<compile_context>
chip_gen: v7x
topology: tpu7x:2x2x1
jax: 0.10.0
libtpu: 0.0.40
codegen_flags: <defaults>
</compile_context>

<pallas_src>
import math

import jax
import jax.numpy as jnp
from jax.experimental import pallas as pl
from jax.experimental.pallas import tpu as pltpu  # noqa: F401  (not needed for this tiny fused kernel)

# ---- model hyper-params (consistent with the PyTorch module) ----
D_MODEL = 32
NUM_HEADS = 4
NUM_LAYERS = 2
D_FF = 64
SRC_VOCAB = 16
TGT_VOCAB = 16
MAX_SEQ = 16
EPS = 1e-5                      # nn.LayerNorm default
D_K = D_MODEL // NUM_HEADS
V_PAD = 128                     # lane-dense logits slab (unmasked stores)
NEG_INF = -1e30                 # finite "masked" fill (no -inf NaN hazard)

# row layout of the consolidated per-layer weight slabs
ENC_MATS = 4    # [Wq*scale, Wk, Wv, Wo]
DEC_MATS = 8    # [Wq_s*scale, Wk_s, Wv_s, Wo_s, Wq_c*scale, Wk_c, Wv_c, Wo_c]
ENC_VECS = 9    # [bq*scale, bk, bv, bo, n1g, n1b, n2g, n2b, ff_b2]
DEC_VECS = 15   # [bq_s, bk_s, bv_s, bo_s, n1g, n1b, bq_c, bk_c, bv_c, bo_c,
                #  n2g, n2b, ff_b2, n3g, n3b]


# ------------------------- in-kernel helpers -------------------------

def _layernorm(z, g, b):
    # LayerNorm over last dim, biased variance (matches torch.nn.LayerNorm)
    mean = jnp.mean(z, axis=-1, keepdims=True)
    var = jnp.mean((z - mean) ** 2, axis=-1, keepdims=True)
    return (z - mean) * jax.lax.rsqrt(var + EPS) * g + b


def _packed_mha(q_in_rep, kv_in_rep, wq, bq, wk, bk, wv, bv, wo, bo,
                m_rows, score_bias, unpack):
    """Batch/head-packed multi-head attention (single pass per module).

    q_in_rep  : (B*H*Sq, D)  query-side input, rows replicated per head
    kv_in_rep : (B*H*Sk, D)  key/value-side input, rows replicated per head
    m_rows    : (B*H*Sq, D)  per-row 0/1 head-band mask
    score_bias: (B*H*Sq, B*H*Sk) additive mask: 0 keep / -1e30 drop, encoding
                the block-diagonal (batch, head) structure + pad/causal masks
    unpack    : (B*Sq, B*H*Sq) = R.T, sums head bands back into (b, s) rows
    returns   : (B*Sq, D)
    1/sqrt(d_k) is pre-folded into wq / bq.
    """
    q = (jnp.dot(q_in_rep, wq, preferred_element_type=jnp.float32) + bq) * m_rows
    k = jnp.dot(kv_in_rep, wk, preferred_element_type=jnp.float32) + bk
    v = jnp.dot(kv_in_rep, wv, preferred_element_type=jnp.float32) + bv

    # q is zero outside its row's head band, so contracting against un-masked k
    # picks up exactly that head's channels; mismatched (batch, head) pairs are
    # removed by the additive bias.
    s = jax.lax.dot_general(q, k, (((1,), (1,)), ((), ())),
                            preferred_element_type=jnp.float32) + score_bias
    s = s - jnp.max(s, axis=-1, keepdims=True)
    p = jnp.exp(s)
    p = p / jnp.sum(p, axis=-1, keepdims=True)

    # PV in packed row layout, re-masked to the row's head band; the unpack
    # matmul (idle MXU) then sums the bands back into (batch, seq) rows, which
    # is exactly combine_heads — no lane-axis concatenation.
    o = jnp.dot(p, v, preferred_element_type=jnp.float32) * m_rows
    attn = jnp.dot(unpack, o, preferred_element_type=jnp.float32)
    return jnp.dot(attn, wo, preferred_element_type=jnp.float32) + bo


# ------------------------- the single fused kernel -------------------------

def _fused_transformer_kernel(
    # activations
    src_x_ref, tgt_x_ref,
    # additive score masks (block-diagonal + pad / causal), precomputed
    bias_enc_ref, bias_dec_ref, bias_cross_ref,
    # packing constants: replication matrices, their transposes, head-band masks
    r_src_ref, r_tgt_ref, u_src_ref, u_tgt_ref, m_src_ref, m_tgt_ref,
    # encoder weights (consolidated)
    e_w_ref, e_ff1_ref, e_ff2_ref, e_vec_ref, e_vecff_ref,
    # decoder weights (consolidated)
    d_w_ref, d_ff1_ref, d_ff2_ref, d_vec_ref, d_vecff_ref,
    # final projection (lane-padded to V_PAD)
    fc_w_ref, fc_b_ref,
    # output
    o_ref,
):
    r_src = r_src_ref[...]
    r_tgt = r_tgt_ref[...]
    u_src = u_src_ref[...]
    u_tgt = u_tgt_ref[...]
    m_src = m_src_ref[...]
    m_tgt = m_tgt_ref[...]
    bias_enc = bias_enc_ref[...]
    bias_dec = bias_dec_ref[...]
    bias_cross = bias_cross_ref[...]

    def vec(ref, idx):
        # static sublane slice of a consolidated (rows, width) slab -> (1, width)
        return ref[idx:idx + 1, :]

    # ----------------- encoder -----------------
    x = src_x_ref[...]                               # (B*Ss, D)
    for l in range(NUM_LAYERS):
        w0 = ENC_MATS * l
        v0 = ENC_VECS * l
        x_rep = jnp.dot(r_src, x, preferred_element_type=jnp.float32)
        attn = _packed_mha(
            x_rep, x_rep,
            e_w_ref[w0 + 0], vec(e_vec_ref, v0 + 0),
            e_w_ref[w0 + 1], vec(e_vec_ref, v0 + 1),
            e_w_ref[w0 + 2], vec(e_vec_ref, v0 + 2),
            e_w_ref[w0 + 3], vec(e_vec_ref, v0 + 3),
            m_src, bias_enc, u_src)
        x = _layernorm(x + attn, vec(e_vec_ref, v0 + 4), vec(e_vec_ref, v0 + 5))
        h = jnp.maximum(
            jnp.dot(x, e_ff1_ref[l], preferred_element_type=jnp.float32)
            + e_vecff_ref[l:l + 1, :], 0.0)
        ff = (jnp.dot(h, e_ff2_ref[l], preferred_element_type=jnp.float32)
              + vec(e_vec_ref, v0 + 8))
        x = _layernorm(x + ff, vec(e_vec_ref, v0 + 6), vec(e_vec_ref, v0 + 7))
    enc_out = x                                      # (B*Ss, D)

    # cross-attention K/V input is layer-independent: replicate once
    enc_rep = jnp.dot(r_src, enc_out, preferred_element_type=jnp.float32)

    # ----------------- decoder -----------------
    y = tgt_x_ref[...]                               # (B*St, D)
    for l in range(NUM_LAYERS):
        w0 = DEC_MATS * l
        v0 = DEC_VECS * l

        # masked self-attention
        y_rep = jnp.dot(r_tgt, y, preferred_element_type=jnp.float32)
        sa = _packed_mha(
            y_rep, y_rep,
            d_w_ref[w0 + 0], vec(d_vec_ref, v0 + 0),
            d_w_ref[w0 + 1], vec(d_vec_ref, v0 + 1),
            d_w_ref[w0 + 2], vec(d_vec_ref, v0 + 2),
            d_w_ref[w0 + 3], vec(d_vec_ref, v0 + 3),
            m_tgt, bias_dec, u_tgt)
        y = _layernorm(y + sa, vec(d_vec_ref, v0 + 4), vec(d_vec_ref, v0 + 5))

        # cross-attention (queries from decoder, keys/values from encoder)
        y_rep = jnp.dot(r_tgt, y, preferred_element_type=jnp.float32)
        ca = _packed_mha(
            y_rep, enc_rep,
            d_w_ref[w0 + 4], vec(d_vec_ref, v0 + 6),
            d_w_ref[w0 + 5], vec(d_vec_ref, v0 + 7),
            d_w_ref[w0 + 6], vec(d_vec_ref, v0 + 8),
            d_w_ref[w0 + 7], vec(d_vec_ref, v0 + 9),
            m_tgt, bias_cross, u_tgt)
        y = _layernorm(y + ca, vec(d_vec_ref, v0 + 10), vec(d_vec_ref, v0 + 11))

        # position-wise feed-forward
        h = jnp.maximum(
            jnp.dot(y, d_ff1_ref[l], preferred_element_type=jnp.float32)
            + d_vecff_ref[l:l + 1, :], 0.0)
        ff = (jnp.dot(h, d_ff2_ref[l], preferred_element_type=jnp.float32)
              + vec(d_vec_ref, v0 + 12))
        y = _layernorm(y + ff, vec(d_vec_ref, v0 + 13), vec(d_vec_ref, v0 + 14))

    # -------- final projection into a lane-dense (B*St, V_PAD) slab --------
    o_ref[...] = (jnp.dot(y, fc_w_ref[...], preferred_element_type=jnp.float32)
                  + fc_b_ref[...])


# ------------------------- wrapper-side constants -------------------------

def make_positional_encoding(max_len, d_model):
    position = jnp.arange(max_len, dtype=jnp.float32)[:, None]
    div_term = jnp.exp(jnp.arange(0, d_model, 2, dtype=jnp.float32)
                       * (-math.log(10000.0) / d_model))
    pe = jnp.zeros((max_len, d_model), jnp.float32)
    pe = pe.at[:, 0::2].set(jnp.sin(position * div_term))
    pe = pe.at[:, 1::2].set(jnp.cos(position * div_term))
    return pe


def _rep_matrix(batch, seq):
    """(B*H*S, B*S) 0/1 matrix: row (b, h, s) copies input row (b, s)."""
    r = jnp.arange(batch * NUM_HEADS * seq)
    b_r = r // (NUM_HEADS * seq)
    s_r = r % seq
    c = jnp.arange(batch * seq)
    b_c = c // seq
    s_c = c % seq
    return ((b_r[:, None] == b_c[None, :])
            & (s_r[:, None] == s_c[None, :])).astype(jnp.float32)


def _head_band_mask(batch, seq):
    """(B*H*S, D) 0/1 mask selecting the row's own head band of channels."""
    r = jnp.arange(batch * NUM_HEADS * seq)
    h_r = (r // seq) % NUM_HEADS
    d = jnp.arange(D_MODEL)
    return (h_r[:, None] == (d // D_K)[None, :]).astype(jnp.float32)


def _score_bias(batch, s_q, s_k, key_valid, causal):
    """(B*H*s_q, B*H*s_k) additive mask: 0 where attention is allowed
    (same batch & head block, key not padding, causal if requested), else -1e30."""
    rq = jnp.arange(batch * NUM_HEADS * s_q)
    rk = jnp.arange(batch * NUM_HEADS * s_k)
    same_block = (rq // s_q)[:, None] == (rk // s_k)[None, :]
    kv = jnp.repeat(key_valid, NUM_HEADS, axis=0).reshape(-1)    # (B*H*s_k,)
    ok = same_block & kv[None, :]
    if causal:
        ok = ok & ((rq % s_q)[:, None] >= (rk % s_k)[None, :])
    return jnp.where(ok, 0.0, NEG_INF).astype(jnp.float32)


# ------------------------- forward wrapper -------------------------

def transformer_forward(params, src, tgt):
    B, Ss = src.shape
    _, St = tgt.shape
    D = D_MODEL

    src_valid = src != 0
    tgt_valid = tgt != 0

    # additive score masks (tiny, plain XLA, built once per call)
    bias_enc = _score_bias(B, Ss, Ss, src_valid, causal=False)
    bias_dec = _score_bias(B, St, St, tgt_valid, causal=True)
    bias_cross = _score_bias(B, St, Ss, src_valid, causal=False)

    # packing constants (shape-only, tiny)
    r_src = _rep_matrix(B, Ss)
    r_tgt = _rep_matrix(B, St)
    u_src = r_src.T
    u_tgt = r_tgt.T
    m_src = _head_band_mask(B, Ss)
    m_tgt = _head_band_mask(B, St)

    # embedding lookup + positional encoding (gather + add fuse in XLA under jit)
    pe = params["pe"]
    src_x = (jnp.take(params["enc_emb"], src, axis=0) + pe[None, :Ss]).reshape(B * Ss, D)
    tgt_x = (jnp.take(params["dec_emb"], tgt, axis=0) + pe[None, :St]).reshape(B * St, D)

    logits_pad = pl.pallas_call(
        _fused_transformer_kernel,
        out_shape=jax.ShapeDtypeStruct((B * St, V_PAD), jnp.float32),
    )(
        src_x, tgt_x,
        bias_enc, bias_dec, bias_cross,
        r_src, r_tgt, u_src, u_tgt, m_src, m_tgt,
        params["e_w"], params["e_ff1"], params["e_ff2"],
        params["e_vec"], params["e_vecff"],
        params["d_w"], params["d_ff1"], params["d_ff2"],
        params["d_vec"], params["d_vecff"],
        params["fc_w_pad"], params["fc_b_pad"],
    )
    return logits_pad[:, :TGT_VOCAB].reshape(B, St, TGT_VOCAB)


# ------------------------- deterministic param init -------------------------

def _init_linear(key, d_in, d_out):
    k1, k2 = jax.random.split(key)
    bound = 1.0 / math.sqrt(d_in)
    w = jax.random.uniform(k1, (d_in, d_out), jnp.float32, -bound, bound)
    b = jax.random.uniform(k2, (d_out,), jnp.float32, -bound, bound)
    return w, b


def init_params(key):
    scale = 1.0 / math.sqrt(D_K)          # folded into Wq / bq
    keys = iter(jax.random.split(key, 3 + NUM_LAYERS * 16))

    enc_emb = jax.random.normal(next(keys), (SRC_VOCAB, D_MODEL), jnp.float32)
    dec_emb = jax.random.normal(next(keys), (TGT_VOCAB, D_MODEL), jnp.float32)

    fc_w, fc_b = _init_linear(next(keys), D_MODEL, TGT_VOCAB)
    # zero-pad final projection to 128 lanes (unmasked stores in-kernel)
    fc_w_pad = jnp.zeros((D_MODEL, V_PAD), jnp.float32).at[:, :TGT_VOCAB].set(fc_w)
    fc_b_pad = jnp.zeros((1, V_PAD), jnp.float32).at[0, :TGT_VOCAB].set(fc_b)

    ones = jnp.ones((D_MODEL,), jnp.float32)
    zeros = jnp.zeros((D_MODEL,), jnp.float32)

    # ---- encoder (consolidated slabs) ----
    e_w, e_vec, e_ff1, e_ff2, e_vecff = [], [], [], [], []
    for _ in range(NUM_LAYERS):
        wq, bq = _init_linear(next(keys), D_MODEL, D_MODEL)
        wk, bk = _init_linear(next(keys), D_MODEL, D_MODEL)
        wv, bv = _init_linear(next(keys), D_MODEL, D_MODEL)
        wo, bo = _init_linear(next(keys), D_MODEL, D_MODEL)
        w1, b1 = _init_linear(next(keys), D_MODEL, D_FF)
        w2, b2 = _init_linear(next(keys), D_FF, D_MODEL)
        e_w += [wq * scale, wk, wv, wo]
        e_vec += [bq * scale, bk, bv, bo, ones, zeros, ones, zeros, b2]
        e_ff1.append(w1)
        e_ff2.append(w2)
        e_vecff.append(b1)

    # ---- decoder (consolidated slabs) ----
    d_w, d_vec, d_ff1, d_ff2, d_vecff = [], [], [], [], []
    for _ in range(NUM_LAYERS):
        wq, bq = _init_linear(next(keys), D_MODEL, D_MODEL)
        wk, bk = _init_linear(next(keys), D_MODEL, D_MODEL)
        wv, bv = _init_linear(next(keys), D_MODEL, D_MODEL)
        wo, bo = _init_linear(next(keys), D_MODEL, D_MODEL)
        cq, cbq = _init_linear(next(keys), D_MODEL, D_MODEL)
        ck, cbk = _init_linear(next(keys), D_MODEL, D_MODEL)
        cv, cbv = _init_linear(next(keys), D_MODEL, D_MODEL)
        co, cbo = _init_linear(next(keys), D_MODEL, D_MODEL)
        w1, b1 = _init_linear(next(keys), D_MODEL, D_FF)
        w2, b2 = _init_linear(next(keys), D_FF, D_MODEL)
        d_w += [wq * scale, wk, wv, wo, cq * scale, ck, cv, co]
        d_vec += [bq * scale, bk, bv, bo, ones, zeros,
                  cbq * scale, cbk, cbv, cbo, ones, zeros, b2, ones, zeros]
        d_ff1.append(w1)
        d_ff2.append(w2)
        d_vecff.append(b1)

    return dict(
        enc_emb=enc_emb, dec_emb=dec_emb,
        pe=make_positional_encoding(MAX_SEQ, D_MODEL),
        e_w=jnp.stack(e_w), e_vec=jnp.stack(e_vec),
        e_ff1=jnp.stack(e_ff1), e_ff2=jnp.stack(e_ff2), e_vecff=jnp.stack(e_vecff),
        d_w=jnp.stack(d_w), d_vec=jnp.stack(d_vec),
        d_ff1=jnp.stack(d_ff1), d_ff2=jnp.stack(d_ff2), d_vecff=jnp.stack(d_vecff),
        fc_w_pad=fc_w_pad, fc_b_pad=fc_b_pad,
    )


# ------------------------- main -------------------------

if __name__ == "__main__":
    key = jax.random.PRNGKey(0)
    kp, ks, kt = jax.random.split(key, 3)

    params = init_params(kp)

    B, S_SRC, S_TGT = 2, 8, 8
    # tokens in [1, vocab) so there are no fully-padded query rows
    src = jax.random.randint(ks, (B, S_SRC), 1, SRC_VOCAB, dtype=jnp.int32)
    tgt = jax.random.randint(kt, (B, S_TGT), 1, TGT_VOCAB, dtype=jnp.int32)

    out = jax.jit(transformer_forward)(params, src, tgt)
    out = jax.block_until_ready(out)
    assert out.shape == (B, S_TGT, TGT_VOCAB)
    assert bool(jnp.all(jnp.isfinite(out)))
    print("KERNEL_OK")
</pallas_src>

<mosaic_0001>
module attributes {stable_mosaic.version = 11 : i64} {
  func.func @_fused_transformer_kernel(%arg0: memref<16x32xf32, #tpu.memory_space<vmem>>, %arg1: memref<16x32xf32, #tpu.memory_space<vmem>>, %arg2: memref<64x64xf32, #tpu.memory_space<vmem>>, %arg3: memref<64x64xf32, #tpu.memory_space<vmem>>, %arg4: memref<64x64xf32, #tpu.memory_space<vmem>>, %arg5: memref<64x16xf32, #tpu.memory_space<vmem>>, %arg6: memref<64x16xf32, #tpu.memory_space<vmem>>, %arg7: memref<16x64xf32, #tpu.memory_space<vmem>>, %arg8: memref<16x64xf32, #tpu.memory_space<vmem>>, %arg9: memref<64x32xf32, #tpu.memory_space<vmem>>, %arg10: memref<64x32xf32, #tpu.memory_space<vmem>>, %arg11: memref<8x32x32xf32, #tpu.memory_space<vmem>>, %arg12: memref<2x32x64xf32, #tpu.memory_space<vmem>>, %arg13: memref<2x64x32xf32, #tpu.memory_space<vmem>>, %arg14: memref<18x32xf32, #tpu.memory_space<vmem>>, %arg15: memref<2x64xf32, #tpu.memory_space<vmem>>, %arg16: memref<16x32x32xf32, #tpu.memory_space<vmem>>, %arg17: memref<2x32x64xf32, #tpu.memory_space<vmem>>, %arg18: memref<2x64x32xf32, #tpu.memory_space<vmem>>, %arg19: memref<30x32xf32, #tpu.memory_space<vmem>>, %arg20: memref<2x64xf32, #tpu.memory_space<vmem>>, %arg21: memref<32x128xf32, #tpu.memory_space<vmem>>, %arg22: memref<1x128xf32, #tpu.memory_space<vmem>>, %arg23: memref<16x128xf32, #tpu.memory_space<vmem>>) attributes {dimension_semantics = [], scalar_prefetch = 0 : i64, scratch_operands = 0 : i64, tpu.core_type = #tpu.core_type<tc>} {
    %c0 = arith.constant 0 : index
    %c0_0 = arith.constant 0 : index
    %0 = vector.load %arg5[%c0, %c0_0] : memref<64x16xf32, #tpu.memory_space<vmem>>, vector<64x16xf32>
    %c0_1 = arith.constant 0 : index
    %c0_2 = arith.constant 0 : index
    %1 = vector.load %arg6[%c0_1, %c0_2] : memref<64x16xf32, #tpu.memory_space<vmem>>, vector<64x16xf32>
    %c0_3 = arith.constant 0 : index
    %c0_4 = arith.constant 0 : index
    %2 = vector.load %arg7[%c0_3, %c0_4] : memref<16x64xf32, #tpu.memory_space<vmem>>, vector<16x64xf32>
    %c0_5 = arith.constant 0 : index
    %c0_6 = arith.constant 0 : index
    %3 = vector.load %arg8[%c0_5, %c0_6] : memref<16x64xf32, #tpu.memory_space<vmem>>, vector<16x64xf32>
    %c0_7 = arith.constant 0 : index
    %c0_8 = arith.constant 0 : index
    %4 = vector.load %arg9[%c0_7, %c0_8] : memref<64x32xf32, #tpu.memory_space<vmem>>, vector<64x32xf32>
    %c0_9 = arith.constant 0 : index
    %c0_10 = arith.constant 0 : index
    %5 = vector.load %arg10[%c0_9, %c0_10] : memref<64x32xf32, #tpu.memory_space<vmem>>, vector<64x32xf32>
    %c0_11 = arith.constant 0 : index
    %c0_12 = arith.constant 0 : index
    %6 = vector.load %arg2[%c0_11, %c0_12] : memref<64x64xf32, #tpu.memory_space<vmem>>, vector<64x64xf32>
    %c0_13 = arith.constant 0 : index
    %c0_14 = arith.constant 0 : index
    %7 = vector.load %arg3[%c0_13, %c0_14] : memref<64x64xf32, #tpu.memory_space<vmem>>, vector<64x64xf32>
    %c0_15 = arith.constant 0 : index
    %c0_16 = arith.constant 0 : index
    %8 = vector.load %arg4[%c0_15, %c0_16] : memref<64x64xf32, #tpu.memory_space<vmem>>, vector<64x64xf32>
    %c0_17 = arith.constant 0 : index
    %c0_18 = arith.constant 0 : index
    %9 = vector.load %arg0[%c0_17, %c0_18] : memref<16x32xf32, #tpu.memory_space<vmem>>, vector<16x32xf32>
    %cst = arith.constant dense<0.000000e+00> : vector<64x32xf32>
    %10 = tpu.matmul %0, %9, %cst {dimension_numbers = #tpu.dot_dimension_numbers<[1], [0], [0], [1], [0, 0, 1, 1], [], []>} : vector<64x16xf32>, vector<16x32xf32>, vector<64x32xf32> -> vector<64x32xf32>
    %c0_19 = arith.constant 0 : index
    %c0_20 = arith.constant 0 : index
    %c0_21 = arith.constant 0 : index
    %11 = vector.load %arg11[%c0_19, %c0_20, %c0_21] : memref<8x32x32xf32, #tpu.memory_space<vmem>>, vector<1x32x32xf32>
    %12 = vector.shape_cast %11 : vector<1x32x32xf32> to vector<32x32xf32>
    %c0_22 = arith.constant 0 : index
    %c0_23 = arith.constant 0 : index
    %13 = vector.load %arg14[%c0_22, %c0_23] : memref<18x32xf32, #tpu.memory_space<vmem>>, vector<1x32xf32>
    %c1 = arith.constant 1 : index
    %c0_24 = arith.constant 0 : index
    %c0_25 = arith.constant 0 : index
    %14 = vector.load %arg11[%c1, %c0_24, %c0_25] : memref<8x32x32xf32, #tpu.memory_space<vmem>>, vector<1x32x32xf32>
    %15 = vector.shape_cast %14 : vector<1x32x32xf32> to vector<32x32xf32>
    %c1_26 = arith.constant 1 : index
    %c0_27 = arith.constant 0 : index
    %16 = vector.load %arg14[%c1_26, %c0_27] : memref<18x32xf32, #tpu.memory_space<vmem>>, vector<1x32xf32>
    %c2 = arith.constant 2 : index
    %c0_28 = arith.constant 0 : index
    %c0_29 = arith.constant 0 : index
    %17 = vector.load %arg11[%c2, %c0_28, %c0_29] : memref<8x32x32xf32, #tpu.memory_space<vmem>>, vector<1x32x32xf32>
    %18 = vector.shape_cast %17 : vector<1x32x32xf32> to vector<32x32xf32>
    %c2_30 = arith.constant 2 : index
    %c0_31 = arith.constant 0 : index
    %19 = vector.load %arg14[%c2_30, %c0_31] : memref<18x32xf32, #tpu.memory_space<vmem>>, vector<1x32xf32>
    %c3 = arith.constant 3 : index
    %c0_32 = arith.constant 0 : index
    %c0_33 = arith.constant 0 : index
    %20 = vector.load %arg11[%c3, %c0_32, %c0_33] : memref<8x32x32xf32, #tpu.memory_space<vmem>>, vector<1x32x32xf32>
    %21 = vector.shape_cast %20 : vector<1x32x32xf32> to vector<32x32xf32>
    %c3_34 = arith.constant 3 : index
    %c0_35 = arith.constant 0 : index
    %22 = vector.load %arg14[%c3_34, %c0_35] : memref<18x32xf32, #tpu.memory_space<vmem>>, vector<1x32xf32>
    %cst_36 = arith.constant dense<0.000000e+00> : vector<64x32xf32>
    %23 = tpu.matmul %10, %12, %cst_36 {dimension_numbers = #tpu.dot_dimension_numbers<[1], [0], [0], [1], [0, 0, 1, 1], [], []>} : vector<64x32xf32>, vector<32x32xf32>, vector<64x32xf32> -> vector<64x32xf32>
    %24 = vector.broadcast %13 : vector<1x32xf32> to vector<64x32xf32>
    %25 = arith.addf %23, %24 : vector<64x32xf32>
    %26 = arith.mulf %25, %4 : vector<64x32xf32>
    %cst_37 = arith.constant dense<0.000000e+00> : vector<64x32xf32>
    %27 = tpu.matmul %10, %15, %cst_37 {dimension_numbers = #tpu.dot_dimension_numbers<[1], [0], [0], [1], [0, 0, 1, 1], [], []>} : vector<64x32xf32>, vector<32x32xf32>, vector<64x32xf32> -> vector<64x32xf32>
    %28 = vector.broadcast %16 : vector<1x32xf32> to vector<64x32xf32>
    %29 = arith.addf %27, %28 : vector<64x32xf32>
    %cst_38 = arith.constant dense<0.000000e+00> : vector<64x32xf32>
    %30 = tpu.matmul %10, %18, %cst_38 {dimension_numbers = #tpu.dot_dimension_numbers<[1], [0], [0], [1], [0, 0, 1, 1], [], []>} : vector<64x32xf32>, vector<32x32xf32>, vector<64x32xf32> -> vector<64x32xf32>
    %31 = vector.broadcast %19 : vector<1x32xf32> to vector<64x32xf32>
    %32 = arith.addf %30, %31 : vector<64x32xf32>
    %cst_39 = arith.constant dense<0.000000e+00> : vector<64x64xf32>
    %33 = tpu.matmul %26, %29, %cst_39 {dimension_numbers = #tpu.dot_dimension_numbers<[1], [1], [0], [0], [0, 0, 1, 0], [], []>} : vector<64x32xf32>, vector<64x32xf32>, vector<64x64xf32> -> vector<64x64xf32>
    %34 = arith.addf %33, %6 : vector<64x64xf32>
    %cst_40 = arith.constant dense<0xFF800000> : vector<64xf32>
    %35 = vector.multi_reduction <maximumf>, %34, %cst_40 [1] : vector<64x64xf32> to vector<64xf32>
    %36 = vector.shape_cast %35 : vector<64xf32> to vector<64x1xf32>
    %37 = vector.broadcast %36 : vector<64x1xf32> to vector<64x64xf32>
    %38 = arith.subf %34, %37 : vector<64x64xf32>
    %39 = math.exp %38 : vector<64x64xf32>
    %cst_41 = arith.constant dense<0.000000e+00> : vector<64xf32>
    %40 = vector.multi_reduction <add>, %39, %cst_41 [1] : vector<64x64xf32> to vector<64xf32>
    %41 = vector.shape_cast %40 : vector<64xf32> to vector<64x1xf32>
    %42 = vector.broadcast %41 : vector<64x1xf32> to vector<64x64xf32>
    %43 = arith.divf %39, %42 : vector<64x64xf32>
    %cst_42 = arith.constant dense<0.000000e+00> : vector<64x32xf32>
    %44 = tpu.matmul %43, %32, %cst_42 {dimension_numbers = #tpu.dot_dimension_numbers<[1], [0], [0], [1], [0, 0, 1, 1], [], []>} : vector<64x64xf32>, vector<64x32xf32>, vector<64x32xf32> -> vector<64x32xf32>
    %45 = arith.mulf %44, %4 : vector<64x32xf32>
    %cst_43 = arith.constant dense<0.000000e+00> : vector<16x32xf32>
    %46 = tpu.matmul %2, %45, %cst_43 {dimension_numbers = #tpu.dot_dimension_numbers<[1], [0], [0], [1], [0, 0, 1, 1], [], []>} : vector<16x64xf32>, vector<64x32xf32>, vector<16x32xf32> -> vector<16x32xf32>
    %cst_44 = arith.constant dense<0.000000e+00> : vector<16x32xf32>
    %47 = tpu.matmul %46, %21, %cst_44 {dimension_numbers = #tpu.dot_dimension_numbers<[1], [0], [0], [1], [0, 0, 1, 1], [], []>} : vector<16x32xf32>, vector<32x32xf32>, vector<16x32xf32> -> vector<16x32xf32>
    %48 = vector.broadcast %22 : vector<1x32xf32> to vector<16x32xf32>
    %49 = arith.addf %47, %48 : vector<16x32xf32>
    %50 = arith.addf %9, %49 : vector<16x32xf32>
    %c4 = arith.constant 4 : index
    %c0_45 = arith.constant 0 : index
    %51 = vector.load %arg14[%c4, %c0_45] : memref<18x32xf32, #tpu.memory_space<vmem>>, vector<1x32xf32>
    %c5 = arith.constant 5 : index
    %c0_46 = arith.constant 0 : index
    %52 = vector.load %arg14[%c5, %c0_46] : memref<18x32xf32, #tpu.memory_space<vmem>>, vector<1x32xf32>
    %cst_47 = arith.constant dense<0.000000e+00> : vector<16xf32>
    %53 = vector.multi_reduction <add>, %50, %cst_47 [1] : vector<16x32xf32> to vector<16xf32>
    %54 = vector.shape_cast %53 : vector<16xf32> to vector<16x1xf32>
    %cst_48 = arith.constant 3.200000e+01 : f32
    %55 = vector.broadcast %cst_48 : f32 to vector<16x1xf32>
    %56 = arith.divf %54, %55 : vector<16x1xf32>
    %57 = vector.broadcast %56 : vector<16x1xf32> to vector<16x32xf32>
    %58 = arith.subf %50, %57 : vector<16x32xf32>
    %59 = arith.mulf %58, %58 : vector<16x32xf32>
    %cst_49 = arith.constant dense<0.000000e+00> : vector<16xf32>
    %60 = vector.multi_reduction <add>, %59, %cst_49 [1] : vector<16x32xf32> to vector<16xf32>
    %61 = vector.shape_cast %60 : vector<16xf32> to vector<16x1xf32>
    %cst_50 = arith.constant 3.200000e+01 : f32
    %62 = vector.broadcast %cst_50 : f32 to vector<16x1xf32>
    %63 = arith.divf %61, %62 : vector<16x1xf32>
    %64 = vector.broadcast %56 : vector<16x1xf32> to vector<16x32xf32>
    %65 = arith.subf %50, %64 : vector<16x32xf32>
    %cst_51 = arith.constant 9.99999974E-6 : f32
    %66 = vector.broadcast %cst_51 : f32 to vector<16x1xf32>
    %67 = arith.addf %63, %66 : vector<16x1xf32>
    %68 = math.rsqrt %67 : vector<16x1xf32>
    %69 = vector.broadcast %68 : vector<16x1xf32> to vector<16x32xf32>
    %70 = arith.mulf %65, %69 : vector<16x32xf32>
    %71 = vector.broadcast %51 : vector<1x32xf32> to vector<16x32xf32>
    %72 = arith.mulf %70, %71 : vector<16x32xf32>
    %73 = vector.broadcast %52 : vector<1x32xf32> to vector<16x32xf32>
    %74 = arith.addf %72, %73 : vector<16x32xf32>
    %c0_52 = arith.constant 0 : index
    %c0_53 = arith.constant 0 : index
    %c0_54 = arith.constant 0 : index
    %75 = vector.load %arg12[%c0_52, %c0_53, %c0_54] : memref<2x32x64xf32, #tpu.memory_space<vmem>>, vector<1x32x64xf32>
    %76 = vector.shape_cast %75 : vector<1x32x64xf32> to vector<32x64xf32>
    %cst_55 = arith.constant dense<0.000000e+00> : vector<16x64xf32>
    %77 = tpu.matmul %74, %76, %cst_55 {dimension_numbers = #tpu.dot_dimension_numbers<[1], [0], [0], [1], [0, 0, 1, 1], [], []>} : vector<16x32xf32>, vector<32x64xf32>, vector<16x64xf32> -> vector<16x64xf32>
    %c0_56 = arith.constant 0 : index
    %c0_57 = arith.constant 0 : index
    %78 = vector.load %arg15[%c0_56, %c0_57] : memref<2x64xf32, #tpu.memory_space<vmem>>, vector<1x64xf32>
    %79 = vector.broadcast %78 : vector<1x64xf32> to vector<16x64xf32>
    %80 = arith.addf %77, %79 : vector<16x64xf32>
    %cst_58 = arith.constant 0.000000e+00 : f32
    %81 = vector.broadcast %cst_58 : f32 to vector<16x64xf32>
    %82 = arith.maximumf %80, %81 : vector<16x64xf32>
    %c0_59 = arith.constant 0 : index
    %c0_60 = arith.constant 0 : index
    %c0_61 = arith.constant 0 : index
    %83 = vector.load %arg13[%c0_59, %c0_60, %c0_61] : memref<2x64x32xf32, #tpu.memory_space<vmem>>, vector<1x64x32xf32>
    %84 = vector.shape_cast %83 : vector<1x64x32xf32> to vector<64x32xf32>
    %cst_62 = arith.constant dense<0.000000e+00> : vector<16x32xf32>
    %85 = tpu.matmul %82, %84, %cst_62 {dimension_numbers = #tpu.dot_dimension_numbers<[1], [0], [0], [1], [0, 0, 1, 1], [], []>} : vector<16x64xf32>, vector<64x32xf32>, vector<16x32xf32> -> vector<16x32xf32>
    %c8 = arith.constant 8 : index
    %c0_63 = arith.constant 0 : index
    %86 = vector.load %arg14[%c8, %c0_63] : memref<18x32xf32, #tpu.memory_space<vmem>>, vector<1x32xf32>
    %87 = vector.broadcast %86 : vector<1x32xf32> to vector<16x32xf32>
    %88 = arith.addf %85, %87 : vector<16x32xf32>
    %89 = arith.addf %74, %88 : vector<16x32xf32>
    %c6 = arith.constant 6 : index
    %c0_64 = arith.constant 0 : index
    %90 = vector.load %arg14[%c6, %c0_64] : memref<18x32xf32, #tpu.memory_space<vmem>>, vector<1x32xf32>
    %c7 = arith.constant 7 : index
    %c0_65 = arith.constant 0 : index
    %91 = vector.load %arg14[%c7, %c0_65] : memref<18x32xf32, #tpu.memory_space<vmem>>, vector<1x32xf32>
    %cst_66 = arith.constant dense<0.000000e+00> : vector<16xf32>
    %92 = vector.multi_reduction <add>, %89, %cst_66 [1] : vector<16x32xf32> to vector<16xf32>
    %93 = vector.shape_cast %92 : vector<16xf32> to vector<16x1xf32>
    %cst_67 = arith.constant 3.200000e+01 : f32
    %94 = vector.broadcast %cst_67 : f32 to vector<16x1xf32>
    %95 = arith.divf %93, %94 : vector<16x1xf32>
    %96 = vector.broadcast %95 : vector<16x1xf32> to vector<16x32xf32>
    %97 = arith.subf %89, %96 : vector<16x32xf32>
    %98 = arith.mulf %97, %97 : vector<16x32xf32>
    %cst_68 = arith.constant dense<0.000000e+00> : vector<16xf32>
    %99 = vector.multi_reduction <add>, %98, %cst_68 [1] : vector<16x32xf32> to vector<16xf32>
    %100 = vector.shape_cast %99 : vector<16xf32> to vector<16x1xf32>
    %cst_69 = arith.constant 3.200000e+01 : f32
    %101 = vector.broadcast %cst_69 : f32 to vector<16x1xf32>
    %102 = arith.divf %100, %101 : vector<16x1xf32>
    %103 = vector.broadcast %95 : vector<16x1xf32> to vector<16x32xf32>
    %104 = arith.subf %89, %103 : vector<16x32xf32>
    %cst_70 = arith.constant 9.99999974E-6 : f32
    %105 = vector.broadcast %cst_70 : f32 to vector<16x1xf32>
    %106 = arith.addf %102, %105 : vector<16x1xf32>
    %107 = math.rsqrt %106 : vector<16x1xf32>
    %108 = vector.broadcast %107 : vector<16x1xf32> to vector<16x32xf32>
    %109 = arith.mulf %104, %108 : vector<16x32xf32>
    %110 = vector.broadcast %90 : vector<1x32xf32> to vector<16x32xf32>
    %111 = arith.mulf %109, %110 : vector<16x32xf32>
    %112 = vector.broadcast %91 : vector<1x32xf32> to vector<16x32xf32>
    %113 = arith.addf %111, %112 : vector<16x32xf32>
    %cst_71 = arith.constant dense<0.000000e+00> : vector<64x32xf32>
    %114 = tpu.matmul %0, %113, %cst_71 {dimension_numbers = #tpu.dot_dimension_numbers<[1], [0], [0], [1], [0, 0, 1, 1], [], []>} : vector<64x16xf32>, vector<16x32xf32>, vector<64x32xf32> -> vector<64x32xf32>
    %c4_72 = arith.constant 4 : index
    %c0_73 = arith.constant 0 : index
    %c0_74 = arith.constant 0 : index
    %115 = vector.load %arg11[%c4_72, %c0_73, %c0_74] : memref<8x32x32xf32, #tpu.memory_space<vmem>>, vector<1x32x32xf32>
    %116 = vector.shape_cast %115 : vector<1x32x32xf32> to vector<32x32xf32>
    %c9 = arith.constant 9 : index
    %c0_75 = arith.constant 0 : index
    %117 = vector.load %arg14[%c9, %c0_75] : memref<18x32xf32, #tpu.memory_space<vmem>>, vector<1x32xf32>
    %c5_76 = arith.constant 5 : index
    %c0_77 = arith.constant 0 : index
    %c0_78 = arith.constant 0 : index
    %118 = vector.load %arg11[%c5_76, %c0_77, %c0_78] : memref<8x32x32xf32, #tpu.memory_space<vmem>>, vector<1x32x32xf32>
    %119 = vector.shape_cast %118 : vector<1x32x32xf32> to vector<32x32xf32>
    %c10 = arith.constant 10 : index
    %c0_79 = arith.constant 0 : index
    %120 = vector.load %arg14[%c10, %c0_79] : memref<18x32xf32, #tpu.memory_space<vmem>>, vector<1x32xf32>
    %c6_80 = arith.constant 6 : index
    %c0_81 = arith.constant 0 : index
    %c0_82 = arith.constant 0 : index
    %121 = vector.load %arg11[%c6_80, %c0_81, %c0_82] : memref<8x32x32xf32, #tpu.memory_space<vmem>>, vector<1x32x32xf32>
    %122 = vector.shape_cast %121 : vector<1x32x32xf32> to vector<32x32xf32>
    %c11 = arith.constant 11 : index
    %c0_83 = arith.constant 0 : index
    %123 = vector.load %arg14[%c11, %c0_83] : memref<18x32xf32, #tpu.memory_space<vmem>>, vector<1x32xf32>
    %c7_84 = arith.constant 7 : index
    %c0_85 = arith.constant 0 : index
    %c0_86 = arith.constant 0 : index
    %124 = vector.load %arg11[%c7_84, %c0_85, %c0_86] : memref<8x32x32xf32, #tpu.memory_space<vmem>>, vector<1x32x32xf32>
    %125 = vector.shape_cast %124 : vector<1x32x32xf32> to vector<32x32xf32>
    %c12 = arith.constant 12 : index
    %c0_87 = arith.constant 0 : index
    %126 = vector.load %arg14[%c12, %c0_87] : memref<18x32xf32, #tpu.memory_space<vmem>>, vector<1x32xf32>
    %cst_88 = arith.constant dense<0.000000e+00> : vector<64x32xf32>
    %127 = tpu.matmul %114, %116, %cst_88 {dimension_numbers = #tpu.dot_dimension_numbers<[1], [0], [0], [1], [0, 0, 1, 1], [], []>} : vector<64x32xf32>, vector<32x32xf32>, vector<64x32xf32> -> vector<64x32xf32>
    %128 = vector.broadcast %117 : vector<1x32xf32> to vector<64x32xf32>
    %129 = arith.addf %127, %128 : vector<64x32xf32>
    %130 = arith.mulf %129, %4 : vector<64x32xf32>
    %cst_89 = arith.constant dense<0.000000e+00> : vector<64x32xf32>
    %131 = tpu.matmul %114, %119, %cst_89 {dimension_numbers = #tpu.dot_dimension_numbers<[1], [0], [0], [1], [0, 0, 1, 1], [], []>} : vector<64x32xf32>, vector<32x32xf32>, vector<64x32xf32> -> vector<64x32xf32>
    %132 = vector.broadcast %120 : vector<1x32xf32> to vector<64x32xf32>
    %133 = arith.addf %131, %132 : vector<64x32xf32>
    %cst_90 = arith.constant dense<0.000000e+00> : vector<64x32xf32>
    %134 = tpu.matmul %114, %122, %cst_90 {dimension_numbers = #tpu.dot_dimension_numbers<[1], [0], [0], [1], [0, 0, 1, 1], [], []>} : vector<64x32xf32>, vector<32x32xf32>, vector<64x32xf32> -> vector<64x32xf32>
    %135 = vector.broadcast %123 : vector<1x32xf32> to vector<64x32xf32>
    %136 = arith.addf %134, %135 : vector<64x32xf32>
    %cst_91 = arith.constant dense<0.000000e+00> : vector<64x64xf32>
    %137 = tpu.matmul %130, %133, %cst_91 {dimension_numbers = #tpu.dot_dimension_numbers<[1], [1], [0], [0], [0, 0, 1, 0], [], []>} : vector<64x32xf32>, vector<64x32xf32>, vector<64x64xf32> -> vector<64x64xf32>
    %138 = arith.addf %137, %6 : vector<64x64xf32>
    %cst_92 = arith.constant dense<0xFF800000> : vector<64xf32>
    %139 = vector.multi_reduction <maximumf>, %138, %cst_92 [1] : vector<64x64xf32> to vector<64xf32>
    %140 = vector.shape_cast %139 : vector<64xf32> to vector<64x1xf32>
    %141 = vector.broadcast %140 : vector<64x1xf32> to vector<64x64xf32>
    %142 = arith.subf %138, %141 : vector<64x64xf32>
    %143 = math.exp %142 : vector<64x64xf32>
    %cst_93 = arith.constant dense<0.000000e+00> : vector<64xf32>
    %144 = vector.multi_reduction <add>, %143, %cst_93 [1] : vector<64x64xf32> to vector<64xf32>
    %145 = vector.shape_cast %144 : vector<64xf32> to vector<64x1xf32>
    %146 = vector.broadcast %145 : vector<64x1xf32> to vector<64x64xf32>
    %147 = arith.divf %143, %146 : vector<64x64xf32>
    %cst_94 = arith.constant dense<0.000000e+00> : vector<64x32xf32>
    %148 = tpu.matmul %147, %136, %cst_94 {dimension_numbers = #tpu.dot_dimension_numbers<[1], [0], [0], [1], [0, 0, 1, 1], [], []>} : vector<64x64xf32>, vector<64x32xf32>, vector<64x32xf32> -> vector<64x32xf32>
    %149 = arith.mulf %148, %4 : vector<64x32xf32>
    %cst_95 = arith.constant dense<0.000000e+00> : vector<16x32xf32>
    %150 = tpu.matmul %2, %149, %cst_95 {dimension_numbers = #tpu.dot_dimension_numbers<[1], [0], [0], [1], [0, 0, 1, 1], [], []>} : vector<16x64xf32>, vector<64x32xf32>, vector<16x32xf32> -> vector<16x32xf32>
    %cst_96 = arith.constant dense<0.000000e+00> : vector<16x32xf32>
    %151 = tpu.matmul %150, %125, %cst_96 {dimension_numbers = #tpu.dot_dimension_numbers<[1], [0], [0], [1], [0, 0, 1, 1], [], []>} : vector<16x32xf32>, vector<32x32xf32>, vector<16x32xf32> -> vector<16x32xf32>
    %152 = vector.broadcast %126 : vector<1x32xf32> to vector<16x32xf32>
    %153 = arith.addf %151, %152 : vector<16x32xf32>
    %154 = arith.addf %113, %153 : vector<16x32xf32>
    %c13 = arith.constant 13 : index
    %c0_97 = arith.constant 0 : index
    %155 = vector.load %arg14[%c13, %c0_97] : memref<18x32xf32, #tpu.memory_space<vmem>>, vector<1x32xf32>
    %c14 = arith.constant 14 : index
    %c0_98 = arith.constant 0 : index
    %156 = vector.load %arg14[%c14, %c0_98] : memref<18x32xf32, #tpu.memory_space<vmem>>, vector<1x32xf32>
    %cst_99 = arith.constant dense<0.000000e+00> : vector<16xf32>
    %157 = vector.multi_reduction <add>, %154, %cst_99 [1] : vector<16x32xf32> to vector<16xf32>
    %158 = vector.shape_cast %157 : vector<16xf32> to vector<16x1xf32>
    %cst_100 = arith.constant 3.200000e+01 : f32
    %159 = vector.broadcast %cst_100 : f32 to vector<16x1xf32>
    %160 = arith.divf %158, %159 : vector<16x1xf32>
    %161 = vector.broadcast %160 : vector<16x1xf32> to vector<16x32xf32>
    %162 = arith.subf %154, %161 : vector<16x32xf32>
    %163 = arith.mulf %162, %162 : vector<16x32xf32>
    %cst_101 = arith.constant dense<0.000000e+00> : vector<16xf32>
    %164 = vector.multi_reduction <add>, %163, %cst_101 [1] : vector<16x32xf32> to vector<16xf32>
    %165 = vector.shape_cast %164 : vector<16xf32> to vector<16x1xf32>
    %cst_102 = arith.constant 3.200000e+01 : f32
    %166 = vector.broadcast %cst_102 : f32 to vector<16x1xf32>
    %167 = arith.divf %165, %166 : vector<16x1xf32>
    %168 = vector.broadcast %160 : vector<16x1xf32> to vector<16x32xf32>
    %169 = arith.subf %154, %168 : vector<16x32xf32>
    %cst_103 = arith.constant 9.99999974E-6 : f32
    %170 = vector.broadcast %cst_103 : f32 to vector<16x1xf32>
    %171 = arith.addf %167, %170 : vector<16x1xf32>
    %172 = math.rsqrt %171 : vector<16x1xf32>
    %173 = vector.broadcast %172 : vector<16x1xf32> to vector<16x32xf32>
    %174 = arith.mulf %169, %173 : vector<16x32xf32>
    %175 = vector.broadcast %155 : vector<1x32xf32> to vector<16x32xf32>
    %176 = arith.mulf %174, %175 : vector<16x32xf32>
    %177 = vector.broadcast %156 : vector<1x32xf32> to vector<16x32xf32>
    %178 = arith.addf %176, %177 : vector<16x32xf32>
    %c1_104 = arith.constant 1 : index
    %c0_105 = arith.constant 0 : index
    %c0_106 = arith.constant 0 : index
    %179 = vector.load %arg12[%c1_104, %c0_105, %c0_106] : memref<2x32x64xf32, #tpu.memory_space<vmem>>, vector<1x32x64xf32>
    %180 = vector.shape_cast %179 : vector<1x32x64xf32> to vector<32x64xf32>
    %cst_107 = arith.constant dense<0.000000e+00> : vector<16x64xf32>
    %181 = tpu.matmul %178, %180, %cst_107 {dimension_numbers = #tpu.dot_dimension_numbers<[1], [0], [0], [1], [0, 0, 1, 1], [], []>} : vector<16x32xf32>, vector<32x64xf32>, vector<16x64xf32> -> vector<16x64xf32>
    %c1_108 = arith.constant 1 : index
    %c0_109 = arith.constant 0 : index
    %182 = vector.load %arg15[%c1_108, %c0_109] : memref<2x64xf32, #tpu.memory_space<vmem>>, vector<1x64xf32>
    %183 = vector.broadcast %182 : vector<1x64xf32> to vector<16x64xf32>
    %184 = arith.addf %181, %183 : vector<16x64xf32>
    %cst_110 = arith.constant 0.000000e+00 : f32
    %185 = vector.broadcast %cst_110 : f32 to vector<16x64xf32>
    %186 = arith.maximumf %184, %185 : vector<16x64xf32>
    %c1_111 = arith.constant 1 : index
    %c0_112 = arith.constant 0 : index
    %c0_113 = arith.constant 0 : index
    %187 = vector.load %arg13[%c1_111, %c0_112, %c0_113] : memref<2x64x32xf32, #tpu.memory_space<vmem>>, vector<1x64x32xf32>
    %188 = vector.shape_cast %187 : vector<1x64x32xf32> to vector<64x32xf32>
    %cst_114 = arith.constant dense<0.000000e+00> : vector<16x32xf32>
    %189 = tpu.matmul %186, %188, %cst_114 {dimension_numbers = #tpu.dot_dimension_numbers<[1], [0], [0], [1], [0, 0, 1, 1], [], []>} : vector<16x64xf32>, vector<64x32xf32>, vector<16x32xf32> -> vector<16x32xf32>
    %c17 = arith.constant 17 : index
    %c0_115 = arith.constant 0 : index
    %190 = vector.load %arg14[%c17, %c0_115] : memref<18x32xf32, #tpu.memory_space<vmem>>, vector<1x32xf32>
    %191 = vector.broadcast %190 : vector<1x32xf32> to vector<16x32xf32>
    %192 = arith.addf %189, %191 : vector<16x32xf32>
    %193 = arith.addf %178, %192 : vector<16x32xf32>
    %c15 = arith.constant 15 : index
    %c0_116 = arith.constant 0 : index
    %194 = vector.load %arg14[%c15, %c0_116] : memref<18x32xf32, #tpu.memory_space<vmem>>, vector<1x32xf32>
    %c16 = arith.constant 16 : index
    %c0_117 = arith.constant 0 : index
    %195 = vector.load %arg14[%c16, %c0_117] : memref<18x32xf32, #tpu.memory_space<vmem>>, vector<1x32xf32>
    %cst_118 = arith.constant dense<0.000000e+00> : vector<16xf32>
    %196 = vector.multi_reduction <add>, %193, %cst_118 [1] : vector<16x32xf32> to vector<16xf32>
    %197 = vector.shape_cast %196 : vector<16xf32> to vector<16x1xf32>
    %cst_119 = arith.constant 3.200000e+01 : f32
    %198 = vector.broadcast %cst_119 : f32 to vector<16x1xf32>
    %199 = arith.divf %197, %198 : vector<16x1xf32>
    %200 = vector.broadcast %199 : vector<16x1xf32> to vector<16x32xf32>
    %201 = arith.subf %193, %200 : vector<16x32xf32>
    %202 = arith.mulf %201, %201 : vector<16x32xf32>
    %cst_120 = arith.constant dense<0.000000e+00> : vector<16xf32>
    %203 = vector.multi_reduction <add>, %202, %cst_120 [1] : vector<16x32xf32> to vector<16xf32>
    %204 = vector.shape_cast %203 : vector<16xf32> to vector<16x1xf32>
    %cst_121 = arith.constant 3.200000e+01 : f32
    %205 = vector.broadcast %cst_121 : f32 to vector<16x1xf32>
    %206 = arith.divf %204, %205 : vector<16x1xf32>
    %207 = vector.broadcast %199 : vector<16x1xf32> to vector<16x32xf32>
    %208 = arith.subf %193, %207 : vector<16x32xf32>
    %cst_122 = arith.constant 9.99999974E-6 : f32
    %209 = vector.broadcast %cst_122 : f32 to vector<16x1xf32>
    %210 = arith.addf %206, %209 : vector<16x1xf32>
    %211 = math.rsqrt %210 : vector<16x1xf32>
    %212 = vector.broadcast %211 : vector<16x1xf32> to vector<16x32xf32>
    %213 = arith.mulf %208, %212 : vector<16x32xf32>
    %214 = vector.broadcast %194 : vector<1x32xf32> to vector<16x32xf32>
    %215 = arith.mulf %213, %214 : vector<16x32xf32>
    %216 = vector.broadcast %195 : vector<1x32xf32> to vector<16x32xf32>
    %217 = arith.addf %215, %216 : vector<16x32xf32>
    %cst_123 = arith.constant dense<0.000000e+00> : vector<64x32xf32>
    %218 = tpu.matmul %0, %217, %cst_123 {dimension_numbers = #tpu.dot_dimension_numbers<[1], [0], [0], [1], [0, 0, 1, 1], [], []>} : vector<64x16xf32>, vector<16x32xf32>, vector<64x32xf32> -> vector<64x32xf32>
    %c0_124 = arith.constant 0 : index
    %c0_125 = arith.constant 0 : index
    %219 = vector.load %arg1[%c0_124, %c0_125] : memref<16x32xf32, #tpu.memory_space<vmem>>, vector<16x32xf32>
    %cst_126 = arith.constant dense<0.000000e+00> : vector<64x32xf32>
    %220 = tpu.matmul %1, %219, %cst_126 {dimension_numbers = #tpu.dot_dimension_numbers<[1], [0], [0], [1], [0, 0, 1, 1], [], []>} : vector<64x16xf32>, vector<16x32xf32>, vector<64x32xf32> -> vector<64x32xf32>
    %c0_127 = arith.constant 0 : index
    %c0_128 = arith.constant 0 : index
    %c0_129 = arith.constant 0 : index
    %221 = vector.load %arg16[%c0_127, %c0_128, %c0_129] : memref<16x32x32xf32, #tpu.memory_space<vmem>>, vector<1x32x32xf32>
    %222 = vector.shape_cast %221 : vector<1x32x32xf32> to vector<32x32xf32>
    %c0_130 = arith.constant 0 : index
    %c0_131 = arith.constant 0 : index
    %223 = vector.load %arg19[%c0_130, %c0_131] : memref<30x32xf32, #tpu.memory_space<vmem>>, vector<1x32xf32>
    %c1_132 = arith.constant 1 : index
    %c0_133 = arith.constant 0 : index
    %c0_134 = arith.constant 0 : index
    %224 = vector.load %arg16[%c1_132, %c0_133, %c0_134] : memref<16x32x32xf32, #tpu.memory_space<vmem>>, vector<1x32x32xf32>
    %225 = vector.shape_cast %224 : vector<1x32x32xf32> to vector<32x32xf32>
    %c1_135 = arith.constant 1 : index
    %c0_136 = arith.constant 0 : index
    %226 = vector.load %arg19[%c1_135, %c0_136] : memref<30x32xf32, #tpu.memory_space<vmem>>, vector<1x32xf32>
    %c2_137 = arith.constant 2 : index
    %c0_138 = arith.constant 0 : index
    %c0_139 = arith.constant 0 : index
    %227 = vector.load %arg16[%c2_137, %c0_138, %c0_139] : memref<16x32x32xf32, #tpu.memory_space<vmem>>, vector<1x32x32xf32>
    %228 = vector.shape_cast %227 : vector<1x32x32xf32> to vector<32x32xf32>
    %c2_140 = arith.constant 2 : index
    %c0_141 = arith.constant 0 : index
    %229 = vector.load %arg19[%c2_140, %c0_141] : memref<30x32xf32, #tpu.memory_space<vmem>>, vector<1x32xf32>
    %c3_142 = arith.constant 3 : index
    %c0_143 = arith.constant 0 : index
    %c0_144 = arith.constant 0 : index
    %230 = vector.load %arg16[%c3_142, %c0_143, %c0_144] : memref<16x32x32xf32, #tpu.memory_space<vmem>>, vector<1x32x32xf32>
    %231 = vector.shape_cast %230 : vector<1x32x32xf32> to vector<32x32xf32>
    %c3_145 = arith.constant 3 : index
    %c0_146 = arith.constant 0 : index
    %232 = vector.load %arg19[%c3_145, %c0_146] : memref<30x32xf32, #tpu.memory_space<vmem>>, vector<1x32xf32>
    %cst_147 = arith.constant dense<0.000000e+00> : vector<64x32xf32>
    %233 = tpu.matmul %220, %222, %cst_147 {dimension_numbers = #tpu.dot_dimension_numbers<[1], [0], [0], [1], [0, 0, 1, 1], [], []>} : vector<64x32xf32>, vector<32x32xf32>, vector<64x32xf32> -> vector<64x32xf32>
    %234 = vector.broadcast %223 : vector<1x32xf32> to vector<64x32xf32>
    %235 = arith.addf %233, %234 : vector<64x32xf32>
    %236 = arith.mulf %235, %5 : vector<64x32xf32>
    %cst_148 = arith.constant dense<0.000000e+00> : vector<64x32xf32>
    %237 = tpu.matmul %220, %225, %cst_148 {dimension_numbers = #tpu.dot_dimension_numbers<[1], [0], [0], [1], [0, 0, 1, 1], [], []>} : vector<64x32xf32>, vector<32x32xf32>, vector<64x32xf32> -> vector<64x32xf32>
    %238 = vector.broadcast %226 : vector<1x32xf32> to vector<64x32xf32>
    %239 = arith.addf %237, %238 : vector<64x32xf32>
    %cst_149 = arith.constant dense<0.000000e+00> : vector<64x32xf32>
    %240 = tpu.matmul %220, %228, %cst_149 {dimension_numbers = #tpu.dot_dimension_numbers<[1], [0], [0], [1], [0, 0, 1, 1], [], []>} : vector<64x32xf32>, vector<32x32xf32>, vector<64x32xf32> -> vector<64x32xf32>
    %241 = vector.broadcast %229 : vector<1x32xf32> to vector<64x32xf32>
    %242 = arith.addf %240, %241 : vector<64x32xf32>
    %cst_150 = arith.constant dense<0.000000e+00> : vector<64x64xf32>
    %243 = tpu.matmul %236, %239, %cst_150 {dimension_numbers = #tpu.dot_dimension_numbers<[1], [1], [0], [0], [0, 0, 1, 0], [], []>} : vector<64x32xf32>, vector<64x32xf32>, vector<64x64xf32> -> vector<64x64xf32>
    %244 = arith.addf %243, %7 : vector<64x64xf32>
    %cst_151 = arith.constant dense<0xFF800000> : vector<64xf32>
    %245 = vector.multi_reduction <maximumf>, %244, %cst_151 [1] : vector<64x64xf32> to vector<64xf32>
    %246 = vector.shape_cast %245 : vector<64xf32> to vector<64x1xf32>
    %247 = vector.broadcast %246 : vector<64x1xf32> to vector<64x64xf32>
    %248 = arith.subf %244, %247 : vector<64x64xf32>
    %249 = math.exp %248 : vector<64x64xf32>
    %cst_152 = arith.constant dense<0.000000e+00> : vector<64xf32>
    %250 = vector.multi_reduction <add>, %249, %cst_152 [1] : vector<64x64xf32> to vector<64xf32>
    %251 = vector.shape_cast %250 : vector<64xf32> to vector<64x1xf32>
    %252 = vector.broadcast %251 : vector<64x1xf32> to vector<64x64xf32>
    %253 = arith.divf %249, %252 : vector<64x64xf32>
    %cst_153 = arith.constant dense<0.000000e+00> : vector<64x32xf32>
    %254 = tpu.matmul %253, %242, %cst_153 {dimension_numbers = #tpu.dot_dimension_numbers<[1], [0], [0], [1], [0, 0, 1, 1], [], []>} : vector<64x64xf32>, vector<64x32xf32>, vector<64x32xf32> -> vector<64x32xf32>
    %255 = arith.mulf %254, %5 : vector<64x32xf32>
    %cst_154 = arith.constant dense<0.000000e+00> : vector<16x32xf32>
    %256 = tpu.matmul %3, %255, %cst_154 {dimension_numbers = #tpu.dot_dimension_numbers<[1], [0], [0], [1], [0, 0, 1, 1], [], []>} : vector<16x64xf32>, vector<64x32xf32>, vector<16x32xf32> -> vector<16x32xf32>
    %cst_155 = arith.constant dense<0.000000e+00> : vector<16x32xf32>
    %257 = tpu.matmul %256, %231, %cst_155 {dimension_numbers = #tpu.dot_dimension_numbers<[1], [0], [0], [1], [0, 0, 1, 1], [], []>} : vector<16x32xf32>, vector<32x32xf32>, vector<16x32xf32> -> vector<16x32xf32>
    %258 = vector.broadcast %232 : vector<1x32xf32> to vector<16x32xf32>
    %259 = arith.addf %257, %258 : vector<16x32xf32>
    %260 = arith.addf %219, %259 : vector<16x32xf32>
    %c4_156 = arith.constant 4 : index
    %c0_157 = arith.constant 0 : index
    %261 = vector.load %arg19[%c4_156, %c0_157] : memref<30x32xf32, #tpu.memory_space<vmem>>, vector<1x32xf32>
    %c5_158 = arith.constant 5 : index
    %c0_159 = arith.constant 0 : index
    %262 = vector.load %arg19[%c5_158, %c0_159] : memref<30x32xf32, #tpu.memory_space<vmem>>, vector<1x32xf32>
    %cst_160 = arith.constant dense<0.000000e+00> : vector<16xf32>
    %263 = vector.multi_reduction <add>, %260, %cst_160 [1] : vector<16x32xf32> to vector<16xf32>
    %264 = vector.shape_cast %263 : vector<16xf32> to vector<16x1xf32>
    %cst_161 = arith.constant 3.200000e+01 : f32
    %265 = vector.broadcast %cst_161 : f32 to vector<16x1xf32>
    %266 = arith.divf %264, %265 : vector<16x1xf32>
    %267 = vector.broadcast %266 : vector<16x1xf32> to vector<16x32xf32>
    %268 = arith.subf %260, %267 : vector<16x32xf32>
    %269 = arith.mulf %268, %268 : vector<16x32xf32>
    %cst_162 = arith.constant dense<0.000000e+00> : vector<16xf32>
    %270 = vector.multi_reduction <add>, %269, %cst_162 [1] : vector<16x32xf32> to vector<16xf32>
    %271 = vector.shape_cast %270 : vector<16xf32> to vector<16x1xf32>
    %cst_163 = arith.constant 3.200000e+01 : f32
    %272 = vector.broadcast %cst_163 : f32 to vector<16x1xf32>
    %273 = arith.divf %271, %272 : vector<16x1xf32>
    %274 = vector.broadcast %266 : vector<16x1xf32> to vector<16x32xf32>
    %275 = arith.subf %260, %274 : vector<16x32xf32>
    %cst_164 = arith.constant 9.99999974E-6 : f32
    %276 = vector.broadcast %cst_164 : f32 to vector<16x1xf32>
    %277 = arith.addf %273, %276 : vector<16x1xf32>
    %278 = math.rsqrt %277 : vector<16x1xf32>
    %279 = vector.broadcast %278 : vector<16x1xf32> to vector<16x32xf32>
    %280 = arith.mulf %275, %279 : vector<16x32xf32>
    %281 = vector.broadcast %261 : vector<1x32xf32> to vector<16x32xf32>
    %282 = arith.mulf %280, %281 : vector<16x32xf32>
    %283 = vector.broadcast %262 : vector<1x32xf32> to vector<16x32xf32>
    %284 = arith.addf %282, %283 : vector<16x32xf32>
    %cst_165 = arith.constant dense<0.000000e+00> : vector<64x32xf32>
    %285 = tpu.matmul %1, %284, %cst_165 {dimension_numbers = #tpu.dot_dimension_numbers<[1], [0], [0], [1], [0, 0, 1, 1], [], []>} : vector<64x16xf32>, vector<16x32xf32>, vector<64x32xf32> -> vector<64x32xf32>
    %c4_166 = arith.constant 4 : index
    %c0_167 = arith.constant 0 : index
    %c0_168 = arith.constant 0 : index
    %286 = vector.load %arg16[%c4_166, %c0_167, %c0_168] : memref<16x32x32xf32, #tpu.memory_space<vmem>>, vector<1x32x32xf32>
    %287 = vector.shape_cast %286 : vector<1x32x32xf32> to vector<32x32xf32>
    %c6_169 = arith.constant 6 : index
    %c0_170 = arith.constant 0 : index
    %288 = vector.load %arg19[%c6_169, %c0_170] : memref<30x32xf32, #tpu.memory_space<vmem>>, vector<1x32xf32>
    %c5_171 = arith.constant 5 : index
    %c0_172 = arith.constant 0 : index
    %c0_173 = arith.constant 0 : index
    %289 = vector.load %arg16[%c5_171, %c0_172, %c0_173] : memref<16x32x32xf32, #tpu.memory_space<vmem>>, vector<1x32x32xf32>
    %290 = vector.shape_cast %289 : vector<1x32x32xf32> to vector<32x32xf32>
    %c7_174 = arith.constant 7 : index
    %c0_175 = arith.constant 0 : index
    %291 = vector.load %arg19[%c7_174, %c0_175] : memref<30x32xf32, #tpu.memory_space<vmem>>, vector<1x32xf32>
    %c6_176 = arith.constant 6 : index
    %c0_177 = arith.constant 0 : index
    %c0_178 = arith.constant 0 : index
    %292 = vector.load %arg16[%c6_176, %c0_177, %c0_178] : memref<16x32x32xf32, #tpu.memory_space<vmem>>, vector<1x32x32xf32>
    %293 = vector.shape_cast %292 : vector<1x32x32xf32> to vector<32x32xf32>
    %c8_179 = arith.constant 8 : index
    %c0_180 = arith.constant 0 : index
    %294 = vector.load %arg19[%c8_179, %c0_180] : memref<30x32xf32, #tpu.memory_space<vmem>>, vector<1x32xf32>
    %c7_181 = arith.constant 7 : index
    %c0_182 = arith.constant 0 : index
    %c0_183 = arith.constant 0 : index
    %295 = vector.load %arg16[%c7_181, %c0_182, %c0_183] : memref<16x32x32xf32, #tpu.memory_space<vmem>>, vector<1x32x32xf32>
    %296 = vector.shape_cast %295 : vector<1x32x32xf32> to vector<32x32xf32>
    %c9_184 = arith.constant 9 : index
    %c0_185 = arith.constant 0 : index
    %297 = vector.load %arg19[%c9_184, %c0_185] : memref<30x32xf32, #tpu.memory_space<vmem>>, vector<1x32xf32>
    %cst_186 = arith.constant dense<0.000000e+00> : vector<64x32xf32>
    %298 = tpu.matmul %285, %287, %cst_186 {dimension_numbers = #tpu.dot_dimension_numbers<[1], [0], [0], [1], [0, 0, 1, 1], [], []>} : vector<64x32xf32>, vector<32x32xf32>, vector<64x32xf32> -> vector<64x32xf32>
    %299 = vector.broadcast %288 : vector<1x32xf32> to vector<64x32xf32>
    %300 = arith.addf %298, %299 : vector<64x32xf32>
    %301 = arith.mulf %300, %5 : vector<64x32xf32>
    %cst_187 = arith.constant dense<0.000000e+00> : vector<64x32xf32>
    %302 = tpu.matmul %218, %290, %cst_187 {dimension_numbers = #tpu.dot_dimension_numbers<[1], [0], [0], [1], [0, 0, 1, 1], [], []>} : vector<64x32xf32>, vector<32x32xf32>, vector<64x32xf32> -> vector<64x32xf32>
    %303 = vector.broadcast %291 : vector<1x32xf32> to vector<64x32xf32>
    %304 = arith.addf %302, %303 : vector<64x32xf32>
    %cst_188 = arith.constant dense<0.000000e+00> : vector<64x32xf32>
    %305 = tpu.matmul %218, %293, %cst_188 {dimension_numbers = #tpu.dot_dimension_numbers<[1], [0], [0], [1], [0, 0, 1, 1], [], []>} : vector<64x32xf32>, vector<32x32xf32>, vector<64x32xf32> -> vector<64x32xf32>
    %306 = vector.broadcast %294 : vector<1x32xf32> to vector<64x32xf32>
    %307 = arith.addf %305, %306 : vector<64x32xf32>
    %cst_189 = arith.constant dense<0.000000e+00> : vector<64x64xf32>
    %308 = tpu.matmul %301, %304, %cst_189 {dimension_numbers = #tpu.dot_dimension_numbers<[1], [1], [0], [0], [0, 0, 1, 0], [], []>} : vector<64x32xf32>, vector<64x32xf32>, vector<64x64xf32> -> vector<64x64xf32>
    %309 = arith.addf %308, %8 : vector<64x64xf32>
    %cst_190 = arith.constant dense<0xFF800000> : vector<64xf32>
    %310 = vector.multi_reduction <maximumf>, %309, %cst_190 [1] : vector<64x64xf32> to vector<64xf32>
    %311 = vector.shape_cast %310 : vector<64xf32> to vector<64x1xf32>
    %312 = vector.broadcast %311 : vector<64x1xf32> to vector<64x64xf32>
    %313 = arith.subf %309, %312 : vector<64x64xf32>
    %314 = math.exp %313 : vector<64x64xf32>
    %cst_191 = arith.constant dense<0.000000e+00> : vector<64xf32>
    %315 = vector.multi_reduction <add>, %314, %cst_191 [1] : vector<64x64xf32> to vector<64xf32>
    %316 = vector.shape_cast %315 : vector<64xf32> to vector<64x1xf32>
    %317 = vector.broadcast %316 : vector<64x1xf32> to vector<64x64xf32>
    %318 = arith.divf %314, %317 : vector<64x64xf32>
    %cst_192 = arith.constant dense<0.000000e+00> : vector<64x32xf32>
    %319 = tpu.matmul %318, %307, %cst_192 {dimension_numbers = #tpu.dot_dimension_numbers<[1], [0], [0], [1], [0, 0, 1, 1], [], []>} : vector<64x64xf32>, vector<64x32xf32>, vector<64x32xf32> -> vector<64x32xf32>
    %320 = arith.mulf %319, %5 : vector<64x32xf32>
    %cst_193 = arith.constant dense<0.000000e+00> : vector<16x32xf32>
    %321 = tpu.matmul %3, %320, %cst_193 {dimension_numbers = #tpu.dot_dimension_numbers<[1], [0], [0], [1], [0, 0, 1, 1], [], []>} : vector<16x64xf32>, vector<64x32xf32>, vector<16x32xf32> -> vector<16x32xf32>
    %cst_194 = arith.constant dense<0.000000e+00> : vector<16x32xf32>
    %322 = tpu.matmul %321, %296, %cst_194 {dimension_numbers = #tpu.dot_dimension_numbers<[1], [0], [0], [1], [0, 0, 1, 1], [], []>} : vector<16x32xf32>, vector<32x32xf32>, vector<16x32xf32> -> vector<16x32xf32>
    %323 = vector.broadcast %297 : vector<1x32xf32> to vector<16x32xf32>
    %324 = arith.addf %322, %323 : vector<16x32xf32>
    %325 = arith.addf %284, %324 : vector<16x32xf32>
    %c10_195 = arith.constant 10 : index
    %c0_196 = arith.constant 0 : index
    %326 = vector.load %arg19[%c10_195, %c0_196] : memref<30x32xf32, #tpu.memory_space<vmem>>, vector<1x32xf32>
    %c11_197 = arith.constant 11 : index
    %c0_198 = arith.constant 0 : index
    %327 = vector.load %arg19[%c11_197, %c0_198] : memref<30x32xf32, #tpu.memory_space<vmem>>, vector<1x32xf32>
    %cst_199 = arith.constant dense<0.000000e+00> : vector<16xf32>
    %328 = vector.multi_reduction <add>, %325, %cst_199 [1] : vector<16x32xf32> to vector<16xf32>
    %329 = vector.shape_cast %328 : vector<16xf32> to vector<16x1xf32>
    %cst_200 = arith.constant 3.200000e+01 : f32
    %330 = vector.broadcast %cst_200 : f32 to vector<16x1xf32>
    %331 = arith.divf %329, %330 : vector<16x1xf32>
    %332 = vector.broadcast %331 : vector<16x1xf32> to vector<16x32xf32>
    %333 = arith.subf %325, %332 : vector<16x32xf32>
    %334 = arith.mulf %333, %333 : vector<16x32xf32>
    %cst_201 = arith.constant dense<0.000000e+00> : vector<16xf32>
    %335 = vector.multi_reduction <add>, %334, %cst_201 [1] : vector<16x32xf32> to vector<16xf32>
    %336 = vector.shape_cast %335 : vector<16xf32> to vector<16x1xf32>
    %cst_202 = arith.constant 3.200000e+01 : f32
    %337 = vector.broadcast %cst_202 : f32 to vector<16x1xf32>
    %338 = arith.divf %336, %337 : vector<16x1xf32>
    %339 = vector.broadcast %331 : vector<16x1xf32> to vector<16x32xf32>
    %340 = arith.subf %325, %339 : vector<16x32xf32>
    %cst_203 = arith.constant 9.99999974E-6 : f32
    %341 = vector.broadcast %cst_203 : f32 to vector<16x1xf32>
    %342 = arith.addf %338, %341 : vector<16x1xf32>
    %343 = math.rsqrt %342 : vector<16x1xf32>
    %344 = vector.broadcast %343 : vector<16x1xf32> to vector<16x32xf32>
    %345 = arith.mulf %340, %344 : vector<16x32xf32>
    %346 = vector.broadcast %326 : vector<1x32xf32> to vector<16x32xf32>
    %347 = arith.mulf %345, %346 : vector<16x32xf32>
    %348 = vector.broadcast %327 : vector<1x32xf32> to vector<16x32xf32>
    %349 = arith.addf %347, %348 : vector<16x32xf32>
    %c0_204 = arith.constant 0 : index
    %c0_205 = arith.constant 0 : index
    %c0_206 = arith.constant 0 : index
    %350 = vector.load %arg17[%c0_204, %c0_205, %c0_206] : memref<2x32x64xf32, #tpu.memory_space<vmem>>, vector<1x32x64xf32>
    %351 = vector.shape_cast %350 : vector<1x32x64xf32> to vector<32x64xf32>
    %cst_207 = arith.constant dense<0.000000e+00> : vector<16x64xf32>
    %352 = tpu.matmul %349, %351, %cst_207 {dimension_numbers = #tpu.dot_dimension_numbers<[1], [0], [0], [1], [0, 0, 1, 1], [], []>} : vector<16x32xf32>, vector<32x64xf32>, vector<16x64xf32> -> vector<16x64xf32>
    %c0_208 = arith.constant 0 : index
    %c0_209 = arith.constant 0 : index
    %353 = vector.load %arg20[%c0_208, %c0_209] : memref<2x64xf32, #tpu.memory_space<vmem>>, vector<1x64xf32>
    %354 = vector.broadcast %353 : vector<1x64xf32> to vector<16x64xf32>
    %355 = arith.addf %352, %354 : vector<16x64xf32>
    %cst_210 = arith.constant 0.000000e+00 : f32
    %356 = vector.broadcast %cst_210 : f32 to vector<16x64xf32>
    %357 = arith.maximumf %355, %356 : vector<16x64xf32>
    %c0_211 = arith.constant 0 : index
    %c0_212 = arith.constant 0 : index
    %c0_213 = arith.constant 0 : index
    %358 = vector.load %arg18[%c0_211, %c0_212, %c0_213] : memref<2x64x32xf32, #tpu.memory_space<vmem>>, vector<1x64x32xf32>
    %359 = vector.shape_cast %358 : vector<1x64x32xf32> to vector<64x32xf32>
    %cst_214 = arith.constant dense<0.000000e+00> : vector<16x32xf32>
    %360 = tpu.matmul %357, %359, %cst_214 {dimension_numbers = #tpu.dot_dimension_numbers<[1], [0], [0], [1], [0, 0, 1, 1], [], []>} : vector<16x64xf32>, vector<64x32xf32>, vector<16x32xf32> -> vector<16x32xf32>
    %c12_215 = arith.constant 12 : index
    %c0_216 = arith.constant 0 : index
    %361 = vector.load %arg19[%c12_215, %c0_216] : memref<30x32xf32, #tpu.memory_space<vmem>>, vector<1x32xf32>
    %362 = vector.broadcast %361 : vector<1x32xf32> to vector<16x32xf32>
    %363 = arith.addf %360, %362 : vector<16x32xf32>
    %364 = arith.addf %349, %363 : vector<16x32xf32>
    %c13_217 = arith.constant 13 : index
    %c0_218 = arith.constant 0 : index
    %365 = vector.load %arg19[%c13_217, %c0_218] : memref<30x32xf32, #tpu.memory_space<vmem>>, vector<1x32xf32>
    %c14_219 = arith.constant 14 : index
    %c0_220 = arith.constant 0 : index
    %366 = vector.load %arg19[%c14_219, %c0_220] : memref<30x32xf32, #tpu.memory_space<vmem>>, vector<1x32xf32>
    %cst_221 = arith.constant dense<0.000000e+00> : vector<16xf32>
    %367 = vector.multi_reduction <add>, %364, %cst_221 [1] : vector<16x32xf32> to vector<16xf32>
    %368 = vector.shape_cast %367 : vector<16xf32> to vector<16x1xf32>
    %cst_222 = arith.constant 3.200000e+01 : f32
    %369 = vector.broadcast %cst_222 : f32 to vector<16x1xf32>
    %370 = arith.divf %368, %369 : vector<16x1xf32>
    %371 = vector.broadcast %370 : vector<16x1xf32> to vector<16x32xf32>
    %372 = arith.subf %364, %371 : vector<16x32xf32>
    %373 = arith.mulf %372, %372 : vector<16x32xf32>
    %cst_223 = arith.constant dense<0.000000e+00> : vector<16xf32>
    %374 = vector.multi_reduction <add>, %373, %cst_223 [1] : vector<16x32xf32> to vector<16xf32>
    %375 = vector.shape_cast %374 : vector<16xf32> to vector<16x1xf32>
    %cst_224 = arith.constant 3.200000e+01 : f32
    %376 = vector.broadcast %cst_224 : f32 to vector<16x1xf32>
    %377 = arith.divf %375, %376 : vector<16x1xf32>
    %378 = vector.broadcast %370 : vector<16x1xf32> to vector<16x32xf32>
    %379 = arith.subf %364, %378 : vector<16x32xf32>
    %cst_225 = arith.constant 9.99999974E-6 : f32
    %380 = vector.broadcast %cst_225 : f32 to vector<16x1xf32>
    %381 = arith.addf %377, %380 : vector<16x1xf32>
    %382 = math.rsqrt %381 : vector<16x1xf32>
    %383 = vector.broadcast %382 : vector<16x1xf32> to vector<16x32xf32>
    %384 = arith.mulf %379, %383 : vector<16x32xf32>
    %385 = vector.broadcast %365 : vector<1x32xf32> to vector<16x32xf32>
    %386 = arith.mulf %384, %385 : vector<16x32xf32>
    %387 = vector.broadcast %366 : vector<1x32xf32> to vector<16x32xf32>
    %388 = arith.addf %386, %387 : vector<16x32xf32>
    %cst_226 = arith.constant dense<0.000000e+00> : vector<64x32xf32>
    %389 = tpu.matmul %1, %388, %cst_226 {dimension_numbers = #tpu.dot_dimension_numbers<[1], [0], [0], [1], [0, 0, 1, 1], [], []>} : vector<64x16xf32>, vector<16x32xf32>, vector<64x32xf32> -> vector<64x32xf32>
    %c8_227 = arith.constant 8 : index
    %c0_228 = arith.constant 0 : index
    %c0_229 = arith.constant 0 : index
    %390 = vector.load %arg16[%c8_227, %c0_228, %c0_229] : memref<16x32x32xf32, #tpu.memory_space<vmem>>, vector<1x32x32xf32>
    %391 = vector.shape_cast %390 : vector<1x32x32xf32> to vector<32x32xf32>
    %c15_230 = arith.constant 15 : index
    %c0_231 = arith.constant 0 : index
    %392 = vector.load %arg19[%c15_230, %c0_231] : memref<30x32xf32, #tpu.memory_space<vmem>>, vector<1x32xf32>
    %c9_232 = arith.constant 9 : index
    %c0_233 = arith.constant 0 : index
    %c0_234 = arith.constant 0 : index
    %393 = vector.load %arg16[%c9_232, %c0_233, %c0_234] : memref<16x32x32xf32, #tpu.memory_space<vmem>>, vector<1x32x32xf32>
    %394 = vector.shape_cast %393 : vector<1x32x32xf32> to vector<32x32xf32>
    %c16_235 = arith.constant 16 : index
    %c0_236 = arith.constant 0 : index
    %395 = vector.load %arg19[%c16_235, %c0_236] : memref<30x32xf32, #tpu.memory_space<vmem>>, vector<1x32xf32>
    %c10_237 = arith.constant 10 : index
    %c0_238 = arith.constant 0 : index
    %c0_239 = arith.constant 0 : index
    %396 = vector.load %arg16[%c10_237, %c0_238, %c0_239] : memref<16x32x32xf32, #tpu.memory_space<vmem>>, vector<1x32x32xf32>
    %397 = vector.shape_cast %396 : vector<1x32x32xf32> to vector<32x32xf32>
    %c17_240 = arith.constant 17 : index
    %c0_241 = arith.constant 0 : index
    %398 = vector.load %arg19[%c17_240, %c0_241] : memref<30x32xf32, #tpu.memory_space<vmem>>, vector<1x32xf32>
    %c11_242 = arith.constant 11 : index
    %c0_243 = arith.constant 0 : index
    %c0_244 = arith.constant 0 : index
    %399 = vector.load %arg16[%c11_242, %c0_243, %c0_244] : memref<16x32x32xf32, #tpu.memory_space<vmem>>, vector<1x32x32xf32>
    %400 = vector.shape_cast %399 : vector<1x32x32xf32> to vector<32x32xf32>
    %c18 = arith.constant 18 : index
    %c0_245 = arith.constant 0 : index
    %401 = vector.load %arg19[%c18, %c0_245] : memref<30x32xf32, #tpu.memory_space<vmem>>, vector<1x32xf32>
    %cst_246 = arith.constant dense<0.000000e+00> : vector<64x32xf32>
    %402 = tpu.matmul %389, %391, %cst_246 {dimension_numbers = #tpu.dot_dimension_numbers<[1], [0], [0], [1], [0, 0, 1, 1], [], []>} : vector<64x32xf32>, vector<32x32xf32>, vector<64x32xf32> -> vector<64x32xf32>
    %403 = vector.broadcast %392 : vector<1x32xf32> to vector<64x32xf32>
    %404 = arith.addf %402, %403 : vector<64x32xf32>
    %405 = arith.mulf %404, %5 : vector<64x32xf32>
    %cst_247 = arith.constant dense<0.000000e+00> : vector<64x32xf32>
    %406 = tpu.matmul %389, %394, %cst_247 {dimension_numbers = #tpu.dot_dimension_numbers<[1], [0], [0], [1], [0, 0, 1, 1], [], []>} : vector<64x32xf32>, vector<32x32xf32>, vector<64x32xf32> -> vector<64x32xf32>
    %407 = vector.broadcast %395 : vector<1x32xf32> to vector<64x32xf32>
    %408 = arith.addf %406, %407 : vector<64x32xf32>
    %cst_248 = arith.constant dense<0.000000e+00> : vector<64x32xf32>
    %409 = tpu.matmul %389, %397, %cst_248 {dimension_numbers = #tpu.dot_dimension_numbers<[1], [0], [0], [1], [0, 0, 1, 1], [], []>} : vector<64x32xf32>, vector<32x32xf32>, vector<64x32xf32> -> vector<64x32xf32>
    %410 = vector.broadcast %398 : vector<1x32xf32> to vector<64x32xf32>
    %411 = arith.addf %409, %410 : vector<64x32xf32>
    %cst_249 = arith.constant dense<0.000000e+00> : vector<64x64xf32>
    %412 = tpu.matmul %405, %408, %cst_249 {dimension_numbers = #tpu.dot_dimension_numbers<[1], [1], [0], [0], [0, 0, 1, 0], [], []>} : vector<64x32xf32>, vector<64x32xf32>, vector<64x64xf32> -> vector<64x64xf32>
    %413 = arith.addf %412, %7 : vector<64x64xf32>
    %cst_250 = arith.constant dense<0xFF800000> : vector<64xf32>
    %414 = vector.multi_reduction <maximumf>, %413, %cst_250 [1] : vector<64x64xf32> to vector<64xf32>
    %415 = vector.shape_cast %414 : vector<64xf32> to vector<64x1xf32>
    %416 = vector.broadcast %415 : vector<64x1xf32> to vector<64x64xf32>
    %417 = arith.subf %413, %416 : vector<64x64xf32>
    %418 = math.exp %417 : vector<64x64xf32>
    %cst_251 = arith.constant dense<0.000000e+00> : vector<64xf32>
    %419 = vector.multi_reduction <add>, %418, %cst_251 [1] : vector<64x64xf32> to vector<64xf32>
    %420 = vector.shape_cast %419 : vector<64xf32> to vector<64x1xf32>
    %421 = vector.broadcast %420 : vector<64x1xf32> to vector<64x64xf32>
    %422 = arith.divf %418, %421 : vector<64x64xf32>
    %cst_252 = arith.constant dense<0.000000e+00> : vector<64x32xf32>
    %423 = tpu.matmul %422, %411, %cst_252 {dimension_numbers = #tpu.dot_dimension_numbers<[1], [0], [0], [1], [0, 0, 1, 1], [], []>} : vector<64x64xf32>, vector<64x32xf32>, vector<64x32xf32> -> vector<64x32xf32>
    %424 = arith.mulf %423, %5 : vector<64x32xf32>
    %cst_253 = arith.constant dense<0.000000e+00> : vector<16x32xf32>
    %425 = tpu.matmul %3, %424, %cst_253 {dimension_numbers = #tpu.dot_dimension_numbers<[1], [0], [0], [1], [0, 0, 1, 1], [], []>} : vector<16x64xf32>, vector<64x32xf32>, vector<16x32xf32> -> vector<16x32xf32>
    %cst_254 = arith.constant dense<0.000000e+00> : vector<16x32xf32>
    %426 = tpu.matmul %425, %400, %cst_254 {dimension_numbers = #tpu.dot_dimension_numbers<[1], [0], [0], [1], [0, 0, 1, 1], [], []>} : vector<16x32xf32>, vector<32x32xf32>, vector<16x32xf32> -> vector<16x32xf32>
    %427 = vector.broadcast %401 : vector<1x32xf32> to vector<16x32xf32>
    %428 = arith.addf %426, %427 : vector<16x32xf32>
    %429 = arith.addf %388, %428 : vector<16x32xf32>
    %c19 = arith.constant 19 : index
    %c0_255 = arith.constant 0 : index
    %430 = vector.load %arg19[%c19, %c0_255] : memref<30x32xf32, #tpu.memory_space<vmem>>, vector<1x32xf32>
    %c20 = arith.constant 20 : index
    %c0_256 = arith.constant 0 : index
    %431 = vector.load %arg19[%c20, %c0_256] : memref<30x32xf32, #tpu.memory_space<vmem>>, vector<1x32xf32>
    %cst_257 = arith.constant dense<0.000000e+00> : vector<16xf32>
    %432 = vector.multi_reduction <add>, %429, %cst_257 [1] : vector<16x32xf32> to vector<16xf32>
    %433 = vector.shape_cast %432 : vector<16xf32> to vector<16x1xf32>
    %cst_258 = arith.constant 3.200000e+01 : f32
    %434 = vector.broadcast %cst_258 : f32 to vector<16x1xf32>
    %435 = arith.divf %433, %434 : vector<16x1xf32>
    %436 = vector.broadcast %435 : vector<16x1xf32> to vector<16x32xf32>
    %437 = arith.subf %429, %436 : vector<16x32xf32>
    %438 = arith.mulf %437, %437 : vector<16x32xf32>
    %cst_259 = arith.constant dense<0.000000e+00> : vector<16xf32>
    %439 = vector.multi_reduction <add>, %438, %cst_259 [1] : vector<16x32xf32> to vector<16xf32>
    %440 = vector.shape_cast %439 : vector<16xf32> to vector<16x1xf32>
    %cst_260 = arith.constant 3.200000e+01 : f32
    %441 = vector.broadcast %cst_260 : f32 to vector<16x1xf32>
    %442 = arith.divf %440, %441 : vector<16x1xf32>
    %443 = vector.broadcast %435 : vector<16x1xf32> to vector<16x32xf32>
    %444 = arith.subf %429, %443 : vector<16x32xf32>
    %cst_261 = arith.constant 9.99999974E-6 : f32
    %445 = vector.broadcast %cst_261 : f32 to vector<16x1xf32>
    %446 = arith.addf %442, %445 : vector<16x1xf32>
    %447 = math.rsqrt %446 : vector<16x1xf32>
    %448 = vector.broadcast %447 : vector<16x1xf32> to vector<16x32xf32>
    %449 = arith.mulf %444, %448 : vector<16x32xf32>
    %450 = vector.broadcast %430 : vector<1x32xf32> to vector<16x32xf32>
    %451 = arith.mulf %449, %450 : vector<16x32xf32>
    %452 = vector.broadcast %431 : vector<1x32xf32> to vector<16x32xf32>
    %453 = arith.addf %451, %452 : vector<16x32xf32>
    %cst_262 = arith.constant dense<0.000000e+00> : vector<64x32xf32>
    %454 = tpu.matmul %1, %453, %cst_262 {dimension_numbers = #tpu.dot_dimension_numbers<[1], [0], [0], [1], [0, 0, 1, 1], [], []>} : vector<64x16xf32>, vector<16x32xf32>, vector<64x32xf32> -> vector<64x32xf32>
    %c12_263 = arith.constant 12 : index
    %c0_264 = arith.constant 0 : index
    %c0_265 = arith.constant 0 : index
    %455 = vector.load %arg16[%c12_263, %c0_264, %c0_265] : memref<16x32x32xf32, #tpu.memory_space<vmem>>, vector<1x32x32xf32>
    %456 = vector.shape_cast %455 : vector<1x32x32xf32> to vector<32x32xf32>
    %c21 = arith.constant 21 : index
    %c0_266 = arith.constant 0 : index
    %457 = vector.load %arg19[%c21, %c0_266] : memref<30x32xf32, #tpu.memory_space<vmem>>, vector<1x32xf32>
    %c13_267 = arith.constant 13 : index
    %c0_268 = arith.constant 0 : index
    %c0_269 = arith.constant 0 : index
    %458 = vector.load %arg16[%c13_267, %c0_268, %c0_269] : memref<16x32x32xf32, #tpu.memory_space<vmem>>, vector<1x32x32xf32>
    %459 = vector.shape_cast %458 : vector<1x32x32xf32> to vector<32x32xf32>
    %c22 = arith.constant 22 : index
    %c0_270 = arith.constant 0 : index
    %460 = vector.load %arg19[%c22, %c0_270] : memref<30x32xf32, #tpu.memory_space<vmem>>, vector<1x32xf32>
    %c14_271 = arith.constant 14 : index
    %c0_272 = arith.constant 0 : index
    %c0_273 = arith.constant 0 : index
    %461 = vector.load %arg16[%c14_271, %c0_272, %c0_273] : memref<16x32x32xf32, #tpu.memory_space<vmem>>, vector<1x32x32xf32>
    %462 = vector.shape_cast %461 : vector<1x32x32xf32> to vector<32x32xf32>
    %c23 = arith.constant 23 : index
    %c0_274 = arith.constant 0 : index
    %463 = vector.load %arg19[%c23, %c0_274] : memref<30x32xf32, #tpu.memory_space<vmem>>, vector<1x32xf32>
    %c15_275 = arith.constant 15 : index
    %c0_276 = arith.constant 0 : index
    %c0_277 = arith.constant 0 : index
    %464 = vector.load %arg16[%c15_275, %c0_276, %c0_277] : memref<16x32x32xf32, #tpu.memory_space<vmem>>, vector<1x32x32xf32>
    %465 = vector.shape_cast %464 : vector<1x32x32xf32> to vector<32x32xf32>
    %c24 = arith.constant 24 : index
    %c0_278 = arith.constant 0 : index
    %466 = vector.load %arg19[%c24, %c0_278] : memref<30x32xf32, #tpu.memory_space<vmem>>, vector<1x32xf32>
    %cst_279 = arith.constant dense<0.000000e+00> : vector<64x32xf32>
    %467 = tpu.matmul %454, %456, %cst_279 {dimension_numbers = #tpu.dot_dimension_numbers<[1], [0], [0], [1], [0, 0, 1, 1], [], []>} : vector<64x32xf32>, vector<32x32xf32>, vector<64x32xf32> -> vector<64x32xf32>
    %468 = vector.broadcast %457 : vector<1x32xf32> to vector<64x32xf32>
    %469 = arith.addf %467, %468 : vector<64x32xf32>
    %470 = arith.mulf %469, %5 : vector<64x32xf32>
    %cst_280 = arith.constant dense<0.000000e+00> : vector<64x32xf32>
    %471 = tpu.matmul %218, %459, %cst_280 {dimension_numbers = #tpu.dot_dimension_numbers<[1], [0], [0], [1], [0, 0, 1, 1], [], []>} : vector<64x32xf32>, vector<32x32xf32>, vector<64x32xf32> -> vector<64x32xf32>
    %472 = vector.broadcast %460 : vector<1x32xf32> to vector<64x32xf32>
    %473 = arith.addf %471, %472 : vector<64x32xf32>
    %cst_281 = arith.constant dense<0.000000e+00> : vector<64x32xf32>
    %474 = tpu.matmul %218, %462, %cst_281 {dimension_numbers = #tpu.dot_dimension_numbers<[1], [0], [0], [1], [0, 0, 1, 1], [], []>} : vector<64x32xf32>, vector<32x32xf32>, vector<64x32xf32> -> vector<64x32xf32>
    %475 = vector.broadcast %463 : vector<1x32xf32> to vector<64x32xf32>
    %476 = arith.addf %474, %475 : vector<64x32xf32>
    %cst_282 = arith.constant dense<0.000000e+00> : vector<64x64xf32>
    %477 = tpu.matmul %470, %473, %cst_282 {dimension_numbers = #tpu.dot_dimension_numbers<[1], [1], [0], [0], [0, 0, 1, 0], [], []>} : vector<64x32xf32>, vector<64x32xf32>, vector<64x64xf32> -> vector<64x64xf32>
    %478 = arith.addf %477, %8 : vector<64x64xf32>
    %cst_283 = arith.constant dense<0xFF800000> : vector<64xf32>
    %479 = vector.multi_reduction <maximumf>, %478, %cst_283 [1] : vector<64x64xf32> to vector<64xf32>
    %480 = vector.shape_cast %479 : vector<64xf32> to vector<64x1xf32>
    %481 = vector.broadcast %480 : vector<64x1xf32> to vector<64x64xf32>
    %482 = arith.subf %478, %481 : vector<64x64xf32>
    %483 = math.exp %482 : vector<64x64xf32>
    %cst_284 = arith.constant dense<0.000000e+00> : vector<64xf32>
    %484 = vector.multi_reduction <add>, %483, %cst_284 [1] : vector<64x64xf32> to vector<64xf32>
    %485 = vector.shape_cast %484 : vector<64xf32> to vector<64x1xf32>
    %486 = vector.broadcast %485 : vector<64x1xf32> to vector<64x64xf32>
    %487 = arith.divf %483, %486 : vector<64x64xf32>
    %cst_285 = arith.constant dense<0.000000e+00> : vector<64x32xf32>
    %488 = tpu.matmul %487, %476, %cst_285 {dimension_numbers = #tpu.dot_dimension_numbers<[1], [0], [0], [1], [0, 0, 1, 1], [], []>} : vector<64x64xf32>, vector<64x32xf32>, vector<64x32xf32> -> vector<64x32xf32>
    %489 = arith.mulf %488, %5 : vector<64x32xf32>
    %cst_286 = arith.constant dense<0.000000e+00> : vector<16x32xf32>
    %490 = tpu.matmul %3, %489, %cst_286 {dimension_numbers = #tpu.dot_dimension_numbers<[1], [0], [0], [1], [0, 0, 1, 1], [], []>} : vector<16x64xf32>, vector<64x32xf32>, vector<16x32xf32> -> vector<16x32xf32>
    %cst_287 = arith.constant dense<0.000000e+00> : vector<16x32xf32>
    %491 = tpu.matmul %490, %465, %cst_287 {dimension_numbers = #tpu.dot_dimension_numbers<[1], [0], [0], [1], [0, 0, 1, 1], [], []>} : vector<16x32xf32>, vector<32x32xf32>, vector<16x32xf32> -> vector<16x32xf32>
    %492 = vector.broadcast %466 : vector<1x32xf32> to vector<16x32xf32>
    %493 = arith.addf %491, %492 : vector<16x32xf32>
    %494 = arith.addf %453, %493 : vector<16x32xf32>
    %c25 = arith.constant 25 : index
    %c0_288 = arith.constant 0 : index
    %495 = vector.load %arg19[%c25, %c0_288] : memref<30x32xf32, #tpu.memory_space<vmem>>, vector<1x32xf32>
    %c26 = arith.constant 26 : index
    %c0_289 = arith.constant 0 : index
    %496 = vector.load %arg19[%c26, %c0_289] : memref<30x32xf32, #tpu.memory_space<vmem>>, vector<1x32xf32>
    %cst_290 = arith.constant dense<0.000000e+00> : vector<16xf32>
    %497 = vector.multi_reduction <add>, %494, %cst_290 [1] : vector<16x32xf32> to vector<16xf32>
    %498 = vector.shape_cast %497 : vector<16xf32> to vector<16x1xf32>
    %cst_291 = arith.constant 3.200000e+01 : f32
    %499 = vector.broadcast %cst_291 : f32 to vector<16x1xf32>
    %500 = arith.divf %498, %499 : vector<16x1xf32>
    %501 = vector.broadcast %500 : vector<16x1xf32> to vector<16x32xf32>
    %502 = arith.subf %494, %501 : vector<16x32xf32>
    %503 = arith.mulf %502, %502 : vector<16x32xf32>
    %cst_292 = arith.constant dense<0.000000e+00> : vector<16xf32>
    %504 = vector.multi_reduction <add>, %503, %cst_292 [1] : vector<16x32xf32> to vector<16xf32>
    %505 = vector.shape_cast %504 : vector<16xf32> to vector<16x1xf32>
    %cst_293 = arith.constant 3.200000e+01 : f32
    %506 = vector.broadcast %cst_293 : f32 to vector<16x1xf32>
    %507 = arith.divf %505, %506 : vector<16x1xf32>
    %508 = vector.broadcast %500 : vector<16x1xf32> to vector<16x32xf32>
    %509 = arith.subf %494, %508 : vector<16x32xf32>
    %cst_294 = arith.constant 9.99999974E-6 : f32
    %510 = vector.broadcast %cst_294 : f32 to vector<16x1xf32>
    %511 = arith.addf %507, %510 : vector<16x1xf32>
    %512 = math.rsqrt %511 : vector<16x1xf32>
    %513 = vector.broadcast %512 : vector<16x1xf32> to vector<16x32xf32>
    %514 = arith.mulf %509, %513 : vector<16x32xf32>
    %515 = vector.broadcast %495 : vector<1x32xf32> to vector<16x32xf32>
    %516 = arith.mulf %514, %515 : vector<16x32xf32>
    %517 = vector.broadcast %496 : vector<1x32xf32> to vector<16x32xf32>
    %518 = arith.addf %516, %517 : vector<16x32xf32>
    %c1_295 = arith.constant 1 : index
    %c0_296 = arith.constant 0 : index
    %c0_297 = arith.constant 0 : index
    %519 = vector.load %arg17[%c1_295, %c0_296, %c0_297] : memref<2x32x64xf32, #tpu.memory_space<vmem>>, vector<1x32x64xf32>
    %520 = vector.shape_cast %519 : vector<1x32x64xf32> to vector<32x64xf32>
    %cst_298 = arith.constant dense<0.000000e+00> : vector<16x64xf32>
    %521 = tpu.matmul %518, %520, %cst_298 {dimension_numbers = #tpu.dot_dimension_numbers<[1], [0], [0], [1], [0, 0, 1, 1], [], []>} : vector<16x32xf32>, vector<32x64xf32>, vector<16x64xf32> -> vector<16x64xf32>
    %c1_299 = arith.constant 1 : index
    %c0_300 = arith.constant 0 : index
    %522 = vector.load %arg20[%c1_299, %c0_300] : memref<2x64xf32, #tpu.memory_space<vmem>>, vector<1x64xf32>
    %523 = vector.broadcast %522 : vector<1x64xf32> to vector<16x64xf32>
    %524 = arith.addf %521, %523 : vector<16x64xf32>
    %cst_301 = arith.constant 0.000000e+00 : f32
    %525 = vector.broadcast %cst_301 : f32 to vector<16x64xf32>
    %526 = arith.maximumf %524, %525 : vector<16x64xf32>
    %c1_302 = arith.constant 1 : index
    %c0_303 = arith.constant 0 : index
    %c0_304 = arith.constant 0 : index
    %527 = vector.load %arg18[%c1_302, %c0_303, %c0_304] : memref<2x64x32xf32, #tpu.memory_space<vmem>>, vector<1x64x32xf32>
    %528 = vector.shape_cast %527 : vector<1x64x32xf32> to vector<64x32xf32>
    %cst_305 = arith.constant dense<0.000000e+00> : vector<16x32xf32>
    %529 = tpu.matmul %526, %528, %cst_305 {dimension_numbers = #tpu.dot_dimension_numbers<[1], [0], [0], [1], [0, 0, 1, 1], [], []>} : vector<16x64xf32>, vector<64x32xf32>, vector<16x32xf32> -> vector<16x32xf32>
    %c27 = arith.constant 27 : index
    %c0_306 = arith.constant 0 : index
    %530 = vector.load %arg19[%c27, %c0_306] : memref<30x32xf32, #tpu.memory_space<vmem>>, vector<1x32xf32>
    %531 = vector.broadcast %530 : vector<1x32xf32> to vector<16x32xf32>
    %532 = arith.addf %529, %531 : vector<16x32xf32>
    %533 = arith.addf %518, %532 : vector<16x32xf32>
    %c28 = arith.constant 28 : index
    %c0_307 = arith.constant 0 : index
    %534 = vector.load %arg19[%c28, %c0_307] : memref<30x32xf32, #tpu.memory_space<vmem>>, vector<1x32xf32>
    %c29 = arith.constant 29 : index
    %c0_308 = arith.constant 0 : index
    %535 = vector.load %arg19[%c29, %c0_308] : memref<30x32xf32, #tpu.memory_space<vmem>>, vector<1x32xf32>
    %cst_309 = arith.constant dense<0.000000e+00> : vector<16xf32>
    %536 = vector.multi_reduction <add>, %533, %cst_309 [1] : vector<16x32xf32> to vector<16xf32>
    %537 = vector.shape_cast %536 : vector<16xf32> to vector<16x1xf32>
    %cst_310 = arith.constant 3.200000e+01 : f32
    %538 = vector.broadcast %cst_310 : f32 to vector<16x1xf32>
    %539 = arith.divf %537, %538 : vector<16x1xf32>
    %540 = vector.broadcast %539 : vector<16x1xf32> to vector<16x32xf32>
    %541 = arith.subf %533, %540 : vector<16x32xf32>
    %542 = arith.mulf %541, %541 : vector<16x32xf32>
    %cst_311 = arith.constant dense<0.000000e+00> : vector<16xf32>
    %543 = vector.multi_reduction <add>, %542, %cst_311 [1] : vector<16x32xf32> to vector<16xf32>
    %544 = vector.shape_cast %543 : vector<16xf32> to vector<16x1xf32>
    %cst_312 = arith.constant 3.200000e+01 : f32
    %545 = vector.broadcast %cst_312 : f32 to vector<16x1xf32>
    %546 = arith.divf %544, %545 : vector<16x1xf32>
    %547 = vector.broadcast %539 : vector<16x1xf32> to vector<16x32xf32>
    %548 = arith.subf %533, %547 : vector<16x32xf32>
    %cst_313 = arith.constant 9.99999974E-6 : f32
    %549 = vector.broadcast %cst_313 : f32 to vector<16x1xf32>
    %550 = arith.addf %546, %549 : vector<16x1xf32>
    %551 = math.rsqrt %550 : vector<16x1xf32>
    %552 = vector.broadcast %551 : vector<16x1xf32> to vector<16x32xf32>
    %553 = arith.mulf %548, %552 : vector<16x32xf32>
    %554 = vector.broadcast %534 : vector<1x32xf32> to vector<16x32xf32>
    %555 = arith.mulf %553, %554 : vector<16x32xf32>
    %556 = vector.broadcast %535 : vector<1x32xf32> to vector<16x32xf32>
    %557 = arith.addf %555, %556 : vector<16x32xf32>
    %c0_314 = arith.constant 0 : index
    %c0_315 = arith.constant 0 : index
    %558 = vector.load %arg21[%c0_314, %c0_315] : memref<32x128xf32, #tpu.memory_space<vmem>>, vector<32x128xf32>
    %cst_316 = arith.constant dense<0.000000e+00> : vector<16x128xf32>
    %559 = tpu.matmul %557, %558, %cst_316 {dimension_numbers = #tpu.dot_dimension_numbers<[1], [0], [0], [1], [0, 0, 1, 1], [], []>} : vector<16x32xf32>, vector<32x128xf32>, vector<16x128xf32> -> vector<16x128xf32>
    %c0_317 = arith.constant 0 : index
    %c0_318 = arith.constant 0 : index
    %560 = vector.load %arg22[%c0_317, %c0_318] : memref<1x128xf32, #tpu.memory_space<vmem>>, vector<1x128xf32>
    %561 = vector.broadcast %560 : vector<1x128xf32> to vector<16x128xf32>
    %562 = arith.addf %559, %561 : vector<16x128xf32>
    %c0_319 = arith.constant 0 : index
    %c0_320 = arith.constant 0 : index
    %563 = vector.load %arg23[%c0_319, %c0_320] : memref<16x128xf32, #tpu.memory_space<vmem>>, vector<16x128xf32>
    tpu.vector_store %arg23[%c0_319, %c0_320], %562 {strides = array<i32>} : memref<16x128xf32, #tpu.memory_space<vmem>>, vector<16x128xf32>,
    return
  }
}

</mosaic_0001>

<llo_original>
// kernel: transformer_forward.1
$region0: #{transformer_forward.1}
  #allocation0 [shape = 'u32[]', space=smem, size = 0x4, offset = 0x4, fixed_abs, tag = 'smem constant byte address 0x4 - core index']
  #allocation1 [shape = 'u32[144,128]{1,0:T(1,128)}', space=vmem, size = 0x12000, scoped, tag = 'internal scratch']
  %s0 = inlined_call_operand.vmem [shape: f32[16,32], index: 0, kind: input, shape index: {}]
  %s1 = inlined_call_operand.vmem [shape: f32[16,32], index: 1, kind: input, shape index: {}]
  %s2 = inlined_call_operand.vmem [shape: f32[64,64], index: 2, kind: input, shape index: {}, may-alias: {2,4}]
  %s3 = inlined_call_operand.vmem [shape: f32[64,64], index: 3, kind: input, shape index: {}]
  %s4 = inlined_call_operand.vmem [shape: f32[64,64], index: 4, kind: input, shape index: {}, may-alias: {2,4}]
  %s5 = inlined_call_operand.vmem [shape: f32[64,16], index: 5, kind: input, shape index: {}, may-alias: {5,6}]
  %s6 = inlined_call_operand.vmem [shape: f32[64,16], index: 6, kind: input, shape index: {}, may-alias: {5,6}]
  %s7 = inlined_call_operand.vmem [shape: f32[16,64], index: 7, kind: input, shape index: {}, may-alias: {7,8}]
  %s8 = inlined_call_operand.vmem [shape: f32[16,64], index: 8, kind: input, shape index: {}, may-alias: {7,8}]
  %s9 = inlined_call_operand.vmem [shape: f32[64,32], index: 9, kind: input, shape index: {}, may-alias: {9,10}]
  %s10 = inlined_call_operand.vmem [shape: f32[64,32], index: 10, kind: input, shape index: {}, may-alias: {9,10}]
  %s11 = inlined_call_operand.vmem [shape: f32[8,32,32], index: 11, kind: input, shape index: {}]
  %s12 = inlined_call_operand.vmem [shape: f32[2,32,64], index: 12, kind: input, shape index: {}]
  %s13 = inlined_call_operand.vmem [shape: f32[2,64,32], index: 13, kind: input, shape index: {}]
  %s14 = inlined_call_operand.vmem [shape: f32[18,32], index: 14, kind: input, shape index: {}]
  %s15 = inlined_call_operand.vmem [shape: f32[2,64], index: 15, kind: input, shape index: {}]
  %s16 = inlined_call_operand.vmem [shape: f32[16,32,32], index: 16, kind: input, shape index: {}]
  %s17 = inlined_call_operand.vmem [shape: f32[2,32,64], index: 17, kind: input, shape index: {}]
  %s18 = inlined_call_operand.vmem [shape: f32[2,64,32], index: 18, kind: input, shape index: {}]
  %s19 = inlined_call_operand.vmem [shape: f32[30,32], index: 19, kind: input, shape index: {}]
  %s20 = inlined_call_operand.vmem [shape: f32[2,64], index: 20, kind: input, shape index: {}]
  %s21 = inlined_call_operand.vmem [shape: f32[32,128], index: 21, kind: input, shape index: {}]
  %s22 = inlined_call_operand.vmem [shape: f32[1,128], index: 22, kind: input, shape index: {}]
  %s23 = inlined_call_operand.vmem [shape: f32[16,128], index: 23, kind: output, shape index: {}]
  %s24 = sld [smem:[#allocation0]]
  $region102: #{transformer_forward.1} parent=0
    _
  %s26 = ssub.s32 1, %s24
  %s27 = scalar_select 0, %s26, %s24
  // Predicated region
  $region2: #{transformer_forward.1} parent=0 // pred_check
    _
  $region3: #{transformer_forward.1} parent=0 // pred_check_branch
    %29 = sbr.rel (0) target = $region5
  $region4: #{transformer_forward.1} parent=0 // pred_region
    _
  $region5: #{transformer_forward.1} parent=0 // pred_fallthru
    _
  // Predicated region
  $region6: #{transformer_forward.1} parent=0 // pred_check
    _
  $region7: #{transformer_forward.1} parent=0 // pred_check_branch
    %31 = sbr.rel (0) target = $region9
  $region8: #{transformer_forward.1} parent=0 // pred_region
    _
  $region9: #{transformer_forward.1} parent=0 // pred_fallthru
    _
  // Predicated region
  $region10: #{transformer_forward.1} parent=0 // pred_check
    _
  $region11: #{transformer_forward.1} parent=0 // pred_check_branch
    %33 = sbr.rel (0) target = $region13
  $region12: #{transformer_forward.1} parent=0 // pred_region
    _
  $region13: #{transformer_forward.1} parent=0 // pred_fallthru
    _
  // Predicated region
  $region14: #{transformer_forward.1} parent=0 // pred_check
    _
  $region15: #{transformer_forward.1} parent=0 // pred_check_branch
    %35 = sbr.rel (0) target = $region17
  $region16: #{transformer_forward.1} parent=0 // pred_region
    _
  $region17: #{transformer_forward.1} parent=0 // pred_fallthru
    _
  // Predicated region
  $region18: #{transformer_forward.1} parent=0 // pred_check
    _
  $region19: #{transformer_forward.1} parent=0 // pred_check_branch
    %37 = sbr.rel (0) target = $region21
  $region20: #{transformer_forward.1} parent=0 // pred_region
    _
  $region21: #{transformer_forward.1} parent=0 // pred_fallthru
    _
  // Predicated region
  $region22: #{transformer_forward.1} parent=0 // pred_check
    _
  $region23: #{transformer_forward.1} parent=0 // pred_check_branch
    %39 = sbr.rel (0) target = $region25
  $region24: #{transformer_forward.1} parent=0 // pred_region
    _
  $region25: #{transformer_forward.1} parent=0 // pred_fallthru
    _
  // Predicated region
  $region26: #{transformer_forward.1} parent=0 // pred_check
    _
  $region27: #{transformer_forward.1} parent=0 // pred_check_branch
    %41 = sbr.rel (0) target = $region29
  $region28: #{transformer_forward.1} parent=0 // pred_region
    _
  $region29: #{transformer_forward.1} parent=0 // pred_fallthru
    _
  // Predicated region
  $region30: #{transformer_forward.1} parent=0 // pred_check
    _
  $region31: #{transformer_forward.1} parent=0 // pred_check_branch
    %43 = sbr.rel (0) target = $region33
  $region32: #{transformer_forward.1} parent=0 // pred_region
    _
  $region33: #{transformer_forward.1} parent=0 // pred_fallthru
    _
  // Predicated region
  $region34: #{transformer_forward.1} parent=0 // pred_check
    _
  $region35: #{transformer_forward.1} parent=0 // pred_check_branch
    %45 = sbr.rel (0) target = $region37
  $region36: #{transformer_forward.1} parent=0 // pred_region
    _
  $region37: #{transformer_forward.1} parent=0 // pred_fallthru
    _
  // Predicated region
  $region38: #{transformer_forward.1} parent=0 // pred_check
    _
  $region39: #{transformer_forward.1} parent=0 // pred_check_branch
    %47 = sbr.rel (0) target = $region41
  $region40: #{transformer_forward.1} parent=0 // pred_region
    _
  $region41: #{transformer_forward.1} parent=0 // pred_fallthru
    _
  // Predicated region
  $region42: #{transformer_forward.1} parent=0 // pred_check
    _
  $region43: #{transformer_forward.1} parent=0 // pred_check_branch
    %49 = sbr.rel (0) target = $region45
  $region44: #{transformer_forward.1} parent=0 // pred_region
    _
  $region45: #{transformer_forward.1} parent=0 // pred_fallthru
    _
  // Predicated region
  $region46: #{transformer_forward.1} parent=0 // pred_check
    _
  $region47: #{transformer_forward.1} parent=0 // pred_check_branch
    %51 = sbr.rel (0) target = $region49
  $region48: #{transformer_forward.1} parent=0 // pred_region
    _
  $region49: #{transformer_forward.1} parent=0 // pred_fallthru
    _
  // Predicated region
  $region50: #{transformer_forward.1} parent=0 // pred_check
    _
  $region51: #{transformer_forward.1} parent=0 // pred_check_branch
    %53 = sbr.rel (0) target = $region53
  $region52: #{transformer_forward.1} parent=0 // pred_region
    _
  $region53: #{transformer_forward.1} parent=0 // pred_fallthru
    _
  // Predicated region
  $region54: #{transformer_forward.1} parent=0 // pred_check
    _
  $region55: #{transformer_forward.1} parent=0 // pred_check_branch
    %55 = sbr.rel (0) target = $region57
  $region56: #{transformer_forward.1} parent=0 // pred_region
    _
  $region57: #{transformer_forward.1} parent=0 // pred_fallthru
    _
  // Predicated region
  $region58: #{transformer_forward.1} parent=0 // pred_check
    _
  $region59: #{transformer_forward.1} parent=0 // pred_check_branch
    %57 = sbr.rel (0) target = $region61
  $region60: #{transformer_forward.1} parent=0 // pred_region
    _
  $region61: #{transformer_forward.1} parent=0 // pred_fallthru
    _
  // Predicated region
  $region62: #{transformer_forward.1} parent=0 // pred_check
    _
  $region63: #{transformer_forward.1} parent=0 // pred_check_branch
    %59 = sbr.rel (0) target = $region65
  $region64: #{transformer_forward.1} parent=0 // pred_region
    _
  $region65: #{transformer_forward.1} parent=0 // pred_fallthru
    _
  // Predicated region
  $region66: #{transformer_forward.1} parent=0 // pred_check
    _
  $region67: #{transformer_forward.1} parent=0 // pred_check_branch
    %61 = sbr.rel (0) target = $region69
  $region68: #{transformer_forward.1} parent=0 // pred_region
    _
  $region69: #{transformer_forward.1} parent=0 // pred_fallthru
    _
  // Predicated region
  $region70: #{transformer_forward.1} parent=0 // pred_check
    _
  $region71: #{transformer_forward.1} parent=0 // pred_check_branch
    %63 = sbr.rel (0) target = $region73
  $region72: #{transformer_forward.1} parent=0 // pred_region
    _
  $region73: #{transformer_forward.1} parent=0 // pred_fallthru
    _
  // Predicated region
  $region74: #{transformer_forward.1} parent=0 // pred_check
    _
  $region75: #{transformer_forward.1} parent=0 // pred_check_branch
    %65 = sbr.rel (0) target = $region77
  $region76: #{transformer_forward.1} parent=0 // pred_region
    _
  $region77: #{transformer_forward.1} parent=0 // pred_fallthru
    _
  // Predicated region
  $region78: #{transformer_forward.1} parent=0 // pred_check
    _
  $region79: #{transformer_forward.1} parent=0 // pred_check_branch
    %67 = sbr.rel (0) target = $region81
  $region80: #{transformer_forward.1} parent=0 // pred_region
    _
  $region81: #{transformer_forward.1} parent=0 // pred_fallthru
    _
  // Predicated region
  $region82: #{transformer_forward.1} parent=0 // pred_check
    _
  $region83: #{transformer_forward.1} parent=0 // pred_check_branch
    %69 = sbr.rel (0) target = $region85
  $region84: #{transformer_forward.1} parent=0 // pred_region
    _
  $region85: #{transformer_forward.1} parent=0 // pred_fallthru
    _
  // Predicated region
  $region86: #{transformer_forward.1} parent=0 // pred_check
    _
  $region87: #{transformer_forward.1} parent=0 // pred_check_branch
    %71 = sbr.rel (0) target = $region89
  $region88: #{transformer_forward.1} parent=0 // pred_region
    _
  $region89: #{transformer_forward.1} parent=0 // pred_fallthru
    _
  // Predicated region
  $region90: #{transformer_forward.1} parent=0 // pred_check
    _
  $region91: #{transformer_forward.1} parent=0 // pred_check_branch
    %73 = sbr.rel (0) target = $region93
  $region92: #{transformer_forward.1} parent=0 // pred_region
    _
  $region93: #{transformer_forward.1} parent=0 // pred_fallthru
    _
  %v74 = vld [vmem:[%s5] sm:$0xff]
  %v75 = vld [vmem:[%s5 + $0x8] sm:$0xff]
  %v76 = vld [vmem:[%s5 + $0x10] sm:$0xff]
  %v77 = vld [vmem:[%s5 + $0x18] sm:$0xff]
  %v78 = vld [vmem:[%s5 + $0x20] sm:$0xff]
  %v79 = vld [vmem:[%s5 + $0x28] sm:$0xff]
  %v80 = vld [vmem:[%s5 + $0x30] sm:$0xff]
  %v81 = vld [vmem:[%s5 + $0x38] sm:$0xff]
  %v82 = vld [vmem:[%s6] sm:$0xff]
  %v83 = vld [vmem:[%s6 + $0x8] sm:$0xff]
  %v84 = vld [vmem:[%s6 + $0x10] sm:$0xff]
  %v85 = vld [vmem:[%s6 + $0x18] sm:$0xff]
  %v86 = vld [vmem:[%s6 + $0x20] sm:$0xff]
  %v87 = vld [vmem:[%s6 + $0x28] sm:$0xff]
  %v88 = vld [vmem:[%s6 + $0x30] sm:$0xff]
  %v89 = vld [vmem:[%s6 + $0x38] sm:$0xff]
  %v90 = vld [vmem:[%s7] sm:$0xff]
  %v91 = vld [vmem:[%s7 + $0x8] sm:$0xff]
  %v92 = vld [vmem:[%s8] sm:$0xff]
  %v93 = vld [vmem:[%s8 + $0x8] sm:$0xff]
  %v94 = vld [vmem:[%s9] sm:$0xff]
  %v95 = vld [vmem:[%s9 + $0x8] sm:$0xff]
  %v96 = vld [vmem:[%s9 + $0x10] sm:$0xff]
  %v97 = vld [vmem:[%s9 + $0x18] sm:$0xff]
  %v98 = vld [vmem:[%s9 + $0x20] sm:$0xff]
  %v99 = vld [vmem:[%s9 + $0x28] sm:$0xff]
  %v100 = vld [vmem:[%s9 + $0x30] sm:$0xff]
  %v101 = vld [vmem:[%s9 + $0x38] sm:$0xff]
  %v102 = vld [vmem:[%s10] sm:$0xff]
  %v103 = vld [vmem:[%s10 + $0x8] sm:$0xff]
  %v104 = vld [vmem:[%s10 + $0x10] sm:$0xff]
  %v105 = vld [vmem:[%s10 + $0x18] sm:$0xff]
  %v106 = vld [vmem:[%s10 + $0x20] sm:$0xff]
  %v107 = vld [vmem:[%s10 + $0x28] sm:$0xff]
  %v108 = vld [vmem:[%s10 + $0x30] sm:$0xff]
  %v109 = vld [vmem:[%s10 + $0x38] sm:$0xff]
  %v110 = vld [vmem:[%s2] sm:$0xff]
  %v111 = vld [vmem:[%s2 + $0x8] sm:$0xff]
  %v112 = vld [vmem:[%s2 + $0x10] sm:$0xff]
  %v113 = vld [vmem:[%s2 + $0x18] sm:$0xff]
  %v114 = vld [vmem:[%s2 + $0x20] sm:$0xff]
  %v115 = vld [vmem:[%s2 + $0x28] sm:$0xff]
  %v116 = vld [vmem:[%s2 + $0x30] sm:$0xff]
  %v117 = vld [vmem:[%s2 + $0x38] sm:$0xff]
  %v118 = vld [vmem:[%s3] sm:$0xff]
  %v119 = vld [vmem:[%s3 + $0x8] sm:$0xff]
  %v120 = vld [vmem:[%s3 + $0x10] sm:$0xff]
  %v121 = vld [vmem:[%s3 + $0x18] sm:$0xff]
  %v122 = vld [vmem:[%s3 + $0x20] sm:$0xff]
  %v123 = vld [vmem:[%s3 + $0x28] sm:$0xff]
  %v124 = vld [vmem:[%s3 + $0x30] sm:$0xff]
  %v125 = vld [vmem:[%s3 + $0x38] sm:$0xff]
  %v126 = vld [vmem:[%s4] sm:$0xff]
  %v127 = vld [vmem:[%s4 + $0x8] sm:$0xff]
  %v128 = vld [vmem:[%s4 + $0x10] sm:$0xff]
  %v129 = vld [vmem:[%s4 + $0x18] sm:$0xff]
  %v130 = vld [vmem:[%s4 + $0x20] sm:$0xff]
  %v131 = vld [vmem:[%s4 + $0x28] sm:$0xff]
  %v132 = vld [vmem:[%s4 + $0x30] sm:$0xff]
  %v133 = vld [vmem:[%s4 + $0x38] sm:$0xff]
  %v134 = vld [vmem:[%s0] sm:$0xff]
  %v135 = vld [vmem:[%s0 + $0x8] sm:$0xff]
  %vm136 = vcmask 130048
  %v138 = vsel %vm136, %v74, 0
  %v141 = vsel %vm136, %v75, 0
  %v144 = vsel %vm136, %v76, 0
  %v147 = vsel %vm136, %v77, 0
  %v150 = vsel %vm136, %v78, 0
  %v153 = vsel %vm136, %v79, 0
  %v156 = vsel %vm136, %v80, 0
  %v159 = vsel %vm136, %v81, 0
  %161 = vmatprep.subr.mxu0 0.0
  %162 = vmatpush1.msra.mxu0 %v134
  %163 = vmatprep.subr.mxu0 0.0
  %164 = vmatpush1.msra.mxu0 %v135
  %165 = vmatprep.subr.mxu0 0.0
  %166 = vmatpush1.msra.mxu0 0.0
  %167 = vmatprep.subr.mxu0 0.0
  %168 = vmatpush1.msra.mxu0 0.0
  %169 = vmatprep.subr.mxu0 0.0
  %170 = vmatpush1.msra.mxu0 0.0
  %171 = vmatprep.subr.mxu0 0.0
  %172 = vmatpush1.msra.mxu0 0.0
  %173 = vmatprep.subr.mxu0 0.0
  %174 = vmatpush1.msra.mxu0 0.0
  %175 = vmatprep.subr.mxu0 0.0
  %176 = vmatpush1.msra.mxu0 0.0
  %177 = vmatprep.subr.mxu0 0.0
  %178 = vmatpush1.msra.mxu0 0.0
  %179 = vmatprep.subr.mxu0 0.0
  %180 = vmatpush1.msra.mxu0 0.0
  %181 = vmatprep.subr.mxu0 0.0
  %182 = vmatpush1.msra.mxu0 0.0
  %183 = vmatprep.subr.mxu0 0.0
  %184 = vmatpush1.msra.mxu0 0.0
  %185 = vmatprep.subr.mxu0 0.0
  %186 = vmatpush1.msra.mxu0 0.0
  %187 = vmatprep.subr.mxu0 0.0
  %188 = vmatpush1.msra.mxu0 0.0
  %189 = vmatprep.subr.mxu0 0.0
  %190 = vmatpush1.msra.mxu0 0.0
  %191 = vmatprep.subr.mxu0 0.0
  %192 = vmatpush1.msra.mxu0 0.0
  %193 = vmatprep.subr.mxu0 0.0
  %194 = vmatpush1.msra.mxu0 0.0
  %195 = vmatprep.subr.mxu0 0.0
  %196 = vmatpush1.msra.mxu0 0.0
  %197 = vmatprep.subr.mxu0 0.0
  %198 = vmatpush1.msra.mxu0 0.0
  %199 = vmatprep.subr.mxu0 0.0
  %200 = vmatpush1.msra.mxu0 0.0
  %201 = vmatprep.subr.mxu0 0.0
  %202 = vmatpush1.msra.mxu0 0.0
  %203 = vmatprep.subr.mxu0 0.0
  %204 = vmatpush1.msra.mxu0 0.0
  %205 = vmatprep.subr.mxu0 0.0
  %206 = vmatpush1.msra.mxu0 0.0
  %207 = vmatprep.subr.mxu0 0.0
  %208 = vmatpush1.msra.mxu0 0.0
  %209 = vmatprep.subr.mxu0 0.0
  %210 = vmatpush1.msra.mxu0 0.0
  %211 = vmatprep.subr.mxu0 0.0
  %212 = vmatpush1.msra.mxu0 0.0
  %213 = vmatprep.subr.mxu0 0.0
  %214 = vmatpush1.msra.mxu0 0.0
  %215 = vmatprep.subr.mxu0 0.0
  %216 = vmatpush1.msra.mxu0 0.0
  %217 = vmatprep.subr.mxu0 0.0
  %218 = vmatpush1.msra.mxu0 0.0
  %219 = vmatprep.subr.mxu0 0.0
  %220 = vmatpush1.msra.mxu0 0.0
  %221 = vmatprep.subr.mxu0 0.0
  %222 = vmatpush1.msra.mxu0 0.0
  %223 = vmatprep.subr.mxu0 0.0
  %224 = vmatpush1.msra.mxu0 0.0
  %225 = vmatprep.mubr.f32.mxu0 0.0
  %226 = vmatmul.mubr.f32.gmra.mrb[0].mxu0 %v138
  %v227 = vpop.f32.mrb[0].mxu0
  %v228 = vadd.f32 0.0, %v227
  %v229 = vpop.f32.mrb[0].mxu0
  %230 = vmatprep.mubr.f32.mxu0 0.0
  %231 = vmatmul.mubr.f32.gmra.mrb[0].mxu0 %v141
  %v232 = vpop.f32.mrb[0].mxu0
  %v233 = vadd.f32 0.0, %v232
  %v234 = vpop.f32.mrb[0].mxu0
  %235 = vmatprep.mubr.f32.mxu0 0.0
  %236 = vmatmul.mubr.f32.gmra.mrb[0].mxu0 %v144
  %v237 = vpop.f32.mrb[0].mxu0
  %v238 = vadd.f32 0.0, %v237
  %v239 = vpop.f32.mrb[0].mxu0
  %240 = vmatprep.mubr.f32.mxu0 0.0
  %241 = vmatmul.mubr.f32.gmra.mrb[0].mxu0 %v147
  %v242 = vpop.f32.mrb[0].mxu0
  %v243 = vadd.f32 0.0, %v242
  %v244 = vpop.f32.mrb[0].mxu0
  %245 = vmatprep.mubr.f32.mxu0 0.0
  %246 = vmatmul.mubr.f32.gmra.mrb[0].mxu0 %v150
  %v247 = vpop.f32.mrb[0].mxu0
  %v248 = vadd.f32 0.0, %v247
  %v249 = vpop.f32.mrb[0].mxu0
  %250 = vmatprep.mubr.f32.mxu0 0.0
  %251 = vmatmul.mubr.f32.gmra.mrb[0].mxu0 %v153
  %v252 = vpop.f32.mrb[0].mxu0
  %v253 = vadd.f32 0.0, %v252
  %v254 = vpop.f32.mrb[0].mxu0
  %255 = vmatprep.mubr.f32.mxu0 0.0
  %256 = vmatmul.mubr.f32.gmra.mrb[0].mxu0 %v156
  %v257 = vpop.f32.mrb[0].mxu0
  %v258 = vadd.f32 0.0, %v257
  %v259 = vpop.f32.mrb[0].mxu0
  %260 = vmatprep.mubr.f32.mxu0 0.0
  %261 = vmatmul.mubr.f32.gmra.mrb[0].mxu0 %v159
  %v262 = vpop.f32.mrb[0].mxu0
  %v263 = vadd.f32 0.0, %v262
  %v264 = vpop.f32.mrb[0].mxu0
  %265 = vdwg.mxu0
  %v266 = vld [vmem:[%s11] sm:$0xff]
  %v267 = vld [vmem:[%s11 + $0x8] sm:$0xff]
  %v268 = vld [vmem:[%s11 + $0x10] sm:$0xff]
  %v269 = vld [vmem:[%s11 + $0x18] sm:$0xff]
  %v270 = vld [vmem:[%s14] sm:$0x1]
  %s271 = scalar_lea.vmem %s11, 32
  %v272 = vld [vmem:[%s271] sm:$0xff]
  %v273 = vld [vmem:[%s271 + $0x8] sm:$0xff]
  %v274 = vld [vmem:[%s271 + $0x10] sm:$0xff]
  %v275 = vld [vmem:[%s271 + $0x18] sm:$0xff]
  %v276 = vld [vmem:[%s14 + $0x1] sm:$0x1]
  %s277 = scalar_lea.vmem %s11, 64
  %v278 = vld [vmem:[%s277] sm:$0xff]
  %v279 = vld [vmem:[%s277 + $0x8] sm:$0xff]
  %v280 = vld [vmem:[%s277 + $0x10] sm:$0xff]
  %v281 = vld [vmem:[%s277 + $0x18] sm:$0xff]
  %v282 = vld [vmem:[%s14 + $0x2] sm:$0x1]
  %s283 = scalar_lea.vmem %s11, 96
  %v284 = vld [vmem:[%s283] sm:$0xff]
  %v285 = vld [vmem:[%s283 + $0x8] sm:$0xff]
  %v286 = vld [vmem:[%s283 + $0x10] sm:$0xff]
  %v287 = vld [vmem:[%s283 + $0x18] sm:$0xff]
  %v288 = vld [vmem:[%s14 + $0x3] sm:$0x1]
  %v289 = vlaneseq
  %v290 = vshrl.u32 %v289, 7
  %v291 = vsub.s32 0, %v290
  %v292 = vrot.slane %v270, %v291
  %vm293 = vcmask 261120
  %v295 = vsel %vm293, %v228, 0
  %v298 = vsel %vm293, %v233, 0
  %v301 = vsel %vm293, %v238, 0
  %v304 = vsel %vm293, %v243, 0
  %v307 = vsel %vm293, %v248, 0
  %v310 = vsel %vm293, %v253, 0
  %v313 = vsel %vm293, %v258, 0
  %v316 = vsel %vm293, %v263, 0
  %318 = vmatprep.subr.mxu0 0.0
  %319 = vmatpush1.msra.mxu0 %v266
  %320 = vmatprep.subr.mxu0 0.0
  %321 = vmatpush1.msra.mxu0 %v267
  %322 = vmatprep.subr.mxu0 0.0
  %323 = vmatpush1.msra.mxu0 %v268
  %324 = vmatprep.subr.mxu0 0.0
  %325 = vmatpush1.msra.mxu0 %v269
  %326 = vmatprep.subr.mxu0 0.0
  %327 = vmatpush1.msra.mxu0 0.0
  %328 = vmatprep.subr.mxu0 0.0
  %329 = vmatpush1.msra.mxu0 0.0
  %330 = vmatprep.subr.mxu0 0.0
  %331 = vmatpush1.msra.mxu0 0.0
  %332 = vmatprep.subr.mxu0 0.0
  %333 = vmatpush1.msra.mxu0 0.0
  %334 = vmatprep.subr.mxu0 0.0
  %335 = vmatpush1.msra.mxu0 0.0
  %336 = vmatprep.subr.mxu0 0.0
  %337 = vmatpush1.msra.mxu0 0.0
  %338 = vmatprep.subr.mxu0 0.0
  %339 = vmatpush1.msra.mxu0 0.0
  %340 = vmatprep.subr.mxu0 0.0
  %341 = vmatpush1.msra.mxu0 0.0
  %342 = vmatprep.subr.mxu0 0.0
  %343 = vmatpush1.msra.mxu0 0.0
  %344 = vmatprep.subr.mxu0 0.0
  %345 = vmatpush1.msra.mxu0 0.0
  %346 = vmatprep.subr.mxu0 0.0
  %347 = vmatpush1.msra.mxu0 0.0
  %348 = vmatprep.subr.mxu0 0.0
  %349 = vmatpush1.msra.mxu0 0.0
  %350 = vmatprep.subr.mxu0 0.0
  %351 = vmatpush1.msra.mxu0 0.0
  %352 = vmatprep.subr.mxu0 0.0
  %353 = vmatpush1.msra.mxu0 0.0
  %354 = vmatprep.subr.mxu0 0.0
  %355 = vmatpush1.msra.mxu0 0.0
  %356 = vmatprep.subr.mxu0 0.0
  %357 = vmatpush1.msra.mxu0 0.0
  %358 = vmatprep.subr.mxu0 0.0
  %359 = vmatpush1.msra.mxu0 0.0
  %360 = vmatprep.subr.mxu0 0.0
  %361 = vmatpush1.msra.mxu0 0.0
  %362 = vmatprep.subr.mxu0 0.0
  %363 = vmatpush1.msra.mxu0 0.0
  %364 = vmatprep.subr.mxu0 0.0
  %365 = vmatpush1.msra.mxu0 0.0
  %366 = vmatprep.subr.mxu0 0.0
  %367 = vmatpush1.msra.mxu0 0.0
  %368 = vmatprep.subr.mxu0 0.0
  %369 = vmatpush1.msra.mxu0 0.0
  %370 = vmatprep.subr.mxu0 0.0
  %371 = vmatpush1.msra.mxu0 0.0
  %372 = vmatprep.subr.mxu0 0.0
  %373 = vmatpush1.msra.mxu0 0.0
  %374 = vmatprep.subr.mxu0 0.0
  %375 = vmatpush1.msra.mxu0 0.0
  %376 = vmatprep.subr.mxu0 0.0
  %377 = vmatpush1.msra.mxu0 0.0
  %378 = vmatprep.subr.mxu0 0.0
  %379 = vmatpush1.msra.mxu0 0.0
  %380 = vmatprep.subr.mxu0 0.0
  %381 = vmatpush1.msra.mxu0 0.0
  %382 = vmatprep.mubr.f32.mxu0 0.0
  %383 = vmatmul.mubr.f32.gmra.mrb[0].mxu0 %v295
  %v384 = vpop.f32.mrb[0].mxu0
  %v385 = vadd.f32 %v292, %v384
  %v386 = vpop.f32.mrb[0].mxu0
  %387 = vmatprep.mubr.f32.mxu0 0.0
  %388 = vmatmul.mubr.f32.gmra.mrb[0].mxu0 %v298
  %v389 = vpop.f32.mrb[0].mxu0
  %v390 = vadd.f32 %v292, %v389
  %v391 = vpop.f32.mrb[0].mxu0
  %392 = vmatprep.mubr.f32.mxu0 0.0
  %393 = vmatmul.mubr.f32.gmra.mrb[0].mxu0 %v301
  %v394 = vpop.f32.mrb[0].mxu0
  %v395 = vadd.f32 %v292, %v394
  %v396 = vpop.f32.mrb[0].mxu0
  %397 = vmatprep.mubr.f32.mxu0 0.0
  %398 = vmatmul.mubr.f32.gmra.mrb[0].mxu0 %v304
  %v399 = vpop.f32.mrb[0].mxu0
  %v400 = vadd.f32 %v292, %v399
  %v401 = vpop.f32.mrb[0].mxu0
  %402 = vmatprep.mubr.f32.mxu0 0.0
  %403 = vmatmul.mubr.f32.gmra.mrb[0].mxu0 %v307
  %v404 = vpop.f32.mrb[0].mxu0
  %v405 = vadd.f32 %v292, %v404
  %v406 = vpop.f32.mrb[0].mxu0
  %407 = vmatprep.mubr.f32.mxu0 0.0
  %408 = vmatmul.mubr.f32.gmra.mrb[0].mxu0 %v310
  %v409 = vpop.f32.mrb[0].mxu0
  %v410 = vadd.f32 %v292, %v409
  %v411 = vpop.f32.mrb[0].mxu0
  %412 = vmatprep.mubr.f32.mxu0 0.0
  %413 = vmatmul.mubr.f32.gmra.mrb[0].mxu0 %v313
  %v414 = vpop.f32.mrb[0].mxu0
  %v415 = vadd.f32 %v292, %v414
  %v416 = vpop.f32.mrb[0].mxu0
  %417 = vmatprep.mubr.f32.mxu0 0.0
  %418 = vmatmul.mubr.f32.gmra.mrb[0].mxu0 %v316
  %v419 = vpop.f32.mrb[0].mxu0
  %v420 = vadd.f32 %v292, %v419
  %v421 = vpop.f32.mrb[0].mxu0
  %422 = vdwg.mxu0
  %v423 = vmul.f32 %v385, %v94
  %v424 = vmul.f32 %v390, %v95
  %v425 = vmul.f32 %v395, %v96
  %v426 = vmul.f32 %v400, %v97
  %v427 = vmul.f32 %v405, %v98
  %v428 = vmul.f32 %v410, %v99
  %v429 = vmul.f32 %v415, %v100
  %v430 = vmul.f32 %v420, %v101
  %v431 = vlaneseq
  %v432 = vshrl.u32 %v431, 7
  %v433 = vsub.s32 0, %v432
  %v434 = vrot.slane %v276, %v433
  %435 = vmatprep.subr.mxu0 0.0
  %436 = vmatpush1.msra.mxu0 %v272
  %437 = vmatprep.subr.mxu0 0.0
  %438 = vmatpush1.msra.mxu0 %v273
  %439 = vmatprep.subr.mxu0 0.0
  %440 = vmatpush1.msra.mxu0 %v274
  %441 = vmatprep.subr.mxu0 0.0
  %442 = vmatpush1.msra.mxu0 %v275
  %443 = vmatprep.subr.mxu0 0.0
  %444 = vmatpush1.msra.mxu0 0.0
  %445 = vmatprep.subr.mxu0 0.0
  %446 = vmatpush1.msra.mxu0 0.0
  %447 = vmatprep.subr.mxu0 0.0
  %448 = vmatpush1.msra.mxu0 0.0
  %449 = vmatprep.subr.mxu0 0.0
  %450 = vmatpush1.msra.mxu0 0.0
  %451 = vmatprep.subr.mxu0 0.0
  %452 = vmatpush1.msra.mxu0 0.0
  %453 = vmatprep.subr.mxu0 0.0
  %454 = vmatpush1.msra.mxu0 0.0
  %455 = vmatprep.subr.mxu0 0.0
  %456 = vmatpush1.msra.mxu0 0.0
  %457 = vmatprep.subr.mxu0 0.0
  %458 = vmatpush1.msra.mxu0 0.0
  %459 = vmatprep.subr.mxu0 0.0
  %460 = vmatpush1.msra.mxu0 0.0
  %461 = vmatprep.subr.mxu0 0.0
  %462 = vmatpush1.msra.mxu0 0.0
  %463 = vmatprep.subr.mxu0 0.0
  %464 = vmatpush1.msra.mxu0 0.0
  %465 = vmatprep.subr.mxu0 0.0
  %466 = vmatpush1.msra.mxu0 0.0
  %467 = vmatprep.subr.mxu0 0.0
  %468 = vmatpush1.msra.mxu0 0.0
  %469 = vmatprep.subr.mxu0 0.0
  %470 = vmatpush1.msra.mxu0 0.0
  %471 = vmatprep.subr.mxu0 0.0
  %472 = vmatpush1.msra.mxu0 0.0
  %473 = vmatprep.subr.mxu0 0.0
  %474 = vmatpush1.msra.mxu0 0.0
  %475 = vmatprep.subr.mxu0 0.0
  %476 = vmatpush1.msra.mxu0 0.0
  %477 = vmatprep.subr.mxu0 0.0
  %478 = vmatpush1.msra.mxu0 0.0
  %479 = vmatprep.subr.mxu0 0.0
  %480 = vmatpush1.msra.mxu0 0.0
  %481 = vmatprep.subr.mxu0 0.0
  %482 = vmatpush1.msra.mxu0 0.0
  %483 = vmatprep.subr.mxu0 0.0
  %484 = vmatpush1.msra.mxu0 0.0
  %485 = vmatprep.subr.mxu0 0.0
  %486 = vmatpush1.msra.mxu0 0.0
  %487 = vmatprep.subr.mxu0 0.0
  %488 = vmatpush1.msra.mxu0 0.0
  %489 = vmatprep.subr.mxu0 0.0
  %490 = vmatpush1.msra.mxu0 0.0
  %491 = vmatprep.subr.mxu0 0.0
  %492 = vmatpush1.msra.mxu0 0.0
  %493 = vmatprep.subr.mxu0 0.0
  %494 = vmatpush1.msra.mxu0 0.0
  %495 = vmatprep.subr.mxu0 0.0
  %496 = vmatpush1.msra.mxu0 0.0
  %497 = vmatprep.subr.mxu0 0.0
  %498 = vmatpush1.msra.mxu0 0.0
  %499 = vmatprep.mubr.f32.mxu0 0.0
  %500 = vmatmul.mubr.f32.gmra.mrb[0].mxu0 %v295
  %v501 = vpop.f32.mrb[0].mxu0
  %v502 = vadd.f32 %v434, %v501
  %v503 = vpop.f32.mrb[0].mxu0
  %504 = vmatprep.mubr.f32.mxu0 0.0
  %505 = vmatmul.mubr.f32.gmra.mrb[0].mxu0 %v298
  %v506 = vpop.f32.mrb[0].mxu0
  %v507 = vadd.f32 %v434, %v506
  %v508 = vpop.f32.mrb[0].mxu0
  %509 = vmatprep.mubr.f32.mxu0 0.0
  %510 = vmatmul.mubr.f32.gmra.mrb[0].mxu0 %v301
  %v511 = vpop.f32.mrb[0].mxu0
  %v512 = vadd.f32 %v434, %v511
  %v513 = vpop.f32.mrb[0].mxu0
  %514 = vmatprep.mubr.f32.mxu0 0.0
  %515 = vmatmul.mubr.f32.gmra.mrb[0].mxu0 %v304
  %v516 = vpop.f32.mrb[0].mxu0
  %v517 = vadd.f32 %v434, %v516
  %v518 = vpop.f32.mrb[0].mxu0
  %519 = vmatprep.mubr.f32.mxu0 0.0
  %520 = vmatmul.mubr.f32.gmra.mrb[0].mxu0 %v307
  %v521 = vpop.f32.mrb[0].mxu0
  %v522 = vadd.f32 %v434, %v521
  %v523 = vpop.f32.mrb[0].mxu0
  %524 = vmatprep.mubr.f32.mxu0 0.0
  %525 = vmatmul.mubr.f32.gmra.mrb[0].mxu0 %v310
  %v526 = vpop.f32.mrb[0].mxu0
  %v527 = vadd.f32 %v434, %v526
  %v528 = vpop.f32.mrb[0].mxu0
  %529 = vmatprep.mubr.f32.mxu0 0.0
  %530 = vmatmul.mubr.f32.gmra.mrb[0].mxu0 %v313
  %v531 = vpop.f32.mrb[0].mxu0
  %v532 = vadd.f32 %v434, %v531
  %v533 = vpop.f32.mrb[0].mxu0
  %534 = vmatprep.mubr.f32.mxu0 0.0
  %535 = vmatmul.mubr.f32.gmra.mrb[0].mxu0 %v316
  %v536 = vpop.f32.mrb[0].mxu0
  %v537 = vadd.f32 %v434, %v536
  %v538 = vpop.f32.mrb[0].mxu0
  %539 = vdwg.mxu0
  %v540 = vlaneseq
  %v541 = vshrl.u32 %v540, 7
  %v542 = vsub.s32 0, %v541
  %v543 = vrot.slane %v282, %v542
  %544 = vmatprep.subr.mxu0 0.0
  %545 = vmatpush1.msra.mxu0 %v278
  %546 = vmatprep.subr.mxu0 0.0
  %547 = vmatpush1.msra.mxu0 %v279
  %548 = vmatprep.subr.mxu0 0.0
  %549 = vmatpush1.msra.mxu0 %v280
  %550 = vmatprep.subr.mxu0 0.0
  %551 = vmatpush1.msra.mxu0 %v281
  %552 = vmatprep.subr.mxu0 0.0
  %553 = vmatpush1.msra.mxu0 0.0
  %554 = vmatprep.subr.mxu0 0.0
  %555 = vmatpush1.msra.mxu0 0.0
  %556 = vmatprep.subr.mxu0 0.0
  %557 = vmatpush1.msra.mxu0 0.0
  %558 = vmatprep.subr.mxu0 0.0
  %559 = vmatpush1.msra.mxu0 0.0
  %560 = vmatprep.subr.mxu0 0.0
  %561 = vmatpush1.msra.mxu0 0.0
  %562 = vmatprep.subr.mxu0 0.0
  %563 = vmatpush1.msra.mxu0 0.0
  %564 = vmatprep.subr.mxu0 0.0
  %565 = vmatpush1.msra.mxu0 0.0
  %566 = vmatprep.subr.mxu0 0.0
  %567 = vmatpush1.msra.mxu0 0.0
  %568 = vmatprep.subr.mxu0 0.0
  %569 = vmatpush1.msra.mxu0 0.0
  %570 = vmatprep.subr.mxu0 0.0
  %571 = vmatpush1.msra.mxu0 0.0
  %572 = vmatprep.subr.mxu0 0.0
  %573 = vmatpush1.msra.mxu0 0.0
  %574 = vmatprep.subr.mxu0 0.0
  %575 = vmatpush1.msra.mxu0 0.0
  %576 = vmatprep.subr.mxu0 0.0
  %577 = vmatpush1.msra.mxu0 0.0
  %578 = vmatprep.subr.mxu0 0.0
  %579 = vmatpush1.msra.mxu0 0.0
  %580 = vmatprep.subr.mxu0 0.0
  %581 = vmatpush1.msra.mxu0 0.0
  %582 = vmatprep.subr.mxu0 0.0
  %583 = vmatpush1.msra.mxu0 0.0
  %584 = vmatprep.subr.mxu0 0.0
  %585 = vmatpush1.msra.mxu0 0.0
  %586 = vmatprep.subr.mxu0 0.0
  %587 = vmatpush1.msra.mxu0 0.0
  %588 = vmatprep.subr.mxu0 0.0
  %589 = vmatpush1.msra.mxu0 0.0
  %590 = vmatprep.subr.mxu0 0.0
  %591 = vmatpush1.msra.mxu0 0.0
  %592 = vmatprep.subr.mxu0 0.0
  %593 = vmatpush1.msra.mxu0 0.0
  %594 = vmatprep.subr.mxu0 0.0
  %595 = vmatpush1.msra.mxu0 0.0
  %596 = vmatprep.subr.mxu0 0.0
  %597 = vmatpush1.msra.mxu0 0.0
  %598 = vmatprep.subr.mxu0 0.0
  %599 = vmatpush1.msra.mxu0 0.0
  %600 = vmatprep.subr.mxu0 0.0
  %601 = vmatpush1.msra.mxu0 0.0
  %602 = vmatprep.subr.mxu0 0.0
  %603 = vmatpush1.msra.mxu0 0.0
  %604 = vmatprep.subr.mxu0 0.0
  %605 = vmatpush1.msra.mxu0 0.0
  %606 = vmatprep.subr.mxu0 0.0
  %607 = vmatpush1.msra.mxu0 0.0
  %608 = vmatprep.mubr.f32.mxu0 0.0
  %609 = vmatmul.mubr.f32.gmra.mrb[0].mxu0 %v295
  %v610 = vpop.f32.mrb[0].mxu0
  %v611 = vadd.f32 %v543, %v610
  %v612 = vpop.f32.mrb[0].mxu0
  %613 = vmatprep.mubr.f32.mxu0 0.0
  %614 = vmatmul.mubr.f32.gmra.mrb[0].mxu0 %v298
  %v615 = vpop.f32.mrb[0].mxu0
  %v616 = vadd.f32 %v543, %v615
  %v617 = vpop.f32.mrb[0].mxu0
  %618 = vmatprep.mubr.f32.mxu0 0.0
  %619 = vmatmul.mubr.f32.gmra.mrb[0].mxu0 %v301
  %v620 = vpop.f32.mrb[0].mxu0
  %v621 = vadd.f32 %v543, %v620
  %v622 = vpop.f32.mrb[0].mxu0
  %623 = vmatprep.mubr.f32.mxu0 0.0
  %624 = vmatmul.mubr.f32.gmra.mrb[0].mxu0 %v304
  %v625 = vpop.f32.mrb[0].mxu0
  %v626 = vadd.f32 %v543, %v625
  %v627 = vpop.f32.mrb[0].mxu0
  %628 = vmatprep.mubr.f32.mxu0 0.0
  %629 = vmatmul.mubr.f32.gmra.mrb[0].mxu0 %v307
  %v630 = vpop.f32.mrb[0].mxu0
  %v631 = vadd.f32 %v543, %v630
  %v632 = vpop.f32.mrb[0].mxu0
  %633 = vmatprep.mubr.f32.mxu0 0.0
  %634 = vmatmul.mubr.f32.gmra.mrb[0].mxu0 %v310
  %v635 = vpop.f32.mrb[0].mxu0
  %v636 = vadd.f32 %v543, %v635
  %v637 = vpop.f32.mrb[0].mxu0
  %638 = vmatprep.mubr.f32.mxu0 0.0
  %639 = vmatmul.mubr.f32.gmra.mrb[0].mxu0 %v313
  %v640 = vpop.f32.mrb[0].mxu0
  %v641 = vadd.f32 %v543, %v640
  %v642 = vpop.f32.mrb[0].mxu0
  %643 = vmatprep.mubr.f32.mxu0 0.0
  %644 = vmatmul.mubr.f32.gmra.mrb[0].mxu0 %v316
  %v645 = vpop.f32.mrb[0].mxu0
  %v646 = vadd.f32 %v543, %v645
  %v647 = vpop.f32.mrb[0].mxu0
  %648 = vdwg.mxu0
  %v650 = vsel %vm293, %v423, 0
  %v653 = vsel %vm293, %v424, 0
  %v656 = vsel %vm293, %v425, 0
  %v659 = vsel %vm293, %v426, 0
  %v662 = vsel %vm293, %v427, 0
  %v665 = vsel %vm293, %v428, 0
  %v668 = vsel %vm293, %v429, 0
  %v671 = vsel %vm293, %v430, 0
  %v674 = vsel %vm293, %v502, 0
  %v677 = vsel %vm293, %v507, 0
  %v680 = vsel %vm293, %v512, 0
  %v683 = vsel %vm293, %v517, 0
  %v686 = vsel %vm293, %v522, 0
  %v689 = vsel %vm293, %v527, 0
  %v692 = vsel %vm293, %v532, 0
  %v695 = vsel %vm293, %v537, 0
  %697 = vmatprep.subr.mxu0 0.0
  %698 = vmatpush1.xpose.msra.mxu0 %v674
  %699 = vmatprep.subr.mxu0 0.0
  %700 = vmatpush1.xpose.msra.mxu0 %v677
  %701 = vmatprep.subr.mxu0 0.0
  %702 = vmatpush1.xpose.msra.mxu0 %v680
  %703 = vmatprep.subr.mxu0 0.0
  %704 = vmatpush1.xpose.msra.mxu0 %v683
  %705 = vmatprep.subr.mxu0 0.0
  %706 = vmatpush1.xpose.msra.mxu0 %v686
  %707 = vmatprep.subr.mxu0 0.0
  %708 = vmatpush1.xpose.msra.mxu0 %v689
  %709 = vmatprep.subr.mxu0 0.0
  %710 = vmatpush1.xpose.msra.mxu0 %v692
  %711 = vmatprep.subr.mxu0 0.0
  %712 = vmatpush1.xpose.msra.mxu0 %v695
  %713 = vmatprep.subr.mxu0 0.0
  %714 = vmatpush1.xpose.msra.mxu0 0.0
  %715 = vmatprep.subr.mxu0 0.0
  %716 = vmatpush1.xpose.msra.mxu0 0.0
  %717 = vmatprep.subr.mxu0 0.0
  %718 = vmatpush1.xpose.msra.mxu0 0.0
  %719 = vmatprep.subr.mxu0 0.0
  %720 = vmatpush1.xpose.msra.mxu0 0.0
  %721 = vmatprep.subr.mxu0 0.0
  %722 = vmatpush1.xpose.msra.mxu0 0.0
  %723 = vmatprep.subr.mxu0 0.0
  %724 = vmatpush1.xpose.msra.mxu0 0.0
  %725 = vmatprep.subr.mxu0 0.0
  %726 = vmatpush1.xpose.msra.mxu0 0.0
  %727 = vmatprep.subr.mxu0 0.0
  %728 = vmatpush1.xpose.msra.mxu0 0.0
  %729 = vmatprep.subr.mxu0 0.0
  %730 = vmatpush1.xpose.msra.mxu0 0.0
  %731 = vmatprep.subr.mxu0 0.0
  %732 = vmatpush1.xpose.msra.mxu0 0.0
  %733 = vmatprep.subr.mxu0 0.0
  %734 = vmatpush1.xpose.msra.mxu0 0.0
  %735 = vmatprep.subr.mxu0 0.0
  %736 = vmatpush1.xpose.msra.mxu0 0.0
  %737 = vmatprep.subr.mxu0 0.0
  %738 = vmatpush1.xpose.msra.mxu0 0.0
  %739 = vmatprep.subr.mxu0 0.0
  %740 = vmatpush1.xpose.msra.mxu0 0.0
  %741 = vmatprep.subr.mxu0 0.0
  %742 = vmatpush1.xpose.msra.mxu0 0.0
  %743 = vmatprep.subr.mxu0 0.0
  %744 = vmatpush1.xpose.msra.mxu0 0.0
  %745 = vmatprep.subr.mxu0 0.0
  %746 = vmatpush1.xpose.msra.mxu0 0.0
  %747 = vmatprep.subr.mxu0 0.0
  %748 = vmatpush1.xpose.msra.mxu0 0.0
  %749 = vmatprep.subr.mxu0 0.0
  %750 = vmatpush1.xpose.msra.mxu0 0.0
  %751 = vmatprep.subr.mxu0 0.0
  %752 = vmatpush1.xpose.msra.mxu0 0.0
  %753 = vmatprep.subr.mxu0 0.0
  %754 = vmatpush1.xpose.msra.mxu0 0.0
  %755 = vmatprep.subr.mxu0 0.0
  %756 = vmatpush1.xpose.msra.mxu0 0.0
  %757 = vmatprep.subr.mxu0 0.0
  %758 = vmatpush1.xpose.msra.mxu0 0.0
  %759 = vmatprep.subr.mxu0 0.0
  %760 = vmatpush1.xpose.msra.mxu0 0.0
  %761 = vmatprep.mubr.f32.mxu0 0.0
  %762 = vmatmul.mubr.f32.gmra.mrb[0].mxu0 %v650
  %v763 = vpop.f32.mrb[0].mxu0
  %v764 = vadd.f32 %v110, %v763
  %v765 = vpop.f32.mrb[0].mxu0
  %766 = vmatprep.mubr.f32.mxu0 0.0
  %767 = vmatmul.mubr.f32.gmra.mrb[0].mxu0 %v653
  %v768 = vpop.f32.mrb[0].mxu0
  %v769 = vadd.f32 %v111, %v768
  %v770 = vpop.f32.mrb[0].mxu0
  %771 = vmatprep.mubr.f32.mxu0 0.0
  %772 = vmatmul.mubr.f32.gmra.mrb[0].mxu0 %v656
  %v773 = vpop.f32.mrb[0].mxu0
  %v774 = vadd.f32 %v112, %v773
  %v775 = vpop.f32.mrb[0].mxu0
  %776 = vmatprep.mubr.f32.mxu0 0.0
  %777 = vmatmul.mubr.f32.gmra.mrb[0].mxu0 %v659
  %v778 = vpop.f32.mrb[0].mxu0
  %v779 = vadd.f32 %v113, %v778
  %v780 = vpop.f32.mrb[0].mxu0
  %781 = vmatprep.mubr.f32.mxu0 0.0
  %782 = vmatmul.mubr.f32.gmra.mrb[0].mxu0 %v662
  %v783 = vpop.f32.mrb[0].mxu0
  %v784 = vadd.f32 %v114, %v783
  %v785 = vpop.f32.mrb[0].mxu0
  %786 = vmatprep.mubr.f32.mxu0 0.0
  %787 = vmatmul.mubr.f32.gmra.mrb[0].mxu0 %v665
  %v788 = vpop.f32.mrb[0].mxu0
  %v789 = vadd.f32 %v115, %v788
  %v790 = vpop.f32.mrb[0].mxu0
  %791 = vmatprep.mubr.f32.mxu0 0.0
  %792 = vmatmul.mubr.f32.gmra.mrb[0].mxu0 %v668
  %v793 = vpop.f32.mrb[0].mxu0
  %v794 = vadd.f32 %v116, %v793
  %v795 = vpop.f32.mrb[0].mxu0
  %796 = vmatprep.mubr.f32.mxu0 0.0
  %797 = vmatmul.mubr.f32.gmra.mrb[0].mxu0 %v671
  %v798 = vpop.f32.mrb[0].mxu0
  %v799 = vadd.f32 %v117, %v798
  %v800 = vpop.f32.mrb[0].mxu0
  %801 = vdwg.mxu0
  %vm802 = vcmask 523264
  %v803 = vsel %vm802, %v764, -inf
  %804 = vmax.xlane.f32.xlu0 %v803
  %v805 = vpop.xlane.xlu0 %804
  %v806 = vsel %vm802, %v769, -inf
  %807 = vmax.xlane.f32.xlu0 %v806
  %v808 = vpop.xlane.xlu0 %807
  %v809 = vsel %vm802, %v774, -inf
  %810 = vmax.xlane.f32.xlu0 %v809
  %v811 = vpop.xlane.xlu0 %810
  %v812 = vsel %vm802, %v779, -inf
  %813 = vmax.xlane.f32.xlu0 %v812
  %v814 = vpop.xlane.xlu0 %813
  %v815 = vsel %vm802, %v784, -inf
  %816 = vmax.xlane.f32.xlu0 %v815
  %v817 = vpop.xlane.xlu0 %816
  %v818 = vsel %vm802, %v789, -inf
  %819 = vmax.xlane.f32.xlu0 %v818
  %v820 = vpop.xlane.xlu0 %819
  %v821 = vsel %vm802, %v794, -inf
  %822 = vmax.xlane.f32.xlu0 %v821
  %v823 = vpop.xlane.xlu0 %822
  %v824 = vsel %vm802, %v799, -inf
  %825 = vmax.xlane.f32.xlu0 %v824
  %v826 = vpop.xlane.xlu0 %825
  %v827 = vsub.f32 %v764, %v805
  %v828 = vsub.f32 %v769, %v808
  %v829 = vsub.f32 %v774, %v811
  %v830 = vsub.f32 %v779, %v814
  %v831 = vsub.f32 %v784, %v817
  %v832 = vsub.f32 %v789, %v820
  %v833 = vsub.f32 %v794, %v823
  %v834 = vsub.f32 %v799, %v826
  %v835 = vmul.f32 %v827, 1.442695
  %v836 = vpow.pop %v835
  %v837 = vmul.f32 %v828, 1.442695
  %v838 = vpow.pop %v837
  %v839 = vmul.f32 %v829, 1.442695
  %v840 = vpow.pop %v839
  %v841 = vmul.f32 %v830, 1.442695
  %v842 = vpow.pop %v841
  %v843 = vmul.f32 %v831, 1.442695
  %v844 = vpow.pop %v843
  %v845 = vmul.f32 %v832, 1.442695
  %v846 = vpow.pop %v845
  %v847 = vmul.f32 %v833, 1.442695
  %v848 = vpow.pop %v847
  %v849 = vmul.f32 %v834, 1.442695
  %v850 = vpow.pop %v849
  %v851 = vsel %vm802, %v836, 0.0
  %852 = vadd.xlane.f32.xlu0 %v851
  %v853 = vpop.xlane.xlu0 %852
  %v854 = vsel %vm802, %v838, 0.0
  %855 = vadd.xlane.f32.xlu0 %v854
  %v856 = vpop.xlane.xlu0 %855
  %v857 = vsel %vm802, %v840, 0.0
  %858 = vadd.xlane.f32.xlu0 %v857
  %v859 = vpop.xlane.xlu0 %858
  %v860 = vsel %vm802, %v842, 0.0
  %861 = vadd.xlane.f32.xlu0 %v860
  %v862 = vpop.xlane.xlu0 %861
  %v863 = vsel %vm802, %v844, 0.0
  %864 = vadd.xlane.f32.xlu0 %v863
  %v865 = vpop.xlane.xlu0 %864
  %v866 = vsel %vm802, %v846, 0.0
  %867 = vadd.xlane.f32.xlu0 %v866
  %v868 = vpop.xlane.xlu0 %867
  %v869 = vsel %vm802, %v848, 0.0
  %870 = vadd.xlane.f32.xlu0 %v869
  %v871 = vpop.xlane.xlu0 %870
  %v872 = vsel %vm802, %v850, 0.0
  %873 = vadd.xlane.f32.xlu0 %v872
  %v874 = vpop.xlane.xlu0 %873
  %v875 = vrcp.pop %v853
  %v876 = vmul.f32 %v836, %v875
  %v877 = vrcp.pop %v856
  %v878 = vmul.f32 %v838, %v877
  %v879 = vrcp.pop %v859
  %v880 = vmul.f32 %v840, %v879
  %v881 = vrcp.pop %v862
  %v882 = vmul.f32 %v842, %v881
  %v883 = vrcp.pop %v865
  %v884 = vmul.f32 %v844, %v883
  %v885 = vrcp.pop %v868
  %v886 = vmul.f32 %v846, %v885
  %v887 = vrcp.pop %v871
  %v888 = vmul.f32 %v848, %v887
  %v889 = vrcp.pop %v874
  %v890 = vmul.f32 %v850, %v889
  %v892 = vsel %vm802, %v876, 0
  %v895 = vsel %vm802, %v878, 0
  %v898 = vsel %vm802, %v880, 0
  %v901 = vsel %vm802, %v882, 0
  %v904 = vsel %vm802, %v884, 0
  %v907 = vsel %vm802, %v886, 0
  %v910 = vsel %vm802, %v888, 0
  %v913 = vsel %vm802, %v890, 0
  %915 = vmatprep.subr.mxu0 0.0
  %916 = vmatpush1.msra.mxu0 %v611
  %917 = vmatprep.subr.mxu0 0.0
  %918 = vmatpush1.msra.mxu0 %v616
  %919 = vmatprep.subr.mxu0 0.0
  %920 = vmatpush1.msra.mxu0 %v621
  %921 = vmatprep.subr.mxu0 0.0
  %922 = vmatpush1.msra.mxu0 %v626
  %923 = vmatprep.subr.mxu0 0.0
  %924 = vmatpush1.msra.mxu0 %v631
  %925 = vmatprep.subr.mxu0 0.0
  %926 = vmatpush1.msra.mxu0 %v636
  %927 = vmatprep.subr.mxu0 0.0
  %928 = vmatpush1.msra.mxu0 %v641
  %929 = vmatprep.subr.mxu0 0.0
  %930 = vmatpush1.msra.mxu0 %v646
  %931 = vmatprep.subr.mxu0 0.0
  %932 = vmatpush1.msra.mxu0 0.0
  %933 = vmatprep.subr.mxu0 0.0
  %934 = vmatpush1.msra.mxu0 0.0
  %935 = vmatprep.subr.mxu0 0.0
  %936 = vmatpush1.msra.mxu0 0.0
  %937 = vmatprep.subr.mxu0 0.0
  %938 = vmatpush1.msra.mxu0 0.0
  %939 = vmatprep.subr.mxu0 0.0
  %940 = vmatpush1.msra.mxu0 0.0
  %941 = vmatprep.subr.mxu0 0.0
  %942 = vmatpush1.msra.mxu0 0.0
  %943 = vmatprep.subr.mxu0 0.0
  %944 = vmatpush1.msra.mxu0 0.0
  %945 = vmatprep.subr.mxu0 0.0
  %946 = vmatpush1.msra.mxu0 0.0
  %947 = vmatprep.subr.mxu0 0.0
  %948 = vmatpush1.msra.mxu0 0.0
  %949 = vmatprep.subr.mxu0 0.0
  %950 = vmatpush1.msra.mxu0 0.0
  %951 = vmatprep.subr.mxu0 0.0
  %952 = vmatpush1.msra.mxu0 0.0
  %953 = vmatprep.subr.mxu0 0.0
  %954 = vmatpush1.msra.mxu0 0.0
  %955 = vmatprep.subr.mxu0 0.0
  %956 = vmatpush1.msra.mxu0 0.0
  %957 = vmatprep.subr.mxu0 0.0
  %958 = vmatpush1.msra.mxu0 0.0
  %959 = vmatprep.subr.mxu0 0.0
  %960 = vmatpush1.msra.mxu0 0.0
  %961 = vmatprep.subr.mxu0 0.0
  %962 = vmatpush1.msra.mxu0 0.0
  %963 = vmatprep.subr.mxu0 0.0
  %964 = vmatpush1.msra.mxu0 0.0
  %965 = vmatprep.subr.mxu0 0.0
  %966 = vmatpush1.msra.mxu0 0.0
  %967 = vmatprep.subr.mxu0 0.0
  %968 = vmatpush1.msra.mxu0 0.0
  %969 = vmatprep.subr.mxu0 0.0
  %970 = vmatpush1.msra.mxu0 0.0
  %971 = vmatprep.subr.mxu0 0.0
  %972 = vmatpush1.msra.mxu0 0.0
  %973 = vmatprep.subr.mxu0 0.0
  %974 = vmatpush1.msra.mxu0 0.0
  %975 = vmatprep.subr.mxu0 0.0
  %976 = vmatpush1.msra.mxu0 0.0
  %977 = vmatprep.subr.mxu0 0.0
  %978 = vmatpush1.msra.mxu0 0.0
  %979 = vmatprep.mubr.f32.mxu0 0.0
  %980 = vmatmul.mubr.f32.gmra.mrb[0].mxu0 %v892
  %v981 = vpop.f32.mrb[0].mxu0
  %v982 = vadd.f32 0.0, %v981
  %v983 = vpop.f32.mrb[0].mxu0
  %984 = vmatprep.mubr.f32.mxu0 0.0
  %985 = vmatmul.mubr.f32.gmra.mrb[0].mxu0 %v895
  %v986 = vpop.f32.mrb[0].mxu0
  %v987 = vadd.f32 0.0, %v986
  %v988 = vpop.f32.mrb[0].mxu0
  %989 = vmatprep.mubr.f32.mxu0 0.0
  %990 = vmatmul.mubr.f32.gmra.mrb[0].mxu0 %v898
  %v991 = vpop.f32.mrb[0].mxu0
  %v992 = vadd.f32 0.0, %v991
  %v993 = vpop.f32.mrb[0].mxu0
  %994 = vmatprep.mubr.f32.mxu0 0.0
  %995 = vmatmul.mubr.f32.gmra.mrb[0].mxu0 %v901
  %v996 = vpop.f32.mrb[0].mxu0
  %v997 = vadd.f32 0.0, %v996
  %v998 = vpop.f32.mrb[0].mxu0
  %999 = vmatprep.mubr.f32.mxu0 0.0
  %1000 = vmatmul.mubr.f32.gmra.mrb[0].mxu0 %v904
  %v1001 = vpop.f32.mrb[0].mxu0
  %v1002 = vadd.f32 0.0, %v1001
  %v1003 = vpop.f32.mrb[0].mxu0
  %1004 = vmatprep.mubr.f32.mxu0 0.0
  %1005 = vmatmul.mubr.f32.gmra.mrb[0].mxu0 %v907
  %v1006 = vpop.f32.mrb[0].mxu0
  %v1007 = vadd.f32 0.0, %v1006
  %v1008 = vpop.f32.mrb[0].mxu0
  %1009 = vmatprep.mubr.f32.mxu0 0.0
  %1010 = vmatmul.mubr.f32.gmra.mrb[0].mxu0 %v910
  %v1011 = vpop.f32.mrb[0].mxu0
  %v1012 = vadd.f32 0.0, %v1011
  %v1013 = vpop.f32.mrb[0].mxu0
  %1014 = vmatprep.mubr.f32.mxu0 0.0
  %1015 = vmatmul.mubr.f32.gmra.mrb[0].mxu0 %v913
  %v1016 = vpop.f32.mrb[0].mxu0
  %v1017 = vadd.f32 0.0, %v1016
  %v1018 = vpop.f32.mrb[0].mxu0
  %1019 = vdwg.mxu0
  %v1020 = vmul.f32 %v982, %v94
  %v1021 = vmul.f32 %v987, %v95
  %v1022 = vmul.f32 %v992, %v96
  %v1023 = vmul.f32 %v997, %v97
  %v1024 = vmul.f32 %v1002, %v98
  %v1025 = vmul.f32 %v1007, %v99
  %v1026 = vmul.f32 %v1012, %v100
  %v1027 = vmul.f32 %v1017, %v101
  %v1029 = vsel %vm802, %v90, 0
  %v1032 = vsel %vm802, %v91, 0
  %1034 = vmatprep.subr.mxu0 0.0
  %1035 = vmatpush1.msra.mxu0 %v1020
  %1036 = vmatprep.subr.mxu0 0.0
  %1037 = vmatpush1.msra.mxu0 %v1021
  %1038 = vmatprep.subr.mxu0 0.0
  %1039 = vmatpush1.msra.mxu0 %v1022
  %1040 = vmatprep.subr.mxu0 0.0
  %1041 = vmatpush1.msra.mxu0 %v1023
  %1042 = vmatprep.subr.mxu0 0.0
  %1043 = vmatpush1.msra.mxu0 %v1024
  %1044 = vmatprep.subr.mxu0 0.0
  %1045 = vmatpush1.msra.mxu0 %v1025
  %1046 = vmatprep.subr.mxu0 0.0
  %1047 = vmatpush1.msra.mxu0 %v1026
  %1048 = vmatprep.subr.mxu0 0.0
  %1049 = vmatpush1.msra.mxu0 %v1027
  %1050 = vmatprep.subr.mxu0 0.0
  %1051 = vmatpush1.msra.mxu0 0.0
  %1052 = vmatprep.subr.mxu0 0.0
  %1053 = vmatpush1.msra.mxu0 0.0
  %1054 = vmatprep.subr.mxu0 0.0
  %1055 = vmatpush1.msra.mxu0 0.0
  %1056 = vmatprep.subr.mxu0 0.0
  %1057 = vmatpush1.msra.mxu0 0.0
  %1058 = vmatprep.subr.mxu0 0.0
  %1059 = vmatpush1.msra.mxu0 0.0
  %1060 = vmatprep.subr.mxu0 0.0
  %1061 = vmatpush1.msra.mxu0 0.0
  %1062 = vmatprep.subr.mxu0 0.0
  %1063 = vmatpush1.msra.mxu0 0.0
  %1064 = vmatprep.subr.mxu0 0.0
  %1065 = vmatpush1.msra.mxu0 0.0
  %1066 = vmatprep.subr.mxu0 0.0
  %1067 = vmatpush1.msra.mxu0 0.0
  %1068 = vmatprep.subr.mxu0 0.0
  %1069 = vmatpush1.msra.mxu0 0.0
  %1070 = vmatprep.subr.mxu0 0.0
  %1071 = vmatpush1.msra.mxu0 0.0
  %1072 = vmatprep.subr.mxu0 0.0
  %1073 = vmatpush1.msra.mxu0 0.0
  %1074 = vmatprep.subr.mxu0 0.0
  %1075 = vmatpush1.msra.mxu0 0.0
  %1076 = vmatprep.subr.mxu0 0.0
  %1077 = vmatpush1.msra.mxu0 0.0
  %1078 = vmatprep.subr.mxu0 0.0
  %1079 = vmatpush1.msra.mxu0 0.0
  %1080 = vmatprep.subr.mxu0 0.0
  %1081 = vmatpush1.msra.mxu0 0.0
  %1082 = vmatprep.subr.mxu0 0.0
  %1083 = vmatpush1.msra.mxu0 0.0
  %1084 = vmatprep.subr.mxu0 0.0
  %1085 = vmatpush1.msra.mxu0 0.0
  %1086 = vmatprep.subr.mxu0 0.0
  %1087 = vmatpush1.msra.mxu0 0.0
  %1088 = vmatprep.subr.mxu0 0.0
  %1089 = vmatpush1.msra.mxu0 0.0
  %1090 = vmatprep.subr.mxu0 0.0
  %1091 = vmatpush1.msra.mxu0 0.0
  %1092 = vmatprep.subr.mxu0 0.0
  %1093 = vmatpush1.msra.mxu0 0.0
  %1094 = vmatprep.subr.mxu0 0.0
  %1095 = vmatpush1.msra.mxu0 0.0
  %1096 = vmatprep.subr.mxu0 0.0
  %1097 = vmatpush1.msra.mxu0 0.0
  %1098 = vmatprep.mubr.f32.mxu0 0.0
  %1099 = vmatmul.mubr.f32.gmra.mrb[0].mxu0 %v1029
  %v1100 = vpop.f32.mrb[0].mxu0
  %v1101 = vadd.f32 0.0, %v1100
  %v1102 = vpop.f32.mrb[0].mxu0
  %1103 = vmatprep.mubr.f32.mxu0 0.0
  %1104 = vmatmul.mubr.f32.gmra.mrb[0].mxu0 %v1032
  %v1105 = vpop.f32.mrb[0].mxu0
  %v1106 = vadd.f32 0.0, %v1105
  %v1107 = vpop.f32.mrb[0].mxu0
  %1108 = vdwg.mxu0
  %v1109 = vlaneseq
  %v1110 = vshrl.u32 %v1109, 7
  %v1111 = vsub.s32 0, %v1110
  %v1112 = vrot.slane %v288, %v1111
  %v1114 = vsel %vm293, %v1101, 0
  %v1117 = vsel %vm293, %v1106, 0
  %1119 = vmatprep.subr.mxu0 0.0
  %1120 = vmatpush1.msra.mxu0 %v284
  %1121 = vmatprep.subr.mxu0 0.0
  %1122 = vmatpush1.msra.mxu0 %v285
  %1123 = vmatprep.subr.mxu0 0.0
  %1124 = vmatpush1.msra.mxu0 %v286
  %1125 = vmatprep.subr.mxu0 0.0
  %1126 = vmatpush1.msra.mxu0 %v287
  %1127 = vmatprep.subr.mxu0 0.0
  %1128 = vmatpush1.msra.mxu0 0.0
  %1129 = vmatprep.subr.mxu0 0.0
  %1130 = vmatpush1.msra.mxu0 0.0
  %1131 = vmatprep.subr.mxu0 0.0
  %1132 = vmatpush1.msra.mxu0 0.0
  %1133 = vmatprep.subr.mxu0 0.0
  %1134 = vmatpush1.msra.mxu0 0.0
  %1135 = vmatprep.subr.mxu0 0.0
  %1136 = vmatpush1.msra.mxu0 0.0
  %1137 = vmatprep.subr.mxu0 0.0
  %1138 = vmatpush1.msra.mxu0 0.0
  %1139 = vmatprep.subr.mxu0 0.0
  %1140 = vmatpush1.msra.mxu0 0.0
  %1141 = vmatprep.subr.mxu0 0.0
  %1142 = vmatpush1.msra.mxu0 0.0
  %1143 = vmatprep.subr.mxu0 0.0
  %1144 = vmatpush1.msra.mxu0 0.0
  %1145 = vmatprep.subr.mxu0 0.0
  %1146 = vmatpush1.msra.mxu0 0.0
  %1147 = vmatprep.subr.mxu0 0.0
  %1148 = vmatpush1.msra.mxu0 0.0
  %1149 = vmatprep.subr.mxu0 0.0
  %1150 = vmatpush1.msra.mxu0 0.0
  %1151 = vmatprep.subr.mxu0 0.0
  %1152 = vmatpush1.msra.mxu0 0.0
  %1153 = vmatprep.subr.mxu0 0.0
  %1154 = vmatpush1.msra.mxu0 0.0
  %1155 = vmatprep.subr.mxu0 0.0
  %1156 = vmatpush1.msra.mxu0 0.0
  %1157 = vmatprep.subr.mxu0 0.0
  %1158 = vmatpush1.msra.mxu0 0.0
  %1159 = vmatprep.subr.mxu0 0.0
  %1160 = vmatpush1.msra.mxu0 0.0
  %1161 = vmatprep.subr.mxu0 0.0
  %1162 = vmatpush1.msra.mxu0 0.0
  %1163 = vmatprep.subr.mxu0 0.0
  %1164 = vmatpush1.msra.mxu0 0.0
  %1165 = vmatprep.subr.mxu0 0.0
  %1166 = vmatpush1.msra.mxu0 0.0
  %1167 = vmatprep.subr.mxu0 0.0
  %1168 = vmatpush1.msra.mxu0 0.0
  %1169 = vmatprep.subr.mxu0 0.0
  %1170 = vmatpush1.msra.mxu0 0.0
  %1171 = vmatprep.subr.mxu0 0.0
  %1172 = vmatpush1.msra.mxu0 0.0
  %1173 = vmatprep.subr.mxu0 0.0
  %1174 = vmatpush1.msra.mxu0 0.0
  %1175 = vmatprep.subr.mxu0 0.0
  %1176 = vmatpush1.msra.mxu0 0.0
  %1177 = vmatprep.subr.mxu0 0.0
  %1178 = vmatpush1.msra.mxu0 0.0
  %1179 = vmatprep.subr.mxu0 0.0
  %1180 = vmatpush1.msra.mxu0 0.0
  %1181 = vmatprep.subr.mxu0 0.0
  %1182 = vmatpush1.msra.mxu0 0.0
  %1183 = vmatprep.mubr.f32.mxu0 0.0
  %1184 = vmatmul.mubr.f32.gmra.mrb[0].mxu0 %v1114
  %v1185 = vpop.f32.mrb[0].mxu0
  %v1186 = vadd.f32 %v1112, %v1185
  %v1187 = vpop.f32.mrb[0].mxu0
  %1188 = vmatprep.mubr.f32.mxu0 0.0
  %1189 = vmatmul.mubr.f32.gmra.mrb[0].mxu0 %v1117
  %v1190 = vpop.f32.mrb[0].mxu0
  %v1191 = vadd.f32 %v1112, %v1190
  %v1192 = vpop.f32.mrb[0].mxu0
  %1193 = vdwg.mxu0
  %v1194 = vadd.f32 %v134, %v1186
  %v1195 = vadd.f32 %v135, %v1191
  %v1196 = vld [vmem:[%s14 + $0x4] sm:$0x1]
  %v1197 = vld [vmem:[%s14 + $0x5] sm:$0x1]
  %v1198 = vsel %vm293, %v1194, 0.0
  %1199 = vadd.xlane.f32.xlu0 %v1198
  %v1200 = vpop.xlane.xlu0 %1199
  %v1201 = vsel %vm293, %v1195, 0.0
  %1202 = vadd.xlane.f32.xlu0 %v1201
  %v1203 = vpop.xlane.xlu0 %1202
  %v1204 = vrcp.pop 32.0
  %v1205 = vmul.f32 %v1200, %v1204
  %v1206 = vmul.f32 %v1203, %v1204
  %v1207 = vsub.f32 %v1194, %v1205
  %v1208 = vsub.f32 %v1195, %v1206
  %v1209 = vmul.f32 %v1207, %v1207
  %v1210 = vmul.f32 %v1208, %v1208
  %v1211 = vsel %vm293, %v1209, 0.0
  %1212 = vadd.xlane.f32.xlu0 %v1211
  %v1213 = vpop.xlane.xlu0 %1212
  %v1214 = vsel %vm293, %v1210, 0.0
  %1215 = vadd.xlane.f32.xlu0 %v1214
  %v1216 = vpop.xlane.xlu0 %1215
  %v1217 = vmul.f32 %v1213, %v1204
  %v1218 = vmul.f32 %v1216, %v1204
  %v1219 = vadd.f32 %v1217, 1e-05
  %v1220 = vadd.f32 %v1218, 1e-05
  %v1221 = vrsqrt.pop %v1219
  %v1222 = vrsqrt.pop %v1220
  %v1223 = vmul.f32 %v1207, %v1221
  %v1224 = vmul.f32 %v1208, %v1222
  %v1225 = vlaneseq
  %v1226 = vshrl.u32 %v1225, 7
  %v1227 = vsub.s32 0, %v1226
  %v1228 = vrot.slane %v1196, %v1227
  %v1229 = vmul.f32 %v1223, %v1228
  %v1230 = vmul.f32 %v1224, %v1228
  %v1231 = vlaneseq
  %v1232 = vshrl.u32 %v1231, 7
  %v1233 = vsub.s32 0, %v1232
  %v1234 = vrot.slane %v1197, %v1233
  %v1235 = vadd.f32 %v1229, %v1234
  %v1236 = vadd.f32 %v1230, %v1234
  %v1237 = vld [vmem:[%s12] sm:$0xff]
  %v1238 = vld [vmem:[%s12 + $0x8] sm:$0xff]
  %v1239 = vld [vmem:[%s12 + $0x10] sm:$0xff]
  %v1240 = vld [vmem:[%s12 + $0x18] sm:$0xff]
  %v1241 = vld [vmem:[%s15] sm:$0x1]
  %v1242 = vlaneseq
  %v1243 = vshrl.u32 %v1242, 7
  %v1244 = vsub.s32 0, %v1243
  %v1245 = vrot.slane %v1241, %v1244
  %v1247 = vsel %vm293, %v1235, 0
  %v1250 = vsel %vm293, %v1236, 0
  %1252 = vmatprep.subr.mxu0 0.0
  %1253 = vmatpush1.msra.mxu0 %v1237
  %1254 = vmatprep.subr.mxu0 0.0
  %1255 = vmatpush1.msra.mxu0 %v1238
  %1256 = vmatprep.subr.mxu0 0.0
  %1257 = vmatpush1.msra.mxu0 %v1239
  %1258 = vmatprep.subr.mxu0 0.0
  %1259 = vmatpush1.msra.mxu0 %v1240
  %1260 = vmatprep.subr.mxu0 0.0
  %1261 = vmatpush1.msra.mxu0 0.0
  %1262 = vmatprep.subr.mxu0 0.0
  %1263 = vmatpush1.msra.mxu0 0.0
  %1264 = vmatprep.subr.mxu0 0.0
  %1265 = vmatpush1.msra.mxu0 0.0
  %1266 = vmatprep.subr.mxu0 0.0
  %1267 = vmatpush1.msra.mxu0 0.0
  %1268 = vmatprep.subr.mxu0 0.0
  %1269 = vmatpush1.msra.mxu0 0.0
  %1270 = vmatprep.subr.mxu0 0.0
  %1271 = vmatpush1.msra.mxu0 0.0
  %1272 = vmatprep.subr.mxu0 0.0
  %1273 = vmatpush1.msra.mxu0 0.0
  %1274 = vmatprep.subr.mxu0 0.0
  %1275 = vmatpush1.msra.mxu0 0.0
  %1276 = vmatprep.subr.mxu0 0.0
  %1277 = vmatpush1.msra.mxu0 0.0
  %1278 = vmatprep.subr.mxu0 0.0
  %1279 = vmatpush1.msra.mxu0 0.0
  %1280 = vmatprep.subr.mxu0 0.0
  %1281 = vmatpush1.msra.mxu0 0.0
  %1282 = vmatprep.subr.mxu0 0.0
  %1283 = vmatpush1.msra.mxu0 0.0
  %1284 = vmatprep.subr.mxu0 0.0
  %1285 = vmatpush1.msra.mxu0 0.0
  %1286 = vmatprep.subr.mxu0 0.0
  %1287 = vmatpush1.msra.mxu0 0.0
  %1288 = vmatprep.subr.mxu0 0.0
  %1289 = vmatpush1.msra.mxu0 0.0
  %1290 = vmatprep.subr.mxu0 0.0
  %1291 = vmatpush1.msra.mxu0 0.0
  %1292 = vmatprep.subr.mxu0 0.0
  %1293 = vmatpush1.msra.mxu0 0.0
  %1294 = vmatprep.subr.mxu0 0.0
  %1295 = vmatpush1.msra.mxu0 0.0
  %1296 = vmatprep.subr.mxu0 0.0
  %1297 = vmatpush1.msra.mxu0 0.0
  %1298 = vmatprep.subr.mxu0 0.0
  %1299 = vmatpush1.msra.mxu0 0.0
  %1300 = vmatprep.subr.mxu0 0.0
  %1301 = vmatpush1.msra.mxu0 0.0
  %1302 = vmatprep.subr.mxu0 0.0
  %1303 = vmatpush1.msra.mxu0 0.0
  %1304 = vmatprep.subr.mxu0 0.0
  %1305 = vmatpush1.msra.mxu0 0.0
  %1306 = vmatprep.subr.mxu0 0.0
  %1307 = vmatpush1.msra.mxu0 0.0
  %1308 = vmatprep.subr.mxu0 0.0
  %1309 = vmatpush1.msra.mxu0 0.0
  %1310 = vmatprep.subr.mxu0 0.0
  %1311 = vmatpush1.msra.mxu0 0.0
  %1312 = vmatprep.subr.mxu0 0.0
  %1313 = vmatpush1.msra.mxu0 0.0
  %1314 = vmatprep.subr.mxu0 0.0
  %1315 = vmatpush1.msra.mxu0 0.0
  %1316 = vmatprep.mubr.f32.mxu0 0.0
  %1317 = vmatmul.mubr.f32.gmra.mrb[0].mxu0 %v1247
  %v1318 = vpop.f32.mrb[0].mxu0
  %v1319 = vadd.f32 %v1245, %v1318
  %v1320 = vpop.f32.mrb[0].mxu0
  %1321 = vmatprep.mubr.f32.mxu0 0.0
  %1322 = vmatmul.mubr.f32.gmra.mrb[0].mxu0 %v1250
  %v1323 = vpop.f32.mrb[0].mxu0
  %v1324 = vadd.f32 %v1245, %v1323
  %v1325 = vpop.f32.mrb[0].mxu0
  %1326 = vdwg.mxu0
  %v1327 = vmax.f32 %v1319, 0.0
  %v1328 = vmax.f32 %v1324, 0.0
  %v1329 = vld [vmem:[%s13] sm:$0xff]
  %v1330 = vld [vmem:[%s13 + $0x8] sm:$0xff]
  %v1331 = vld [vmem:[%s13 + $0x10] sm:$0xff]
  %v1332 = vld [vmem:[%s13 + $0x18] sm:$0xff]
  %v1333 = vld [vmem:[%s13 + $0x20] sm:$0xff]
  %v1334 = vld [vmem:[%s13 + $0x28] sm:$0xff]
  %v1335 = vld [vmem:[%s13 + $0x30] sm:$0xff]
  %v1336 = vld [vmem:[%s13 + $0x38] sm:$0xff]
  %v1337 = vld [vmem:[%s14 + $0x8] sm:$0x1]
  %v1338 = vlaneseq
  %v1339 = vshrl.u32 %v1338, 7
  %v1340 = vsub.s32 0, %v1339
  %v1341 = vrot.slane %v1337, %v1340
  %v1343 = vsel %vm802, %v1327, 0
  %v1346 = vsel %vm802, %v1328, 0
  %1348 = vmatprep.subr.mxu0 0.0
  %1349 = vmatpush1.msra.mxu0 %v1329
  %1350 = vmatprep.subr.mxu0 0.0
  %1351 = vmatpush1.msra.mxu0 %v1330
  %1352 = vmatprep.subr.mxu0 0.0
  %1353 = vmatpush1.msra.mxu0 %v1331
  %1354 = vmatprep.subr.mxu0 0.0
  %1355 = vmatpush1.msra.mxu0 %v1332
  %1356 = vmatprep.subr.mxu0 0.0
  %1357 = vmatpush1.msra.mxu0 %v1333
  %1358 = vmatprep.subr.mxu0 0.0
  %1359 = vmatpush1.msra.mxu0 %v1334
  %1360 = vmatprep.subr.mxu0 0.0
  %1361 = vmatpush1.msra.mxu0 %v1335
  %1362 = vmatprep.subr.mxu0 0.0
  %1363 = vmatpush1.msra.mxu0 %v1336
  %1364 = vmatprep.subr.mxu0 0.0
  %1365 = vmatpush1.msra.mxu0 0.0
  %1366 = vmatprep.subr.mxu0 0.0
  %1367 = vmatpush1.msra.mxu0 0.0
  %1368 = vmatprep.subr.mxu0 0.0
  %1369 = vmatpush1.msra.mxu0 0.0
  %1370 = vmatprep.subr.mxu0 0.0
  %1371 = vmatpush1.msra.mxu0 0.0
  %1372 = vmatprep.subr.mxu0 0.0
  %1373 = vmatpush1.msra.mxu0 0.0
  %1374 = vmatprep.subr.mxu0 0.0
  %1375 = vmatpush1.msra.mxu0 0.0
  %1376 = vmatprep.subr.mxu0 0.0
  %1377 = vmatpush1.msra.mxu0 0.0
  %1378 = vmatprep.subr.mxu0 0.0
  %1379 = vmatpush1.msra.mxu0 0.0
  %1380 = vmatprep.subr.mxu0 0.0
  %1381 = vmatpush1.msra.mxu0 0.0
  %1382 = vmatprep.subr.mxu0 0.0
  %1383 = vmatpush1.msra.mxu0 0.0
  %1384 = vmatprep.subr.mxu0 0.0
  %1385 = vmatpush1.msra.mxu0 0.0
  %1386 = vmatprep.subr.mxu0 0.0
  %1387 = vmatpush1.msra.mxu0 0.0
  %1388 = vmatprep.subr.mxu0 0.0
  %1389 = vmatpush1.msra.mxu0 0.0
  %1390 = vmatprep.subr.mxu0 0.0
  %1391 = vmatpush1.msra.mxu0 0.0
  %1392 = vmatprep.subr.mxu0 0.0
  %1393 = vmatpush1.msra.mxu0 0.0
  %1394 = vmatprep.subr.mxu0 0.0
  %1395 = vmatpush1.msra.mxu0 0.0
  %1396 = vmatprep.subr.mxu0 0.0
  %1397 = vmatpush1.msra.mxu0 0.0
  %1398 = vmatprep.subr.mxu0 0.0
  %1399 = vmatpush1.msra.mxu0 0.0
  %1400 = vmatprep.subr.mxu0 0.0
  %1401 = vmatpush1.msra.mxu0 0.0
  %1402 = vmatprep.subr.mxu0 0.0
  %1403 = vmatpush1.msra.mxu0 0.0
  %1404 = vmatprep.subr.mxu0 0.0
  %1405 = vmatpush1.msra.mxu0 0.0
  %1406 = vmatprep.subr.mxu0 0.0
  %1407 = vmatpush1.msra.mxu0 0.0
  %1408 = vmatprep.subr.mxu0 0.0
  %1409 = vmatpush1.msra.mxu0 0.0
  %1410 = vmatprep.subr.mxu0 0.0
  %1411 = vmatpush1.msra.mxu0 0.0
  %1412 = vmatprep.mubr.f32.mxu0 0.0
  %1413 = vmatmul.mubr.f32.gmra.mrb[0].mxu0 %v1343
  %v1414 = vpop.f32.mrb[0].mxu0
  %v1415 = vadd.f32 %v1341, %v1414
  %v1416 = vpop.f32.mrb[0].mxu0
  %1417 = vmatprep.mubr.f32.mxu0 0.0
  %1418 = vmatmul.mubr.f32.gmra.mrb[0].mxu0 %v1346
  %v1419 = vpop.f32.mrb[0].mxu0
  %v1420 = vadd.f32 %v1341, %v1419
  %v1421 = vpop.f32.mrb[0].mxu0
  %1422 = vdwg.mxu0
  %v1423 = vadd.f32 %v1235, %v1415
  %v1424 = vadd.f32 %v1236, %v1420
  %v1425 = vld [vmem:[%s14 + $0x6] sm:$0x1]
  %v1426 = vld [vmem:[%s14 + $0x7] sm:$0x1]
  %v1427 = vsel %vm293, %v1423, 0.0
  %1428 = vadd.xlane.f32.xlu0 %v1427
  %v1429 = vpop.xlane.xlu0 %1428
  %v1430 = vsel %vm293, %v1424, 0.0
  %1431 = vadd.xlane.f32.xlu0 %v1430
  %v1432 = vpop.xlane.xlu0 %1431
  %v1433 = vmul.f32 %v1429, %v1204
  %v1434 = vmul.f32 %v1432, %v1204
  %v1435 = vsub.f32 %v1423, %v1433
  %v1436 = vsub.f32 %v1424, %v1434
  %v1437 = vmul.f32 %v1435, %v1435
  %v1438 = vmul.f32 %v1436, %v1436
  %v1439 = vsel %vm293, %v1437, 0.0
  %1440 = vadd.xlane.f32.xlu0 %v1439
  %v1441 = vpop.xlane.xlu0 %1440
  %v1442 = vsel %vm293, %v1438, 0.0
  %1443 = vadd.xlane.f32.xlu0 %v1442
  %v1444 = vpop.xlane.xlu0 %1443
  %v1445 = vmul.f32 %v1441, %v1204
  %v1446 = vmul.f32 %v1444, %v1204
  %v1447 = vadd.f32 %v1445, 1e-05
  %v1448 = vadd.f32 %v1446, 1e-05
  %v1449 = vrsqrt.pop %v1447
  %v1450 = vrsqrt.pop %v1448
  %v1451 = vmul.f32 %v1435, %v1449
  %v1452 = vmul.f32 %v1436, %v1450
  %v1453 = vlaneseq
  %v1454 = vshrl.u32 %v1453, 7
  %v1455 = vsub.s32 0, %v1454
  %v1456 = vrot.slane %v1425, %v1455
  %v1457 = vmul.f32 %v1451, %v1456
  %v1458 = vmul.f32 %v1452, %v1456
  %v1459 = vlaneseq
  %v1460 = vshrl.u32 %v1459, 7
  %v1461 = vsub.s32 0, %v1460
  %v1462 = vrot.slane %v1426, %v1461
  %v1463 = vadd.f32 %v1457, %v1462
  %v1464 = vadd.f32 %v1458, %v1462
  %1465 = vmatprep.subr.mxu0 0.0
  %1466 = vmatpush1.msra.mxu0 %v1463
  %1467 = vmatprep.subr.mxu0 0.0
  %1468 = vmatpush1.msra.mxu0 %v1464
  %1469 = vmatprep.subr.mxu0 0.0
  %1470 = vmatpush1.msra.mxu0 0.0
  %1471 = vmatprep.subr.mxu0 0.0
  %1472 = vmatpush1.msra.mxu0 0.0
  %1473 = vmatprep.subr.mxu0 0.0
  %1474 = vmatpush1.msra.mxu0 0.0
  %1475 = vmatprep.subr.mxu0 0.0
  %1476 = vmatpush1.msra.mxu0 0.0
  %1477 = vmatprep.subr.mxu0 0.0
  %1478 = vmatpush1.msra.mxu0 0.0
  %1479 = vmatprep.subr.mxu0 0.0
  %1480 = vmatpush1.msra.mxu0 0.0
  %1481 = vmatprep.subr.mxu0 0.0
  %1482 = vmatpush1.msra.mxu0 0.0
  %1483 = vmatprep.subr.mxu0 0.0
  %1484 = vmatpush1.msra.mxu0 0.0
  %1485 = vmatprep.subr.mxu0 0.0
  %1486 = vmatpush1.msra.mxu0 0.0
  %1487 = vmatprep.subr.mxu0 0.0
  %1488 = vmatpush1.msra.mxu0 0.0
  %1489 = vmatprep.subr.mxu0 0.0
  %1490 = vmatpush1.msra.mxu0 0.0
  %1491 = vmatprep.subr.mxu0 0.0
  %1492 = vmatpush1.msra.mxu0 0.0
  %1493 = vmatprep.subr.mxu0 0.0
  %1494 = vmatpush1.msra.mxu0 0.0
  %1495 = vmatprep.subr.mxu0 0.0
  %1496 = vmatpush1.msra.mxu0 0.0
  %1497 = vmatprep.subr.mxu0 0.0
  %1498 = vmatpush1.msra.mxu0 0.0
  %1499 = vmatprep.subr.mxu0 0.0
  %1500 = vmatpush1.msra.mxu0 0.0
  %1501 = vmatprep.subr.mxu0 0.0
  %1502 = vmatpush1.msra.mxu0 0.0
  %1503 = vmatprep.subr.mxu0 0.0
  %1504 = vmatpush1.msra.mxu0 0.0
  %1505 = vmatprep.subr.mxu0 0.0
  %1506 = vmatpush1.msra.mxu0 0.0
  %1507 = vmatprep.subr.mxu0 0.0
  %1508 = vmatpush1.msra.mxu0 0.0
  %1509 = vmatprep.subr.mxu0 0.0
  %1510 = vmatpush1.msra.mxu0 0.0
  %1511 = vmatprep.subr.mxu0 0.0
  %1512 = vmatpush1.msra.mxu0 0.0
  %1513 = vmatprep.subr.mxu0 0.0
  %1514 = vmatpush1.msra.mxu0 0.0
  %1515 = vmatprep.subr.mxu0 0.0
  %1516 = vmatpush1.msra.mxu0 0.0
  %1517 = vmatprep.subr.mxu0 0.0
  %1518 = vmatpush1.msra.mxu0 0.0
  %1519 = vmatprep.subr.mxu0 0.0
  %1520 = vmatpush1.msra.mxu0 0.0
  %1521 = vmatprep.subr.mxu0 0.0
  %1522 = vmatpush1.msra.mxu0 0.0
  %1523 = vmatprep.subr.mxu0 0.0
  %1524 = vmatpush1.msra.mxu0 0.0
  %1525 = vmatprep.subr.mxu0 0.0
  %1526 = vmatpush1.msra.mxu0 0.0
  %1527 = vmatprep.subr.mxu0 0.0
  %1528 = vmatpush1.msra.mxu0 0.0
  %1529 = vmatprep.mubr.f32.mxu0 0.0
  %1530 = vmatmul.mubr.f32.gmra.mrb[0].mxu0 %v138
  %v1531 = vpop.f32.mrb[0].mxu0
  %v1532 = vadd.f32 0.0, %v1531
  %v1533 = vpop.f32.mrb[0].mxu0
  %1534 = vmatprep.mubr.f32.mxu0 0.0
  %1535 = vmatmul.mubr.f32.gmra.mrb[0].mxu0 %v141
  %v1536 = vpop.f32.mrb[0].mxu0
  %v1537 = vadd.f32 0.0, %v1536
  %v1538 = vpop.f32.mrb[0].mxu0
  %1539 = vmatprep.mubr.f32.mxu0 0.0
  %1540 = vmatmul.mubr.f32.gmra.mrb[0].mxu0 %v144
  %v1541 = vpop.f32.mrb[0].mxu0
  %v1542 = vadd.f32 0.0, %v1541
  %v1543 = vpop.f32.mrb[0].mxu0
  %1544 = vmatprep.mubr.f32.mxu0 0.0
  %1545 = vmatmul.mubr.f32.gmra.mrb[0].mxu0 %v147
  %v1546 = vpop.f32.mrb[0].mxu0
  %v1547 = vadd.f32 0.0, %v1546
  %v1548 = vpop.f32.mrb[0].mxu0
  %1549 = vmatprep.mubr.f32.mxu0 0.0
  %1550 = vmatmul.mubr.f32.gmra.mrb[0].mxu0 %v150
  %v1551 = vpop.f32.mrb[0].mxu0
  %v1552 = vadd.f32 0.0, %v1551
  %v1553 = vpop.f32.mrb[0].mxu0
  %1554 = vmatprep.mubr.f32.mxu0 0.0
  %1555 = vmatmul.mubr.f32.gmra.mrb[0].mxu0 %v153
  %v1556 = vpop.f32.mrb[0].mxu0
  %v1557 = vadd.f32 0.0, %v1556
  %v1558 = vpop.f32.mrb[0].mxu0
  %1559 = vmatprep.mubr.f32.mxu0 0.0
  %1560 = vmatmul.mubr.f32.gmra.mrb[0].mxu0 %v156
  %v1561 = vpop.f32.mrb[0].mxu0
  %v1562 = vadd.f32 0.0, %v1561
  %v1563 = vpop.f32.mrb[0].mxu0
  %1564 = vmatprep.mubr.f32.mxu0 0.0
  %1565 = vmatmul.mubr.f32.gmra.mrb[0].mxu0 %v159
  %v1566 = vpop.f32.mrb[0].mxu0
  %v1567 = vadd.f32 0.0, %v1566
  %v1568 = vpop.f32.mrb[0].mxu0
  %1569 = vdwg.mxu0
  %s1570 = scalar_lea.vmem %s11, 128
  %v1571 = vld [vmem:[%s1570] sm:$0xff]
  %v1572 = vld [vmem:[%s1570 + $0x8] sm:$0xff]
  %v1573 = vld [vmem:[%s1570 + $0x10] sm:$0xff]
  %v1574 = vld [vmem:[%s1570 + $0x18] sm:$0xff]
  %v1575 = vld [vmem:[%s14 + $0x9] sm:$0x1]
  %s1576 = scalar_lea.vmem %s11, 160
  %v1577 = vld [vmem:[%s1576] sm:$0xff]
  %v1578 = vld [vmem:[%s1576 + $0x8] sm:$0xff]
  %v1579 = vld [vmem:[%s1576 + $0x10] sm:$0xff]
  %v1580 = vld [vmem:[%s1576 + $0x18] sm:$0xff]
  %v1581 = vld [vmem:[%s14 + $0xa] sm:$0x1]
  %s1582 = scalar_lea.vmem %s11, 192
  %v1583 = vld [vmem:[%s1582] sm:$0xff]
  %v1584 = vld [vmem:[%s1582 + $0x8] sm:$0xff]
  %v1585 = vld [vmem:[%s1582 + $0x10] sm:$0xff]
  %v1586 = vld [vmem:[%s1582 + $0x18] sm:$0xff]
  %v1587 = vld [vmem:[%s14 + $0xb] sm:$0x1]
  %s1588 = scalar_lea.vmem %s11, 224
  %v1589 = vld [vmem:[%s1588] sm:$0xff]
  %v1590 = vld [vmem:[%s1588 + $0x8] sm:$0xff]
  %v1591 = vld [vmem:[%s1588 + $0x10] sm:$0xff]
  %v1592 = vld [vmem:[%s1588 + $0x18] sm:$0xff]
  %v1593 = vld [vmem:[%s14 + $0xc] sm:$0x1]
  %v1594 = vlaneseq
  %v1595 = vshrl.u32 %v1594, 7
  %v1596 = vsub.s32 0, %v1595
  %v1597 = vrot.slane %v1575, %v1596
  %v1599 = vsel %vm293, %v1532, 0
  %v1602 = vsel %vm293, %v1537, 0
  %v1605 = vsel %vm293, %v1542, 0
  %v1608 = vsel %vm293, %v1547, 0
  %v1611 = vsel %vm293, %v1552, 0
  %v1614 = vsel %vm293, %v1557, 0
  %v1617 = vsel %vm293, %v1562, 0
  %v1620 = vsel %vm293, %v1567, 0
  %1622 = vmatprep.subr.mxu0 0.0
  %1623 = vmatpush1.msra.mxu0 %v1571
  %1624 = vmatprep.subr.mxu0 0.0
  %1625 = vmatpush1.msra.mxu0 %v1572
  %1626 = vmatprep.subr.mxu0 0.0
  %1627 = vmatpush1.msra.mxu0 %v1573
  %1628 = vmatprep.subr.mxu0 0.0
  %1629 = vmatpush1.msra.mxu0 %v1574
  %1630 = vmatprep.subr.mxu0 0.0
  %1631 = vmatpush1.msra.mxu0 0.0
  %1632 = vmatprep.subr.mxu0 0.0
  %1633 = vmatpush1.msra.mxu0 0.0
  %1634 = vmatprep.subr.mxu0 0.0
  %1635 = vmatpush1.msra.mxu0 0.0
  %1636 = vmatprep.subr.mxu0 0.0
  %1637 = vmatpush1.msra.mxu0 0.0
  %1638 = vmatprep.subr.mxu0 0.0
  %1639 = vmatpush1.msra.mxu0 0.0
  %1640 = vmatprep.subr.mxu0 0.0
  %1641 = vmatpush1.msra.mxu0 0.0
  %1642 = vmatprep.subr.mxu0 0.0
  %1643 = vmatpush1.msra.mxu0 0.0
  %1644 = vmatprep.subr.mxu0 0.0
  %1645 = vmatpush1.msra.mxu0 0.0
  %1646 = vmatprep.subr.mxu0 0.0
  %1647 = vmatpush1.msra.mxu0 0.0
  %1648 = vmatprep.subr.mxu0 0.0
  %1649 = vmatpush1.msra.mxu0 0.0
  %1650 = vmatprep.subr.mxu0 0.0
  %1651 = vmatpush1.msra.mxu0 0.0
  %1652 = vmatprep.subr.mxu0 0.0
  %1653 = vmatpush1.msra.mxu0 0.0
  %1654 = vmatprep.subr.mxu0 0.0
  %1655 = vmatpush1.msra.mxu0 0.0
  %1656 = vmatprep.subr.mxu0 0.0
  %1657 = vmatpush1.msra.mxu0 0.0
  %1658 = vmatprep.subr.mxu0 0.0
  %1659 = vmatpush1.msra.mxu0 0.0
  %1660 = vmatprep.subr.mxu0 0.0
  %1661 = vmatpush1.msra.mxu0 0.0
  %1662 = vmatprep.subr.mxu0 0.0
  %1663 = vmatpush1.msra.mxu0 0.0
  %1664 = vmatprep.subr.mxu0 0.0
  %1665 = vmatpush1.msra.mxu0 0.0
  %1666 = vmatprep.subr.mxu0 0.0
  %1667 = vmatpush1.msra.mxu0 0.0
  %1668 = vmatprep.subr.mxu0 0.0
  %1669 = vmatpush1.msra.mxu0 0.0
  %1670 = vmatprep.subr.mxu0 0.0
  %1671 = vmatpush1.msra.mxu0 0.0
  %1672 = vmatprep.subr.mxu0 0.0
  %1673 = vmatpush1.msra.mxu0 0.0
  %1674 = vmatprep.subr.mxu0 0.0
  %1675 = vmatpush1.msra.mxu0 0.0
  %1676 = vmatprep.subr.mxu0 0.0
  %1677 = vmatpush1.msra.mxu0 0.0
  %1678 = vmatprep.subr.mxu0 0.0
  %1679 = vmatpush1.msra.mxu0 0.0
  %1680 = vmatprep.subr.mxu0 0.0
  %1681 = vmatpush1.msra.mxu0 0.0
  %1682 = vmatprep.subr.mxu0 0.0
  %1683 = vmatpush1.msra.mxu0 0.0
  %1684 = vmatprep.subr.mxu0 0.0
  %1685 = vmatpush1.msra.mxu0 0.0
  %1686 = vmatprep.mubr.f32.mxu0 0.0
  %1687 = vmatmul.mubr.f32.gmra.mrb[0].mxu0 %v1599
  %v1688 = vpop.f32.mrb[0].mxu0
  %v1689 = vadd.f32 %v1597, %v1688
  %v1690 = vpop.f32.mrb[0].mxu0
  %1691 = vmatprep.mubr.f32.mxu0 0.0
  %1692 = vmatmul.mubr.f32.gmra.mrb[0].mxu0 %v1602
  %v1693 = vpop.f32.mrb[0].mxu0
  %v1694 = vadd.f32 %v1597, %v1693
  %v1695 = vpop.f32.mrb[0].mxu0
  %1696 = vmatprep.mubr.f32.mxu0 0.0
  %1697 = vmatmul.mubr.f32.gmra.mrb[0].mxu0 %v1605
  %v1698 = vpop.f32.mrb[0].mxu0
  %v1699 = vadd.f32 %v1597, %v1698
  %v1700 = vpop.f32.mrb[0].mxu0
  %1701 = vmatprep.mubr.f32.mxu0 0.0
  %1702 = vmatmul.mubr.f32.gmra.mrb[0].mxu0 %v1608
  %v1703 = vpop.f32.mrb[0].mxu0
  %v1704 = vadd.f32 %v1597, %v1703
  %v1705 = vpop.f32.mrb[0].mxu0
  %1706 = vmatprep.mubr.f32.mxu0 0.0
  %1707 = vmatmul.mubr.f32.gmra.mrb[0].mxu0 %v1611
  %v1708 = vpop.f32.mrb[0].mxu0
  %v1709 = vadd.f32 %v1597, %v1708
  %v1710 = vpop.f32.mrb[0].mxu0
  %1711 = vmatprep.mubr.f32.mxu0 0.0
  %1712 = vmatmul.mubr.f32.gmra.mrb[0].mxu0 %v1614
  %v1713 = vpop.f32.mrb[0].mxu0
  %v1714 = vadd.f32 %v1597, %v1713
  %v1715 = vpop.f32.mrb[0].mxu0
  %1716 = vmatprep.mubr.f32.mxu0 0.0
  %1717 = vmatmul.mubr.f32.gmra.mrb[0].mxu0 %v1617
  %v1718 = vpop.f32.mrb[0].mxu0
  %v1719 = vadd.f32 %v1597, %v1718
  %v1720 = vpop.f32.mrb[0].mxu0
  %1721 = vmatprep.mubr.f32.mxu0 0.0
  %1722 = vmatmul.mubr.f32.gmra.mrb[0].mxu0 %v1620
  %v1723 = vpop.f32.mrb[0].mxu0
  %v1724 = vadd.f32 %v1597, %v1723
  %v1725 = vpop.f32.mrb[0].mxu0
  %1726 = vdwg.mxu0
  %v1727 = vmul.f32 %v1689, %v94
  %v1728 = vmul.f32 %v1694, %v95
  %v1729 = vmul.f32 %v1699, %v96
  %v1730 = vmul.f32 %v1704, %v97
  %v1731 = vmul.f32 %v1709, %v98
  %v1732 = vmul.f32 %v1714, %v99
  %v1733 = vmul.f32 %v1719, %v100
  %v1734 = vmul.f32 %v1724, %v101
  %v1735 = vlaneseq
  %v1736 = vshrl.u32 %v1735, 7
  %v1737 = vsub.s32 0, %v1736
  %v1738 = vrot.slane %v1581, %v1737
  %1739 = vmatprep.subr.mxu0 0.0
  %1740 = vmatpush1.msra.mxu0 %v1577
  %1741 = vmatprep.subr.mxu0 0.0
  %1742 = vmatpush1.msra.mxu0 %v1578
  %1743 = vmatprep.subr.mxu0 0.0
  %1744 = vmatpush1.msra.mxu0 %v1579
  %1745 = vmatprep.subr.mxu0 0.0
  %1746 = vmatpush1.msra.mxu0 %v1580
  %1747 = vmatprep.subr.mxu0 0.0
  %1748 = vmatpush1.msra.mxu0 0.0
  %1749 = vmatprep.subr.mxu0 0.0
  %1750 = vmatpush1.msra.mxu0 0.0
  %1751 = vmatprep.subr.mxu0 0.0
  %1752 = vmatpush1.msra.mxu0 0.0
  %1753 = vmatprep.subr.mxu0 0.0
  %1754 = vmatpush1.msra.mxu0 0.0
  %1755 = vmatprep.subr.mxu0 0.0
  %1756 = vmatpush1.msra.mxu0 0.0
  %1757 = vmatprep.subr.mxu0 0.0
  %1758 = vmatpush1.msra.mxu0 0.0
  %1759 = vmatprep.subr.mxu0 0.0
  %1760 = vmatpush1.msra.mxu0 0.0
  %1761 = vmatprep.subr.mxu0 0.0
  %1762 = vmatpush1.msra.mxu0 0.0
  %1763 = vmatprep.subr.mxu0 0.0
  %1764 = vmatpush1.msra.mxu0 0.0
  %1765 = vmatprep.subr.mxu0 0.0
  %1766 = vmatpush1.msra.mxu0 0.0
  %1767 = vmatprep.subr.mxu0 0.0
  %1768 = vmatpush1.msra.mxu0 0.0
  %1769 = vmatprep.subr.mxu0 0.0
  %1770 = vmatpush1.msra.mxu0 0.0
  %1771 = vmatprep.subr.mxu0 0.0
  %1772 = vmatpush1.msra.mxu0 0.0
  %1773 = vmatprep.subr.mxu0 0.0
  %1774 = vmatpush1.msra.mxu0 0.0
  %1775 = vmatprep.subr.mxu0 0.0
  %1776 = vmatpush1.msra.mxu0 0.0
  %1777 = vmatprep.subr.mxu0 0.0
  %1778 = vmatpush1.msra.mxu0 0.0
  %1779 = vmatprep.subr.mxu0 0.0
  %1780 = vmatpush1.msra.mxu0 0.0
  %1781 = vmatprep.subr.mxu0 0.0
  %1782 = vmatpush1.msra.mxu0 0.0
  %1783 = vmatprep.subr.mxu0 0.0
  %1784 = vmatpush1.msra.mxu0 0.0
  %1785 = vmatprep.subr.mxu0 0.0
  %1786 = vmatpush1.msra.mxu0 0.0
  %1787 = vmatprep.subr.mxu0 0.0
  %1788 = vmatpush1.msra.mxu0 0.0
  %1789 = vmatprep.subr.mxu0 0.0
  %1790 = vmatpush1.msra.mxu0 0.0
  %1791 = vmatprep.subr.mxu0 0.0
  %1792 = vmatpush1.msra.mxu0 0.0
  %1793 = vmatprep.subr.mxu0 0.0
  %1794 = vmatpush1.msra.mxu0 0.0
  %1795 = vmatprep.subr.mxu0 0.0
  %1796 = vmatpush1.msra.mxu0 0.0
  %1797 = vmatprep.subr.mxu0 0.0
  %1798 = vmatpush1.msra.mxu0 0.0
  %1799 = vmatprep.subr.mxu0 0.0
  %1800 = vmatpush1.msra.mxu0 0.0
  %1801 = vmatprep.subr.mxu0 0.0
  %1802 = vmatpush1.msra.mxu0 0.0
  %1803 = vmatprep.mubr.f32.mxu0 0.0
  %1804 = vmatmul.mubr.f32.gmra.mrb[0].mxu0 %v1599
  %v1805 = vpop.f32.mrb[0].mxu0
  %v1806 = vadd.f32 %v1738, %v1805
  %v1807 = vpop.f32.mrb[0].mxu0
  %1808 = vmatprep.mubr.f32.mxu0 0.0
  %1809 = vmatmul.mubr.f32.gmra.mrb[0].mxu0 %v1602
  %v1810 = vpop.f32.mrb[0].mxu0
  %v1811 = vadd.f32 %v1738, %v1810
  %v1812 = vpop.f32.mrb[0].mxu0
  %1813 = vmatprep.mubr.f32.mxu0 0.0
  %1814 = vmatmul.mubr.f32.gmra.mrb[0].mxu0 %v1605
  %v1815 = vpop.f32.mrb[0].mxu0
  %v1816 = vadd.f32 %v1738, %v1815
  %v1817 = vpop.f32.mrb[0].mxu0
  %1818 = vmatprep.mubr.f32.mxu0 0.0
  %1819 = vmatmul.mubr.f32.gmra.mrb[0].mxu0 %v1608
  %v1820 = vpop.f32.mrb[0].mxu0
  %v1821 = vadd.f32 %v1738, %v1820
  %v1822 = vpop.f32.mrb[0].mxu0
  %1823 = vmatprep.mubr.f32.mxu0 0.0
  %1824 = vmatmul.mubr.f32.gmra.mrb[0].mxu0 %v1611
  %v1825 = vpop.f32.mrb[0].mxu0
  %v1826 = vadd.f32 %v1738, %v1825
  %v1827 = vpop.f32.mrb[0].mxu0
  %1828 = vmatprep.mubr.f32.mxu0 0.0
  %1829 = vmatmul.mubr.f32.gmra.mrb[0].mxu0 %v1614
  %v1830 = vpop.f32.mrb[0].mxu0
  %v1831 = vadd.f32 %v1738, %v1830
  %v1832 = vpop.f32.mrb[0].mxu0
  %1833 = vmatprep.mubr.f32.mxu0 0.0
  %1834 = vmatmul.mubr.f32.gmra.mrb[0].mxu0 %v1617
  %v1835 = vpop.f32.mrb[0].mxu0
  %v1836 = vadd.f32 %v1738, %v1835
  %v1837 = vpop.f32.mrb[0].mxu0
  %1838 = vmatprep.mubr.f32.mxu0 0.0
  %1839 = vmatmul.mubr.f32.gmra.mrb[0].mxu0 %v1620
  %v1840 = vpop.f32.mrb[0].mxu0
  %v1841 = vadd.f32 %v1738, %v1840
  %v1842 = vpop.f32.mrb[0].mxu0
  %1843 = vdwg.mxu0
  %v1844 = vlaneseq
  %v1845 = vshrl.u32 %v1844, 7
  %v1846 = vsub.s32 0, %v1845
  %v1847 = vrot.slane %v1587, %v1846
  %1848 = vmatprep.subr.mxu0 0.0
  %1849 = vmatpush1.msra.mxu0 %v1583
  %1850 = vmatprep.subr.mxu0 0.0
  %1851 = vmatpush1.msra.mxu0 %v1584
  %1852 = vmatprep.subr.mxu0 0.0
  %1853 = vmatpush1.msra.mxu0 %v1585
  %1854 = vmatprep.subr.mxu0 0.0
  %1855 = vmatpush1.msra.mxu0 %v1586
  %1856 = vmatprep.subr.mxu0 0.0
  %1857 = vmatpush1.msra.mxu0 0.0
  %1858 = vmatprep.subr.mxu0 0.0
  %1859 = vmatpush1.msra.mxu0 0.0
  %1860 = vmatprep.subr.mxu0 0.0
  %1861 = vmatpush1.msra.mxu0 0.0
  %1862 = vmatprep.subr.mxu0 0.0
  %1863 = vmatpush1.msra.mxu0 0.0
  %1864 = vmatprep.subr.mxu0 0.0
  %1865 = vmatpush1.msra.mxu0 0.0
  %1866 = vmatprep.subr.mxu0 0.0
  %1867 = vmatpush1.msra.mxu0 0.0
  %1868 = vmatprep.subr.mxu0 0.0
  %1869 = vmatpush1.msra.mxu0 0.0
  %1870 = vmatprep.subr.mxu0 0.0
  %1871 = vmatpush1.msra.mxu0 0.0
  %1872 = vmatprep.subr.mxu0 0.0
  %1873 = vmatpush1.msra.mxu0 0.0
  %1874 = vmatprep.subr.mxu0 0.0
  %1875 = vmatpush1.msra.mxu0 0.0
  %1876 = vmatprep.subr.mxu0 0.0
  %1877 = vmatpush1.msra.mxu0 0.0
  %1878 = vmatprep.subr.mxu0 0.0
  %1879 = vmatpush1.msra.mxu0 0.0
  %1880 = vmatprep.subr.mxu0 0.0
  %1881 = vmatpush1.msra.mxu0 0.0
  %1882 = vmatprep.subr.mxu0 0.0
  %1883 = vmatpush1.msra.mxu0 0.0
  %1884 = vmatprep.subr.mxu0 0.0
  %1885 = vmatpush1.msra.mxu0 0.0
  %1886 = vmatprep.subr.mxu0 0.0
  %1887 = vmatpush1.msra.mxu0 0.0
  %1888 = vmatprep.subr.mxu0 0.0
  %1889 = vmatpush1.msra.mxu0 0.0
  %1890 = vmatprep.subr.mxu0 0.0
  %1891 = vmatpush1.msra.mxu0 0.0
  %1892 = vmatprep.subr.mxu0 0.0
  %1893 = vmatpush1.msra.mxu0 0.0
  %1894 = vmatprep.subr.mxu0 0.0
  %1895 = vmatpush1.msra.mxu0 0.0
  %1896 = vmatprep.subr.mxu0 0.0
  %1897 = vmatpush1.msra.mxu0 0.0
  %1898 = vmatprep.subr.mxu0 0.0
  %1899 = vmatpush1.msra.mxu0 0.0
  %1900 = vmatprep.subr.mxu0 0.0
  %1901 = vmatpush1.msra.mxu0 0.0
  %1902 = vmatprep.subr.mxu0 0.0
  %1903 = vmatpush1.msra.mxu0 0.0
  %1904 = vmatprep.subr.mxu0 0.0
  %1905 = vmatpush1.msra.mxu0 0.0
  %1906 = vmatprep.subr.mxu0 0.0
  %1907 = vmatpush1.msra.mxu0 0.0
  %1908 = vmatprep.subr.mxu0 0.0
  %1909 = vmatpush1.msra.mxu0 0.0
  %1910 = vmatprep.subr.mxu0 0.0
  %1911 = vmatpush1.msra.mxu0 0.0
  %1912 = vmatprep.mubr.f32.mxu0 0.0
  %1913 = vmatmul.mubr.f32.gmra.mrb[0].mxu0 %v1599
  %v1914 = vpop.f32.mrb[0].mxu0
  %v1915 = vadd.f32 %v1847, %v1914
  %v1916 = vpop.f32.mrb[0].mxu0
  %1917 = vmatprep.mubr.f32.mxu0 0.0
  %1918 = vmatmul.mubr.f32.gmra.mrb[0].mxu0 %v1602
  %v1919 = vpop.f32.mrb[0].mxu0
  %v1920 = vadd.f32 %v1847, %v1919
  %v1921 = vpop.f32.mrb[0].mxu0
  %1922 = vmatprep.mubr.f32.mxu0 0.0
  %1923 = vmatmul.mubr.f32.gmra.mrb[0].mxu0 %v1605
  %v1924 = vpop.f32.mrb[0].mxu0
  %v1925 = vadd.f32 %v1847, %v1924
  %v1926 = vpop.f32.mrb[0].mxu0
  %1927 = vmatprep.mubr.f32.mxu0 0.0
  %1928 = vmatmul.mubr.f32.gmra.mrb[0].mxu0 %v1608
  %v1929 = vpop.f32.mrb[0].mxu0
  %v1930 = vadd.f32 %v1847, %v1929
  %v1931 = vpop.f32.mrb[0].mxu0
  %1932 = vmatprep.mubr.f32.mxu0 0.0
  %1933 = vmatmul.mubr.f32.gmra.mrb[0].mxu0 %v1611
  %v1934 = vpop.f32.mrb[0].mxu0
  %v1935 = vadd.f32 %v1847, %v1934
  %v1936 = vpop.f32.mrb[0].mxu0
  %1937 = vmatprep.mubr.f32.mxu0 0.0
  %1938 = vmatmul.mubr.f32.gmra.mrb[0].mxu0 %v1614
  %v1939 = vpop.f32.mrb[0].mxu0
  %v1940 = vadd.f32 %v1847, %v1939
  %v1941 = vpop.f32.mrb[0].mxu0
  %1942 = vmatprep.mubr.f32.mxu0 0.0
  %1943 = vmatmul.mubr.f32.gmra.mrb[0].mxu0 %v1617
  %v1944 = vpop.f32.mrb[0].mxu0
  %v1945 = vadd.f32 %v1847, %v1944
  %v1946 = vpop.f32.mrb[0].mxu0
  %1947 = vmatprep.mubr.f32.mxu0 0.0
  %1948 = vmatmul.mubr.f32.gmra.mrb[0].mxu0 %v1620
  %v1949 = vpop.f32.mrb[0].mxu0
  %v1950 = vadd.f32 %v1847, %v1949
  %v1951 = vpop.f32.mrb[0].mxu0
  %1952 = vdwg.mxu0
  %v1954 = vsel %vm293, %v1727, 0
  %v1957 = vsel %vm293, %v1728, 0
  %v1960 = vsel %vm293, %v1729, 0
  %v1963 = vsel %vm293, %v1730, 0
  %v1966 = vsel %vm293, %v1731, 0
  %v1969 = vsel %vm293, %v1732, 0
  %v1972 = vsel %vm293, %v1733, 0
  %v1975 = vsel %vm293, %v1734, 0
  %v1978 = vsel %vm293, %v1806, 0
  %v1981 = vsel %vm293, %v1811, 0
  %v1984 = vsel %vm293, %v1816, 0
  %v1987 = vsel %vm293, %v1821, 0
  %v1990 = vsel %vm293, %v1826, 0
  %v1993 = vsel %vm293, %v1831, 0
  %v1996 = vsel %vm293, %v1836, 0
  %v1999 = vsel %vm293, %v1841, 0
  %2001 = vmatprep.subr.mxu0 0.0
  %2002 = vmatpush1.xpose.msra.mxu0 %v1978
  %2003 = vmatprep.subr.mxu0 0.0
  %2004 = vmatpush1.xpose.msra.mxu0 %v1981
  %2005 = vmatprep.subr.mxu0 0.0
  %2006 = vmatpush1.xpose.msra.mxu0 %v1984
  %2007 = vmatprep.subr.mxu0 0.0
  %2008 = vmatpush1.xpose.msra.mxu0 %v1987
  %2009 = vmatprep.subr.mxu0 0.0
  %2010 = vmatpush1.xpose.msra.mxu0 %v1990
  %2011 = vmatprep.subr.mxu0 0.0
  %2012 = vmatpush1.xpose.msra.mxu0 %v1993
  %2013 = vmatprep.subr.mxu0 0.0
  %2014 = vmatpush1.xpose.msra.mxu0 %v1996
  %2015 = vmatprep.subr.mxu0 0.0
  %2016 = vmatpush1.xpose.msra.mxu0 %v1999
  %2017 = vmatprep.subr.mxu0 0.0
  %2018 = vmatpush1.xpose.msra.mxu0 0.0
  %2019 = vmatprep.subr.mxu0 0.0
  %2020 = vmatpush1.xpose.msra.mxu0 0.0
  %2021 = vmatprep.subr.mxu0 0.0
  %2022 = vmatpush1.xpose.msra.mxu0 0.0
  %2023 = vmatprep.subr.mxu0 0.0
  %2024 = vmatpush1.xpose.msra.mxu0 0.0
  %2025 = vmatprep.subr.mxu0 0.0
  %2026 = vmatpush1.xpose.msra.mxu0 0.0
  %2027 = vmatprep.subr.mxu0 0.0
  %2028 = vmatpush1.xpose.msra.mxu0 0.0
  %2029 = vmatprep.subr.mxu0 0.0
  %2030 = vmatpush1.xpose.msra.mxu0 0.0
  %2031 = vmatprep.subr.mxu0 0.0
  %2032 = vmatpush1.xpose.msra.mxu0 0.0
  %2033 = vmatprep.subr.mxu0 0.0
  %2034 = vmatpush1.xpose.msra.mxu0 0.0
  %2035 = vmatprep.subr.mxu0 0.0
  %2036 = vmatpush1.xpose.msra.mxu0 0.0
  %2037 = vmatprep.subr.mxu0 0.0
  %2038 = vmatpush1.xpose.msra.mxu0 0.0
  %2039 = vmatprep.subr.mxu0 0.0
  %2040 = vmatpush1.xpose.msra.mxu0 0.0
  %2041 = vmatprep.subr.mxu0 0.0
  %2042 = vmatpush1.xpose.msra.mxu0 0.0
  %2043 = vmatprep.subr.mxu0 0.0
  %2044 = vmatpush1.xpose.msra.mxu0 0.0
  %2045 = vmatprep.subr.mxu0 0.0
  %2046 = vmatpush1.xpose.msra.mxu0 0.0
  %2047 = vmatprep.subr.mxu0 0.0
  %2048 = vmatpush1.xpose.msra.mxu0 0.0
  %2049 = vmatprep.subr.mxu0 0.0
  %2050 = vmatpush1.xpose.msra.mxu0 0.0
  %2051 = vmatprep.subr.mxu0 0.0
  %2052 = vmatpush1.xpose.msra.mxu0 0.0
  %2053 = vmatprep.subr.mxu0 0.0
  %2054 = vmatpush1.xpose.msra.mxu0 0.0
  %2055 = vmatprep.subr.mxu0 0.0
  %2056 = vmatpush1.xpose.msra.mxu0 0.0
  %2057 = vmatprep.subr.mxu0 0.0
  %2058 = vmatpush1.xpose.msra.mxu0 0.0
  %2059 = vmatprep.subr.mxu0 0.0
  %2060 = vmatpush1.xpose.msra.mxu0 0.0
  %2061 = vmatprep.subr.mxu0 0.0
  %2062 = vmatpush1.xpose.msra.mxu0 0.0
  %2063 = vmatprep.subr.mxu0 0.0
  %2064 = vmatpush1.xpose.msra.mxu0 0.0
  %2065 = vmatprep.mubr.f32.mxu0 0.0
  %2066 = vmatmul.mubr.f32.gmra.mrb[0].mxu0 %v1954
  %v2067 = vpop.f32.mrb[0].mxu0
  %v2068 = vadd.f32 %v110, %v2067
  %v2069 = vpop.f32.mrb[0].mxu0
  %2070 = vmatprep.mubr.f32.mxu0 0.0
  %2071 = vmatmul.mubr.f32.gmra.mrb[0].mxu0 %v1957
  %v2072 = vpop.f32.mrb[0].mxu0
  %v2073 = vadd.f32 %v111, %v2072
  %v2074 = vpop.f32.mrb[0].mxu0
  %2075 = vmatprep.mubr.f32.mxu0 0.0
  %2076 = vmatmul.mubr.f32.gmra.mrb[0].mxu0 %v1960
  %v2077 = vpop.f32.mrb[0].mxu0
  %v2078 = vadd.f32 %v112, %v2077
  %v2079 = vpop.f32.mrb[0].mxu0
  %2080 = vmatprep.mubr.f32.mxu0 0.0
  %2081 = vmatmul.mubr.f32.gmra.mrb[0].mxu0 %v1963
  %v2082 = vpop.f32.mrb[0].mxu0
  %v2083 = vadd.f32 %v113, %v2082
  %v2084 = vpop.f32.mrb[0].mxu0
  %2085 = vmatprep.mubr.f32.mxu0 0.0
  %2086 = vmatmul.mubr.f32.gmra.mrb[0].mxu0 %v1966
  %v2087 = vpop.f32.mrb[0].mxu0
  %v2088 = vadd.f32 %v114, %v2087
  %v2089 = vpop.f32.mrb[0].mxu0
  %2090 = vmatprep.mubr.f32.mxu0 0.0
  %2091 = vmatmul.mubr.f32.gmra.mrb[0].mxu0 %v1969
  %v2092 = vpop.f32.mrb[0].mxu0
  %v2093 = vadd.f32 %v115, %v2092
  %v2094 = vpop.f32.mrb[0].mxu0
  %2095 = vmatprep.mubr.f32.mxu0 0.0
  %2096 = vmatmul.mubr.f32.gmra.mrb[0].mxu0 %v1972
  %v2097 = vpop.f32.mrb[0].mxu0
  %v2098 = vadd.f32 %v116, %v2097
  %v2099 = vpop.f32.mrb[0].mxu0
  %2100 = vmatprep.mubr.f32.mxu0 0.0
  %2101 = vmatmul.mubr.f32.gmra.mrb[0].mxu0 %v1975
  %v2102 = vpop.f32.mrb[0].mxu0
  %v2103 = vadd.f32 %v117, %v2102
  %v2104 = vpop.f32.mrb[0].mxu0
  %2105 = vdwg.mxu0
  %v2106 = vsel %vm802, %v2068, -inf
  %2107 = vmax.xlane.f32.xlu0 %v2106
  %v2108 = vpop.xlane.xlu0 %2107
  %v2109 = vsel %vm802, %v2073, -inf
  %2110 = vmax.xlane.f32.xlu0 %v2109
  %v2111 = vpop.xlane.xlu0 %2110
  %v2112 = vsel %vm802, %v2078, -inf
  %2113 = vmax.xlane.f32.xlu0 %v2112
  %v2114 = vpop.xlane.xlu0 %2113
  %v2115 = vsel %vm802, %v2083, -inf
  %2116 = vmax.xlane.f32.xlu0 %v2115
  %v2117 = vpop.xlane.xlu0 %2116
  %v2118 = vsel %vm802, %v2088, -inf
  %2119 = vmax.xlane.f32.xlu0 %v2118
  %v2120 = vpop.xlane.xlu0 %2119
  %v2121 = vsel %vm802, %v2093, -inf
  %2122 = vmax.xlane.f32.xlu0 %v2121
  %v2123 = vpop.xlane.xlu0 %2122
  %v2124 = vsel %vm802, %v2098, -inf
  %2125 = vmax.xlane.f32.xlu0 %v2124
  %v2126 = vpop.xlane.xlu0 %2125
  %v2127 = vsel %vm802, %v2103, -inf
  %2128 = vmax.xlane.f32.xlu0 %v2127
  %v2129 = vpop.xlane.xlu0 %2128
  %v2130 = vsub.f32 %v2068, %v2108
  %v2131 = vsub.f32 %v2073, %v2111
  %v2132 = vsub.f32 %v2078, %v2114
  %v2133 = vsub.f32 %v2083, %v2117
  %v2134 = vsub.f32 %v2088, %v2120
  %v2135 = vsub.f32 %v2093, %v2123
  %v2136 = vsub.f32 %v2098, %v2126
  %v2137 = vsub.f32 %v2103, %v2129
  %v2138 = vmul.f32 %v2130, 1.442695
  %v2139 = vpow.pop %v2138
  %v2140 = vmul.f32 %v2131, 1.442695
  %v2141 = vpow.pop %v2140
  %v2142 = vmul.f32 %v2132, 1.442695
  %v2143 = vpow.pop %v2142
  %v2144 = vmul.f32 %v2133, 1.442695
  %v2145 = vpow.pop %v2144
  %v2146 = vmul.f32 %v2134, 1.442695
  %v2147 = vpow.pop %v2146
  %v2148 = vmul.f32 %v2135, 1.442695
  %v2149 = vpow.pop %v2148
  %v2150 = vmul.f32 %v2136, 1.442695
  %v2151 = vpow.pop %v2150
  %v2152 = vmul.f32 %v2137, 1.442695
  %v2153 = vpow.pop %v2152
  %v2154 = vsel %vm802, %v2139, 0.0
  %2155 = vadd.xlane.f32.xlu0 %v2154
  %v2156 = vpop.xlane.xlu0 %2155
  %v2157 = vsel %vm802, %v2141, 0.0
  %2158 = vadd.xlane.f32.xlu0 %v2157
  %v2159 = vpop.xlane.xlu0 %2158
  %v2160 = vsel %vm802, %v2143, 0.0
  %2161 = vadd.xlane.f32.xlu0 %v2160
  %v2162 = vpop.xlane.xlu0 %2161
  %v2163 = vsel %vm802, %v2145, 0.0
  %2164 = vadd.xlane.f32.xlu0 %v2163
  %v2165 = vpop.xlane.xlu0 %2164
  %v2166 = vsel %vm802, %v2147, 0.0
  %2167 = vadd.xlane.f32.xlu0 %v2166
  %v2168 = vpop.xlane.xlu0 %2167
  %v2169 = vsel %vm802, %v2149, 0.0
  %2170 = vadd.xlane.f32.xlu0 %v2169
  %v2171 = vpop.xlane.xlu0 %2170
  %v2172 = vsel %vm802, %v2151, 0.0
  %2173 = vadd.xlane.f32.xlu0 %v2172
  %v2174 = vpop.xlane.xlu0 %2173
  %v2175 = vsel %vm802, %v2153, 0.0
  %2176 = vadd.xlane.f32.xlu0 %v2175
  %v2177 = vpop.xlane.xlu0 %2176
  %v2178 = vrcp.pop %v2156
  %v2179 = vmul.f32 %v2139, %v2178
  %v2180 = vrcp.pop %v2159
  %v2181 = vmul.f32 %v2141, %v2180
  %v2182 = vrcp.pop %v2162
  %v2183 = vmul.f32 %v2143, %v2182
  %v2184 = vrcp.pop %v2165
  %v2185 = vmul.f32 %v2145, %v2184
  %v2186 = vrcp.pop %v2168
  %v2187 = vmul.f32 %v2147, %v2186
  %v2188 = vrcp.pop %v2171
  %v2189 = vmul.f32 %v2149, %v2188
  %v2190 = vrcp.pop %v2174
  %v2191 = vmul.f32 %v2151, %v2190
  %v2192 = vrcp.pop %v2177
  %v2193 = vmul.f32 %v2153, %v2192
  %v2195 = vsel %vm802, %v2179, 0
  %v2198 = vsel %vm802, %v2181, 0
  %v2201 = vsel %vm802, %v2183, 0
  %v2204 = vsel %vm802, %v2185, 0
  %v2207 = vsel %vm802, %v2187, 0
  %v2210 = vsel %vm802, %v2189, 0
  %v2213 = vsel %vm802, %v2191, 0
  %v2216 = vsel %vm802, %v2193, 0
  %2218 = vmatprep.subr.mxu0 0.0
  %2219 = vmatpush1.msra.mxu0 %v1915
  %2220 = vmatprep.subr.mxu0 0.0
  %2221 = vmatpush1.msra.mxu0 %v1920
  %2222 = vmatprep.subr.mxu0 0.0
  %2223 = vmatpush1.msra.mxu0 %v1925
  %2224 = vmatprep.subr.mxu0 0.0
  %2225 = vmatpush1.msra.mxu0 %v1930
  %2226 = vmatprep.subr.mxu0 0.0
  %2227 = vmatpush1.msra.mxu0 %v1935
  %2228 = vmatprep.subr.mxu0 0.0
  %2229 = vmatpush1.msra.mxu0 %v1940
  %2230 = vmatprep.subr.mxu0 0.0
  %2231 = vmatpush1.msra.mxu0 %v1945
  %2232 = vmatprep.subr.mxu0 0.0
  %2233 = vmatpush1.msra.mxu0 %v1950
  %2234 = vmatprep.subr.mxu0 0.0
  %2235 = vmatpush1.msra.mxu0 0.0
  %2236 = vmatprep.subr.mxu0 0.0
  %2237 = vmatpush1.msra.mxu0 0.0
  %2238 = vmatprep.subr.mxu0 0.0
  %2239 = vmatpush1.msra.mxu0 0.0
  %2240 = vmatprep.subr.mxu0 0.0
  %2241 = vmatpush1.msra.mxu0 0.0
  %2242 = vmatprep.subr.mxu0 0.0
  %2243 = vmatpush1.msra.mxu0 0.0
  %2244 = vmatprep.subr.mxu0 0.0
  %2245 = vmatpush1.msra.mxu0 0.0
  %2246 = vmatprep.subr.mxu0 0.0
  %2247 = vmatpush1.msra.mxu0 0.0
  %2248 = vmatprep.subr.mxu0 0.0
  %2249 = vmatpush1.msra.mxu0 0.0
  %2250 = vmatprep.subr.mxu0 0.0
  %2251 = vmatpush1.msra.mxu0 0.0
  %2252 = vmatprep.subr.mxu0 0.0
  %2253 = vmatpush1.msra.mxu0 0.0
  %2254 = vmatprep.subr.mxu0 0.0
  %2255 = vmatpush1.msra.mxu0 0.0
  %2256 = vmatprep.subr.mxu0 0.0
  %2257 = vmatpush1.msra.mxu0 0.0
  %2258 = vmatprep.subr.mxu0 0.0
  %2259 = vmatpush1.msra.mxu0 0.0
  %2260 = vmatprep.subr.mxu0 0.0
  %2261 = vmatpush1.msra.mxu0 0.0
  %2262 = vmatprep.subr.mxu0 0.0
  %2263 = vmatpush1.msra.mxu0 0.0
  %2264 = vmatprep.subr.mxu0 0.0
  %2265 = vmatpush1.msra.mxu0 0.0
  %2266 = vmatprep.subr.mxu0 0.0
  %2267 = vmatpush1.msra.mxu0 0.0
  %2268 = vmatprep.subr.mxu0 0.0
  %2269 = vmatpush1.msra.mxu0 0.0
  %2270 = vmatprep.subr.mxu0 0.0
  %2271 = vmatpush1.msra.mxu0 0.0
  %2272 = vmatprep.subr.mxu0 0.0
  %2273 = vmatpush1.msra.mxu0 0.0
  %2274 = vmatprep.subr.mxu0 0.0
  %2275 = vmatpush1.msra.mxu0 0.0
  %2276 = vmatprep.subr.mxu0 0.0
  %2277 = vmatpush1.msra.mxu0 0.0
  %2278 = vmatprep.subr.mxu0 0.0
  %2279 = vmatpush1.msra.mxu0 0.0
  %2280 = vmatprep.subr.mxu0 0.0
  %2281 = vmatpush1.msra.mxu0 0.0
  %2282 = vmatprep.mubr.f32.mxu0 0.0
  %2283 = vmatmul.mubr.f32.gmra.mrb[0].mxu0 %v2195
  %v2284 = vpop.f32.mrb[0].mxu0
  %v2285 = vadd.f32 0.0, %v2284
  %v2286 = vpop.f32.mrb[0].mxu0
  %2287 = vmatprep.mubr.f32.mxu0 0.0
  %2288 = vmatmul.mubr.f32.gmra.mrb[0].mxu0 %v2198
  %v2289 = vpop.f32.mrb[0].mxu0
  %v2290 = vadd.f32 0.0, %v2289
  %v2291 = vpop.f32.mrb[0].mxu0
  %2292 = vmatprep.mubr.f32.mxu0 0.0
  %2293 = vmatmul.mubr.f32.gmra.mrb[0].mxu0 %v2201
  %v2294 = vpop.f32.mrb[0].mxu0
  %v2295 = vadd.f32 0.0, %v2294
  %v2296 = vpop.f32.mrb[0].mxu0
  %2297 = vmatprep.mubr.f32.mxu0 0.0
  %2298 = vmatmul.mubr.f32.gmra.mrb[0].mxu0 %v2204
  %v2299 = vpop.f32.mrb[0].mxu0
  %v2300 = vadd.f32 0.0, %v2299
  %v2301 = vpop.f32.mrb[0].mxu0
  %2302 = vmatprep.mubr.f32.mxu0 0.0
  %2303 = vmatmul.mubr.f32.gmra.mrb[0].mxu0 %v2207
  %v2304 = vpop.f32.mrb[0].mxu0
  %v2305 = vadd.f32 0.0, %v2304
  %v2306 = vpop.f32.mrb[0].mxu0
  %2307 = vmatprep.mubr.f32.mxu0 0.0
  %2308 = vmatmul.mubr.f32.gmra.mrb[0].mxu0 %v2210
  %v2309 = vpop.f32.mrb[0].mxu0
  %v2310 = vadd.f32 0.0, %v2309
  %v2311 = vpop.f32.mrb[0].mxu0
  %2312 = vmatprep.mubr.f32.mxu0 0.0
  %2313 = vmatmul.mubr.f32.gmra.mrb[0].mxu0 %v2213
  %v2314 = vpop.f32.mrb[0].mxu0
  %v2315 = vadd.f32 0.0, %v2314
  %v2316 = vpop.f32.mrb[0].mxu0
  %2317 = vmatprep.mubr.f32.mxu0 0.0
  %2318 = vmatmul.mubr.f32.gmra.mrb[0].mxu0 %v2216
  %v2319 = vpop.f32.mrb[0].mxu0
  %v2320 = vadd.f32 0.0, %v2319
  %v2321 = vpop.f32.mrb[0].mxu0
  %2322 = vdwg.mxu0
  %v2323 = vmul.f32 %v2285, %v94
  %v2324 = vmul.f32 %v2290, %v95
  %v2325 = vmul.f32 %v2295, %v96
  %v2326 = vmul.f32 %v2300, %v97
  %v2327 = vmul.f32 %v2305, %v98
  %v2328 = vmul.f32 %v2310, %v99
  %v2329 = vmul.f32 %v2315, %v100
  %v2330 = vmul.f32 %v2320, %v101
  %2331 = vmatprep.subr.mxu0 0.0
  %2332 = vmatpush1.msra.mxu0 %v2323
  %2333 = vmatprep.subr.mxu0 0.0
  %2334 = vmatpush1.msra.mxu0 %v2324
  %2335 = vmatprep.subr.mxu0 0.0
  %2336 = vmatpush1.msra.mxu0 %v2325
  %2337 = vmatprep.subr.mxu0 0.0
  %2338 = vmatpush1.msra.mxu0 %v2326
  %2339 = vmatprep.subr.mxu0 0.0
  %2340 = vmatpush1.msra.mxu0 %v2327
  %2341 = vmatprep.subr.mxu0 0.0
  %2342 = vmatpush1.msra.mxu0 %v2328
  %2343 = vmatprep.subr.mxu0 0.0
  %2344 = vmatpush1.msra.mxu0 %v2329
  %2345 = vmatprep.subr.mxu0 0.0
  %2346 = vmatpush1.msra.mxu0 %v2330
  %2347 = vmatprep.subr.mxu0 0.0
  %2348 = vmatpush1.msra.mxu0 0.0
  %2349 = vmatprep.subr.mxu0 0.0
  %2350 = vmatpush1.msra.mxu0 0.0
  %2351 = vmatprep.subr.mxu0 0.0
  %2352 = vmatpush1.msra.mxu0 0.0
  %2353 = vmatprep.subr.mxu0 0.0
  %2354 = vmatpush1.msra.mxu0 0.0
  %2355 = vmatprep.subr.mxu0 0.0
  %2356 = vmatpush1.msra.mxu0 0.0
  %2357 = vmatprep.subr.mxu0 0.0
  %2358 = vmatpush1.msra.mxu0 0.0
  %2359 = vmatprep.subr.mxu0 0.0
  %2360 = vmatpush1.msra.mxu0 0.0
  %2361 = vmatprep.subr.mxu0 0.0
  %2362 = vmatpush1.msra.mxu0 0.0
  %2363 = vmatprep.subr.mxu0 0.0
  %2364 = vmatpush1.msra.mxu0 0.0
  %2365 = vmatprep.subr.mxu0 0.0
  %2366 = vmatpush1.msra.mxu0 0.0
  %2367 = vmatprep.subr.mxu0 0.0
  %2368 = vmatpush1.msra.mxu0 0.0
  %2369 = vmatprep.subr.mxu0 0.0
  %2370 = vmatpush1.msra.mxu0 0.0
  %2371 = vmatprep.subr.mxu0 0.0
  %2372 = vmatpush1.msra.mxu0 0.0
  %2373 = vmatprep.subr.mxu0 0.0
  %2374 = vmatpush1.msra.mxu0 0.0
  %2375 = vmatprep.subr.mxu0 0.0
  %2376 = vmatpush1.msra.mxu0 0.0
  %2377 = vmatprep.subr.mxu0 0.0
  %2378 = vmatpush1.msra.mxu0 0.0
  %2379 = vmatprep.subr.mxu0 0.0
  %2380 = vmatpush1.msra.mxu0 0.0
  %2381 = vmatprep.subr.mxu0 0.0
  %2382 = vmatpush1.msra.mxu0 0.0
  %2383 = vmatprep.subr.mxu0 0.0
  %2384 = vmatpush1.msra.mxu0 0.0
  %2385 = vmatprep.subr.mxu0 0.0
  %2386 = vmatpush1.msra.mxu0 0.0
  %2387 = vmatprep.subr.mxu0 0.0
  %2388 = vmatpush1.msra.mxu0 0.0
  %2389 = vmatprep.subr.mxu0 0.0
  %2390 = vmatpush1.msra.mxu0 0.0
  %2391 = vmatprep.subr.mxu0 0.0
  %2392 = vmatpush1.msra.mxu0 0.0
  %2393 = vmatprep.subr.mxu0 0.0
  %2394 = vmatpush1.msra.mxu0 0.0
  %2395 = vmatprep.mubr.f32.mxu0 0.0
  %2396 = vmatmul.mubr.f32.gmra.mrb[0].mxu0 %v1029
  %v2397 = vpop.f32.mrb[0].mxu0
  %v2398 = vadd.f32 0.0, %v2397
  %v2399 = vpop.f32.mrb[0].mxu0
  %2400 = vmatprep.mubr.f32.mxu0 0.0
  %2401 = vmatmul.mubr.f32.gmra.mrb[0].mxu0 %v1032
  %v2402 = vpop.f32.mrb[0].mxu0
  %v2403 = vadd.f32 0.0, %v2402
  %v2404 = vpop.f32.mrb[0].mxu0
  %2405 = vdwg.mxu0
  %v2406 = vlaneseq
  %v2407 = vshrl.u32 %v2406, 7
  %v2408 = vsub.s32 0, %v2407
  %v2409 = vrot.slane %v1593, %v2408
  %v2411 = vsel %vm293, %v2398, 0
  %v2414 = vsel %vm293, %v2403, 0
  %2416 = vmatprep.subr.mxu0 0.0
  %2417 = vmatpush1.msra.mxu0 %v1589
  %2418 = vmatprep.subr.mxu0 0.0
  %2419 = vmatpush1.msra.mxu0 %v1590
  %2420 = vmatprep.subr.mxu0 0.0
  %2421 = vmatpush1.msra.mxu0 %v1591
  %2422 = vmatprep.subr.mxu0 0.0
  %2423 = vmatpush1.msra.mxu0 %v1592
  %2424 = vmatprep.subr.mxu0 0.0
  %2425 = vmatpush1.msra.mxu0 0.0
  %2426 = vmatprep.subr.mxu0 0.0
  %2427 = vmatpush1.msra.mxu0 0.0
  %2428 = vmatprep.subr.mxu0 0.0
  %2429 = vmatpush1.msra.mxu0 0.0
  %2430 = vmatprep.subr.mxu0 0.0
  %2431 = vmatpush1.msra.mxu0 0.0
  %2432 = vmatprep.subr.mxu0 0.0
  %2433 = vmatpush1.msra.mxu0 0.0
  %2434 = vmatprep.subr.mxu0 0.0
  %2435 = vmatpush1.msra.mxu0 0.0
  %2436 = vmatprep.subr.mxu0 0.0
  %2437 = vmatpush1.msra.mxu0 0.0
  %2438 = vmatprep.subr.mxu0 0.0
  %2439 = vmatpush1.msra.mxu0 0.0
  %2440 = vmatprep.subr.mxu0 0.0
  %2441 = vmatpush1.msra.mxu0 0.0
  %2442 = vmatprep.subr.mxu0 0.0
  %2443 = vmatpush1.msra.mxu0 0.0
  %2444 = vmatprep.subr.mxu0 0.0
  %2445 = vmatpush1.msra.mxu0 0.0
  %2446 = vmatprep.subr.mxu0 0.0
  %2447 = vmatpush1.msra.mxu0 0.0
  %2448 = vmatprep.subr.mxu0 0.0
  %2449 = vmatpush1.msra.mxu0 0.0
  %2450 = vmatprep.subr.mxu0 0.0
  %2451 = vmatpush1.msra.mxu0 0.0
  %2452 = vmatprep.subr.mxu0 0.0
  %2453 = vmatpush1.msra.mxu0 0.0
  %2454 = vmatprep.subr.mxu0 0.0
  %2455 = vmatpush1.msra.mxu0 0.0
  %2456 = vmatprep.subr.mxu0 0.0
  %2457 = vmatpush1.msra.mxu0 0.0
  %2458 = vmatprep.subr.mxu0 0.0
  %2459 = vmatpush1.msra.mxu0 0.0
  %2460 = vmatprep.subr.mxu0 0.0
  %2461 = vmatpush1.msra.mxu0 0.0
  %2462 = vmatprep.subr.mxu0 0.0
  %2463 = vmatpush1.msra.mxu0 0.0
  %2464 = vmatprep.subr.mxu0 0.0
  %2465 = vmatpush1.msra.mxu0 0.0
  %2466 = vmatprep.subr.mxu0 0.0
  %2467 = vmatpush1.msra.mxu0 0.0
  %2468 = vmatprep.subr.mxu0 0.0
  %2469 = vmatpush1.msra.mxu0 0.0
  %2470 = vmatprep.subr.mxu0 0.0
  %2471 = vmatpush1.msra.mxu0 0.0
  %2472 = vmatprep.subr.mxu0 0.0
  %2473 = vmatpush1.msra.mxu0 0.0
  %2474 = vmatprep.subr.mxu0 0.0
  %2475 = vmatpush1.msra.mxu0 0.0
  %2476 = vmatprep.subr.mxu0 0.0
  %2477 = vmatpush1.msra.mxu0 0.0
  %2478 = vmatprep.subr.mxu0 0.0
  %2479 = vmatpush1.msra.mxu0 0.0
  %2480 = vmatprep.mubr.f32.mxu0 0.0
  %2481 = vmatmul.mubr.f32.gmra.mrb[0].mxu0 %v2411
  %v2482 = vpop.f32.mrb[0].mxu0
  %v2483 = vadd.f32 %v2409, %v2482
  %v2484 = vpop.f32.mrb[0].mxu0
  %2485 = vmatprep.mubr.f32.mxu0 0.0
  %2486 = vmatmul.mubr.f32.gmra.mrb[0].mxu0 %v2414
  %v2487 = vpop.f32.mrb[0].mxu0
  %v2488 = vadd.f32 %v2409, %v2487
  %v2489 = vpop.f32.mrb[0].mxu0
  %2490 = vdwg.mxu0
  %v2491 = vadd.f32 %v1463, %v2483
  %v2492 = vadd.f32 %v1464, %v2488
  %v2493 = vld [vmem:[%s14 + $0xd] sm:$0x1]
  %v2494 = vld [vmem:[%s14 + $0xe] sm:$0x1]
  %v2495 = vsel %vm293, %v2491, 0.0
  %2496 = vadd.xlane.f32.xlu0 %v2495
  %v2497 = vpop.xlane.xlu0 %2496
  %v2498 = vsel %vm293, %v2492, 0.0
  %2499 = vadd.xlane.f32.xlu0 %v2498
  %v2500 = vpop.xlane.xlu0 %2499
  %v2501 = vmul.f32 %v2497, %v1204
  %v2502 = vmul.f32 %v2500, %v1204
  %v2503 = vsub.f32 %v2491, %v2501
  %v2504 = vsub.f32 %v2492, %v2502
  %v2505 = vmul.f32 %v2503, %v2503
  %v2506 = vmul.f32 %v2504, %v2504
  %v2507 = vsel %vm293, %v2505, 0.0
  %2508 = vadd.xlane.f32.xlu0 %v2507
  %v2509 = vpop.xlane.xlu0 %2508
  %v2510 = vsel %vm293, %v2506, 0.0
  %2511 = vadd.xlane.f32.xlu0 %v2510
  %v2512 = vpop.xlane.xlu0 %2511
  %v2513 = vmul.f32 %v2509, %v1204
  %v2514 = vmul.f32 %v2512, %v1204
  %v2515 = vadd.f32 %v2513, 1e-05
  %v2516 = vadd.f32 %v2514, 1e-05
  %v2517 = vrsqrt.pop %v2515
  %v2518 = vrsqrt.pop %v2516
  %v2519 = vmul.f32 %v2503, %v2517
  %v2520 = vmul.f32 %v2504, %v2518
  %v2521 = vlaneseq
  %v2522 = vshrl.u32 %v2521, 7
  %v2523 = vsub.s32 0, %v2522
  %v2524 = vrot.slane %v2493, %v2523
  %v2525 = vmul.f32 %v2519, %v2524
  %v2526 = vmul.f32 %v2520, %v2524
  %v2527 = vlaneseq
  %v2528 = vshrl.u32 %v2527, 7
  %v2529 = vsub.s32 0, %v2528
  %v2530 = vrot.slane %v2494, %v2529
  %v2531 = vadd.f32 %v2525, %v2530
  %v2532 = vadd.f32 %v2526, %v2530
  %s2533 = scalar_lea.vmem %s12, 32
  %v2534 = vld [vmem:[%s2533] sm:$0xff]
  %v2535 = vld [vmem:[%s2533 + $0x8] sm:$0xff]
  %v2536 = vld [vmem:[%s2533 + $0x10] sm:$0xff]
  %v2537 = vld [vmem:[%s2533 + $0x18] sm:$0xff]
  %v2538 = vld [vmem:[%s15 + $0x1] sm:$0x1]
  %v2539 = vlaneseq
  %v2540 = vshrl.u32 %v2539, 7
  %v2541 = vsub.s32 0, %v2540
  %v2542 = vrot.slane %v2538, %v2541
  %v2544 = vsel %vm293, %v2531, 0
  %v2547 = vsel %vm293, %v2532, 0
  %2549 = vmatprep.subr.mxu0 0.0
  %2550 = vmatpush1.msra.mxu0 %v2534
  %2551 = vmatprep.subr.mxu0 0.0
  %2552 = vmatpush1.msra.mxu0 %v2535
  %2553 = vmatprep.subr.mxu0 0.0
  %2554 = vmatpush1.msra.mxu0 %v2536
  %2555 = vmatprep.subr.mxu0 0.0
  %2556 = vmatpush1.msra.mxu0 %v2537
  %2557 = vmatprep.subr.mxu0 0.0
  %2558 = vmatpush1.msra.mxu0 0.0
  %2559 = vmatprep.subr.mxu0 0.0
  %2560 = vmatpush1.msra.mxu0 0.0
  %2561 = vmatprep.subr.mxu0 0.0
  %2562 = vmatpush1.msra.mxu0 0.0
  %2563 = vmatprep.subr.mxu0 0.0
  %2564 = vmatpush1.msra.mxu0 0.0
  %2565 = vmatprep.subr.mxu0 0.0
  %2566 = vmatpush1.msra.mxu0 0.0
  %2567 = vmatprep.subr.mxu0 0.0
  %2568 = vmatpush1.msra.mxu0 0.0
  %2569 = vmatprep.subr.mxu0 0.0
  %2570 = vmatpush1.msra.mxu0 0.0
  %2571 = vmatprep.subr.mxu0 0.0
  %2572 = vmatpush1.msra.mxu0 0.0
  %2573 = vmatprep.subr.mxu0 0.0
  %2574 = vmatpush1.msra.mxu0 0.0
  %2575 = vmatprep.subr.mxu0 0.0
  %2576 = vmatpush1.msra.mxu0 0.0
  %2577 = vmatprep.subr.mxu0 0.0
  %2578 = vmatpush1.msra.mxu0 0.0
  %2579 = vmatprep.subr.mxu0 0.0
  %2580 = vmatpush1.msra.mxu0 0.0
  %2581 = vmatprep.subr.mxu0 0.0
  %2582 = vmatpush1.msra.mxu0 0.0
  %2583 = vmatprep.subr.mxu0 0.0
  %2584 = vmatpush1.msra.mxu0 0.0
  %2585 = vmatprep.subr.mxu0 0.0
  %2586 = vmatpush1.msra.mxu0 0.0
  %2587 = vmatprep.subr.mxu0 0.0
  %2588 = vmatpush1.msra.mxu0 0.0
  %2589 = vmatprep.subr.mxu0 0.0
  %2590 = vmatpush1.msra.mxu0 0.0
  %2591 = vmatprep.subr.mxu0 0.0
  %2592 = vmatpush1.msra.mxu0 0.0
  %2593 = vmatprep.subr.mxu0 0.0
  %2594 = vmatpush1.msra.mxu0 0.0
  %2595 = vmatprep.subr.mxu0 0.0
  %2596 = vmatpush1.msra.mxu0 0.0
  %2597 = vmatprep.subr.mxu0 0.0
  %2598 = vmatpush1.msra.mxu0 0.0
  %2599 = vmatprep.subr.mxu0 0.0
  %2600 = vmatpush1.msra.mxu0 0.0
  %2601 = vmatprep.subr.mxu0 0.0
  %2602 = vmatpush1.msra.mxu0 0.0
  %2603 = vmatprep.subr.mxu0 0.0
  %2604 = vmatpush1.msra.mxu0 0.0
  %2605 = vmatprep.subr.mxu0 0.0
  %2606 = vmatpush1.msra.mxu0 0.0
  %2607 = vmatprep.subr.mxu0 0.0
  %2608 = vmatpush1.msra.mxu0 0.0
  %2609 = vmatprep.subr.mxu0 0.0
  %2610 = vmatpush1.msra.mxu0 0.0
  %2611 = vmatprep.subr.mxu0 0.0
  %2612 = vmatpush1.msra.mxu0 0.0
  %2613 = vmatprep.mubr.f32.mxu0 0.0
  %2614 = vmatmul.mubr.f32.gmra.mrb[0].mxu0 %v2544
  %v2615 = vpop.f32.mrb[0].mxu0
  %v2616 = vadd.f32 %v2542, %v2615
  %v2617 = vpop.f32.mrb[0].mxu0
  %2618 = vmatprep.mubr.f32.mxu0 0.0
  %2619 = vmatmul.mubr.f32.gmra.mrb[0].mxu0 %v2547
  %v2620 = vpop.f32.mrb[0].mxu0
  %v2621 = vadd.f32 %v2542, %v2620
  %v2622 = vpop.f32.mrb[0].mxu0
  %2623 = vdwg.mxu0
  %v2624 = vmax.f32 %v2616, 0.0
  %v2625 = vmax.f32 %v2621, 0.0
  %s2626 = scalar_lea.vmem %s13, 64
  %v2627 = vld [vmem:[%s2626] sm:$0xff]
  %v2628 = vld [vmem:[%s2626 + $0x8] sm:$0xff]
  %v2629 = vld [vmem:[%s2626 + $0x10] sm:$0xff]
  %v2630 = vld [vmem:[%s2626 + $0x18] sm:$0xff]
  %v2631 = vld [vmem:[%s2626 + $0x20] sm:$0xff]
  %v2632 = vld [vmem:[%s2626 + $0x28] sm:$0xff]
  %v2633 = vld [vmem:[%s2626 + $0x30] sm:$0xff]
  %v2634 = vld [vmem:[%s2626 + $0x38] sm:$0xff]
  %v2635 = vld [vmem:[%s14 + $0x11] sm:$0x1]
  %v2636 = vlaneseq
  %v2637 = vshrl.u32 %v2636, 7
  %v2638 = vsub.s32 0, %v2637
  %v2639 = vrot.slane %v2635, %v2638
  %v2641 = vsel %vm802, %v2624, 0
  %v2644 = vsel %vm802, %v2625, 0
  %2646 = vmatprep.subr.mxu0 0.0
  %2647 = vmatpush1.msra.mxu0 %v2627
  %2648 = vmatprep.subr.mxu0 0.0
  %2649 = vmatpush1.msra.mxu0 %v2628
  %2650 = vmatprep.subr.mxu0 0.0
  %2651 = vmatpush1.msra.mxu0 %v2629
  %2652 = vmatprep.subr.mxu0 0.0
  %2653 = vmatpush1.msra.mxu0 %v2630
  %2654 = vmatprep.subr.mxu0 0.0
  %2655 = vmatpush1.msra.mxu0 %v2631
  %2656 = vmatprep.subr.mxu0 0.0
  %2657 = vmatpush1.msra.mxu0 %v2632
  %2658 = vmatprep.subr.mxu0 0.0
  %2659 = vmatpush1.msra.mxu0 %v2633
  %2660 = vmatprep.subr.mxu0 0.0
  %2661 = vmatpush1.msra.mxu0 %v2634
  %2662 = vmatprep.subr.mxu0 0.0
  %2663 = vmatpush1.msra.mxu0 0.0
  %2664 = vmatprep.subr.mxu0 0.0
  %2665 = vmatpush1.msra.mxu0 0.0
  %2666 = vmatprep.subr.mxu0 0.0
  %2667 = vmatpush1.msra.mxu0 0.0
  %2668 = vmatprep.subr.mxu0 0.0
  %2669 = vmatpush1.msra.mxu0 0.0
  %2670 = vmatprep.subr.mxu0 0.0
  %2671 = vmatpush1.msra.mxu0 0.0
  %2672 = vmatprep.subr.mxu0 0.0
  %2673 = vmatpush1.msra.mxu0 0.0
  %2674 = vmatprep.subr.mxu0 0.0
  %2675 = vmatpush1.msra.mxu0 0.0
  %2676 = vmatprep.subr.mxu0 0.0
  %2677 = vmatpush1.msra.mxu0 0.0
  %2678 = vmatprep.subr.mxu0 0.0
  %2679 = vmatpush1.msra.mxu0 0.0
  %2680 = vmatprep.subr.mxu0 0.0
  %2681 = vmatpush1.msra.mxu0 0.0
  %2682 = vmatprep.subr.mxu0 0.0
  %2683 = vmatpush1.msra.mxu0 0.0
  %2684 = vmatprep.subr.mxu0 0.0
  %2685 = vmatpush1.msra.mxu0 0.0
  %2686 = vmatprep.subr.mxu0 0.0
  %2687 = vmatpush1.msra.mxu0 0.0
  %2688 = vmatprep.subr.mxu0 0.0
  %2689 = vmatpush1.msra.mxu0 0.0
  %2690 = vmatprep.subr.mxu0 0.0
  %2691 = vmatpush1.msra.mxu0 0.0
  %2692 = vmatprep.subr.mxu0 0.0
  %2693 = vmatpush1.msra.mxu0 0.0
  %2694 = vmatprep.subr.mxu0 0.0
  %2695 = vmatpush1.msra.mxu0 0.0
  %2696 = vmatprep.subr.mxu0 0.0
  %2697 = vmatpush1.msra.mxu0 0.0
  %2698 = vmatprep.subr.mxu0 0.0
  %2699 = vmatpush1.msra.mxu0 0.0
  %2700 = vmatprep.subr.mxu0 0.0
  %2701 = vmatpush1.msra.mxu0 0.0
  %2702 = vmatprep.subr.mxu0 0.0
  %2703 = vmatpush1.msra.mxu0 0.0
  %2704 = vmatprep.subr.mxu0 0.0
  %2705 = vmatpush1.msra.mxu0 0.0
  %2706 = vmatprep.subr.mxu0 0.0
  %2707 = vmatpush1.msra.mxu0 0.0
  %2708 = vmatprep.subr.mxu0 0.0
  %2709 = vmatpush1.msra.mxu0 0.0
  %2710 = vmatprep.mubr.f32.mxu0 0.0
  %2711 = vmatmul.mubr.f32.gmra.mrb[0].mxu0 %v2641
  %v2712 = vpop.f32.mrb[0].mxu0
  %v2713 = vadd.f32 %v2639, %v2712
  %v2714 = vpop.f32.mrb[0].mxu0
  %2715 = vmatprep.mubr.f32.mxu0 0.0
  %2716 = vmatmul.mubr.f32.gmra.mrb[0].mxu0 %v2644
  %v2717 = vpop.f32.mrb[0].mxu0
  %v2718 = vadd.f32 %v2639, %v2717
  %v2719 = vpop.f32.mrb[0].mxu0
  %2720 = vdwg.mxu0
  %v2721 = vadd.f32 %v2531, %v2713
  %v2722 = vadd.f32 %v2532, %v2718
  %v2723 = vld [vmem:[%s14 + $0xf] sm:$0x1]
  %v2724 = vld [vmem:[%s14 + $0x10] sm:$0x1]
  %v2725 = vsel %vm293, %v2721, 0.0
  %2726 = vadd.xlane.f32.xlu0 %v2725
  %v2727 = vpop.xlane.xlu0 %2726
  %v2728 = vsel %vm293, %v2722, 0.0
  %2729 = vadd.xlane.f32.xlu0 %v2728
  %v2730 = vpop.xlane.xlu0 %2729
  %v2731 = vmul.f32 %v2727, %v1204
  %v2732 = vmul.f32 %v2730, %v1204
  %v2733 = vsub.f32 %v2721, %v2731
  %v2734 = vsub.f32 %v2722, %v2732
  %v2735 = vmul.f32 %v2733, %v2733
  %v2736 = vmul.f32 %v2734, %v2734
  %v2737 = vsel %vm293, %v2735, 0.0
  %2738 = vadd.xlane.f32.xlu0 %v2737
  %v2739 = vpop.xlane.xlu0 %2738
  %v2740 = vsel %vm293, %v2736, 0.0
  %2741 = vadd.xlane.f32.xlu0 %v2740
  %v2742 = vpop.xlane.xlu0 %2741
  %v2743 = vmul.f32 %v2739, %v1204
  %v2744 = vmul.f32 %v2742, %v1204
  %v2745 = vadd.f32 %v2743, 1e-05
  %v2746 = vadd.f32 %v2744, 1e-05
  %v2747 = vrsqrt.pop %v2745
  %v2748 = vrsqrt.pop %v2746
  %v2749 = vmul.f32 %v2733, %v2747
  %v2750 = vmul.f32 %v2734, %v2748
  %v2751 = vlaneseq
  %v2752 = vshrl.u32 %v2751, 7
  %v2753 = vsub.s32 0, %v2752
  %v2754 = vrot.slane %v2723, %v2753
  %v2755 = vmul.f32 %v2749, %v2754
  %v2756 = vmul.f32 %v2750, %v2754
  %v2757 = vlaneseq
  %v2758 = vshrl.u32 %v2757, 7
  %v2759 = vsub.s32 0, %v2758
  %v2760 = vrot.slane %v2724, %v2759
  %v2761 = vadd.f32 %v2755, %v2760
  %v2762 = vadd.f32 %v2756, %v2760
  %2763 = vmatprep.subr.mxu0 0.0
  %2764 = vmatpush1.msra.mxu0 %v2761
  %2765 = vmatprep.subr.mxu0 0.0
  %2766 = vmatpush1.msra.mxu0 %v2762
  %2767 = vmatprep.subr.mxu0 0.0
  %2768 = vmatpush1.msra.mxu0 0.0
  %2769 = vmatprep.subr.mxu0 0.0
  %2770 = vmatpush1.msra.mxu0 0.0
  %2771 = vmatprep.subr.mxu0 0.0
  %2772 = vmatpush1.msra.mxu0 0.0
  %2773 = vmatprep.subr.mxu0 0.0
  %2774 = vmatpush1.msra.mxu0 0.0
  %2775 = vmatprep.subr.mxu0 0.0
  %2776 = vmatpush1.msra.mxu0 0.0
  %2777 = vmatprep.subr.mxu0 0.0
  %2778 = vmatpush1.msra.mxu0 0.0
  %2779 = vmatprep.subr.mxu0 0.0
  %2780 = vmatpush1.msra.mxu0 0.0
  %2781 = vmatprep.subr.mxu0 0.0
  %2782 = vmatpush1.msra.mxu0 0.0
  %2783 = vmatprep.subr.mxu0 0.0
  %2784 = vmatpush1.msra.mxu0 0.0
  %2785 = vmatprep.subr.mxu0 0.0
  %2786 = vmatpush1.msra.mxu0 0.0
  %2787 = vmatprep.subr.mxu0 0.0
  %2788 = vmatpush1.msra.mxu0 0.0
  %2789 = vmatprep.subr.mxu0 0.0
  %2790 = vmatpush1.msra.mxu0 0.0
  %2791 = vmatprep.subr.mxu0 0.0
  %2792 = vmatpush1.msra.mxu0 0.0
  %2793 = vmatprep.subr.mxu0 0.0
  %2794 = vmatpush1.msra.mxu0 0.0
  %2795 = vmatprep.subr.mxu0 0.0
  %2796 = vmatpush1.msra.mxu0 0.0
  %2797 = vmatprep.subr.mxu0 0.0
  %2798 = vmatpush1.msra.mxu0 0.0
  %2799 = vmatprep.subr.mxu0 0.0
  %2800 = vmatpush1.msra.mxu0 0.0
  %2801 = vmatprep.subr.mxu0 0.0
  %2802 = vmatpush1.msra.mxu0 0.0
  %2803 = vmatprep.subr.mxu0 0.0
  %2804 = vmatpush1.msra.mxu0 0.0
  %2805 = vmatprep.subr.mxu0 0.0
  %2806 = vmatpush1.msra.mxu0 0.0
  %2807 = vmatprep.subr.mxu0 0.0
  %2808 = vmatpush1.msra.mxu0 0.0
  %2809 = vmatprep.subr.mxu0 0.0
  %2810 = vmatpush1.msra.mxu0 0.0
  %2811 = vmatprep.subr.mxu0 0.0
  %2812 = vmatpush1.msra.mxu0 0.0
  %2813 = vmatprep.subr.mxu0 0.0
  %2814 = vmatpush1.msra.mxu0 0.0
  %2815 = vmatprep.subr.mxu0 0.0
  %2816 = vmatpush1.msra.mxu0 0.0
  %2817 = vmatprep.subr.mxu0 0.0
  %2818 = vmatpush1.msra.mxu0 0.0
  %2819 = vmatprep.subr.mxu0 0.0
  %2820 = vmatpush1.msra.mxu0 0.0
  %2821 = vmatprep.subr.mxu0 0.0
  %2822 = vmatpush1.msra.mxu0 0.0
  %2823 = vmatprep.subr.mxu0 0.0
  %2824 = vmatpush1.msra.mxu0 0.0
  %2825 = vmatprep.subr.mxu0 0.0
  %2826 = vmatpush1.msra.mxu0 0.0
  %2827 = vmatprep.mubr.f32.mxu0 0.0
  %2828 = vmatmul.mubr.f32.gmra.mrb[0].mxu0 %v138
  %v2829 = vpop.f32.mrb[0].mxu0
  %v2830 = vadd.f32 0.0, %v2829
  %v2831 = vpop.f32.mrb[0].mxu0
  %2832 = vmatprep.mubr.f32.mxu0 0.0
  %2833 = vmatmul.mubr.f32.gmra.mrb[0].mxu0 %v141
  %v2834 = vpop.f32.mrb[0].mxu0
  %v2835 = vadd.f32 0.0, %v2834
  %v2836 = vpop.f32.mrb[0].mxu0
  %2837 = vmatprep.mubr.f32.mxu0 0.0
  %2838 = vmatmul.mubr.f32.gmra.mrb[0].mxu0 %v144
  %v2839 = vpop.f32.mrb[0].mxu0
  %v2840 = vadd.f32 0.0, %v2839
  %v2841 = vpop.f32.mrb[0].mxu0
  %2842 = vmatprep.mubr.f32.mxu0 0.0
  %2843 = vmatmul.mubr.f32.gmra.mrb[0].mxu0 %v147
  %v2844 = vpop.f32.mrb[0].mxu0
  %v2845 = vadd.f32 0.0, %v2844
  %v2846 = vpop.f32.mrb[0].mxu0
  %2847 = vmatprep.mubr.f32.mxu0 0.0
  %2848 = vmatmul.mubr.f32.gmra.mrb[0].mxu0 %v150
  %v2849 = vpop.f32.mrb[0].mxu0
  %v2850 = vadd.f32 0.0, %v2849
  %v2851 = vpop.f32.mrb[0].mxu0
  %2852 = vmatprep.mubr.f32.mxu0 0.0
  %2853 = vmatmul.mubr.f32.gmra.mrb[0].mxu0 %v153
  %v2854 = vpop.f32.mrb[0].mxu0
  %v2855 = vadd.f32 0.0, %v2854
  %v2856 = vpop.f32.mrb[0].mxu0
  %2857 = vmatprep.mubr.f32.mxu0 0.0
  %2858 = vmatmul.mubr.f32.gmra.mrb[0].mxu0 %v156
  %v2859 = vpop.f32.mrb[0].mxu0
  %v2860 = vadd.f32 0.0, %v2859
  %v2861 = vpop.f32.mrb[0].mxu0
  %2862 = vmatprep.mubr.f32.mxu0 0.0
  %2863 = vmatmul.mubr.f32.gmra.mrb[0].mxu0 %v159
  %v2864 = vpop.f32.mrb[0].mxu0
  %v2865 = vadd.f32 0.0, %v2864
  %v2866 = vpop.f32.mrb[0].mxu0
  %2867 = vdwg.mxu0
  %v2868 = vld [vmem:[%s1] sm:$0xff]
  %v2869 = vld [vmem:[%s1 + $0x8] sm:$0xff]
  %v2871 = vsel %vm136, %v82, 0
  %v2874 = vsel %vm136, %v83, 0
  %v2877 = vsel %vm136, %v84, 0
  %v2880 = vsel %vm136, %v85, 0
  %v2883 = vsel %vm136, %v86, 0
  %v2886 = vsel %vm136, %v87, 0
  %v2889 = vsel %vm136, %v88, 0
  %v2892 = vsel %vm136, %v89, 0
  %2894 = vmatprep.subr.mxu0 0.0
  %2895 = vmatpush1.msra.mxu0 %v2868
  %2896 = vmatprep.subr.mxu0 0.0
  %2897 = vmatpush1.msra.mxu0 %v2869
  %2898 = vmatprep.subr.mxu0 0.0
  %2899 = vmatpush1.msra.mxu0 0.0
  %2900 = vmatprep.subr.mxu0 0.0
  %2901 = vmatpush1.msra.mxu0 0.0
  %2902 = vmatprep.subr.mxu0 0.0
  %2903 = vmatpush1.msra.mxu0 0.0
  %2904 = vmatprep.subr.mxu0 0.0
  %2905 = vmatpush1.msra.mxu0 0.0
  %2906 = vmatprep.subr.mxu0 0.0
  %2907 = vmatpush1.msra.mxu0 0.0
  %2908 = vmatprep.subr.mxu0 0.0
  %2909 = vmatpush1.msra.mxu0 0.0
  %2910 = vmatprep.subr.mxu0 0.0
  %2911 = vmatpush1.msra.mxu0 0.0
  %2912 = vmatprep.subr.mxu0 0.0
  %2913 = vmatpush1.msra.mxu0 0.0
  %2914 = vmatprep.subr.mxu0 0.0
  %2915 = vmatpush1.msra.mxu0 0.0
  %2916 = vmatprep.subr.mxu0 0.0
  %2917 = vmatpush1.msra.mxu0 0.0
  %2918 = vmatprep.subr.mxu0 0.0
  %2919 = vmatpush1.msra.mxu0 0.0
  %2920 = vmatprep.subr.mxu0 0.0
  %2921 = vmatpush1.msra.mxu0 0.0
  %2922 = vmatprep.subr.mxu0 0.0
  %2923 = vmatpush1.msra.mxu0 0.0
  %2924 = vmatprep.subr.mxu0 0.0
  %2925 = vmatpush1.msra.mxu0 0.0
  %2926 = vmatprep.subr.mxu0 0.0
  %2927 = vmatpush1.msra.mxu0 0.0
  %2928 = vmatprep.subr.mxu0 0.0
  %2929 = vmatpush1.msra.mxu0 0.0
  %2930 = vmatprep.subr.mxu0 0.0
  %2931 = vmatpush1.msra.mxu0 0.0
  %2932 = vmatprep.subr.mxu0 0.0
  %2933 = vmatpush1.msra.mxu0 0.0
  %2934 = vmatprep.subr.mxu0 0.0
  %2935 = vmatpush1.msra.mxu0 0.0
  %2936 = vmatprep.subr.mxu0 0.0
  %2937 = vmatpush1.msra.mxu0 0.0
  %2938 = vmatprep.subr.mxu0 0.0
  %2939 = vmatpush1.msra.mxu0 0.0
  %2940 = vmatprep.subr.mxu0 0.0
  %2941 = vmatpush1.msra.mxu0 0.0
  %2942 = vmatprep.subr.mxu0 0.0
  %2943 = vmatpush1.msra.mxu0 0.0
  %2944 = vmatprep.subr.mxu0 0.0
  %2945 = vmatpush1.msra.mxu0 0.0
  %2946 = vmatprep.subr.mxu0 0.0
  %2947 = vmatpush1.msra.mxu0 0.0
  %2948 = vmatprep.subr.mxu0 0.0
  %2949 = vmatpush1.msra.mxu0 0.0
  %2950 = vmatprep.subr.mxu0 0.0
  %2951 = vmatpush1.msra.mxu0 0.0
  %2952 = vmatprep.subr.mxu0 0.0
  %2953 = vmatpush1.msra.mxu0 0.0
  %2954 = vmatprep.subr.mxu0 0.0
  %2955 = vmatpush1.msra.mxu0 0.0
  %2956 = vmatprep.subr.mxu0 0.0
  %2957 = vmatpush1.msra.mxu0 0.0
  %2958 = vmatprep.mubr.f32.mxu0 0.0
  %2959 = vmatmul.mubr.f32.gmra.mrb[0].mxu0 %v2871
  %v2960 = vpop.f32.mrb[0].mxu0
  %v2961 = vadd.f32 0.0, %v2960
  %v2962 = vpop.f32.mrb[0].mxu0
  %2963 = vmatprep.mubr.f32.mxu0 0.0
  %2964 = vmatmul.mubr.f32.gmra.mrb[0].mxu0 %v2874
  %v2965 = vpop.f32.mrb[0].mxu0
  %v2966 = vadd.f32 0.0, %v2965
  %v2967 = vpop.f32.mrb[0].mxu0
  %2968 = vmatprep.mubr.f32.mxu0 0.0
  %2969 = vmatmul.mubr.f32.gmra.mrb[0].mxu0 %v2877
  %v2970 = vpop.f32.mrb[0].mxu0
  %v2971 = vadd.f32 0.0, %v2970
  %v2972 = vpop.f32.mrb[0].mxu0
  %2973 = vmatprep.mubr.f32.mxu0 0.0
  %2974 = vmatmul.mubr.f32.gmra.mrb[0].mxu0 %v2880
  %v2975 = vpop.f32.mrb[0].mxu0
  %v2976 = vadd.f32 0.0, %v2975
  %v2977 = vpop.f32.mrb[0].mxu0
  %2978 = vmatprep.mubr.f32.mxu0 0.0
  %2979 = vmatmul.mubr.f32.gmra.mrb[0].mxu0 %v2883
  %v2980 = vpop.f32.mrb[0].mxu0
  %v2981 = vadd.f32 0.0, %v2980
  %v2982 = vpop.f32.mrb[0].mxu0
  %2983 = vmatprep.mubr.f32.mxu0 0.0
  %2984 = vmatmul.mubr.f32.gmra.mrb[0].mxu0 %v2886
  %v2985 = vpop.f32.mrb[0].mxu0
  %v2986 = vadd.f32 0.0, %v2985
  %v2987 = vpop.f32.mrb[0].mxu0
  %2988 = vmatprep.mubr.f32.mxu0 0.0
  %2989 = vmatmul.mubr.f32.gmra.mrb[0].mxu0 %v2889
  %v2990 = vpop.f32.mrb[0].mxu0
  %v2991 = vadd.f32 0.0, %v2990
  %v2992 = vpop.f32.mrb[0].mxu0
  %2993 = vmatprep.mubr.f32.mxu0 0.0
  %2994 = vmatmul.mubr.f32.gmra.mrb[0].mxu0 %v2892
  %v2995 = vpop.f32.mrb[0].mxu0
  %v2996 = vadd.f32 0.0, %v2995
  %v2997 = vpop.f32.mrb[0].mxu0
  %2998 = vdwg.mxu0
  %v2999 = vld [vmem:[%s16] sm:$0xff]
  %v3000 = vld [vmem:[%s16 + $0x8] sm:$0xff]
  %v3001 = vld [vmem:[%s16 + $0x10] sm:$0xff]
  %v3002 = vld [vmem:[%s16 + $0x18] sm:$0xff]
  %v3003 = vld [vmem:[%s19] sm:$0x1]
  %s3004 = scalar_lea.vmem %s16, 32
  %v3005 = vld [vmem:[%s3004] sm:$0xff]
  %v3006 = vld [vmem:[%s3004 + $0x8] sm:$0xff]
  %v3007 = vld [vmem:[%s3004 + $0x10] sm:$0xff]
  %v3008 = vld [vmem:[%s3004 + $0x18] sm:$0xff]
  %v3009 = vld [vmem:[%s19 + $0x1] sm:$0x1]
  %s3010 = scalar_lea.vmem %s16, 64
  %v3011 = vld [vmem:[%s3010] sm:$0xff]
  %v3012 = vld [vmem:[%s3010 + $0x8] sm:$0xff]
  %v3013 = vld [vmem:[%s3010 + $0x10] sm:$0xff]
  %v3014 = vld [vmem:[%s3010 + $0x18] sm:$0xff]
  %v3015 = vld [vmem:[%s19 + $0x2] sm:$0x1]
  %s3016 = scalar_lea.vmem %s16, 96
  %v3017 = vld [vmem:[%s3016] sm:$0xff]
  %v3018 = vld [vmem:[%s3016 + $0x8] sm:$0xff]
  %v3019 = vld [vmem:[%s3016 + $0x10] sm:$0xff]
  %v3020 = vld [vmem:[%s3016 + $0x18] sm:$0xff]
  %v3021 = vld [vmem:[%s19 + $0x3] sm:$0x1]
  %v3022 = vlaneseq
  %v3023 = vshrl.u32 %v3022, 7
  %v3024 = vsub.s32 0, %v3023
  %v3025 = vrot.slane %v3003, %v3024
  %v3027 = vsel %vm293, %v2961, 0
  %v3030 = vsel %vm293, %v2966, 0
  %v3033 = vsel %vm293, %v2971, 0
  %v3036 = vsel %vm293, %v2976, 0
  %v3039 = vsel %vm293, %v2981, 0
  %v3042 = vsel %vm293, %v2986, 0
  %v3045 = vsel %vm293, %v2991, 0
  %v3048 = vsel %vm293, %v2996, 0
  %3050 = vmatprep.subr.mxu0 0.0
  %3051 = vmatpush1.msra.mxu0 %v2999
  %3052 = vmatprep.subr.mxu0 0.0
  %3053 = vmatpush1.msra.mxu0 %v3000
  %3054 = vmatprep.subr.mxu0 0.0
  %3055 = vmatpush1.msra.mxu0 %v3001
  %3056 = vmatprep.subr.mxu0 0.0
  %3057 = vmatpush1.msra.mxu0 %v3002
  %3058 = vmatprep.subr.mxu0 0.0
  %3059 = vmatpush1.msra.mxu0 0.0
  %3060 = vmatprep.subr.mxu0 0.0
  %3061 = vmatpush1.msra.mxu0 0.0
  %3062 = vmatprep.subr.mxu0 0.0
  %3063 = vmatpush1.msra.mxu0 0.0
  %3064 = vmatprep.subr.mxu0 0.0
  %3065 = vmatpush1.msra.mxu0 0.0
  %3066 = vmatprep.subr.mxu0 0.0
  %3067 = vmatpush1.msra.mxu0 0.0
  %3068 = vmatprep.subr.mxu0 0.0
  %3069 = vmatpush1.msra.mxu0 0.0
  %3070 = vmatprep.subr.mxu0 0.0
  %3071 = vmatpush1.msra.mxu0 0.0
  %3072 = vmatprep.subr.mxu0 0.0
  %3073 = vmatpush1.msra.mxu0 0.0
  %3074 = vmatprep.subr.mxu0 0.0
  %3075 = vmatpush1.msra.mxu0 0.0
  %3076 = vmatprep.subr.mxu0 0.0
  %3077 = vmatpush1.msra.mxu0 0.0
  %3078 = vmatprep.subr.mxu0 0.0
  %3079 = vmatpush1.msra.mxu0 0.0
  %3080 = vmatprep.subr.mxu0 0.0
  %3081 = vmatpush1.msra.mxu0 0.0
  %3082 = vmatprep.subr.mxu0 0.0
  %3083 = vmatpush1.msra.mxu0 0.0
  %3084 = vmatprep.subr.mxu0 0.0
  %3085 = vmatpush1.msra.mxu0 0.0
  %3086 = vmatprep.subr.mxu0 0.0
  %3087 = vmatpush1.msra.mxu0 0.0
  %3088 = vmatprep.subr.mxu0 0.0
  %3089 = vmatpush1.msra.mxu0 0.0
  %3090 = vmatprep.subr.mxu0 0.0
  %3091 = vmatpush1.msra.mxu0 0.0
  %3092 = vmatprep.subr.mxu0 0.0
  %3093 = vmatpush1.msra.mxu0 0.0
  %3094 = vmatprep.subr.mxu0 0.0
  %3095 = vmatpush1.msra.mxu0 0.0
  %3096 = vmatprep.subr.mxu0 0.0
  %3097 = vmatpush1.msra.mxu0 0.0
  %3098 = vmatprep.subr.mxu0 0.0
  %3099 = vmatpush1.msra.mxu0 0.0
  %3100 = vmatprep.subr.mxu0 0.0
  %3101 = vmatpush1.msra.mxu0 0.0
  %3102 = vmatprep.subr.mxu0 0.0
  %3103 = vmatpush1.msra.mxu0 0.0
  %3104 = vmatprep.subr.mxu0 0.0
  %3105 = vmatpush1.msra.mxu0 0.0
  %3106 = vmatprep.subr.mxu0 0.0
  %3107 = vmatpush1.msra.mxu0 0.0
  %3108 = vmatprep.subr.mxu0 0.0
  %3109 = vmatpush1.msra.mxu0 0.0
  %3110 = vmatprep.subr.mxu0 0.0
  %3111 = vmatpush1.msra.mxu0 0.0
  %3112 = vmatprep.subr.mxu0 0.0
  %3113 = vmatpush1.msra.mxu0 0.0
  %3114 = vmatprep.mubr.f32.mxu0 0.0
  %3115 = vmatmul.mubr.f32.gmra.mrb[0].mxu0 %v3027
  %v3116 = vpop.f32.mrb[0].mxu0
  %v3117 = vadd.f32 %v3025, %v3116
  %v3118 = vpop.f32.mrb[0].mxu0
  %3119 = vmatprep.mubr.f32.mxu0 0.0
  %3120 = vmatmul.mubr.f32.gmra.mrb[0].mxu0 %v3030
  %v3121 = vpop.f32.mrb[0].mxu0
  %v3122 = vadd.f32 %v3025, %v3121
  %v3123 = vpop.f32.mrb[0].mxu0
  %3124 = vmatprep.mubr.f32.mxu0 0.0
  %3125 = vmatmul.mubr.f32.gmra.mrb[0].mxu0 %v3033
  %v3126 = vpop.f32.mrb[0].mxu0
  %v3127 = vadd.f32 %v3025, %v3126
  %v3128 = vpop.f32.mrb[0].mxu0
  %3129 = vmatprep.mubr.f32.mxu0 0.0
  %3130 = vmatmul.mubr.f32.gmra.mrb[0].mxu0 %v3036
  %v3131 = vpop.f32.mrb[0].mxu0
  %v3132 = vadd.f32 %v3025, %v3131
  %v3133 = vpop.f32.mrb[0].mxu0
  %3134 = vmatprep.mubr.f32.mxu0 0.0
  %3135 = vmatmul.mubr.f32.gmra.mrb[0].mxu0 %v3039
  %v3136 = vpop.f32.mrb[0].mxu0
  %v3137 = vadd.f32 %v3025, %v3136
  %v3138 = vpop.f32.mrb[0].mxu0
  %3139 = vmatprep.mubr.f32.mxu0 0.0
  %3140 = vmatmul.mubr.f32.gmra.mrb[0].mxu0 %v3042
  %v3141 = vpop.f32.mrb[0].mxu0
  %v3142 = vadd.f32 %v3025, %v3141
  %v3143 = vpop.f32.mrb[0].mxu0
  %3144 = vmatprep.mubr.f32.mxu0 0.0
  %3145 = vmatmul.mubr.f32.gmra.mrb[0].mxu0 %v3045
  %v3146 = vpop.f32.mrb[0].mxu0
  %v3147 = vadd.f32 %v3025, %v3146
  %v3148 = vpop.f32.mrb[0].mxu0
  %3149 = vmatprep.mubr.f32.mxu0 0.0
  %3150 = vmatmul.mubr.f32.gmra.mrb[0].mxu0 %v3048
  %v3151 = vpop.f32.mrb[0].mxu0
  %v3152 = vadd.f32 %v3025, %v3151
  %v3153 = vpop.f32.mrb[0].mxu0
  %3154 = vdwg.mxu0
  %v3155 = vmul.f32 %v3117, %v102
  %v3156 = vmul.f32 %v3122, %v103
  %v3157 = vmul.f32 %v3127, %v104
  %v3158 = vmul.f32 %v3132, %v105
  %v3159 = vmul.f32 %v3137, %v106
  %v3160 = vmul.f32 %v3142, %v107
  %v3161 = vmul.f32 %v3147, %v108
  %v3162 = vmul.f32 %v3152, %v109
  %v3163 = vlaneseq
  %v3164 = vshrl.u32 %v3163, 7
  %v3165 = vsub.s32 0, %v3164
  %v3166 = vrot.slane %v3009, %v3165
  %3167 = vmatprep.subr.mxu0 0.0
  %3168 = vmatpush1.msra.mxu0 %v3005
  %3169 = vmatprep.subr.mxu0 0.0
  %3170 = vmatpush1.msra.mxu0 %v3006
  %3171 = vmatprep.subr.mxu0 0.0
  %3172 = vmatpush1.msra.mxu0 %v3007
  %3173 = vmatprep.subr.mxu0 0.0
  %3174 = vmatpush1.msra.mxu0 %v3008
  %3175 = vmatprep.subr.mxu0 0.0
  %3176 = vmatpush1.msra.mxu0 0.0
  %3177 = vmatprep.subr.mxu0 0.0
  %3178 = vmatpush1.msra.mxu0 0.0
  %3179 = vmatprep.subr.mxu0 0.0
  %3180 = vmatpush1.msra.mxu0 0.0
  %3181 = vmatprep.subr.mxu0 0.0
  %3182 = vmatpush1.msra.mxu0 0.0
  %3183 = vmatprep.subr.mxu0 0.0
  %3184 = vmatpush1.msra.mxu0 0.0
  %3185 = vmatprep.subr.mxu0 0.0
  %3186 = vmatpush1.msra.mxu0 0.0
  %3187 = vmatprep.subr.mxu0 0.0
  %3188 = vmatpush1.msra.mxu0 0.0
  %3189 = vmatprep.subr.mxu0 0.0
  %3190 = vmatpush1.msra.mxu0 0.0
  %3191 = vmatprep.subr.mxu0 0.0
  %3192 = vmatpush1.msra.mxu0 0.0
  %3193 = vmatprep.subr.mxu0 0.0
  %3194 = vmatpush1.msra.mxu0 0.0
  %3195 = vmatprep.subr.mxu0 0.0
  %3196 = vmatpush1.msra.mxu0 0.0
  %3197 = vmatprep.subr.mxu0 0.0
  %3198 = vmatpush1.msra.mxu0 0.0
  %3199 = vmatprep.subr.mxu0 0.0
  %3200 = vmatpush1.msra.mxu0 0.0
  %3201 = vmatprep.subr.mxu0 0.0
  %3202 = vmatpush1.msra.mxu0 0.0
  %3203 = vmatprep.subr.mxu0 0.0
  %3204 = vmatpush1.msra.mxu0 0.0
  %3205 = vmatprep.subr.mxu0 0.0
  %3206 = vmatpush1.msra.mxu0 0.0
  %3207 = vmatprep.subr.mxu0 0.0
  %3208 = vmatpush1.msra.mxu0 0.0
  %3209 = vmatprep.subr.mxu0 0.0
  %3210 = vmatpush1.msra.mxu0 0.0
  %3211 = vmatprep.subr.mxu0 0.0
  %3212 = vmatpush1.msra.mxu0 0.0
  %3213 = vmatprep.subr.mxu0 0.0
  %3214 = vmatpush1.msra.mxu0 0.0
  %3215 = vmatprep.subr.mxu0 0.0
  %3216 = vmatpush1.msra.mxu0 0.0
  %3217 = vmatprep.subr.mxu0 0.0
  %3218 = vmatpush1.msra.mxu0 0.0
  %3219 = vmatprep.subr.mxu0 0.0
  %3220 = vmatpush1.msra.mxu0 0.0
  %3221 = vmatprep.subr.mxu0 0.0
  %3222 = vmatpush1.msra.mxu0 0.0
  %3223 = vmatprep.subr.mxu0 0.0
  %3224 = vmatpush1.msra.mxu0 0.0
  %3225 = vmatprep.subr.mxu0 0.0
  %3226 = vmatpush1.msra.mxu0 0.0
  %3227 = vmatprep.subr.mxu0 0.0
  %3228 = vmatpush1.msra.mxu0 0.0
  %3229 = vmatprep.subr.mxu0 0.0
  %3230 = vmatpush1.msra.mxu0 0.0
  %3231 = vmatprep.mubr.f32.mxu0 0.0
  %3232 = vmatmul.mubr.f32.gmra.mrb[0].mxu0 %v3027
  %v3233 = vpop.f32.mrb[0].mxu0
  %v3234 = vadd.f32 %v3166, %v3233
  %v3235 = vpop.f32.mrb[0].mxu0
  %3236 = vmatprep.mubr.f32.mxu0 0.0
  %3237 = vmatmul.mubr.f32.gmra.mrb[0].mxu0 %v3030
  %v3238 = vpop.f32.mrb[0].mxu0
  %v3239 = vadd.f32 %v3166, %v3238
  %v3240 = vpop.f32.mrb[0].mxu0
  %3241 = vmatprep.mubr.f32.mxu0 0.0
  %3242 = vmatmul.mubr.f32.gmra.mrb[0].mxu0 %v3033
  %v3243 = vpop.f32.mrb[0].mxu0
  %v3244 = vadd.f32 %v3166, %v3243
  %v3245 = vpop.f32.mrb[0].mxu0
  %3246 = vmatprep.mubr.f32.mxu0 0.0
  %3247 = vmatmul.mubr.f32.gmra.mrb[0].mxu0 %v3036
  %v3248 = vpop.f32.mrb[0].mxu0
  %v3249 = vadd.f32 %v3166, %v3248
  %v3250 = vpop.f32.mrb[0].mxu0
  %3251 = vmatprep.mubr.f32.mxu0 0.0
  %3252 = vmatmul.mubr.f32.gmra.mrb[0].mxu0 %v3039
  %v3253 = vpop.f32.mrb[0].mxu0
  %v3254 = vadd.f32 %v3166, %v3253
  %v3255 = vpop.f32.mrb[0].mxu0
  %3256 = vmatprep.mubr.f32.mxu0 0.0
  %3257 = vmatmul.mubr.f32.gmra.mrb[0].mxu0 %v3042
  %v3258 = vpop.f32.mrb[0].mxu0
  %v3259 = vadd.f32 %v3166, %v3258
  %v3260 = vpop.f32.mrb[0].mxu0
  %3261 = vmatprep.mubr.f32.mxu0 0.0
  %3262 = vmatmul.mubr.f32.gmra.mrb[0].mxu0 %v3045
  %v3263 = vpop.f32.mrb[0].mxu0
  %v3264 = vadd.f32 %v3166, %v3263
  %v3265 = vpop.f32.mrb[0].mxu0
  %3266 = vmatprep.mubr.f32.mxu0 0.0
  %3267 = vmatmul.mubr.f32.gmra.mrb[0].mxu0 %v3048
  %v3268 = vpop.f32.mrb[0].mxu0
  %v3269 = vadd.f32 %v3166, %v3268
  %v3270 = vpop.f32.mrb[0].mxu0
  %3271 = vdwg.mxu0
  %v3272 = vlaneseq
  %v3273 = vshrl.u32 %v3272, 7
  %v3274 = vsub.s32 0, %v3273
  %v3275 = vrot.slane %v3015, %v3274
  %3276 = vmatprep.subr.mxu0 0.0
  %3277 = vmatpush1.msra.mxu0 %v3011
  %3278 = vmatprep.subr.mxu0 0.0
  %3279 = vmatpush1.msra.mxu0 %v3012
  %3280 = vmatprep.subr.mxu0 0.0
  %3281 = vmatpush1.msra.mxu0 %v3013
  %3282 = vmatprep.subr.mxu0 0.0
  %3283 = vmatpush1.msra.mxu0 %v3014
  %3284 = vmatprep.subr.mxu0 0.0
  %3285 = vmatpush1.msra.mxu0 0.0
  %3286 = vmatprep.subr.mxu0 0.0
  %3287 = vmatpush1.msra.mxu0 0.0
  %3288 = vmatprep.subr.mxu0 0.0
  %3289 = vmatpush1.msra.mxu0 0.0
  %3290 = vmatprep.subr.mxu0 0.0
  %3291 = vmatpush1.msra.mxu0 0.0
  %3292 = vmatprep.subr.mxu0 0.0
  %3293 = vmatpush1.msra.mxu0 0.0
  %3294 = vmatprep.subr.mxu0 0.0
  %3295 = vmatpush1.msra.mxu0 0.0
  %3296 = vmatprep.subr.mxu0 0.0
  %3297 = vmatpush1.msra.mxu0 0.0
  %3298 = vmatprep.subr.mxu0 0.0
  %3299 = vmatpush1.msra.mxu0 0.0
  %3300 = vmatprep.subr.mxu0 0.0
  %3301 = vmatpush1.msra.mxu0 0.0
  %3302 = vmatprep.subr.mxu0 0.0
  %3303 = vmatpush1.msra.mxu0 0.0
  %3304 = vmatprep.subr.mxu0 0.0
  %3305 = vmatpush1.msra.mxu0 0.0
  %3306 = vmatprep.subr.mxu0 0.0
  %3307 = vmatpush1.msra.mxu0 0.0
  %3308 = vmatprep.subr.mxu0 0.0
  %3309 = vmatpush1.msra.mxu0 0.0
  %3310 = vmatprep.subr.mxu0 0.0
  %3311 = vmatpush1.msra.mxu0 0.0
  %3312 = vmatprep.subr.mxu0 0.0
  %3313 = vmatpush1.msra.mxu0 0.0
  %3314 = vmatprep.subr.mxu0 0.0
  %3315 = vmatpush1.msra.mxu0 0.0
  %3316 = vmatprep.subr.mxu0 0.0
  %3317 = vmatpush1.msra.mxu0 0.0
  %3318 = vmatprep.subr.mxu0 0.0
  %3319 = vmatpush1.msra.mxu0 0.0
  %3320 = vmatprep.subr.mxu0 0.0
  %3321 = vmatpush1.msra.mxu0 0.0
  %3322 = vmatprep.subr.mxu0 0.0
  %3323 = vmatpush1.msra.mxu0 0.0
  %3324 = vmatprep.subr.mxu0 0.0
  %3325 = vmatpush1.msra.mxu0 0.0
  %3326 = vmatprep.subr.mxu0 0.0
  %3327 = vmatpush1.msra.mxu0 0.0
  %3328 = vmatprep.subr.mxu0 0.0
  %3329 = vmatpush1.msra.mxu0 0.0
  %3330 = vmatprep.subr.mxu0 0.0
  %3331 = vmatpush1.msra.mxu0 0.0
  %3332 = vmatprep.subr.mxu0 0.0
  %3333 = vmatpush1.msra.mxu0 0.0
  %3334 = vmatprep.subr.mxu0 0.0
  %3335 = vmatpush1.msra.mxu0 0.0
  %3336 = vmatprep.subr.mxu0 0.0
  %3337 = vmatpush1.msra.mxu0 0.0
  %3338 = vmatprep.subr.mxu0 0.0
  %3339 = vmatpush1.msra.mxu0 0.0
  %3340 = vmatprep.mubr.f32.mxu0 0.0
  %3341 = vmatmul.mubr.f32.gmra.mrb[0].mxu0 %v3027
  %v3342 = vpop.f32.mrb[0].mxu0
  %v3343 = vadd.f32 %v3275, %v3342
  %v3344 = vpop.f32.mrb[0].mxu0
  %3345 = vmatprep.mubr.f32.mxu0 0.0
  %3346 = vmatmul.mubr.f32.gmra.mrb[0].mxu0 %v3030
  %v3347 = vpop.f32.mrb[0].mxu0
  %v3348 = vadd.f32 %v3275, %v3347
  %v3349 = vpop.f32.mrb[0].mxu0
  %3350 = vmatprep.mubr.f32.mxu0 0.0
  %3351 = vmatmul.mubr.f32.gmra.mrb[0].mxu0 %v3033
  %v3352 = vpop.f32.mrb[0].mxu0
  %v3353 = vadd.f32 %v3275, %v3352
  %v3354 = vpop.f32.mrb[0].mxu0
  %3355 = vmatprep.mubr.f32.mxu0 0.0
  %3356 = vmatmul.mubr.f32.gmra.mrb[0].mxu0 %v3036
  %v3357 = vpop.f32.mrb[0].mxu0
  %v3358 = vadd.f32 %v3275, %v3357
  %v3359 = vpop.f32.mrb[0].mxu0
  %3360 = vmatprep.mubr.f32.mxu0 0.0
  %3361 = vmatmul.mubr.f32.gmra.mrb[0].mxu0 %v3039
  %v3362 = vpop.f32.mrb[0].mxu0
  %v3363 = vadd.f32 %v3275, %v3362
  %v3364 = vpop.f32.mrb[0].mxu0
  %3365 = vmatprep.mubr.f32.mxu0 0.0
  %3366 = vmatmul.mubr.f32.gmra.mrb[0].mxu0 %v3042
  %v3367 = vpop.f32.mrb[0].mxu0
  %v3368 = vadd.f32 %v3275, %v3367
  %v3369 = vpop.f32.mrb[0].mxu0
  %3370 = vmatprep.mubr.f32.mxu0 0.0
  %3371 = vmatmul.mubr.f32.gmra.mrb[0].mxu0 %v3045
  %v3372 = vpop.f32.mrb[0].mxu0
  %v3373 = vadd.f32 %v3275, %v3372
  %v3374 = vpop.f32.mrb[0].mxu0
  %3375 = vmatprep.mubr.f32.mxu0 0.0
  %3376 = vmatmul.mubr.f32.gmra.mrb[0].mxu0 %v3048
  %v3377 = vpop.f32.mrb[0].mxu0
  %v3378 = vadd.f32 %v3275, %v3377
  %v3379 = vpop.f32.mrb[0].mxu0
  %3380 = vdwg.mxu0
  %v3382 = vsel %vm293, %v3155, 0
  %v3385 = vsel %vm293, %v3156, 0
  %v3388 = vsel %vm293, %v3157, 0
  %v3391 = vsel %vm293, %v3158, 0
  %v3394 = vsel %vm293, %v3159, 0
  %v3397 = vsel %vm293, %v3160, 0
  %v3400 = vsel %vm293, %v3161, 0
  %v3403 = vsel %vm293, %v3162, 0
  %v3406 = vsel %vm293, %v3234, 0
  %v3409 = vsel %vm293, %v3239, 0
  %v3412 = vsel %vm293, %v3244, 0
  %v3415 = vsel %vm293, %v3249, 0
  %v3418 = vsel %vm293, %v3254, 0
  %v3421 = vsel %vm293, %v3259, 0
  %v3424 = vsel %vm293, %v3264, 0
  %v3427 = vsel %vm293, %v3269, 0
  %3429 = vmatprep.subr.mxu0 0.0
  %3430 = vmatpush1.xpose.msra.mxu0 %v3406
  %3431 = vmatprep.subr.mxu0 0.0
  %3432 = vmatpush1.xpose.msra.mxu0 %v3409
  %3433 = vmatprep.subr.mxu0 0.0
  %3434 = vmatpush1.xpose.msra.mxu0 %v3412
  %3435 = vmatprep.subr.mxu0 0.0
  %3436 = vmatpush1.xpose.msra.mxu0 %v3415
  %3437 = vmatprep.subr.mxu0 0.0
  %3438 = vmatpush1.xpose.msra.mxu0 %v3418
  %3439 = vmatprep.subr.mxu0 0.0
  %3440 = vmatpush1.xpose.msra.mxu0 %v3421
  %3441 = vmatprep.subr.mxu0 0.0
  %3442 = vmatpush1.xpose.msra.mxu0 %v3424
  %3443 = vmatprep.subr.mxu0 0.0
  %3444 = vmatpush1.xpose.msra.mxu0 %v3427
  %3445 = vmatprep.subr.mxu0 0.0
  %3446 = vmatpush1.xpose.msra.mxu0 0.0
  %3447 = vmatprep.subr.mxu0 0.0
  %3448 = vmatpush1.xpose.msra.mxu0 0.0
  %3449 = vmatprep.subr.mxu0 0.0
  %3450 = vmatpush1.xpose.msra.mxu0 0.0
  %3451 = vmatprep.subr.mxu0 0.0
  %3452 = vmatpush1.xpose.msra.mxu0 0.0
  %3453 = vmatprep.subr.mxu0 0.0
  %3454 = vmatpush1.xpose.msra.mxu0 0.0
  %3455 = vmatprep.subr.mxu0 0.0
  %3456 = vmatpush1.xpose.msra.mxu0 0.0
  %3457 = vmatprep.subr.mxu0 0.0
  %3458 = vmatpush1.xpose.msra.mxu0 0.0
  %3459 = vmatprep.subr.mxu0 0.0
  %3460 = vmatpush1.xpose.msra.mxu0 0.0
  %3461 = vmatprep.subr.mxu0 0.0
  %3462 = vmatpush1.xpose.msra.mxu0 0.0
  %3463 = vmatprep.subr.mxu0 0.0
  %3464 = vmatpush1.xpose.msra.mxu0 0.0
  %3465 = vmatprep.subr.mxu0 0.0
  %3466 = vmatpush1.xpose.msra.mxu0 0.0
  %3467 = vmatprep.subr.mxu0 0.0
  %3468 = vmatpush1.xpose.msra.mxu0 0.0
  %3469 = vmatprep.subr.mxu0 0.0
  %3470 = vmatpush1.xpose.msra.mxu0 0.0
  %3471 = vmatprep.subr.mxu0 0.0
  %3472 = vmatpush1.xpose.msra.mxu0 0.0
  %3473 = vmatprep.subr.mxu0 0.0
  %3474 = vmatpush1.xpose.msra.mxu0 0.0
  %3475 = vmatprep.subr.mxu0 0.0
  %3476 = vmatpush1.xpose.msra.mxu0 0.0
  %3477 = vmatprep.subr.mxu0 0.0
  %3478 = vmatpush1.xpose.msra.mxu0 0.0
  %3479 = vmatprep.subr.mxu0 0.0
  %3480 = vmatpush1.xpose.msra.mxu0 0.0
  %3481 = vmatprep.subr.mxu0 0.0
  %3482 = vmatpush1.xpose.msra.mxu0 0.0
  %3483 = vmatprep.subr.mxu0 0.0
  %3484 = vmatpush1.xpose.msra.mxu0 0.0
  %3485 = vmatprep.subr.mxu0 0.0
  %3486 = vmatpush1.xpose.msra.mxu0 0.0
  %3487 = vmatprep.subr.mxu0 0.0
  %3488 = vmatpush1.xpose.msra.mxu0 0.0
  %3489 = vmatprep.subr.mxu0 0.0
  %3490 = vmatpush1.xpose.msra.mxu0 0.0
  %3491 = vmatprep.subr.mxu0 0.0
  %3492 = vmatpush1.xpose.msra.mxu0 0.0
  %3493 = vmatprep.mubr.f32.mxu0 0.0
  %3494 = vmatmul.mubr.f32.gmra.mrb[0].mxu0 %v3382
  %v3495 = vpop.f32.mrb[0].mxu0
  %v3496 = vadd.f32 %v118, %v3495
  %v3497 = vpop.f32.mrb[0].mxu0
  %3498 = vmatprep.mubr.f32.mxu0 0.0
  %3499 = vmatmul.mubr.f32.gmra.mrb[0].mxu0 %v3385
  %v3500 = vpop.f32.mrb[0].mxu0
  %v3501 = vadd.f32 %v119, %v3500
  %v3502 = vpop.f32.mrb[0].mxu0
  %3503 = vmatprep.mubr.f32.mxu0 0.0
  %3504 = vmatmul.mubr.f32.gmra.mrb[0].mxu0 %v3388
  %v3505 = vpop.f32.mrb[0].mxu0
  %v3506 = vadd.f32 %v120, %v3505
  %v3507 = vpop.f32.mrb[0].mxu0
  %3508 = vmatprep.mubr.f32.mxu0 0.0
  %3509 = vmatmul.mubr.f32.gmra.mrb[0].mxu0 %v3391
  %v3510 = vpop.f32.mrb[0].mxu0
  %v3511 = vadd.f32 %v121, %v3510
  %v3512 = vpop.f32.mrb[0].mxu0
  %3513 = vmatprep.mubr.f32.mxu0 0.0
  %3514 = vmatmul.mubr.f32.gmra.mrb[0].mxu0 %v3394
  %v3515 = vpop.f32.mrb[0].mxu0
  %v3516 = vadd.f32 %v122, %v3515
  %v3517 = vpop.f32.mrb[0].mxu0
  %3518 = vmatprep.mubr.f32.mxu0 0.0
  %3519 = vmatmul.mubr.f32.gmra.mrb[0].mxu0 %v3397
  %v3520 = vpop.f32.mrb[0].mxu0
  %v3521 = vadd.f32 %v123, %v3520
  %v3522 = vpop.f32.mrb[0].mxu0
  %3523 = vmatprep.mubr.f32.mxu0 0.0
  %3524 = vmatmul.mubr.f32.gmra.mrb[0].mxu0 %v3400
  %v3525 = vpop.f32.mrb[0].mxu0
  %v3526 = vadd.f32 %v124, %v3525
  %v3527 = vpop.f32.mrb[0].mxu0
  %3528 = vmatprep.mubr.f32.mxu0 0.0
  %3529 = vmatmul.mubr.f32.gmra.mrb[0].mxu0 %v3403
  %v3530 = vpop.f32.mrb[0].mxu0
  %v3531 = vadd.f32 %v125, %v3530
  %v3532 = vpop.f32.mrb[0].mxu0
  %3533 = vdwg.mxu0
  %v3534 = vsel %vm802, %v3496, -inf
  %3535 = vmax.xlane.f32.xlu0 %v3534
  %v3536 = vpop.xlane.xlu0 %3535
  %v3537 = vsel %vm802, %v3501, -inf
  %3538 = vmax.xlane.f32.xlu0 %v3537
  %v3539 = vpop.xlane.xlu0 %3538
  %v3540 = vsel %vm802, %v3506, -inf
  %3541 = vmax.xlane.f32.xlu0 %v3540
  %v3542 = vpop.xlane.xlu0 %3541
  %v3543 = vsel %vm802, %v3511, -inf
  %3544 = vmax.xlane.f32.xlu0 %v3543
  %v3545 = vpop.xlane.xlu0 %3544
  %v3546 = vsel %vm802, %v3516, -inf
  %3547 = vmax.xlane.f32.xlu0 %v3546
  %v3548 = vpop.xlane.xlu0 %3547
  %v3549 = vsel %vm802, %v3521, -inf
  %3550 = vmax.xlane.f32.xlu0 %v3549
  %v3551 = vpop.xlane.xlu0 %3550
  %v3552 = vsel %vm802, %v3526, -inf
  %3553 = vmax.xlane.f32.xlu0 %v3552
  %v3554 = vpop.xlane.xlu0 %3553
  %v3555 = vsel %vm802, %v3531, -inf
  %3556 = vmax.xlane.f32.xlu0 %v3555
  %v3557 = vpop.xlane.xlu0 %3556
  %v3558 = vsub.f32 %v3496, %v3536
  %v3559 = vsub.f32 %v3501, %v3539
  %v3560 = vsub.f32 %v3506, %v3542
  %v3561 = vsub.f32 %v3511, %v3545
  %v3562 = vsub.f32 %v3516, %v3548
  %v3563 = vsub.f32 %v3521, %v3551
  %v3564 = vsub.f32 %v3526, %v3554
  %v3565 = vsub.f32 %v3531, %v3557
  %v3566 = vmul.f32 %v3558, 1.442695
  %v3567 = vpow.pop %v3566
  %v3568 = vmul.f32 %v3559, 1.442695
  %v3569 = vpow.pop %v3568
  %v3570 = vmul.f32 %v3560, 1.442695
  %v3571 = vpow.pop %v3570
  %v3572 = vmul.f32 %v3561, 1.442695
  %v3573 = vpow.pop %v3572
  %v3574 = vmul.f32 %v3562, 1.442695
  %v3575 = vpow.pop %v3574
  %v3576 = vmul.f32 %v3563, 1.442695
  %v3577 = vpow.pop %v3576
  %v3578 = vmul.f32 %v3564, 1.442695
  %v3579 = vpow.pop %v3578
  %v3580 = vmul.f32 %v3565, 1.442695
  %v3581 = vpow.pop %v3580
  %v3582 = vsel %vm802, %v3567, 0.0
  %3583 = vadd.xlane.f32.xlu0 %v3582
  %v3584 = vpop.xlane.xlu0 %3583
  %v3585 = vsel %vm802, %v3569, 0.0
  %3586 = vadd.xlane.f32.xlu0 %v3585
  %v3587 = vpop.xlane.xlu0 %3586
  %v3588 = vsel %vm802, %v3571, 0.0
  %3589 = vadd.xlane.f32.xlu0 %v3588
  %v3590 = vpop.xlane.xlu0 %3589
  %v3591 = vsel %vm802, %v3573, 0.0
  %3592 = vadd.xlane.f32.xlu0 %v3591
  %v3593 = vpop.xlane.xlu0 %3592
  %v3594 = vsel %vm802, %v3575, 0.0
  %3595 = vadd.xlane.f32.xlu0 %v3594
  %v3596 = vpop.xlane.xlu0 %3595
  %v3597 = vsel %vm802, %v3577, 0.0
  %3598 = vadd.xlane.f32.xlu0 %v3597
  %v3599 = vpop.xlane.xlu0 %3598
  %v3600 = vsel %vm802, %v3579, 0.0
  %3601 = vadd.xlane.f32.xlu0 %v3600
  %v3602 = vpop.xlane.xlu0 %3601
  %v3603 = vsel %vm802, %v3581, 0.0
  %3604 = vadd.xlane.f32.xlu0 %v3603
  %v3605 = vpop.xlane.xlu0 %3604
  %v3606 = vrcp.pop %v3584
  %v3607 = vmul.f32 %v3567, %v3606
  %v3608 = vrcp.pop %v3587
  %v3609 = vmul.f32 %v3569, %v3608
  %v3610 = vrcp.pop %v3590
  %v3611 = vmul.f32 %v3571, %v3610
  %v3612 = vrcp.pop %v3593
  %v3613 = vmul.f32 %v3573, %v3612
  %v3614 = vrcp.pop %v3596
  %v3615 = vmul.f32 %v3575, %v3614
  %v3616 = vrcp.pop %v3599
  %v3617 = vmul.f32 %v3577, %v3616
  %v3618 = vrcp.pop %v3602
  %v3619 = vmul.f32 %v3579, %v3618
  %v3620 = vrcp.pop %v3605
  %v3621 = vmul.f32 %v3581, %v3620
  %v3623 = vsel %vm802, %v3607, 0
  %v3626 = vsel %vm802, %v3609, 0
  %v3629 = vsel %vm802, %v3611, 0
  %v3632 = vsel %vm802, %v3613, 0
  %v3635 = vsel %vm802, %v3615, 0
  %v3638 = vsel %vm802, %v3617, 0
  %v3641 = vsel %vm802, %v3619, 0
  %v3644 = vsel %vm802, %v3621, 0
  %3646 = vmatprep.subr.mxu0 0.0
  %3647 = vmatpush1.msra.mxu0 %v3343
  %3648 = vmatprep.subr.mxu0 0.0
  %3649 = vmatpush1.msra.mxu0 %v3348
  %3650 = vmatprep.subr.mxu0 0.0
  %3651 = vmatpush1.msra.mxu0 %v3353
  %3652 = vmatprep.subr.mxu0 0.0
  %3653 = vmatpush1.msra.mxu0 %v3358
  %3654 = vmatprep.subr.mxu0 0.0
  %3655 = vmatpush1.msra.mxu0 %v3363
  %3656 = vmatprep.subr.mxu0 0.0
  %3657 = vmatpush1.msra.mxu0 %v3368
  %3658 = vmatprep.subr.mxu0 0.0
  %3659 = vmatpush1.msra.mxu0 %v3373
  %3660 = vmatprep.subr.mxu0 0.0
  %3661 = vmatpush1.msra.mxu0 %v3378
  %3662 = vmatprep.subr.mxu0 0.0
  %3663 = vmatpush1.msra.mxu0 0.0
  %3664 = vmatprep.subr.mxu0 0.0
  %3665 = vmatpush1.msra.mxu0 0.0
  %3666 = vmatprep.subr.mxu0 0.0
  %3667 = vmatpush1.msra.mxu0 0.0
  %3668 = vmatprep.subr.mxu0 0.0
  %3669 = vmatpush1.msra.mxu0 0.0
  %3670 = vmatprep.subr.mxu0 0.0
  %3671 = vmatpush1.msra.mxu0 0.0
  %3672 = vmatprep.subr.mxu0 0.0
  %3673 = vmatpush1.msra.mxu0 0.0
  %3674 = vmatprep.subr.mxu0 0.0
  %3675 = vmatpush1.msra.mxu0 0.0
  %3676 = vmatprep.subr.mxu0 0.0
  %3677 = vmatpush1.msra.mxu0 0.0
  %3678 = vmatprep.subr.mxu0 0.0
  %3679 = vmatpush1.msra.mxu0 0.0
  %3680 = vmatprep.subr.mxu0 0.0
  %3681 = vmatpush1.msra.mxu0 0.0
  %3682 = vmatprep.subr.mxu0 0.0
  %3683 = vmatpush1.msra.mxu0 0.0
  %3684 = vmatprep.subr.mxu0 0.0
  %3685 = vmatpush1.msra.mxu0 0.0
  %3686 = vmatprep.subr.mxu0 0.0
  %3687 = vmatpush1.msra.mxu0 0.0
  %3688 = vmatprep.subr.mxu0 0.0
  %3689 = vmatpush1.msra.mxu0 0.0
  %3690 = vmatprep.subr.mxu0 0.0
  %3691 = vmatpush1.msra.mxu0 0.0
  %3692 = vmatprep.subr.mxu0 0.0
  %3693 = vmatpush1.msra.mxu0 0.0
  %3694 = vmatprep.subr.mxu0 0.0
  %3695 = vmatpush1.msra.mxu0 0.0
  %3696 = vmatprep.subr.mxu0 0.0
  %3697 = vmatpush1.msra.mxu0 0.0
  %3698 = vmatprep.subr.mxu0 0.0
  %3699 = vmatpush1.msra.mxu0 0.0
  %3700 = vmatprep.subr.mxu0 0.0
  %3701 = vmatpush1.msra.mxu0 0.0
  %3702 = vmatprep.subr.mxu0 0.0
  %3703 = vmatpush1.msra.mxu0 0.0
  %3704 = vmatprep.subr.mxu0 0.0
  %3705 = vmatpush1.msra.mxu0 0.0
  %3706 = vmatprep.subr.mxu0 0.0
  %3707 = vmatpush1.msra.mxu0 0.0
  %3708 = vmatprep.subr.mxu0 0.0
  %3709 = vmatpush1.msra.mxu0 0.0
  %3710 = vmatprep.mubr.f32.mxu0 0.0
  %3711 = vmatmul.mubr.f32.gmra.mrb[0].mxu0 %v3623
  %v3712 = vpop.f32.mrb[0].mxu0
  %v3713 = vadd.f32 0.0, %v3712
  %v3714 = vpop.f32.mrb[0].mxu0
  %3715 = vmatprep.mubr.f32.mxu0 0.0
  %3716 = vmatmul.mubr.f32.gmra.mrb[0].mxu0 %v3626
  %v3717 = vpop.f32.mrb[0].mxu0
  %v3718 = vadd.f32 0.0, %v3717
  %v3719 = vpop.f32.mrb[0].mxu0
  %3720 = vmatprep.mubr.f32.mxu0 0.0
  %3721 = vmatmul.mubr.f32.gmra.mrb[0].mxu0 %v3629
  %v3722 = vpop.f32.mrb[0].mxu0
  %v3723 = vadd.f32 0.0, %v3722
  %v3724 = vpop.f32.mrb[0].mxu0
  %3725 = vmatprep.mubr.f32.mxu0 0.0
  %3726 = vmatmul.mubr.f32.gmra.mrb[0].mxu0 %v3632
  %v3727 = vpop.f32.mrb[0].mxu0
  %v3728 = vadd.f32 0.0, %v3727
  %v3729 = vpop.f32.mrb[0].mxu0
  %3730 = vmatprep.mubr.f32.mxu0 0.0
  %3731 = vmatmul.mubr.f32.gmra.mrb[0].mxu0 %v3635
  %v3732 = vpop.f32.mrb[0].mxu0
  %v3733 = vadd.f32 0.0, %v3732
  %v3734 = vpop.f32.mrb[0].mxu0
  %3735 = vmatprep.mubr.f32.mxu0 0.0
  %3736 = vmatmul.mubr.f32.gmra.mrb[0].mxu0 %v3638
  %v3737 = vpop.f32.mrb[0].mxu0
  %v3738 = vadd.f32 0.0, %v3737
  %v3739 = vpop.f32.mrb[0].mxu0
  %3740 = vmatprep.mubr.f32.mxu0 0.0
  %3741 = vmatmul.mubr.f32.gmra.mrb[0].mxu0 %v3641
  %v3742 = vpop.f32.mrb[0].mxu0
  %v3743 = vadd.f32 0.0, %v3742
  %v3744 = vpop.f32.mrb[0].mxu0
  %3745 = vmatprep.mubr.f32.mxu0 0.0
  %3746 = vmatmul.mubr.f32.gmra.mrb[0].mxu0 %v3644
  %v3747 = vpop.f32.mrb[0].mxu0
  %v3748 = vadd.f32 0.0, %v3747
  %v3749 = vpop.f32.mrb[0].mxu0
  %3750 = vdwg.mxu0
  %v3751 = vmul.f32 %v3713, %v102
  %v3752 = vmul.f32 %v3718, %v103
  %v3753 = vmul.f32 %v3723, %v104
  %v3754 = vmul.f32 %v3728, %v105
  %v3755 = vmul.f32 %v3733, %v106
  %v3756 = vmul.f32 %v3738, %v107
  %v3757 = vmul.f32 %v3743, %v108
  %v3758 = vmul.f32 %v3748, %v109
  %v3760 = vsel %vm802, %v92, 0
  %v3763 = vsel %vm802, %v93, 0
  %3765 = vmatprep.subr.mxu0 0.0
  %3766 = vmatpush1.msra.mxu0 %v3751
  %3767 = vmatprep.subr.mxu0 0.0
  %3768 = vmatpush1.msra.mxu0 %v3752
  %3769 = vmatprep.subr.mxu0 0.0
  %3770 = vmatpush1.msra.mxu0 %v3753
  %3771 = vmatprep.subr.mxu0 0.0
  %3772 = vmatpush1.msra.mxu0 %v3754
  %3773 = vmatprep.subr.mxu0 0.0
  %3774 = vmatpush1.msra.mxu0 %v3755
  %3775 = vmatprep.subr.mxu0 0.0
  %3776 = vmatpush1.msra.mxu0 %v3756
  %3777 = vmatprep.subr.mxu0 0.0
  %3778 = vmatpush1.msra.mxu0 %v3757
  %3779 = vmatprep.subr.mxu0 0.0
  %3780 = vmatpush1.msra.mxu0 %v3758
  %3781 = vmatprep.subr.mxu0 0.0
  %3782 = vmatpush1.msra.mxu0 0.0
  %3783 = vmatprep.subr.mxu0 0.0
  %3784 = vmatpush1.msra.mxu0 0.0
  %3785 = vmatprep.subr.mxu0 0.0
  %3786 = vmatpush1.msra.mxu0 0.0
  %3787 = vmatprep.subr.mxu0 0.0
  %3788 = vmatpush1.msra.mxu0 0.0
  %3789 = vmatprep.subr.mxu0 0.0
  %3790 = vmatpush1.msra.mxu0 0.0
  %3791 = vmatprep.subr.mxu0 0.0
  %3792 = vmatpush1.msra.mxu0 0.0
  %3793 = vmatprep.subr.mxu0 0.0
  %3794 = vmatpush1.msra.mxu0 0.0
  %3795 = vmatprep.subr.mxu0 0.0
  %3796 = vmatpush1.msra.mxu0 0.0
  %3797 = vmatprep.subr.mxu0 0.0
  %3798 = vmatpush1.msra.mxu0 0.0
  %3799 = vmatprep.subr.mxu0 0.0
  %3800 = vmatpush1.msra.mxu0 0.0
  %3801 = vmatprep.subr.mxu0 0.0
  %3802 = vmatpush1.msra.mxu0 0.0
  %3803 = vmatprep.subr.mxu0 0.0
  %3804 = vmatpush1.msra.mxu0 0.0
  %3805 = vmatprep.subr.mxu0 0.0
  %3806 = vmatpush1.msra.mxu0 0.0
  %3807 = vmatprep.subr.mxu0 0.0
  %3808 = vmatpush1.msra.mxu0 0.0
  %3809 = vmatprep.subr.mxu0 0.0
  %3810 = vmatpush1.msra.mxu0 0.0
  %3811 = vmatprep.subr.mxu0 0.0
  %3812 = vmatpush1.msra.mxu0 0.0
  %3813 = vmatprep.subr.mxu0 0.0
  %3814 = vmatpush1.msra.mxu0 0.0
  %3815 = vmatprep.subr.mxu0 0.0
  %3816 = vmatpush1.msra.mxu0 0.0
  %3817 = vmatprep.subr.mxu0 0.0
  %3818 = vmatpush1.msra.mxu0 0.0
  %3819 = vmatprep.subr.mxu0 0.0
  %3820 = vmatpush1.msra.mxu0 0.0
  %3821 = vmatprep.subr.mxu0 0.0
  %3822 = vmatpush1.msra.mxu0 0.0
  %3823 = vmatprep.subr.mxu0 0.0
  %3824 = vmatpush1.msra.mxu0 0.0
  %3825 = vmatprep.subr.mxu0 0.0
  %3826 = vmatpush1.msra.mxu0 0.0
  %3827 = vmatprep.subr.mxu0 0.0
  %3828 = vmatpush1.msra.mxu0 0.0
  %3829 = vmatprep.mubr.f32.mxu0 0.0
  %3830 = vmatmul.mubr.f32.gmra.mrb[0].mxu0 %v3760
  %v3831 = vpop.f32.mrb[0].mxu0
  %v3832 = vadd.f32 0.0, %v3831
  %v3833 = vpop.f32.mrb[0].mxu0
  %3834 = vmatprep.mubr.f32.mxu0 0.0
  %3835 = vmatmul.mubr.f32.gmra.mrb[0].mxu0 %v3763
  %v3836 = vpop.f32.mrb[0].mxu0
  %v3837 = vadd.f32 0.0, %v3836
  %v3838 = vpop.f32.mrb[0].mxu0
  %3839 = vdwg.mxu0
  %v3840 = vlaneseq
  %v3841 = vshrl.u32 %v3840, 7
  %v3842 = vsub.s32 0, %v3841
  %v3843 = vrot.slane %v3021, %v3842
  %v3845 = vsel %vm293, %v3832, 0
  %v3848 = vsel %vm293, %v3837, 0
  %3850 = vmatprep.subr.mxu0 0.0
  %3851 = vmatpush1.msra.mxu0 %v3017
  %3852 = vmatprep.subr.mxu0 0.0
  %3853 = vmatpush1.msra.mxu0 %v3018
  %3854 = vmatprep.subr.mxu0 0.0
  %3855 = vmatpush1.msra.mxu0 %v3019
  %3856 = vmatprep.subr.mxu0 0.0
  %3857 = vmatpush1.msra.mxu0 %v3020
  %3858 = vmatprep.subr.mxu0 0.0
  %3859 = vmatpush1.msra.mxu0 0.0
  %3860 = vmatprep.subr.mxu0 0.0
  %3861 = vmatpush1.msra.mxu0 0.0
  %3862 = vmatprep.subr.mxu0 0.0
  %3863 = vmatpush1.msra.mxu0 0.0
  %3864 = vmatprep.subr.mxu0 0.0
  %3865 = vmatpush1.msra.mxu0 0.0
  %3866 = vmatprep.subr.mxu0 0.0
  %3867 = vmatpush1.msra.mxu0 0.0
  %3868 = vmatprep.subr.mxu0 0.0
  %3869 = vmatpush1.msra.mxu0 0.0
  %3870 = vmatprep.subr.mxu0 0.0
  %3871 = vmatpush1.msra.mxu0 0.0
  %3872 = vmatprep.subr.mxu0 0.0
  %3873 = vmatpush1.msra.mxu0 0.0
  %3874 = vmatprep.subr.mxu0 0.0
  %3875 = vmatpush1.msra.mxu0 0.0
  %3876 = vmatprep.subr.mxu0 0.0
  %3877 = vmatpush1.msra.mxu0 0.0
  %3878 = vmatprep.subr.mxu0 0.0
  %3879 = vmatpush1.msra.mxu0 0.0
  %3880 = vmatprep.subr.mxu0 0.0
  %3881 = vmatpush1.msra.mxu0 0.0
  %3882 = vmatprep.subr.mxu0 0.0
  %3883 = vmatpush1.msra.mxu0 0.0
  %3884 = vmatprep.subr.mxu0 0.0
  %3885 = vmatpush1.msra.mxu0 0.0
  %3886 = vmatprep.subr.mxu0 0.0
  %3887 = vmatpush1.msra.mxu0 0.0
  %3888 = vmatprep.subr.mxu0 0.0
  %3889 = vmatpush1.msra.mxu0 0.0
  %3890 = vmatprep.subr.mxu0 0.0
  %3891 = vmatpush1.msra.mxu0 0.0
  %3892 = vmatprep.subr.mxu0 0.0
  %3893 = vmatpush1.msra.mxu0 0.0
  %3894 = vmatprep.subr.mxu0 0.0
  %3895 = vmatpush1.msra.mxu0 0.0
  %3896 = vmatprep.subr.mxu0 0.0
  %3897 = vmatpush1.msra.mxu0 0.0
  %3898 = vmatprep.subr.mxu0 0.0
  %3899 = vmatpush1.msra.mxu0 0.0
  %3900 = vmatprep.subr.mxu0 0.0
  %3901 = vmatpush1.msra.mxu0 0.0
  %3902 = vmatprep.subr.mxu0 0.0
  %3903 = vmatpush1.msra.mxu0 0.0
  %3904 = vmatprep.subr.mxu0 0.0
  %3905 = vmatpush1.msra.mxu0 0.0
  %3906 = vmatprep.subr.mxu0 0.0
  %3907 = vmatpush1.msra.mxu0 0.0
  %3908 = vmatprep.subr.mxu0 0.0
  %3909 = vmatpush1.msra.mxu0 0.0
  %3910 = vmatprep.subr.mxu0 0.0
  %3911 = vmatpush1.msra.mxu0 0.0
  %3912 = vmatprep.subr.mxu0 0.0
  %3913 = vmatpush1.msra.mxu0 0.0
  %3914 = vmatprep.mubr.f32.mxu0 0.0
  %3915 = vmatmul.mubr.f32.gmra.mrb[0].mxu0 %v3845
  %v3916 = vpop.f32.mrb[0].mxu0
  %v3917 = vadd.f32 %v3843, %v3916
  %v3918 = vpop.f32.mrb[0].mxu0
  %3919 = vmatprep.mubr.f32.mxu0 0.0
  %3920 = vmatmul.mubr.f32.gmra.mrb[0].mxu0 %v3848
  %v3921 = vpop.f32.mrb[0].mxu0
  %v3922 = vadd.f32 %v3843, %v3921
  %v3923 = vpop.f32.mrb[0].mxu0
  %3924 = vdwg.mxu0
  %v3925 = vadd.f32 %v2868, %v3917
  %v3926 = vadd.f32 %v2869, %v3922
  %v3927 = vld [vmem:[%s19 + $0x4] sm:$0x1]
  %v3928 = vld [vmem:[%s19 + $0x5] sm:$0x1]
  %v3929 = vsel %vm293, %v3925, 0.0
  %3930 = vadd.xlane.f32.xlu0 %v3929
  %v3931 = vpop.xlane.xlu0 %3930
  %v3932 = vsel %vm293, %v3926, 0.0
  %3933 = vadd.xlane.f32.xlu0 %v3932
  %v3934 = vpop.xlane.xlu0 %3933
  %v3935 = vmul.f32 %v3931, %v1204
  %v3936 = vmul.f32 %v3934, %v1204
  %v3937 = vsub.f32 %v3925, %v3935
  %v3938 = vsub.f32 %v3926, %v3936
  %v3939 = vmul.f32 %v3937, %v3937
  %v3940 = vmul.f32 %v3938, %v3938
  %v3941 = vsel %vm293, %v3939, 0.0
  %3942 = vadd.xlane.f32.xlu0 %v3941
  %v3943 = vpop.xlane.xlu0 %3942
  %v3944 = vsel %vm293, %v3940, 0.0
  %3945 = vadd.xlane.f32.xlu0 %v3944
  %v3946 = vpop.xlane.xlu0 %3945
  %v3947 = vmul.f32 %v3943, %v1204
  %v3948 = vmul.f32 %v3946, %v1204
  %v3949 = vadd.f32 %v3947, 1e-05
  %v3950 = vadd.f32 %v3948, 1e-05
  %v3951 = vrsqrt.pop %v3949
  %v3952 = vrsqrt.pop %v3950
  %v3953 = vmul.f32 %v3937, %v3951
  %v3954 = vmul.f32 %v3938, %v3952
  %v3955 = vlaneseq
  %v3956 = vshrl.u32 %v3955, 7
  %v3957 = vsub.s32 0, %v3956
  %v3958 = vrot.slane %v3927, %v3957
  %v3959 = vmul.f32 %v3953, %v3958
  %v3960 = vmul.f32 %v3954, %v3958
  %v3961 = vlaneseq
  %v3962 = vshrl.u32 %v3961, 7
  %v3963 = vsub.s32 0, %v3962
  %v3964 = vrot.slane %v3928, %v3963
  %v3965 = vadd.f32 %v3959, %v3964
  %v3966 = vadd.f32 %v3960, %v3964
  %3967 = vmatprep.subr.mxu0 0.0
  %3968 = vmatpush1.msra.mxu0 %v3965
  %3969 = vmatprep.subr.mxu0 0.0
  %3970 = vmatpush1.msra.mxu0 %v3966
  %3971 = vmatprep.subr.mxu0 0.0
  %3972 = vmatpush1.msra.mxu0 0.0
  %3973 = vmatprep.subr.mxu0 0.0
  %3974 = vmatpush1.msra.mxu0 0.0
  %3975 = vmatprep.subr.mxu0 0.0
  %3976 = vmatpush1.msra.mxu0 0.0
  %3977 = vmatprep.subr.mxu0 0.0
  %3978 = vmatpush1.msra.mxu0 0.0
  %3979 = vmatprep.subr.mxu0 0.0
  %3980 = vmatpush1.msra.mxu0 0.0
  %3981 = vmatprep.subr.mxu0 0.0
  %3982 = vmatpush1.msra.mxu0 0.0
  %3983 = vmatprep.subr.mxu0 0.0
  %3984 = vmatpush1.msra.mxu0 0.0
  %3985 = vmatprep.subr.mxu0 0.0
  %3986 = vmatpush1.msra.mxu0 0.0
  %3987 = vmatprep.subr.mxu0 0.0
  %3988 = vmatpush1.msra.mxu0 0.0
  %3989 = vmatprep.subr.mxu0 0.0
  %3990 = vmatpush1.msra.mxu0 0.0
  %3991 = vmatprep.subr.mxu0 0.0
  %3992 = vmatpush1.msra.mxu0 0.0
  %3993 = vmatprep.subr.mxu0 0.0
  %3994 = vmatpush1.msra.mxu0 0.0
  %3995 = vmatprep.subr.mxu0 0.0
  %3996 = vmatpush1.msra.mxu0 0.0
  %3997 = vmatprep.subr.mxu0 0.0
  %3998 = vmatpush1.msra.mxu0 0.0
  %3999 = vmatprep.subr.mxu0 0.0
  %4000 = vmatpush1.msra.mxu0 0.0
  %4001 = vmatprep.subr.mxu0 0.0
  %4002 = vmatpush1.msra.mxu0 0.0
  %4003 = vmatprep.subr.mxu0 0.0
  %4004 = vmatpush1.msra.mxu0 0.0
  %4005 = vmatprep.subr.mxu0 0.0
  %4006 = vmatpush1.msra.mxu0 0.0
  %4007 = vmatprep.subr.mxu0 0.0
  %4008 = vmatpush1.msra.mxu0 0.0
  %4009 = vmatprep.subr.mxu0 0.0
  %4010 = vmatpush1.msra.mxu0 0.0
  %4011 = vmatprep.subr.mxu0 0.0
  %4012 = vmatpush1.msra.mxu0 0.0
  %4013 = vmatprep.subr.mxu0 0.0
  %4014 = vmatpush1.msra.mxu0 0.0
  %4015 = vmatprep.subr.mxu0 0.0
  %4016 = vmatpush1.msra.mxu0 0.0
  %4017 = vmatprep.subr.mxu0 0.0
  %4018 = vmatpush1.msra.mxu0 0.0
  %4019 = vmatprep.subr.mxu0 0.0
  %4020 = vmatpush1.msra.mxu0 0.0
  %4021 = vmatprep.subr.mxu0 0.0
  %4022 = vmatpush1.msra.mxu0 0.0
  %4023 = vmatprep.subr.mxu0 0.0
  %4024 = vmatpush1.msra.mxu0 0.0
  %4025 = vmatprep.subr.mxu0 0.0
  %4026 = vmatpush1.msra.mxu0 0.0
  %4027 = vmatprep.subr.mxu0 0.0
  %4028 = vmatpush1.msra.mxu0 0.0
  %4029 = vmatprep.subr.mxu0 0.0
  %4030 = vmatpush1.msra.mxu0 0.0
  %4031 = vmatprep.mubr.f32.mxu0 0.0
  %4032 = vmatmul.mubr.f32.gmra.mrb[0].mxu0 %v2871
  %v4033 = vpop.f32.mrb[0].mxu0
  %v4034 = vadd.f32 0.0, %v4033
  %v4035 = vpop.f32.mrb[0].mxu0
  %4036 = vmatprep.mubr.f32.mxu0 0.0
  %4037 = vmatmul.mubr.f32.gmra.mrb[0].mxu0 %v2874
  %v4038 = vpop.f32.mrb[0].mxu0
  %v4039 = vadd.f32 0.0, %v4038
  %v4040 = vpop.f32.mrb[0].mxu0
  %4041 = vmatprep.mubr.f32.mxu0 0.0
  %4042 = vmatmul.mubr.f32.gmra.mrb[0].mxu0 %v2877
  %v4043 = vpop.f32.mrb[0].mxu0
  %v4044 = vadd.f32 0.0, %v4043
  %v4045 = vpop.f32.mrb[0].mxu0
  %4046 = vmatprep.mubr.f32.mxu0 0.0
  %4047 = vmatmul.mubr.f32.gmra.mrb[0].mxu0 %v2880
  %v4048 = vpop.f32.mrb[0].mxu0
  %v4049 = vadd.f32 0.0, %v4048
  %v4050 = vpop.f32.mrb[0].mxu0
  %4051 = vmatprep.mubr.f32.mxu0 0.0
  %4052 = vmatmul.mubr.f32.gmra.mrb[0].mxu0 %v2883
  %v4053 = vpop.f32.mrb[0].mxu0
  %v4054 = vadd.f32 0.0, %v4053
  %v4055 = vpop.f32.mrb[0].mxu0
  %4056 = vmatprep.mubr.f32.mxu0 0.0
  %4057 = vmatmul.mubr.f32.gmra.mrb[0].mxu0 %v2886
  %v4058 = vpop.f32.mrb[0].mxu0
  %v4059 = vadd.f32 0.0, %v4058
  %v4060 = vpop.f32.mrb[0].mxu0
  %4061 = vmatprep.mubr.f32.mxu0 0.0
  %4062 = vmatmul.mubr.f32.gmra.mrb[0].mxu0 %v2889
  %v4063 = vpop.f32.mrb[0].mxu0
  %v4064 = vadd.f32 0.0, %v4063
  %v4065 = vpop.f32.mrb[0].mxu0
  %4066 = vmatprep.mubr.f32.mxu0 0.0
  %4067 = vmatmul.mubr.f32.gmra.mrb[0].mxu0 %v2892
  %v4068 = vpop.f32.mrb[0].mxu0
  %v4069 = vadd.f32 0.0, %v4068
  %v4070 = vpop.f32.mrb[0].mxu0
  %4071 = vdwg.mxu0
  %s4072 = scalar_lea.vmem %s16, 128
  %v4073 = vld [vmem:[%s4072] sm:$0xff]
  %v4074 = vld [vmem:[%s4072 + $0x8] sm:$0xff]
  %v4075 = vld [vmem:[%s4072 + $0x10] sm:$0xff]
  %v4076 = vld [vmem:[%s4072 + $0x18] sm:$0xff]
  %v4077 = vld [vmem:[%s19 + $0x6] sm:$0x1]
  %s4078 = scalar_lea.vmem %s16, 160
  %v4079 = vld [vmem:[%s4078] sm:$0xff]
  %v4080 = vld [vmem:[%s4078 + $0x8] sm:$0xff]
  %v4081 = vld [vmem:[%s4078 + $0x10] sm:$0xff]
  %v4082 = vld [vmem:[%s4078 + $0x18] sm:$0xff]
  %v4083 = vld [vmem:[%s19 + $0x7] sm:$0x1]
  %s4084 = scalar_lea.vmem %s16, 192
  %v4085 = vld [vmem:[%s4084] sm:$0xff]
  %v4086 = vld [vmem:[%s4084 + $0x8] sm:$0xff]
  %v4087 = vld [vmem:[%s4084 + $0x10] sm:$0xff]
  %v4088 = vld [vmem:[%s4084 + $0x18] sm:$0xff]
  %v4089 = vld [vmem:[%s19 + $0x8] sm:$0x1]
  %s4090 = scalar_lea.vmem %s16, 224
  %v4091 = vld [vmem:[%s4090] sm:$0xff]
  %v4092 = vld [vmem:[%s4090 + $0x8] sm:$0xff]
  %v4093 = vld [vmem:[%s4090 + $0x10] sm:$0xff]
  %v4094 = vld [vmem:[%s4090 + $0x18] sm:$0xff]
  %v4095 = vld [vmem:[%s19 + $0x9] sm:$0x1]
  %v4096 = vlaneseq
  %v4097 = vshrl.u32 %v4096, 7
  %v4098 = vsub.s32 0, %v4097
  %v4099 = vrot.slane %v4077, %v4098
  %v4101 = vsel %vm293, %v4034, 0
  %v4104 = vsel %vm293, %v4039, 0
  %v4107 = vsel %vm293, %v4044, 0
  %v4110 = vsel %vm293, %v4049, 0
  %v4113 = vsel %vm293, %v4054, 0
  %v4116 = vsel %vm293, %v4059, 0
  %v4119 = vsel %vm293, %v4064, 0
  %v4122 = vsel %vm293, %v4069, 0
  %4124 = vmatprep.subr.mxu0 0.0
  %4125 = vmatpush1.msra.mxu0 %v4073
  %4126 = vmatprep.subr.mxu0 0.0
  %4127 = vmatpush1.msra.mxu0 %v4074
  %4128 = vmatprep.subr.mxu0 0.0
  %4129 = vmatpush1.msra.mxu0 %v4075
  %4130 = vmatprep.subr.mxu0 0.0
  %4131 = vmatpush1.msra.mxu0 %v4076
  %4132 = vmatprep.subr.mxu0 0.0
  %4133 = vmatpush1.msra.mxu0 0.0
  %4134 = vmatprep.subr.mxu0 0.0
  %4135 = vmatpush1.msra.mxu0 0.0
  %4136 = vmatprep.subr.mxu0 0.0
  %4137 = vmatpush1.msra.mxu0 0.0
  %4138 = vmatprep.subr.mxu0 0.0
  %4139 = vmatpush1.msra.mxu0 0.0
  %4140 = vmatprep.subr.mxu0 0.0
  %4141 = vmatpush1.msra.mxu0 0.0
  %4142 = vmatprep.subr.mxu0 0.0
  %4143 = vmatpush1.msra.mxu0 0.0
  %4144 = vmatprep.subr.mxu0 0.0
  %4145 = vmatpush1.msra.mxu0 0.0
  %4146 = vmatprep.subr.mxu0 0.0
  %4147 = vmatpush1.msra.mxu0 0.0
  %4148 = vmatprep.subr.mxu0 0.0
  %4149 = vmatpush1.msra.mxu0 0.0
  %4150 = vmatprep.subr.mxu0 0.0
  %4151 = vmatpush1.msra.mxu0 0.0
  %4152 = vmatprep.subr.mxu0 0.0
  %4153 = vmatpush1.msra.mxu0 0.0
  %4154 = vmatprep.subr.mxu0 0.0
  %4155 = vmatpush1.msra.mxu0 0.0
  %4156 = vmatprep.subr.mxu0 0.0
  %4157 = vmatpush1.msra.mxu0 0.0
  %4158 = vmatprep.subr.mxu0 0.0
  %4159 = vmatpush1.msra.mxu0 0.0
  %4160 = vmatprep.subr.mxu0 0.0
  %4161 = vmatpush1.msra.mxu0 0.0
  %4162 = vmatprep.subr.mxu0 0.0
  %4163 = vmatpush1.msra.mxu0 0.0
  %4164 = vmatprep.subr.mxu0 0.0
  %4165 = vmatpush1.msra.mxu0 0.0
  %4166 = vmatprep.subr.mxu0 0.0
  %4167 = vmatpush1.msra.mxu0 0.0
  %4168 = vmatprep.subr.mxu0 0.0
  %4169 = vmatpush1.msra.mxu0 0.0
  %4170 = vmatprep.subr.mxu0 0.0
  %4171 = vmatpush1.msra.mxu0 0.0
  %4172 = vmatprep.subr.mxu0 0.0
  %4173 = vmatpush1.msra.mxu0 0.0
  %4174 = vmatprep.subr.mxu0 0.0
  %4175 = vmatpush1.msra.mxu0 0.0
  %4176 = vmatprep.subr.mxu0 0.0
  %4177 = vmatpush1.msra.mxu0 0.0
  %4178 = vmatprep.subr.mxu0 0.0
  %4179 = vmatpush1.msra.mxu0 0.0
  %4180 = vmatprep.subr.mxu0 0.0
  %4181 = vmatpush1.msra.mxu0 0.0
  %4182 = vmatprep.subr.mxu0 0.0
  %4183 = vmatpush1.msra.mxu0 0.0
  %4184 = vmatprep.subr.mxu0 0.0
  %4185 = vmatpush1.msra.mxu0 0.0
  %4186 = vmatprep.subr.mxu0 0.0
  %4187 = vmatpush1.msra.mxu0 0.0
  %4188 = vmatprep.mubr.f32.mxu0 0.0
  %4189 = vmatmul.mubr.f32.gmra.mrb[0].mxu0 %v4101
  %v4190 = vpop.f32.mrb[0].mxu0
  %v4191 = vadd.f32 %v4099, %v4190
  %v4192 = vpop.f32.mrb[0].mxu0
  %4193 = vmatprep.mubr.f32.mxu0 0.0
  %4194 = vmatmul.mubr.f32.gmra.mrb[0].mxu0 %v4104
  %v4195 = vpop.f32.mrb[0].mxu0
  %v4196 = vadd.f32 %v4099, %v4195
  %v4197 = vpop.f32.mrb[0].mxu0
  %4198 = vmatprep.mubr.f32.mxu0 0.0
  %4199 = vmatmul.mubr.f32.gmra.mrb[0].mxu0 %v4107
  %v4200 = vpop.f32.mrb[0].mxu0
  %v4201 = vadd.f32 %v4099, %v4200
  %v4202 = vpop.f32.mrb[0].mxu0
  %4203 = vmatprep.mubr.f32.mxu0 0.0
  %4204 = vmatmul.mubr.f32.gmra.mrb[0].mxu0 %v4110
  %v4205 = vpop.f32.mrb[0].mxu0
  %v4206 = vadd.f32 %v4099, %v4205
  %v4207 = vpop.f32.mrb[0].mxu0
  %4208 = vmatprep.mubr.f32.mxu0 0.0
  %4209 = vmatmul.mubr.f32.gmra.mrb[0].mxu0 %v4113
  %v4210 = vpop.f32.mrb[0].mxu0
  %v4211 = vadd.f32 %v4099, %v4210
  %v4212 = vpop.f32.mrb[0].mxu0
  %4213 = vmatprep.mubr.f32.mxu0 0.0
  %4214 = vmatmul.mubr.f32.gmra.mrb[0].mxu0 %v4116
  %v4215 = vpop.f32.mrb[0].mxu0
  %v4216 = vadd.f32 %v4099, %v4215
  %v4217 = vpop.f32.mrb[0].mxu0
  %4218 = vmatprep.mubr.f32.mxu0 0.0
  %4219 = vmatmul.mubr.f32.gmra.mrb[0].mxu0 %v4119
  %v4220 = vpop.f32.mrb[0].mxu0
  %v4221 = vadd.f32 %v4099, %v4220
  %v4222 = vpop.f32.mrb[0].mxu0
  %4223 = vmatprep.mubr.f32.mxu0 0.0
  %4224 = vmatmul.mubr.f32.gmra.mrb[0].mxu0 %v4122
  %v4225 = vpop.f32.mrb[0].mxu0
  %v4226 = vadd.f32 %v4099, %v4225
  %v4227 = vpop.f32.mrb[0].mxu0
  %4228 = vdwg.mxu0
  %v4229 = vmul.f32 %v4191, %v102
  %v4230 = vmul.f32 %v4196, %v103
  %v4231 = vmul.f32 %v4201, %v104
  %v4232 = vmul.f32 %v4206, %v105
  %v4233 = vmul.f32 %v4211, %v106
  %v4234 = vmul.f32 %v4216, %v107
  %v4235 = vmul.f32 %v4221, %v108
  %v4236 = vmul.f32 %v4226, %v109
  %v4237 = vlaneseq
  %v4238 = vshrl.u32 %v4237, 7
  %v4239 = vsub.s32 0, %v4238
  %v4240 = vrot.slane %v4083, %v4239
  %v4242 = vsel %vm293, %v2830, 0
  %v4245 = vsel %vm293, %v2835, 0
  %v4248 = vsel %vm293, %v2840, 0
  %v4251 = vsel %vm293, %v2845, 0
  %v4254 = vsel %vm293, %v2850, 0
  %v4257 = vsel %vm293, %v2855, 0
  %v4260 = vsel %vm293, %v2860, 0
  %v4263 = vsel %vm293, %v2865, 0
  %4265 = vmatprep.subr.mxu0 0.0
  %4266 = vmatpush1.msra.mxu0 %v4079
  %4267 = vmatprep.subr.mxu0 0.0
  %4268 = vmatpush1.msra.mxu0 %v4080
  %4269 = vmatprep.subr.mxu0 0.0
  %4270 = vmatpush1.msra.mxu0 %v4081
  %4271 = vmatprep.subr.mxu0 0.0
  %4272 = vmatpush1.msra.mxu0 %v4082
  %4273 = vmatprep.subr.mxu0 0.0
  %4274 = vmatpush1.msra.mxu0 0.0
  %4275 = vmatprep.subr.mxu0 0.0
  %4276 = vmatpush1.msra.mxu0 0.0
  %4277 = vmatprep.subr.mxu0 0.0
  %4278 = vmatpush1.msra.mxu0 0.0
  %4279 = vmatprep.subr.mxu0 0.0
  %4280 = vmatpush1.msra.mxu0 0.0
  %4281 = vmatprep.subr.mxu0 0.0
  %4282 = vmatpush1.msra.mxu0 0.0
  %4283 = vmatprep.subr.mxu0 0.0
  %4284 = vmatpush1.msra.mxu0 0.0
  %4285 = vmatprep.subr.mxu0 0.0
  %4286 = vmatpush1.msra.mxu0 0.0
  %4287 = vmatprep.subr.mxu0 0.0
  %4288 = vmatpush1.msra.mxu0 0.0
  %4289 = vmatprep.subr.mxu0 0.0
  %4290 = vmatpush1.msra.mxu0 0.0
  %4291 = vmatprep.subr.mxu0 0.0
  %4292 = vmatpush1.msra.mxu0 0.0
  %4293 = vmatprep.subr.mxu0 0.0
  %4294 = vmatpush1.msra.mxu0 0.0
  %4295 = vmatprep.subr.mxu0 0.0
  %4296 = vmatpush1.msra.mxu0 0.0
  %4297 = vmatprep.subr.mxu0 0.0
  %4298 = vmatpush1.msra.mxu0 0.0
  %4299 = vmatprep.subr.mxu0 0.0
  %4300 = vmatpush1.msra.mxu0 0.0
  %4301 = vmatprep.subr.mxu0 0.0
  %4302 = vmatpush1.msra.mxu0 0.0
  %4303 = vmatprep.subr.mxu0 0.0
  %4304 = vmatpush1.msra.mxu0 0.0
  %4305 = vmatprep.subr.mxu0 0.0
  %4306 = vmatpush1.msra.mxu0 0.0
  %4307 = vmatprep.subr.mxu0 0.0
  %4308 = vmatpush1.msra.mxu0 0.0
  %4309 = vmatprep.subr.mxu0 0.0
  %4310 = vmatpush1.msra.mxu0 0.0
  %4311 = vmatprep.subr.mxu0 0.0
  %4312 = vmatpush1.msra.mxu0 0.0
  %4313 = vmatprep.subr.mxu0 0.0
  %4314 = vmatpush1.msra.mxu0 0.0
  %4315 = vmatprep.subr.mxu0 0.0
  %4316 = vmatpush1.msra.mxu0 0.0
  %4317 = vmatprep.subr.mxu0 0.0
  %4318 = vmatpush1.msra.mxu0 0.0
  %4319 = vmatprep.subr.mxu0 0.0
  %4320 = vmatpush1.msra.mxu0 0.0
  %4321 = vmatprep.subr.mxu0 0.0
  %4322 = vmatpush1.msra.mxu0 0.0
  %4323 = vmatprep.subr.mxu0 0.0
  %4324 = vmatpush1.msra.mxu0 0.0
  %4325 = vmatprep.subr.mxu0 0.0
  %4326 = vmatpush1.msra.mxu0 0.0
  %4327 = vmatprep.subr.mxu0 0.0
  %4328 = vmatpush1.msra.mxu0 0.0
  %4329 = vmatprep.mubr.f32.mxu0 0.0
  %4330 = vmatmul.mubr.f32.gmra.mrb[0].mxu0 %v4242
  %v4331 = vpop.f32.mrb[0].mxu0
  %v4332 = vadd.f32 %v4240, %v4331
  %v4333 = vpop.f32.mrb[0].mxu0
  %4334 = vmatprep.mubr.f32.mxu0 0.0
  %4335 = vmatmul.mubr.f32.gmra.mrb[0].mxu0 %v4245
  %v4336 = vpop.f32.mrb[0].mxu0
  %v4337 = vadd.f32 %v4240, %v4336
  %v4338 = vpop.f32.mrb[0].mxu0
  %4339 = vmatprep.mubr.f32.mxu0 0.0
  %4340 = vmatmul.mubr.f32.gmra.mrb[0].mxu0 %v4248
  %v4341 = vpop.f32.mrb[0].mxu0
  %v4342 = vadd.f32 %v4240, %v4341
  %v4343 = vpop.f32.mrb[0].mxu0
  %4344 = vmatprep.mubr.f32.mxu0 0.0
  %4345 = vmatmul.mubr.f32.gmra.mrb[0].mxu0 %v4251
  %v4346 = vpop.f32.mrb[0].mxu0
  %v4347 = vadd.f32 %v4240, %v4346
  %v4348 = vpop.f32.mrb[0].mxu0
  %4349 = vmatprep.mubr.f32.mxu0 0.0
  %4350 = vmatmul.mubr.f32.gmra.mrb[0].mxu0 %v4254
  %v4351 = vpop.f32.mrb[0].mxu0
  %v4352 = vadd.f32 %v4240, %v4351
  %v4353 = vpop.f32.mrb[0].mxu0
  %4354 = vmatprep.mubr.f32.mxu0 0.0
  %4355 = vmatmul.mubr.f32.gmra.mrb[0].mxu0 %v4257
  %v4356 = vpop.f32.mrb[0].mxu0
  %v4357 = vadd.f32 %v4240, %v4356
  %v4358 = vpop.f32.mrb[0].mxu0
  %4359 = vmatprep.mubr.f32.mxu0 0.0
  %4360 = vmatmul.mubr.f32.gmra.mrb[0].mxu0 %v4260
  %v4361 = vpop.f32.mrb[0].mxu0
  %v4362 = vadd.f32 %v4240, %v4361
  %v4363 = vpop.f32.mrb[0].mxu0
  %4364 = vmatprep.mubr.f32.mxu0 0.0
  %4365 = vmatmul.mubr.f32.gmra.mrb[0].mxu0 %v4263
  %v4366 = vpop.f32.mrb[0].mxu0
  %v4367 = vadd.f32 %v4240, %v4366
  %v4368 = vpop.f32.mrb[0].mxu0
  %4369 = vdwg.mxu0
  %v4370 = vlaneseq
  %v4371 = vshrl.u32 %v4370, 7
  %v4372 = vsub.s32 0, %v4371
  %v4373 = vrot.slane %v4089, %v4372
  %4374 = vmatprep.subr.mxu0 0.0
  %4375 = vmatpush1.msra.mxu0 %v4085
  %4376 = vmatprep.subr.mxu0 0.0
  %4377 = vmatpush1.msra.mxu0 %v4086
  %4378 = vmatprep.subr.mxu0 0.0
  %4379 = vmatpush1.msra.mxu0 %v4087
  %4380 = vmatprep.subr.mxu0 0.0
  %4381 = vmatpush1.msra.mxu0 %v4088
  %4382 = vmatprep.subr.mxu0 0.0
  %4383 = vmatpush1.msra.mxu0 0.0
  %4384 = vmatprep.subr.mxu0 0.0
  %4385 = vmatpush1.msra.mxu0 0.0
  %4386 = vmatprep.subr.mxu0 0.0
  %4387 = vmatpush1.msra.mxu0 0.0
  %4388 = vmatprep.subr.mxu0 0.0
  %4389 = vmatpush1.msra.mxu0 0.0
  %4390 = vmatprep.subr.mxu0 0.0
  %4391 = vmatpush1.msra.mxu0 0.0
  %4392 = vmatprep.subr.mxu0 0.0
  %4393 = vmatpush1.msra.mxu0 0.0
  %4394 = vmatprep.subr.mxu0 0.0
  %4395 = vmatpush1.msra.mxu0 0.0
  %4396 = vmatprep.subr.mxu0 0.0
  %4397 = vmatpush1.msra.mxu0 0.0
  %4398 = vmatprep.subr.mxu0 0.0
  %4399 = vmatpush1.msra.mxu0 0.0
  %4400 = vmatprep.subr.mxu0 0.0
  %4401 = vmatpush1.msra.mxu0 0.0
  %4402 = vmatprep.subr.mxu0 0.0
  %4403 = vmatpush1.msra.mxu0 0.0
  %4404 = vmatprep.subr.mxu0 0.0
  %4405 = vmatpush1.msra.mxu0 0.0
  %4406 = vmatprep.subr.mxu0 0.0
  %4407 = vmatpush1.msra.mxu0 0.0
  %4408 = vmatprep.subr.mxu0 0.0
  %4409 = vmatpush1.msra.mxu0 0.0
  %4410 = vmatprep.subr.mxu0 0.0
  %4411 = vmatpush1.msra.mxu0 0.0
  %4412 = vmatprep.subr.mxu0 0.0
  %4413 = vmatpush1.msra.mxu0 0.0
  %4414 = vmatprep.subr.mxu0 0.0
  %4415 = vmatpush1.msra.mxu0 0.0
  %4416 = vmatprep.subr.mxu0 0.0
  %4417 = vmatpush1.msra.mxu0 0.0
  %4418 = vmatprep.subr.mxu0 0.0
  %4419 = vmatpush1.msra.mxu0 0.0
  %4420 = vmatprep.subr.mxu0 0.0
  %4421 = vmatpush1.msra.mxu0 0.0
  %4422 = vmatprep.subr.mxu0 0.0
  %4423 = vmatpush1.msra.mxu0 0.0
  %4424 = vmatprep.subr.mxu0 0.0
  %4425 = vmatpush1.msra.mxu0 0.0
  %4426 = vmatprep.subr.mxu0 0.0
  %4427 = vmatpush1.msra.mxu0 0.0
  %4428 = vmatprep.subr.mxu0 0.0
  %4429 = vmatpush1.msra.mxu0 0.0
  %4430 = vmatprep.subr.mxu0 0.0
  %4431 = vmatpush1.msra.mxu0 0.0
  %4432 = vmatprep.subr.mxu0 0.0
  %4433 = vmatpush1.msra.mxu0 0.0
  %4434 = vmatprep.subr.mxu0 0.0
  %4435 = vmatpush1.msra.mxu0 0.0
  %4436 = vmatprep.subr.mxu0 0.0
  %4437 = vmatpush1.msra.mxu0 0.0
  %4438 = vmatprep.mubr.f32.mxu0 0.0
  %4439 = vmatmul.mubr.f32.gmra.mrb[0].mxu0 %v4242
  %v4440 = vpop.f32.mrb[0].mxu0
  %v4441 = vadd.f32 %v4373, %v4440
  %v4442 = vpop.f32.mrb[0].mxu0
  %4443 = vmatprep.mubr.f32.mxu0 0.0
  %4444 = vmatmul.mubr.f32.gmra.mrb[0].mxu0 %v4245
  %v4445 = vpop.f32.mrb[0].mxu0
  %v4446 = vadd.f32 %v4373, %v4445
  %v4447 = vpop.f32.mrb[0].mxu0
  %4448 = vmatprep.mubr.f32.mxu0 0.0
  %4449 = vmatmul.mubr.f32.gmra.mrb[0].mxu0 %v4248
  %v4450 = vpop.f32.mrb[0].mxu0
  %v4451 = vadd.f32 %v4373, %v4450
  %v4452 = vpop.f32.mrb[0].mxu0
  %4453 = vmatprep.mubr.f32.mxu0 0.0
  %4454 = vmatmul.mubr.f32.gmra.mrb[0].mxu0 %v4251
  %v4455 = vpop.f32.mrb[0].mxu0
  %v4456 = vadd.f32 %v4373, %v4455
  %v4457 = vpop.f32.mrb[0].mxu0
  %4458 = vmatprep.mubr.f32.mxu0 0.0
  %4459 = vmatmul.mubr.f32.gmra.mrb[0].mxu0 %v4254
  %v4460 = vpop.f32.mrb[0].mxu0
  %v4461 = vadd.f32 %v4373, %v4460
  %v4462 = vpop.f32.mrb[0].mxu0
  %4463 = vmatprep.mubr.f32.mxu0 0.0
  %4464 = vmatmul.mubr.f32.gmra.mrb[0].mxu0 %v4257
  %v4465 = vpop.f32.mrb[0].mxu0
  %v4466 = vadd.f32 %v4373, %v4465
  %v4467 = vpop.f32.mrb[0].mxu0
  %4468 = vmatprep.mubr.f32.mxu0 0.0
  %4469 = vmatmul.mubr.f32.gmra.mrb[0].mxu0 %v4260
  %v4470 = vpop.f32.mrb[0].mxu0
  %v4471 = vadd.f32 %v4373, %v4470
  %v4472 = vpop.f32.mrb[0].mxu0
  %4473 = vmatprep.mubr.f32.mxu0 0.0
  %4474 = vmatmul.mubr.f32.gmra.mrb[0].mxu0 %v4263
  %v4475 = vpop.f32.mrb[0].mxu0
  %v4476 = vadd.f32 %v4373, %v4475
  %v4477 = vpop.f32.mrb[0].mxu0
  %4478 = vdwg.mxu0
  %v4480 = vsel %vm293, %v4229, 0
  %v4483 = vsel %vm293, %v4230, 0
  %v4486 = vsel %vm293, %v4231, 0
  %v4489 = vsel %vm293, %v4232, 0
  %v4492 = vsel %vm293, %v4233, 0
  %v4495 = vsel %vm293, %v4234, 0
  %v4498 = vsel %vm293, %v4235, 0
  %v4501 = vsel %vm293, %v4236, 0
  %v4504 = vsel %vm293, %v4332, 0
  %v4507 = vsel %vm293, %v4337, 0
  %v4510 = vsel %vm293, %v4342, 0
  %v4513 = vsel %vm293, %v4347, 0
  %v4516 = vsel %vm293, %v4352, 0
  %v4519 = vsel %vm293, %v4357, 0
  %v4522 = vsel %vm293, %v4362, 0
  %v4525 = vsel %vm293, %v4367, 0
  %4527 = vmatprep.subr.mxu0 0.0
  %4528 = vmatpush1.xpose.msra.mxu0 %v4504
  %4529 = vmatprep.subr.mxu0 0.0
  %4530 = vmatpush1.xpose.msra.mxu0 %v4507
  %4531 = vmatprep.subr.mxu0 0.0
  %4532 = vmatpush1.xpose.msra.mxu0 %v4510
  %4533 = vmatprep.subr.mxu0 0.0
  %4534 = vmatpush1.xpose.msra.mxu0 %v4513
  %4535 = vmatprep.subr.mxu0 0.0
  %4536 = vmatpush1.xpose.msra.mxu0 %v4516
  %4537 = vmatprep.subr.mxu0 0.0
  %4538 = vmatpush1.xpose.msra.mxu0 %v4519
  %4539 = vmatprep.subr.mxu0 0.0
  %4540 = vmatpush1.xpose.msra.mxu0 %v4522
  %4541 = vmatprep.subr.mxu0 0.0
  %4542 = vmatpush1.xpose.msra.mxu0 %v4525
  %4543 = vmatprep.subr.mxu0 0.0
  %4544 = vmatpush1.xpose.msra.mxu0 0.0
  %4545 = vmatprep.subr.mxu0 0.0
  %4546 = vmatpush1.xpose.msra.mxu0 0.0
  %4547 = vmatprep.subr.mxu0 0.0
  %4548 = vmatpush1.xpose.msra.mxu0 0.0
  %4549 = vmatprep.subr.mxu0 0.0
  %4550 = vmatpush1.xpose.msra.mxu0 0.0
  %4551 = vmatprep.subr.mxu0 0.0
  %4552 = vmatpush1.xpose.msra.mxu0 0.0
  %4553 = vmatprep.subr.mxu0 0.0
  %4554 = vmatpush1.xpose.msra.mxu0 0.0
  %4555 = vmatprep.subr.mxu0 0.0
  %4556 = vmatpush1.xpose.msra.mxu0 0.0
  %4557 = vmatprep.subr.mxu0 0.0
  %4558 = vmatpush1.xpose.msra.mxu0 0.0
  %4559 = vmatprep.subr.mxu0 0.0
  %4560 = vmatpush1.xpose.msra.mxu0 0.0
  %4561 = vmatprep.subr.mxu0 0.0
  %4562 = vmatpush1.xpose.msra.mxu0 0.0
  %4563 = vmatprep.subr.mxu0 0.0
  %4564 = vmatpush1.xpose.msra.mxu0 0.0
  %4565 = vmatprep.subr.mxu0 0.0
  %4566 = vmatpush1.xpose.msra.mxu0 0.0
  %4567 = vmatprep.subr.mxu0 0.0
  %4568 = vmatpush1.xpose.msra.mxu0 0.0
  %4569 = vmatprep.subr.mxu0 0.0
  %4570 = vmatpush1.xpose.msra.mxu0 0.0
  %4571 = vmatprep.subr.mxu0 0.0
  %4572 = vmatpush1.xpose.msra.mxu0 0.0
  %4573 = vmatprep.subr.mxu0 0.0
  %4574 = vmatpush1.xpose.msra.mxu0 0.0
  %4575 = vmatprep.subr.mxu0 0.0
  %4576 = vmatpush1.xpose.msra.mxu0 0.0
  %4577 = vmatprep.subr.mxu0 0.0
  %4578 = vmatpush1.xpose.msra.mxu0 0.0
  %4579 = vmatprep.subr.mxu0 0.0
  %4580 = vmatpush1.xpose.msra.mxu0 0.0
  %4581 = vmatprep.subr.mxu0 0.0
  %4582 = vmatpush1.xpose.msra.mxu0 0.0
  %4583 = vmatprep.subr.mxu0 0.0
  %4584 = vmatpush1.xpose.msra.mxu0 0.0
  %4585 = vmatprep.subr.mxu0 0.0
  %4586 = vmatpush1.xpose.msra.mxu0 0.0
  %4587 = vmatprep.subr.mxu0 0.0
  %4588 = vmatpush1.xpose.msra.mxu0 0.0
  %4589 = vmatprep.subr.mxu0 0.0
  %4590 = vmatpush1.xpose.msra.mxu0 0.0
  %4591 = vmatprep.mubr.f32.mxu0 0.0
  %4592 = vmatmul.mubr.f32.gmra.mrb[0].mxu0 %v4480
  %v4593 = vpop.f32.mrb[0].mxu0
  %v4594 = vadd.f32 %v126, %v4593
  %v4595 = vpop.f32.mrb[0].mxu0
  %4596 = vmatprep.mubr.f32.mxu0 0.0
  %4597 = vmatmul.mubr.f32.gmra.mrb[0].mxu0 %v4483
  %v4598 = vpop.f32.mrb[0].mxu0
  %v4599 = vadd.f32 %v127, %v4598
  %v4600 = vpop.f32.mrb[0].mxu0
  %4601 = vmatprep.mubr.f32.mxu0 0.0
  %4602 = vmatmul.mubr.f32.gmra.mrb[0].mxu0 %v4486
  %v4603 = vpop.f32.mrb[0].mxu0
  %v4604 = vadd.f32 %v128, %v4603
  %v4605 = vpop.f32.mrb[0].mxu0
  %4606 = vmatprep.mubr.f32.mxu0 0.0
  %4607 = vmatmul.mubr.f32.gmra.mrb[0].mxu0 %v4489
  %v4608 = vpop.f32.mrb[0].mxu0
  %v4609 = vadd.f32 %v129, %v4608
  %v4610 = vpop.f32.mrb[0].mxu0
  %4611 = vmatprep.mubr.f32.mxu0 0.0
  %4612 = vmatmul.mubr.f32.gmra.mrb[0].mxu0 %v4492
  %v4613 = vpop.f32.mrb[0].mxu0
  %v4614 = vadd.f32 %v130, %v4613
  %v4615 = vpop.f32.mrb[0].mxu0
  %4616 = vmatprep.mubr.f32.mxu0 0.0
  %4617 = vmatmul.mubr.f32.gmra.mrb[0].mxu0 %v4495
  %v4618 = vpop.f32.mrb[0].mxu0
  %v4619 = vadd.f32 %v131, %v4618
  %v4620 = vpop.f32.mrb[0].mxu0
  %4621 = vmatprep.mubr.f32.mxu0 0.0
  %4622 = vmatmul.mubr.f32.gmra.mrb[0].mxu0 %v4498
  %v4623 = vpop.f32.mrb[0].mxu0
  %v4624 = vadd.f32 %v132, %v4623
  %v4625 = vpop.f32.mrb[0].mxu0
  %4626 = vmatprep.mubr.f32.mxu0 0.0
  %4627 = vmatmul.mubr.f32.gmra.mrb[0].mxu0 %v4501
  %v4628 = vpop.f32.mrb[0].mxu0
  %v4629 = vadd.f32 %v133, %v4628
  %v4630 = vpop.f32.mrb[0].mxu0
  %4631 = vdwg.mxu0
  %v4632 = vsel %vm802, %v4594, -inf
  %4633 = vmax.xlane.f32.xlu0 %v4632
  %v4634 = vpop.xlane.xlu0 %4633
  %v4635 = vsel %vm802, %v4599, -inf
  %4636 = vmax.xlane.f32.xlu0 %v4635
  %v4637 = vpop.xlane.xlu0 %4636
  %v4638 = vsel %vm802, %v4604, -inf
  %4639 = vmax.xlane.f32.xlu0 %v4638
  %v4640 = vpop.xlane.xlu0 %4639
  %v4641 = vsel %vm802, %v4609, -inf
  %4642 = vmax.xlane.f32.xlu0 %v4641
  %v4643 = vpop.xlane.xlu0 %4642
  %v4644 = vsel %vm802, %v4614, -inf
  %4645 = vmax.xlane.f32.xlu0 %v4644
  %v4646 = vpop.xlane.xlu0 %4645
  %v4647 = vsel %vm802, %v4619, -inf
  %4648 = vmax.xlane.f32.xlu0 %v4647
  %v4649 = vpop.xlane.xlu0 %4648
  %v4650 = vsel %vm802, %v4624, -inf
  %4651 = vmax.xlane.f32.xlu0 %v4650
  %v4652 = vpop.xlane.xlu0 %4651
  %v4653 = vsel %vm802, %v4629, -inf
  %4654 = vmax.xlane.f32.xlu0 %v4653
  %v4655 = vpop.xlane.xlu0 %4654
  %v4656 = vsub.f32 %v4594, %v4634
  %v4657 = vsub.f32 %v4599, %v4637
  %v4658 = vsub.f32 %v4604, %v4640
  %v4659 = vsub.f32 %v4609, %v4643
  %v4660 = vsub.f32 %v4614, %v4646
  %v4661 = vsub.f32 %v4619, %v4649
  %v4662 = vsub.f32 %v4624, %v4652
  %v4663 = vsub.f32 %v4629, %v4655
  %v4664 = vmul.f32 %v4656, 1.442695
  %v4665 = vpow.pop %v4664
  %v4666 = vmul.f32 %v4657, 1.442695
  %v4667 = vpow.pop %v4666
  %v4668 = vmul.f32 %v4658, 1.442695
  %v4669 = vpow.pop %v4668
  %v4670 = vmul.f32 %v4659, 1.442695
  %v4671 = vpow.pop %v4670
  %v4672 = vmul.f32 %v4660, 1.442695
  %v4673 = vpow.pop %v4672
  %v4674 = vmul.f32 %v4661, 1.442695
  %v4675 = vpow.pop %v4674
  %v4676 = vmul.f32 %v4662, 1.442695
  %v4677 = vpow.pop %v4676
  %v4678 = vmul.f32 %v4663, 1.442695
  %v4679 = vpow.pop %v4678
  %v4680 = vsel %vm802, %v4665, 0.0
  %4681 = vadd.xlane.f32.xlu0 %v4680
  %v4682 = vpop.xlane.xlu0 %4681
  %v4683 = vsel %vm802, %v4667, 0.0
  %4684 = vadd.xlane.f32.xlu0 %v4683
  %v4685 = vpop.xlane.xlu0 %4684
  %v4686 = vsel %vm802, %v4669, 0.0
  %4687 = vadd.xlane.f32.xlu0 %v4686
  %v4688 = vpop.xlane.xlu0 %4687
  %v4689 = vsel %vm802, %v4671, 0.0
  %4690 = vadd.xlane.f32.xlu0 %v4689
  %v4691 = vpop.xlane.xlu0 %4690
  %v4692 = vsel %vm802, %v4673, 0.0
  %4693 = vadd.xlane.f32.xlu0 %v4692
  %v4694 = vpop.xlane.xlu0 %4693
  %v4695 = vsel %vm802, %v4675, 0.0
  %4696 = vadd.xlane.f32.xlu0 %v4695
  %v4697 = vpop.xlane.xlu0 %4696
  %v4698 = vsel %vm802, %v4677, 0.0
  %4699 = vadd.xlane.f32.xlu0 %v4698
  %v4700 = vpop.xlane.xlu0 %4699
  %v4701 = vsel %vm802, %v4679, 0.0
  %4702 = vadd.xlane.f32.xlu0 %v4701
  %v4703 = vpop.xlane.xlu0 %4702
  %v4704 = vrcp.pop %v4682
  %v4705 = vmul.f32 %v4665, %v4704
  %v4706 = vrcp.pop %v4685
  %v4707 = vmul.f32 %v4667, %v4706
  %v4708 = vrcp.pop %v4688
  %v4709 = vmul.f32 %v4669, %v4708
  %v4710 = vrcp.pop %v4691
  %v4711 = vmul.f32 %v4671, %v4710
  %v4712 = vrcp.pop %v4694
  %v4713 = vmul.f32 %v4673, %v4712
  %v4714 = vrcp.pop %v4697
  %v4715 = vmul.f32 %v4675, %v4714
  %v4716 = vrcp.pop %v4700
  %v4717 = vmul.f32 %v4677, %v4716
  %v4718 = vrcp.pop %v4703
  %v4719 = vmul.f32 %v4679, %v4718
  %v4721 = vsel %vm802, %v4705, 0
  %v4724 = vsel %vm802, %v4707, 0
  %v4727 = vsel %vm802, %v4709, 0
  %v4730 = vsel %vm802, %v4711, 0
  %v4733 = vsel %vm802, %v4713, 0
  %v4736 = vsel %vm802, %v4715, 0
  %v4739 = vsel %vm802, %v4717, 0
  %v4742 = vsel %vm802, %v4719, 0
  %4744 = vmatprep.subr.mxu0 0.0
  %4745 = vmatpush1.msra.mxu0 %v4441
  %4746 = vmatprep.subr.mxu0 0.0
  %4747 = vmatpush1.msra.mxu0 %v4446
  %4748 = vmatprep.subr.mxu0 0.0
  %4749 = vmatpush1.msra.mxu0 %v4451
  %4750 = vmatprep.subr.mxu0 0.0
  %4751 = vmatpush1.msra.mxu0 %v4456
  %4752 = vmatprep.subr.mxu0 0.0
  %4753 = vmatpush1.msra.mxu0 %v4461
  %4754 = vmatprep.subr.mxu0 0.0
  %4755 = vmatpush1.msra.mxu0 %v4466
  %4756 = vmatprep.subr.mxu0 0.0
  %4757 = vmatpush1.msra.mxu0 %v4471
  %4758 = vmatprep.subr.mxu0 0.0
  %4759 = vmatpush1.msra.mxu0 %v4476
  %4760 = vmatprep.subr.mxu0 0.0
  %4761 = vmatpush1.msra.mxu0 0.0
  %4762 = vmatprep.subr.mxu0 0.0
  %4763 = vmatpush1.msra.mxu0 0.0
  %4764 = vmatprep.subr.mxu0 0.0
  %4765 = vmatpush1.msra.mxu0 0.0
  %4766 = vmatprep.subr.mxu0 0.0
  %4767 = vmatpush1.msra.mxu0 0.0
  %4768 = vmatprep.subr.mxu0 0.0
  %4769 = vmatpush1.msra.mxu0 0.0
  %4770 = vmatprep.subr.mxu0 0.0
  %4771 = vmatpush1.msra.mxu0 0.0
  %4772 = vmatprep.subr.mxu0 0.0
  %4773 = vmatpush1.msra.mxu0 0.0
  %4774 = vmatprep.subr.mxu0 0.0
  %4775 = vmatpush1.msra.mxu0 0.0
  %4776 = vmatprep.subr.mxu0 0.0
  %4777 = vmatpush1.msra.mxu0 0.0
  %4778 = vmatprep.subr.mxu0 0.0
  %4779 = vmatpush1.msra.mxu0 0.0
  %4780 = vmatprep.subr.mxu0 0.0
  %4781 = vmatpush1.msra.mxu0 0.0
  %4782 = vmatprep.subr.mxu0 0.0
  %4783 = vmatpush1.msra.mxu0 0.0
  %4784 = vmatprep.subr.mxu0 0.0
  %4785 = vmatpush1.msra.mxu0 0.0
  %4786 = vmatprep.subr.mxu0 0.0
  %4787 = vmatpush1.msra.mxu0 0.0
  %4788 = vmatprep.subr.mxu0 0.0
  %4789 = vmatpush1.msra.mxu0 0.0
  %4790 = vmatprep.subr.mxu0 0.0
  %4791 = vmatpush1.msra.mxu0 0.0
  %4792 = vmatprep.subr.mxu0 0.0
  %4793 = vmatpush1.msra.mxu0 0.0
  %4794 = vmatprep.subr.mxu0 0.0
  %4795 = vmatpush1.msra.mxu0 0.0
  %4796 = vmatprep.subr.mxu0 0.0
  %4797 = vmatpush1.msra.mxu0 0.0
  %4798 = vmatprep.subr.mxu0 0.0
  %4799 = vmatpush1.msra.mxu0 0.0
  %4800 = vmatprep.subr.mxu0 0.0
  %4801 = vmatpush1.msra.mxu0 0.0
  %4802 = vmatprep.subr.mxu0 0.0
  %4803 = vmatpush1.msra.mxu0 0.0
  %4804 = vmatprep.subr.mxu0 0.0
  %4805 = vmatpush1.msra.mxu0 0.0
  %4806 = vmatprep.subr.mxu0 0.0
  %4807 = vmatpush1.msra.mxu0 0.0
  %4808 = vmatprep.mubr.f32.mxu0 0.0
  %4809 = vmatmul.mubr.f32.gmra.mrb[0].mxu0 %v4721
  %v4810 = vpop.f32.mrb[0].mxu0
  %v4811 = vadd.f32 0.0, %v4810
  %v4812 = vpop.f32.mrb[0].mxu0
  %4813 = vmatprep.mubr.f32.mxu0 0.0
  %4814 = vmatmul.mubr.f32.gmra.mrb[0].mxu0 %v4724
  %v4815 = vpop.f32.mrb[0].mxu0
  %v4816 = vadd.f32 0.0, %v4815
  %v4817 = vpop.f32.mrb[0].mxu0
  %4818 = vmatprep.mubr.f32.mxu0 0.0
  %4819 = vmatmul.mubr.f32.gmra.mrb[0].mxu0 %v4727
  %v4820 = vpop.f32.mrb[0].mxu0
  %v4821 = vadd.f32 0.0, %v4820
  %v4822 = vpop.f32.mrb[0].mxu0
  %4823 = vmatprep.mubr.f32.mxu0 0.0
  %4824 = vmatmul.mubr.f32.gmra.mrb[0].mxu0 %v4730
  %v4825 = vpop.f32.mrb[0].mxu0
  %v4826 = vadd.f32 0.0, %v4825
  %v4827 = vpop.f32.mrb[0].mxu0
  %4828 = vmatprep.mubr.f32.mxu0 0.0
  %4829 = vmatmul.mubr.f32.gmra.mrb[0].mxu0 %v4733
  %v4830 = vpop.f32.mrb[0].mxu0
  %v4831 = vadd.f32 0.0, %v4830
  %v4832 = vpop.f32.mrb[0].mxu0
  %4833 = vmatprep.mubr.f32.mxu0 0.0
  %4834 = vmatmul.mubr.f32.gmra.mrb[0].mxu0 %v4736
  %v4835 = vpop.f32.mrb[0].mxu0
  %v4836 = vadd.f32 0.0, %v4835
  %v4837 = vpop.f32.mrb[0].mxu0
  %4838 = vmatprep.mubr.f32.mxu0 0.0
  %4839 = vmatmul.mubr.f32.gmra.mrb[0].mxu0 %v4739
  %v4840 = vpop.f32.mrb[0].mxu0
  %v4841 = vadd.f32 0.0, %v4840
  %v4842 = vpop.f32.mrb[0].mxu0
  %4843 = vmatprep.mubr.f32.mxu0 0.0
  %4844 = vmatmul.mubr.f32.gmra.mrb[0].mxu0 %v4742
  %v4845 = vpop.f32.mrb[0].mxu0
  %v4846 = vadd.f32 0.0, %v4845
  %v4847 = vpop.f32.mrb[0].mxu0
  %4848 = vdwg.mxu0
  %v4849 = vmul.f32 %v4811, %v102
  %v4850 = vmul.f32 %v4816, %v103
  %v4851 = vmul.f32 %v4821, %v104
  %v4852 = vmul.f32 %v4826, %v105
  %v4853 = vmul.f32 %v4831, %v106
  %v4854 = vmul.f32 %v4836, %v107
  %v4855 = vmul.f32 %v4841, %v108
  %v4856 = vmul.f32 %v4846, %v109
  %4857 = vmatprep.subr.mxu0 0.0
  %4858 = vmatpush1.msra.mxu0 %v4849
  %4859 = vmatprep.subr.mxu0 0.0
  %4860 = vmatpush1.msra.mxu0 %v4850
  %4861 = vmatprep.subr.mxu0 0.0
  %4862 = vmatpush1.msra.mxu0 %v4851
  %4863 = vmatprep.subr.mxu0 0.0
  %4864 = vmatpush1.msra.mxu0 %v4852
  %4865 = vmatprep.subr.mxu0 0.0
  %4866 = vmatpush1.msra.mxu0 %v4853
  %4867 = vmatprep.subr.mxu0 0.0
  %4868 = vmatpush1.msra.mxu0 %v4854
  %4869 = vmatprep.subr.mxu0 0.0
  %4870 = vmatpush1.msra.mxu0 %v4855
  %4871 = vmatprep.subr.mxu0 0.0
  %4872 = vmatpush1.msra.mxu0 %v4856
  %4873 = vmatprep.subr.mxu0 0.0
  %4874 = vmatpush1.msra.mxu0 0.0
  %4875 = vmatprep.subr.mxu0 0.0
  %4876 = vmatpush1.msra.mxu0 0.0
  %4877 = vmatprep.subr.mxu0 0.0
  %4878 = vmatpush1.msra.mxu0 0.0
  %4879 = vmatprep.subr.mxu0 0.0
  %4880 = vmatpush1.msra.mxu0 0.0
  %4881 = vmatprep.subr.mxu0 0.0
  %4882 = vmatpush1.msra.mxu0 0.0
  %4883 = vmatprep.subr.mxu0 0.0
  %4884 = vmatpush1.msra.mxu0 0.0
  %4885 = vmatprep.subr.mxu0 0.0
  %4886 = vmatpush1.msra.mxu0 0.0
  %4887 = vmatprep.subr.mxu0 0.0
  %4888 = vmatpush1.msra.mxu0 0.0
  %4889 = vmatprep.subr.mxu0 0.0
  %4890 = vmatpush1.msra.mxu0 0.0
  %4891 = vmatprep.subr.mxu0 0.0
  %4892 = vmatpush1.msra.mxu0 0.0
  %4893 = vmatprep.subr.mxu0 0.0
  %4894 = vmatpush1.msra.mxu0 0.0
  %4895 = vmatprep.subr.mxu0 0.0
  %4896 = vmatpush1.msra.mxu0 0.0
  %4897 = vmatprep.subr.mxu0 0.0
  %4898 = vmatpush1.msra.mxu0 0.0
  %4899 = vmatprep.subr.mxu0 0.0
  %4900 = vmatpush1.msra.mxu0 0.0
  %4901 = vmatprep.subr.mxu0 0.0
  %4902 = vmatpush1.msra.mxu0 0.0
  %4903 = vmatprep.subr.mxu0 0.0
  %4904 = vmatpush1.msra.mxu0 0.0
  %4905 = vmatprep.subr.mxu0 0.0
  %4906 = vmatpush1.msra.mxu0 0.0
  %4907 = vmatprep.subr.mxu0 0.0
  %4908 = vmatpush1.msra.mxu0 0.0
  %4909 = vmatprep.subr.mxu0 0.0
  %4910 = vmatpush1.msra.mxu0 0.0
  %4911 = vmatprep.subr.mxu0 0.0
  %4912 = vmatpush1.msra.mxu0 0.0
  %4913 = vmatprep.subr.mxu0 0.0
  %4914 = vmatpush1.msra.mxu0 0.0
  %4915 = vmatprep.subr.mxu0 0.0
  %4916 = vmatpush1.msra.mxu0 0.0
  %4917 = vmatprep.subr.mxu0 0.0
  %4918 = vmatpush1.msra.mxu0 0.0
  %4919 = vmatprep.subr.mxu0 0.0
  %4920 = vmatpush1.msra.mxu0 0.0
  %4921 = vmatprep.mubr.f32.mxu0 0.0
  %4922 = vmatmul.mubr.f32.gmra.mrb[0].mxu0 %v3760
  %v4923 = vpop.f32.mrb[0].mxu0
  %v4924 = vadd.f32 0.0, %v4923
  %v4925 = vpop.f32.mrb[0].mxu0
  %4926 = vmatprep.mubr.f32.mxu0 0.0
  %4927 = vmatmul.mubr.f32.gmra.mrb[0].mxu0 %v3763
  %v4928 = vpop.f32.mrb[0].mxu0
  %v4929 = vadd.f32 0.0, %v4928
  %v4930 = vpop.f32.mrb[0].mxu0
  %4931 = vdwg.mxu0
  %v4932 = vlaneseq
  %v4933 = vshrl.u32 %v4932, 7
  %v4934 = vsub.s32 0, %v4933
  %v4935 = vrot.slane %v4095, %v4934
  %v4937 = vsel %vm293, %v4924, 0
  %v4940 = vsel %vm293, %v4929, 0
  %4942 = vmatprep.subr.mxu0 0.0
  %4943 = vmatpush1.msra.mxu0 %v4091
  %4944 = vmatprep.subr.mxu0 0.0
  %4945 = vmatpush1.msra.mxu0 %v4092
  %4946 = vmatprep.subr.mxu0 0.0
  %4947 = vmatpush1.msra.mxu0 %v4093
  %4948 = vmatprep.subr.mxu0 0.0
  %4949 = vmatpush1.msra.mxu0 %v4094
  %4950 = vmatprep.subr.mxu0 0.0
  %4951 = vmatpush1.msra.mxu0 0.0
  %4952 = vmatprep.subr.mxu0 0.0
  %4953 = vmatpush1.msra.mxu0 0.0
  %4954 = vmatprep.subr.mxu0 0.0
  %4955 = vmatpush1.msra.mxu0 0.0
  %4956 = vmatprep.subr.mxu0 0.0
  %4957 = vmatpush1.msra.mxu0 0.0
  %4958 = vmatprep.subr.mxu0 0.0
  %4959 = vmatpush1.msra.mxu0 0.0
  %4960 = vmatprep.subr.mxu0 0.0
  %4961 = vmatpush1.msra.mxu0 0.0
  %4962 = vmatprep.subr.mxu0 0.0
  %4963 = vmatpush1.msra.mxu0 0.0
  %4964 = vmatprep.subr.mxu0 0.0
  %4965 = vmatpush1.msra.mxu0 0.0
  %4966 = vmatprep.subr.mxu0 0.0
  %4967 = vmatpush1.msra.mxu0 0.0
  %4968 = vmatprep.subr.mxu0 0.0
  %4969 = vmatpush1.msra.mxu0 0.0
  %4970 = vmatprep.subr.mxu0 0.0
  %4971 = vmatpush1.msra.mxu0 0.0
  %4972 = vmatprep.subr.mxu0 0.0
  %4973 = vmatpush1.msra.mxu0 0.0
  %4974 = vmatprep.subr.mxu0 0.0
  %4975 = vmatpush1.msra.mxu0 0.0
  %4976 = vmatprep.subr.mxu0 0.0
  %4977 = vmatpush1.msra.mxu0 0.0
  %4978 = vmatprep.subr.mxu0 0.0
  %4979 = vmatpush1.msra.mxu0 0.0
  %4980 = vmatprep.subr.mxu0 0.0
  %4981 = vmatpush1.msra.mxu0 0.0
  %4982 = vmatprep.subr.mxu0 0.0
  %4983 = vmatpush1.msra.mxu0 0.0
  %4984 = vmatprep.subr.mxu0 0.0
  %4985 = vmatpush1.msra.mxu0 0.0
  %4986 = vmatprep.subr.mxu0 0.0
  %4987 = vmatpush1.msra.mxu0 0.0
  %4988 = vmatprep.subr.mxu0 0.0
  %4989 = vmatpush1.msra.mxu0 0.0
  %4990 = vmatprep.subr.mxu0 0.0
  %4991 = vmatpush1.msra.mxu0 0.0
  %4992 = vmatprep.subr.mxu0 0.0
  %4993 = vmatpush1.msra.mxu0 0.0
  %4994 = vmatprep.subr.mxu0 0.0
  %4995 = vmatpush1.msra.mxu0 0.0
  %4996 = vmatprep.subr.mxu0 0.0
  %4997 = vmatpush1.msra.mxu0 0.0
  %4998 = vmatprep.subr.mxu0 0.0
  %4999 = vmatpush1.msra.mxu0 0.0
  %5000 = vmatprep.subr.mxu0 0.0
  %5001 = vmatpush1.msra.mxu0 0.0
  %5002 = vmatprep.subr.mxu0 0.0
  %5003 = vmatpush1.msra.mxu0 0.0
  %5004 = vmatprep.subr.mxu0 0.0
  %5005 = vmatpush1.msra.mxu0 0.0
  %5006 = vmatprep.mubr.f32.mxu0 0.0
  %5007 = vmatmul.mubr.f32.gmra.mrb[0].mxu0 %v4937
  %v5008 = vpop.f32.mrb[0].mxu0
  %v5009 = vadd.f32 %v4935, %v5008
  %v5010 = vpop.f32.mrb[0].mxu0
  %5011 = vmatprep.mubr.f32.mxu0 0.0
  %5012 = vmatmul.mubr.f32.gmra.mrb[0].mxu0 %v4940
  %v5013 = vpop.f32.mrb[0].mxu0
  %v5014 = vadd.f32 %v4935, %v5013
  %v5015 = vpop.f32.mrb[0].mxu0
  %5016 = vdwg.mxu0
  %v5017 = vadd.f32 %v3965, %v5009
  %v5018 = vadd.f32 %v3966, %v5014
  %v5019 = vld [vmem:[%s19 + $0xa] sm:$0x1]
  %v5020 = vld [vmem:[%s19 + $0xb] sm:$0x1]
  %v5021 = vsel %vm293, %v5017, 0.0
  %5022 = vadd.xlane.f32.xlu0 %v5021
  %v5023 = vpop.xlane.xlu0 %5022
  %v5024 = vsel %vm293, %v5018, 0.0
  %5025 = vadd.xlane.f32.xlu0 %v5024
  %v5026 = vpop.xlane.xlu0 %5025
  %v5027 = vmul.f32 %v5023, %v1204
  %v5028 = vmul.f32 %v5026, %v1204
  %v5029 = vsub.f32 %v5017, %v5027
  %v5030 = vsub.f32 %v5018, %v5028
  %v5031 = vmul.f32 %v5029, %v5029
  %v5032 = vmul.f32 %v5030, %v5030
  %v5033 = vsel %vm293, %v5031, 0.0
  %5034 = vadd.xlane.f32.xlu0 %v5033
  %v5035 = vpop.xlane.xlu0 %5034
  %v5036 = vsel %vm293, %v5032, 0.0
  %5037 = vadd.xlane.f32.xlu0 %v5036
  %v5038 = vpop.xlane.xlu0 %5037
  %v5039 = vmul.f32 %v5035, %v1204
  %v5040 = vmul.f32 %v5038, %v1204
  %v5041 = vadd.f32 %v5039, 1e-05
  %v5042 = vadd.f32 %v5040, 1e-05
  %v5043 = vrsqrt.pop %v5041
  %v5044 = vrsqrt.pop %v5042
  %v5045 = vmul.f32 %v5029, %v5043
  %v5046 = vmul.f32 %v5030, %v5044
  %v5047 = vlaneseq
  %v5048 = vshrl.u32 %v5047, 7
  %v5049 = vsub.s32 0, %v5048
  %v5050 = vrot.slane %v5019, %v5049
  %v5051 = vmul.f32 %v5045, %v5050
  %v5052 = vmul.f32 %v5046, %v5050
  %v5053 = vlaneseq
  %v5054 = vshrl.u32 %v5053, 7
  %v5055 = vsub.s32 0, %v5054
  %v5056 = vrot.slane %v5020, %v5055
  %v5057 = vadd.f32 %v5051, %v5056
  %v5058 = vadd.f32 %v5052, %v5056
  %v5059 = vld [vmem:[%s17] sm:$0xff]
  %v5060 = vld [vmem:[%s17 + $0x8] sm:$0xff]
  %v5061 = vld [vmem:[%s17 + $0x10] sm:$0xff]
  %v5062 = vld [vmem:[%s17 + $0x18] sm:$0xff]
  %v5063 = vld [vmem:[%s20] sm:$0x1]
  %v5064 = vlaneseq
  %v5065 = vshrl.u32 %v5064, 7
  %v5066 = vsub.s32 0, %v5065
  %v5067 = vrot.slane %v5063, %v5066
  %v5069 = vsel %vm293, %v5057, 0
  %v5072 = vsel %vm293, %v5058, 0
  %5074 = vmatprep.subr.mxu0 0.0
  %5075 = vmatpush1.msra.mxu0 %v5059
  %5076 = vmatprep.subr.mxu0 0.0
  %5077 = vmatpush1.msra.mxu0 %v5060
  %5078 = vmatprep.subr.mxu0 0.0
  %5079 = vmatpush1.msra.mxu0 %v5061
  %5080 = vmatprep.subr.mxu0 0.0
  %5081 = vmatpush1.msra.mxu0 %v5062
  %5082 = vmatprep.subr.mxu0 0.0
  %5083 = vmatpush1.msra.mxu0 0.0
  %5084 = vmatprep.subr.mxu0 0.0
  %5085 = vmatpush1.msra.mxu0 0.0
  %5086 = vmatprep.subr.mxu0 0.0
  %5087 = vmatpush1.msra.mxu0 0.0
  %5088 = vmatprep.subr.mxu0 0.0
  %5089 = vmatpush1.msra.mxu0 0.0
  %5090 = vmatprep.subr.mxu0 0.0
  %5091 = vmatpush1.msra.mxu0 0.0
  %5092 = vmatprep.subr.mxu0 0.0
  %5093 = vmatpush1.msra.mxu0 0.0
  %5094 = vmatprep.subr.mxu0 0.0
  %5095 = vmatpush1.msra.mxu0 0.0
  %5096 = vmatprep.subr.mxu0 0.0
  %5097 = vmatpush1.msra.mxu0 0.0
  %5098 = vmatprep.subr.mxu0 0.0
  %5099 = vmatpush1.msra.mxu0 0.0
  %5100 = vmatprep.subr.mxu0 0.0
  %5101 = vmatpush1.msra.mxu0 0.0
  %5102 = vmatprep.subr.mxu0 0.0
  %5103 = vmatpush1.msra.mxu0 0.0
  %5104 = vmatprep.subr.mxu0 0.0
  %5105 = vmatpush1.msra.mxu0 0.0
  %5106 = vmatprep.subr.mxu0 0.0
  %5107 = vmatpush1.msra.mxu0 0.0
  %5108 = vmatprep.subr.mxu0 0.0
  %5109 = vmatpush1.msra.mxu0 0.0
  %5110 = vmatprep.subr.mxu0 0.0
  %5111 = vmatpush1.msra.mxu0 0.0
  %5112 = vmatprep.subr.mxu0 0.0
  %5113 = vmatpush1.msra.mxu0 0.0
  %5114 = vmatprep.subr.mxu0 0.0
  %5115 = vmatpush1.msra.mxu0 0.0
  %5116 = vmatprep.subr.mxu0 0.0
  %5117 = vmatpush1.msra.mxu0 0.0
  %5118 = vmatprep.subr.mxu0 0.0
  %5119 = vmatpush1.msra.mxu0 0.0
  %5120 = vmatprep.subr.mxu0 0.0
  %5121 = vmatpush1.msra.mxu0 0.0
  %5122 = vmatprep.subr.mxu0 0.0
  %5123 = vmatpush1.msra.mxu0 0.0
  %5124 = vmatprep.subr.mxu0 0.0
  %5125 = vmatpush1.msra.mxu0 0.0
  %5126 = vmatprep.subr.mxu0 0.0
  %5127 = vmatpush1.msra.mxu0 0.0
  %5128 = vmatprep.subr.mxu0 0.0
  %5129 = vmatpush1.msra.mxu0 0.0
  %5130 = vmatprep.subr.mxu0 0.0
  %5131 = vmatpush1.msra.mxu0 0.0
  %5132 = vmatprep.subr.mxu0 0.0
  %5133 = vmatpush1.msra.mxu0 0.0
  %5134 = vmatprep.subr.mxu0 0.0
  %5135 = vmatpush1.msra.mxu0 0.0
  %5136 = vmatprep.subr.mxu0 0.0
  %5137 = vmatpush1.msra.mxu0 0.0
  %5138 = vmatprep.mubr.f32.mxu0 0.0
  %5139 = vmatmul.mubr.f32.gmra.mrb[0].mxu0 %v5069
  %v5140 = vpop.f32.mrb[0].mxu0
  %v5141 = vadd.f32 %v5067, %v5140
  %v5142 = vpop.f32.mrb[0].mxu0
  %5143 = vmatprep.mubr.f32.mxu0 0.0
  %5144 = vmatmul.mubr.f32.gmra.mrb[0].mxu0 %v5072
  %v5145 = vpop.f32.mrb[0].mxu0
  %v5146 = vadd.f32 %v5067, %v5145
  %v5147 = vpop.f32.mrb[0].mxu0
  %5148 = vdwg.mxu0
  %v5149 = vmax.f32 %v5141, 0.0
  %v5150 = vmax.f32 %v5146, 0.0
  %v5151 = vld [vmem:[%s18] sm:$0xff]
  %v5152 = vld [vmem:[%s18 + $0x8] sm:$0xff]
  %v5153 = vld [vmem:[%s18 + $0x10] sm:$0xff]
  %v5154 = vld [vmem:[%s18 + $0x18] sm:$0xff]
  %v5155 = vld [vmem:[%s18 + $0x20] sm:$0xff]
  %v5156 = vld [vmem:[%s18 + $0x28] sm:$0xff]
  %v5157 = vld [vmem:[%s18 + $0x30] sm:$0xff]
  %v5158 = vld [vmem:[%s18 + $0x38] sm:$0xff]
  %v5159 = vld [vmem:[%s19 + $0xc] sm:$0x1]
  %v5160 = vlaneseq
  %v5161 = vshrl.u32 %v5160, 7
  %v5162 = vsub.s32 0, %v5161
  %v5163 = vrot.slane %v5159, %v5162
  %v5165 = vsel %vm802, %v5149, 0
  %v5168 = vsel %vm802, %v5150, 0
  %5170 = vmatprep.subr.mxu0 0.0
  %5171 = vmatpush1.msra.mxu0 %v5151
  %5172 = vmatprep.subr.mxu0 0.0
  %5173 = vmatpush1.msra.mxu0 %v5152
  %5174 = vmatprep.subr.mxu0 0.0
  %5175 = vmatpush1.msra.mxu0 %v5153
  %5176 = vmatprep.subr.mxu0 0.0
  %5177 = vmatpush1.msra.mxu0 %v5154
  %5178 = vmatprep.subr.mxu0 0.0
  %5179 = vmatpush1.msra.mxu0 %v5155
  %5180 = vmatprep.subr.mxu0 0.0
  %5181 = vmatpush1.msra.mxu0 %v5156
  %5182 = vmatprep.subr.mxu0 0.0
  %5183 = vmatpush1.msra.mxu0 %v5157
  %5184 = vmatprep.subr.mxu0 0.0
  %5185 = vmatpush1.msra.mxu0 %v5158
  %5186 = vmatprep.subr.mxu0 0.0
  %5187 = vmatpush1.msra.mxu0 0.0
  %5188 = vmatprep.subr.mxu0 0.0
  %5189 = vmatpush1.msra.mxu0 0.0
  %5190 = vmatprep.subr.mxu0 0.0
  %5191 = vmatpush1.msra.mxu0 0.0
  %5192 = vmatprep.subr.mxu0 0.0
  %5193 = vmatpush1.msra.mxu0 0.0
  %5194 = vmatprep.subr.mxu0 0.0
  %5195 = vmatpush1.msra.mxu0 0.0
  %5196 = vmatprep.subr.mxu0 0.0
  %5197 = vmatpush1.msra.mxu0 0.0
  %5198 = vmatprep.subr.mxu0 0.0
  %5199 = vmatpush1.msra.mxu0 0.0
  %5200 = vmatprep.subr.mxu0 0.0
  %5201 = vmatpush1.msra.mxu0 0.0
  %5202 = vmatprep.subr.mxu0 0.0
  %5203 = vmatpush1.msra.mxu0 0.0
  %5204 = vmatprep.subr.mxu0 0.0
  %5205 = vmatpush1.msra.mxu0 0.0
  %5206 = vmatprep.subr.mxu0 0.0
  %5207 = vmatpush1.msra.mxu0 0.0
  %5208 = vmatprep.subr.mxu0 0.0
  %5209 = vmatpush1.msra.mxu0 0.0
  %5210 = vmatprep.subr.mxu0 0.0
  %5211 = vmatpush1.msra.mxu0 0.0
  %5212 = vmatprep.subr.mxu0 0.0
  %5213 = vmatpush1.msra.mxu0 0.0
  %5214 = vmatprep.subr.mxu0 0.0
  %5215 = vmatpush1.msra.mxu0 0.0
  %5216 = vmatprep.subr.mxu0 0.0
  %5217 = vmatpush1.msra.mxu0 0.0
  %5218 = vmatprep.subr.mxu0 0.0
  %5219 = vmatpush1.msra.mxu0 0.0
  %5220 = vmatprep.subr.mxu0 0.0
  %5221 = vmatpush1.msra.mxu0 0.0
  %5222 = vmatprep.subr.mxu0 0.0
  %5223 = vmatpush1.msra.mxu0 0.0
  %5224 = vmatprep.subr.mxu0 0.0
  %5225 = vmatpush1.msra.mxu0 0.0
  %5226 = vmatprep.subr.mxu0 0.0
  %5227 = vmatpush1.msra.mxu0 0.0
  %5228 = vmatprep.subr.mxu0 0.0
  %5229 = vmatpush1.msra.mxu0 0.0
  %5230 = vmatprep.subr.mxu0 0.0
  %5231 = vmatpush1.msra.mxu0 0.0
  %5232 = vmatprep.subr.mxu0 0.0
  %5233 = vmatpush1.msra.mxu0 0.0
  %5234 = vmatprep.mubr.f32.mxu0 0.0
  %5235 = vmatmul.mubr.f32.gmra.mrb[0].mxu0 %v5165
  %v5236 = vpop.f32.mrb[0].mxu0
  %v5237 = vadd.f32 %v5163, %v5236
  %v5238 = vpop.f32.mrb[0].mxu0
  %5239 = vmatprep.mubr.f32.mxu0 0.0
  %5240 = vmatmul.mubr.f32.gmra.mrb[0].mxu0 %v5168
  %v5241 = vpop.f32.mrb[0].mxu0
  %v5242 = vadd.f32 %v5163, %v5241
  %v5243 = vpop.f32.mrb[0].mxu0
  %5244 = vdwg.mxu0
  %v5245 = vadd.f32 %v5057, %v5237
  %v5246 = vadd.f32 %v5058, %v5242
  %v5247 = vld [vmem:[%s19 + $0xd] sm:$0x1]
  %v5248 = vld [vmem:[%s19 + $0xe] sm:$0x1]
  %v5249 = vsel %vm293, %v5245, 0.0
  %5250 = vadd.xlane.f32.xlu0 %v5249
  %v5251 = vpop.xlane.xlu0 %5250
  %v5252 = vsel %vm293, %v5246, 0.0
  %5253 = vadd.xlane.f32.xlu0 %v5252
  %v5254 = vpop.xlane.xlu0 %5253
  %v5255 = vmul.f32 %v5251, %v1204
  %v5256 = vmul.f32 %v5254, %v1204
  %v5257 = vsub.f32 %v5245, %v5255
  %v5258 = vsub.f32 %v5246, %v5256
  %v5259 = vmul.f32 %v5257, %v5257
  %v5260 = vmul.f32 %v5258, %v5258
  %v5261 = vsel %vm293, %v5259, 0.0
  %5262 = vadd.xlane.f32.xlu0 %v5261
  %v5263 = vpop.xlane.xlu0 %5262
  %v5264 = vsel %vm293, %v5260, 0.0
  %5265 = vadd.xlane.f32.xlu0 %v5264
  %v5266 = vpop.xlane.xlu0 %5265
  %v5267 = vmul.f32 %v5263, %v1204
  %v5268 = vmul.f32 %v5266, %v1204
  %v5269 = vadd.f32 %v5267, 1e-05
  %v5270 = vadd.f32 %v5268, 1e-05
  %v5271 = vrsqrt.pop %v5269
  %v5272 = vrsqrt.pop %v5270
  %v5273 = vmul.f32 %v5257, %v5271
  %v5274 = vmul.f32 %v5258, %v5272
  %v5275 = vlaneseq
  %v5276 = vshrl.u32 %v5275, 7
  %v5277 = vsub.s32 0, %v5276
  %v5278 = vrot.slane %v5247, %v5277
  %v5279 = vmul.f32 %v5273, %v5278
  %v5280 = vmul.f32 %v5274, %v5278
  %v5281 = vlaneseq
  %v5282 = vshrl.u32 %v5281, 7
  %v5283 = vsub.s32 0, %v5282
  %v5284 = vrot.slane %v5248, %v5283
  %v5285 = vadd.f32 %v5279, %v5284
  %v5286 = vadd.f32 %v5280, %v5284
  %5287 = vmatprep.subr.mxu0 0.0
  %5288 = vmatpush1.msra.mxu0 %v5285
  %5289 = vmatprep.subr.mxu0 0.0
  %5290 = vmatpush1.msra.mxu0 %v5286
  %5291 = vmatprep.subr.mxu0 0.0
  %5292 = vmatpush1.msra.mxu0 0.0
  %5293 = vmatprep.subr.mxu0 0.0
  %5294 = vmatpush1.msra.mxu0 0.0
  %5295 = vmatprep.subr.mxu0 0.0
  %5296 = vmatpush1.msra.mxu0 0.0
  %5297 = vmatprep.subr.mxu0 0.0
  %5298 = vmatpush1.msra.mxu0 0.0
  %5299 = vmatprep.subr.mxu0 0.0
  %5300 = vmatpush1.msra.mxu0 0.0
  %5301 = vmatprep.subr.mxu0 0.0
  %5302 = vmatpush1.msra.mxu0 0.0
  %5303 = vmatprep.subr.mxu0 0.0
  %5304 = vmatpush1.msra.mxu0 0.0
  %5305 = vmatprep.subr.mxu0 0.0
  %5306 = vmatpush1.msra.mxu0 0.0
  %5307 = vmatprep.subr.mxu0 0.0
  %5308 = vmatpush1.msra.mxu0 0.0
  %5309 = vmatprep.subr.mxu0 0.0
  %5310 = vmatpush1.msra.mxu0 0.0
  %5311 = vmatprep.subr.mxu0 0.0
  %5312 = vmatpush1.msra.mxu0 0.0
  %5313 = vmatprep.subr.mxu0 0.0
  %5314 = vmatpush1.msra.mxu0 0.0
  %5315 = vmatprep.subr.mxu0 0.0
  %5316 = vmatpush1.msra.mxu0 0.0
  %5317 = vmatprep.subr.mxu0 0.0
  %5318 = vmatpush1.msra.mxu0 0.0
  %5319 = vmatprep.subr.mxu0 0.0
  %5320 = vmatpush1.msra.mxu0 0.0
  %5321 = vmatprep.subr.mxu0 0.0
  %5322 = vmatpush1.msra.mxu0 0.0
  %5323 = vmatprep.subr.mxu0 0.0
  %5324 = vmatpush1.msra.mxu0 0.0
  %5325 = vmatprep.subr.mxu0 0.0
  %5326 = vmatpush1.msra.mxu0 0.0
  %5327 = vmatprep.subr.mxu0 0.0
  %5328 = vmatpush1.msra.mxu0 0.0
  %5329 = vmatprep.subr.mxu0 0.0
  %5330 = vmatpush1.msra.mxu0 0.0
  %5331 = vmatprep.subr.mxu0 0.0
  %5332 = vmatpush1.msra.mxu0 0.0
  %5333 = vmatprep.subr.mxu0 0.0
  %5334 = vmatpush1.msra.mxu0 0.0
  %5335 = vmatprep.subr.mxu0 0.0
  %5336 = vmatpush1.msra.mxu0 0.0
  %5337 = vmatprep.subr.mxu0 0.0
  %5338 = vmatpush1.msra.mxu0 0.0
  %5339 = vmatprep.subr.mxu0 0.0
  %5340 = vmatpush1.msra.mxu0 0.0
  %5341 = vmatprep.subr.mxu0 0.0
  %5342 = vmatpush1.msra.mxu0 0.0
  %5343 = vmatprep.subr.mxu0 0.0
  %5344 = vmatpush1.msra.mxu0 0.0
  %5345 = vmatprep.subr.mxu0 0.0
  %5346 = vmatpush1.msra.mxu0 0.0
  %5347 = vmatprep.subr.mxu0 0.0
  %5348 = vmatpush1.msra.mxu0 0.0
  %5349 = vmatprep.subr.mxu0 0.0
  %5350 = vmatpush1.msra.mxu0 0.0
  %5351 = vmatprep.mubr.f32.mxu0 0.0
  %5352 = vmatmul.mubr.f32.gmra.mrb[0].mxu0 %v2871
  %v5353 = vpop.f32.mrb[0].mxu0
  %v5354 = vadd.f32 0.0, %v5353
  %v5355 = vpop.f32.mrb[0].mxu0
  %5356 = vmatprep.mubr.f32.mxu0 0.0
  %5357 = vmatmul.mubr.f32.gmra.mrb[0].mxu0 %v2874
  %v5358 = vpop.f32.mrb[0].mxu0
  %v5359 = vadd.f32 0.0, %v5358
  %v5360 = vpop.f32.mrb[0].mxu0
  %5361 = vmatprep.mubr.f32.mxu0 0.0
  %5362 = vmatmul.mubr.f32.gmra.mrb[0].mxu0 %v2877
  %v5363 = vpop.f32.mrb[0].mxu0
  %v5364 = vadd.f32 0.0, %v5363
  %v5365 = vpop.f32.mrb[0].mxu0
  %5366 = vmatprep.mubr.f32.mxu0 0.0
  %5367 = vmatmul.mubr.f32.gmra.mrb[0].mxu0 %v2880
  %v5368 = vpop.f32.mrb[0].mxu0
  %v5369 = vadd.f32 0.0, %v5368
  %v5370 = vpop.f32.mrb[0].mxu0
  %5371 = vmatprep.mubr.f32.mxu0 0.0
  %5372 = vmatmul.mubr.f32.gmra.mrb[0].mxu0 %v2883
  %v5373 = vpop.f32.mrb[0].mxu0
  %v5374 = vadd.f32 0.0, %v5373
  %v5375 = vpop.f32.mrb[0].mxu0
  %5376 = vmatprep.mubr.f32.mxu0 0.0
  %5377 = vmatmul.mubr.f32.gmra.mrb[0].mxu0 %v2886
  %v5378 = vpop.f32.mrb[0].mxu0
  %v5379 = vadd.f32 0.0, %v5378
  %v5380 = vpop.f32.mrb[0].mxu0
  %5381 = vmatprep.mubr.f32.mxu0 0.0
  %5382 = vmatmul.mubr.f32.gmra.mrb[0].mxu0 %v2889
  %v5383 = vpop.f32.mrb[0].mxu0
  %v5384 = vadd.f32 0.0, %v5383
  %v5385 = vpop.f32.mrb[0].mxu0
  %5386 = vmatprep.mubr.f32.mxu0 0.0
  %5387 = vmatmul.mubr.f32.gmra.mrb[0].mxu0 %v2892
  %v5388 = vpop.f32.mrb[0].mxu0
  %v5389 = vadd.f32 0.0, %v5388
  %v5390 = vpop.f32.mrb[0].mxu0
  %5391 = vdwg.mxu0
  %s5392 = scalar_lea.vmem %s16, 256
  %v5393 = vld [vmem:[%s5392] sm:$0xff]
  %v5394 = vld [vmem:[%s5392 + $0x8] sm:$0xff]
  %v5395 = vld [vmem:[%s5392 + $0x10] sm:$0xff]
  %v5396 = vld [vmem:[%s5392 + $0x18] sm:$0xff]
  %v5397 = vld [vmem:[%s19 + $0xf] sm:$0x1]
  %s5398 = scalar_lea.vmem %s16, 288
  %v5399 = vld [vmem:[%s5398] sm:$0xff]
  %v5400 = vld [vmem:[%s5398 + $0x8] sm:$0xff]
  %v5401 = vld [vmem:[%s5398 + $0x10] sm:$0xff]
  %v5402 = vld [vmem:[%s5398 + $0x18] sm:$0xff]
  %v5403 = vld [vmem:[%s19 + $0x10] sm:$0x1]
  %s5404 = scalar_lea.vmem %s16, 320
  %v5405 = vld [vmem:[%s5404] sm:$0xff]
  %v5406 = vld [vmem:[%s5404 + $0x8] sm:$0xff]
  %v5407 = vld [vmem:[%s5404 + $0x10] sm:$0xff]
  %v5408 = vld [vmem:[%s5404 + $0x18] sm:$0xff]
  %v5409 = vld [vmem:[%s19 + $0x11] sm:$0x1]
  %s5410 = scalar_lea.vmem %s16, 352
  %v5411 = vld [vmem:[%s5410] sm:$0xff]
  %v5412 = vld [vmem:[%s5410 + $0x8] sm:$0xff]
  %v5413 = vld [vmem:[%s5410 + $0x10] sm:$0xff]
  %v5414 = vld [vmem:[%s5410 + $0x18] sm:$0xff]
  %v5415 = vld [vmem:[%s19 + $0x12] sm:$0x1]
  %v5416 = vlaneseq
  %v5417 = vshrl.u32 %v5416, 7
  %v5418 = vsub.s32 0, %v5417
  %v5419 = vrot.slane %v5397, %v5418
  %v5421 = vsel %vm293, %v5354, 0
  %v5424 = vsel %vm293, %v5359, 0
  %v5427 = vsel %vm293, %v5364, 0
  %v5430 = vsel %vm293, %v5369, 0
  %v5433 = vsel %vm293, %v5374, 0
  %v5436 = vsel %vm293, %v5379, 0
  %v5439 = vsel %vm293, %v5384, 0
  %v5442 = vsel %vm293, %v5389, 0
  %5444 = vmatprep.subr.mxu0 0.0
  %5445 = vmatpush1.msra.mxu0 %v5393
  %5446 = vmatprep.subr.mxu0 0.0
  %5447 = vmatpush1.msra.mxu0 %v5394
  %5448 = vmatprep.subr.mxu0 0.0
  %5449 = vmatpush1.msra.mxu0 %v5395
  %5450 = vmatprep.subr.mxu0 0.0
  %5451 = vmatpush1.msra.mxu0 %v5396
  %5452 = vmatprep.subr.mxu0 0.0
  %5453 = vmatpush1.msra.mxu0 0.0
  %5454 = vmatprep.subr.mxu0 0.0
  %5455 = vmatpush1.msra.mxu0 0.0
  %5456 = vmatprep.subr.mxu0 0.0
  %5457 = vmatpush1.msra.mxu0 0.0
  %5458 = vmatprep.subr.mxu0 0.0
  %5459 = vmatpush1.msra.mxu0 0.0
  %5460 = vmatprep.subr.mxu0 0.0
  %5461 = vmatpush1.msra.mxu0 0.0
  %5462 = vmatprep.subr.mxu0 0.0
  %5463 = vmatpush1.msra.mxu0 0.0
  %5464 = vmatprep.subr.mxu0 0.0
  %5465 = vmatpush1.msra.mxu0 0.0
  %5466 = vmatprep.subr.mxu0 0.0
  %5467 = vmatpush1.msra.mxu0 0.0
  %5468 = vmatprep.subr.mxu0 0.0
  %5469 = vmatpush1.msra.mxu0 0.0
  %5470 = vmatprep.subr.mxu0 0.0
  %5471 = vmatpush1.msra.mxu0 0.0
  %5472 = vmatprep.subr.mxu0 0.0
  %5473 = vmatpush1.msra.mxu0 0.0
  %5474 = vmatprep.subr.mxu0 0.0
  %5475 = vmatpush1.msra.mxu0 0.0
  %5476 = vmatprep.subr.mxu0 0.0
  %5477 = vmatpush1.msra.mxu0 0.0
  %5478 = vmatprep.subr.mxu0 0.0
  %5479 = vmatpush1.msra.mxu0 0.0
  %5480 = vmatprep.subr.mxu0 0.0
  %5481 = vmatpush1.msra.mxu0 0.0
  %5482 = vmatprep.subr.mxu0 0.0
  %5483 = vmatpush1.msra.mxu0 0.0
  %5484 = vmatprep.subr.mxu0 0.0
  %5485 = vmatpush1.msra.mxu0 0.0
  %5486 = vmatprep.subr.mxu0 0.0
  %5487 = vmatpush1.msra.mxu0 0.0
  %5488 = vmatprep.subr.mxu0 0.0
  %5489 = vmatpush1.msra.mxu0 0.0
  %5490 = vmatprep.subr.mxu0 0.0
  %5491 = vmatpush1.msra.mxu0 0.0
  %5492 = vmatprep.subr.mxu0 0.0
  %5493 = vmatpush1.msra.mxu0 0.0
  %5494 = vmatprep.subr.mxu0 0.0
  %5495 = vmatpush1.msra.mxu0 0.0
  %5496 = vmatprep.subr.mxu0 0.0
  %5497 = vmatpush1.msra.mxu0 0.0
  %5498 = vmatprep.subr.mxu0 0.0
  %5499 = vmatpush1.msra.mxu0 0.0
  %5500 = vmatprep.subr.mxu0 0.0
  %5501 = vmatpush1.msra.mxu0 0.0
  %5502 = vmatprep.subr.mxu0 0.0
  %5503 = vmatpush1.msra.mxu0 0.0
  %5504 = vmatprep.subr.mxu0 0.0
  %5505 = vmatpush1.msra.mxu0 0.0
  %5506 = vmatprep.subr.mxu0 0.0
  %5507 = vmatpush1.msra.mxu0 0.0
  %5508 = vmatprep.mubr.f32.mxu0 0.0
  %5509 = vmatmul.mubr.f32.gmra.mrb[0].mxu0 %v5421
  %v5510 = vpop.f32.mrb[0].mxu0
  %v5511 = vadd.f32 %v5419, %v5510
  %v5512 = vpop.f32.mrb[0].mxu0
  %5513 = vmatprep.mubr.f32.mxu0 0.0
  %5514 = vmatmul.mubr.f32.gmra.mrb[0].mxu0 %v5424
  %v5515 = vpop.f32.mrb[0].mxu0
  %v5516 = vadd.f32 %v5419, %v5515
  %v5517 = vpop.f32.mrb[0].mxu0
  %5518 = vmatprep.mubr.f32.mxu0 0.0
  %5519 = vmatmul.mubr.f32.gmra.mrb[0].mxu0 %v5427
  %v5520 = vpop.f32.mrb[0].mxu0
  %v5521 = vadd.f32 %v5419, %v5520
  %v5522 = vpop.f32.mrb[0].mxu0
  %5523 = vmatprep.mubr.f32.mxu0 0.0
  %5524 = vmatmul.mubr.f32.gmra.mrb[0].mxu0 %v5430
  %v5525 = vpop.f32.mrb[0].mxu0
  %v5526 = vadd.f32 %v5419, %v5525
  %v5527 = vpop.f32.mrb[0].mxu0
  %5528 = vmatprep.mubr.f32.mxu0 0.0
  %5529 = vmatmul.mubr.f32.gmra.mrb[0].mxu0 %v5433
  %v5530 = vpop.f32.mrb[0].mxu0
  %v5531 = vadd.f32 %v5419, %v5530
  %v5532 = vpop.f32.mrb[0].mxu0
  %5533 = vmatprep.mubr.f32.mxu0 0.0
  %5534 = vmatmul.mubr.f32.gmra.mrb[0].mxu0 %v5436
  %v5535 = vpop.f32.mrb[0].mxu0
  %v5536 = vadd.f32 %v5419, %v5535
  %v5537 = vpop.f32.mrb[0].mxu0
  %5538 = vmatprep.mubr.f32.mxu0 0.0
  %5539 = vmatmul.mubr.f32.gmra.mrb[0].mxu0 %v5439
  %v5540 = vpop.f32.mrb[0].mxu0
  %v5541 = vadd.f32 %v5419, %v5540
  %v5542 = vpop.f32.mrb[0].mxu0
  %5543 = vmatprep.mubr.f32.mxu0 0.0
  %5544 = vmatmul.mubr.f32.gmra.mrb[0].mxu0 %v5442
  %v5545 = vpop.f32.mrb[0].mxu0
  %v5546 = vadd.f32 %v5419, %v5545
  %v5547 = vpop.f32.mrb[0].mxu0
  %5548 = vdwg.mxu0
  %v5549 = vmul.f32 %v5511, %v102
  %v5550 = vmul.f32 %v5516, %v103
  %v5551 = vmul.f32 %v5521, %v104
  %v5552 = vmul.f32 %v5526, %v105
  %v5553 = vmul.f32 %v5531, %v106
  %v5554 = vmul.f32 %v5536, %v107
  %v5555 = vmul.f32 %v5541, %v108
  %v5556 = vmul.f32 %v5546, %v109
  %v5557 = vlaneseq
  %v5558 = vshrl.u32 %v5557, 7
  %v5559 = vsub.s32 0, %v5558
  %v5560 = vrot.slane %v5403, %v5559
  %5561 = vmatprep.subr.mxu0 0.0
  %5562 = vmatpush1.msra.mxu0 %v5399
  %5563 = vmatprep.subr.mxu0 0.0
  %5564 = vmatpush1.msra.mxu0 %v5400
  %5565 = vmatprep.subr.mxu0 0.0
  %5566 = vmatpush1.msra.mxu0 %v5401
  %5567 = vmatprep.subr.mxu0 0.0
  %5568 = vmatpush1.msra.mxu0 %v5402
  %5569 = vmatprep.subr.mxu0 0.0
  %5570 = vmatpush1.msra.mxu0 0.0
  %5571 = vmatprep.subr.mxu0 0.0
  %5572 = vmatpush1.msra.mxu0 0.0
  %5573 = vmatprep.subr.mxu0 0.0
  %5574 = vmatpush1.msra.mxu0 0.0
  %5575 = vmatprep.subr.mxu0 0.0
  %5576 = vmatpush1.msra.mxu0 0.0
  %5577 = vmatprep.subr.mxu0 0.0
  %5578 = vmatpush1.msra.mxu0 0.0
  %5579 = vmatprep.subr.mxu0 0.0
  %5580 = vmatpush1.msra.mxu0 0.0
  %5581 = vmatprep.subr.mxu0 0.0
  %5582 = vmatpush1.msra.mxu0 0.0
  %5583 = vmatprep.subr.mxu0 0.0
  %5584 = vmatpush1.msra.mxu0 0.0
  %5585 = vmatprep.subr.mxu0 0.0
  %5586 = vmatpush1.msra.mxu0 0.0
  %5587 = vmatprep.subr.mxu0 0.0
  %5588 = vmatpush1.msra.mxu0 0.0
  %5589 = vmatprep.subr.mxu0 0.0
  %5590 = vmatpush1.msra.mxu0 0.0
  %5591 = vmatprep.subr.mxu0 0.0
  %5592 = vmatpush1.msra.mxu0 0.0
  %5593 = vmatprep.subr.mxu0 0.0
  %5594 = vmatpush1.msra.mxu0 0.0
  %5595 = vmatprep.subr.mxu0 0.0
  %5596 = vmatpush1.msra.mxu0 0.0
  %5597 = vmatprep.subr.mxu0 0.0
  %5598 = vmatpush1.msra.mxu0 0.0
  %5599 = vmatprep.subr.mxu0 0.0
  %5600 = vmatpush1.msra.mxu0 0.0
  %5601 = vmatprep.subr.mxu0 0.0
  %5602 = vmatpush1.msra.mxu0 0.0
  %5603 = vmatprep.subr.mxu0 0.0
  %5604 = vmatpush1.msra.mxu0 0.0
  %5605 = vmatprep.subr.mxu0 0.0
  %5606 = vmatpush1.msra.mxu0 0.0
  %5607 = vmatprep.subr.mxu0 0.0
  %5608 = vmatpush1.msra.mxu0 0.0
  %5609 = vmatprep.subr.mxu0 0.0
  %5610 = vmatpush1.msra.mxu0 0.0
  %5611 = vmatprep.subr.mxu0 0.0
  %5612 = vmatpush1.msra.mxu0 0.0
  %5613 = vmatprep.subr.mxu0 0.0
  %5614 = vmatpush1.msra.mxu0 0.0
  %5615 = vmatprep.subr.mxu0 0.0
  %5616 = vmatpush1.msra.mxu0 0.0
  %5617 = vmatprep.subr.mxu0 0.0
  %5618 = vmatpush1.msra.mxu0 0.0
  %5619 = vmatprep.subr.mxu0 0.0
  %5620 = vmatpush1.msra.mxu0 0.0
  %5621 = vmatprep.subr.mxu0 0.0
  %5622 = vmatpush1.msra.mxu0 0.0
  %5623 = vmatprep.subr.mxu0 0.0
  %5624 = vmatpush1.msra.mxu0 0.0
  %5625 = vmatprep.mubr.f32.mxu0 0.0
  %5626 = vmatmul.mubr.f32.gmra.mrb[0].mxu0 %v5421
  %v5627 = vpop.f32.mrb[0].mxu0
  %v5628 = vadd.f32 %v5560, %v5627
  %v5629 = vpop.f32.mrb[0].mxu0
  %5630 = vmatprep.mubr.f32.mxu0 0.0
  %5631 = vmatmul.mubr.f32.gmra.mrb[0].mxu0 %v5424
  %v5632 = vpop.f32.mrb[0].mxu0
  %v5633 = vadd.f32 %v5560, %v5632
  %v5634 = vpop.f32.mrb[0].mxu0
  %5635 = vmatprep.mubr.f32.mxu0 0.0
  %5636 = vmatmul.mubr.f32.gmra.mrb[0].mxu0 %v5427
  %v5637 = vpop.f32.mrb[0].mxu0
  %v5638 = vadd.f32 %v5560, %v5637
  %v5639 = vpop.f32.mrb[0].mxu0
  %5640 = vmatprep.mubr.f32.mxu0 0.0
  %5641 = vmatmul.mubr.f32.gmra.mrb[0].mxu0 %v5430
  %v5642 = vpop.f32.mrb[0].mxu0
  %v5643 = vadd.f32 %v5560, %v5642
  %v5644 = vpop.f32.mrb[0].mxu0
  %5645 = vmatprep.mubr.f32.mxu0 0.0
  %5646 = vmatmul.mubr.f32.gmra.mrb[0].mxu0 %v5433
  %v5647 = vpop.f32.mrb[0].mxu0
  %v5648 = vadd.f32 %v5560, %v5647
  %v5649 = vpop.f32.mrb[0].mxu0
  %5650 = vmatprep.mubr.f32.mxu0 0.0
  %5651 = vmatmul.mubr.f32.gmra.mrb[0].mxu0 %v5436
  %v5652 = vpop.f32.mrb[0].mxu0
  %v5653 = vadd.f32 %v5560, %v5652
  %v5654 = vpop.f32.mrb[0].mxu0
  %5655 = vmatprep.mubr.f32.mxu0 0.0
  %5656 = vmatmul.mubr.f32.gmra.mrb[0].mxu0 %v5439
  %v5657 = vpop.f32.mrb[0].mxu0
  %v5658 = vadd.f32 %v5560, %v5657
  %v5659 = vpop.f32.mrb[0].mxu0
  %5660 = vmatprep.mubr.f32.mxu0 0.0
  %5661 = vmatmul.mubr.f32.gmra.mrb[0].mxu0 %v5442
  %v5662 = vpop.f32.mrb[0].mxu0
  %v5663 = vadd.f32 %v5560, %v5662
  %v5664 = vpop.f32.mrb[0].mxu0
  %5665 = vdwg.mxu0
  %v5666 = vlaneseq
  %v5667 = vshrl.u32 %v5666, 7
  %v5668 = vsub.s32 0, %v5667
  %v5669 = vrot.slane %v5409, %v5668
  %5670 = vmatprep.subr.mxu0 0.0
  %5671 = vmatpush1.msra.mxu0 %v5405
  %5672 = vmatprep.subr.mxu0 0.0
  %5673 = vmatpush1.msra.mxu0 %v5406
  %5674 = vmatprep.subr.mxu0 0.0
  %5675 = vmatpush1.msra.mxu0 %v5407
  %5676 = vmatprep.subr.mxu0 0.0
  %5677 = vmatpush1.msra.mxu0 %v5408
  %5678 = vmatprep.subr.mxu0 0.0
  %5679 = vmatpush1.msra.mxu0 0.0
  %5680 = vmatprep.subr.mxu0 0.0
  %5681 = vmatpush1.msra.mxu0 0.0
  %5682 = vmatprep.subr.mxu0 0.0
  %5683 = vmatpush1.msra.mxu0 0.0
  %5684 = vmatprep.subr.mxu0 0.0
  %5685 = vmatpush1.msra.mxu0 0.0
  %5686 = vmatprep.subr.mxu0 0.0
  %5687 = vmatpush1.msra.mxu0 0.0
  %5688 = vmatprep.subr.mxu0 0.0
  %5689 = vmatpush1.msra.mxu0 0.0
  %5690 = vmatprep.subr.mxu0 0.0
  %5691 = vmatpush1.msra.mxu0 0.0
  %5692 = vmatprep.subr.mxu0 0.0
  %5693 = vmatpush1.msra.mxu0 0.0
  %5694 = vmatprep.subr.mxu0 0.0
  %5695 = vmatpush1.msra.mxu0 0.0
  %5696 = vmatprep.subr.mxu0 0.0
  %5697 = vmatpush1.msra.mxu0 0.0
  %5698 = vmatprep.subr.mxu0 0.0
  %5699 = vmatpush1.msra.mxu0 0.0
  %5700 = vmatprep.subr.mxu0 0.0
  %5701 = vmatpush1.msra.mxu0 0.0
  %5702 = vmatprep.subr.mxu0 0.0
  %5703 = vmatpush1.msra.mxu0 0.0
  %5704 = vmatprep.subr.mxu0 0.0
  %5705 = vmatpush1.msra.mxu0 0.0
  %5706 = vmatprep.subr.mxu0 0.0
  %5707 = vmatpush1.msra.mxu0 0.0
  %5708 = vmatprep.subr.mxu0 0.0
  %5709 = vmatpush1.msra.mxu0 0.0
  %5710 = vmatprep.subr.mxu0 0.0
  %5711 = vmatpush1.msra.mxu0 0.0
  %5712 = vmatprep.subr.mxu0 0.0
  %5713 = vmatpush1.msra.mxu0 0.0
  %5714 = vmatprep.subr.mxu0 0.0
  %5715 = vmatpush1.msra.mxu0 0.0
  %5716 = vmatprep.subr.mxu0 0.0
  %5717 = vmatpush1.msra.mxu0 0.0
  %5718 = vmatprep.subr.mxu0 0.0
  %5719 = vmatpush1.msra.mxu0 0.0
  %5720 = vmatprep.subr.mxu0 0.0
  %5721 = vmatpush1.msra.mxu0 0.0
  %5722 = vmatprep.subr.mxu0 0.0
  %5723 = vmatpush1.msra.mxu0 0.0
  %5724 = vmatprep.subr.mxu0 0.0
  %5725 = vmatpush1.msra.mxu0 0.0
  %5726 = vmatprep.subr.mxu0 0.0
  %5727 = vmatpush1.msra.mxu0 0.0
  %5728 = vmatprep.subr.mxu0 0.0
  %5729 = vmatpush1.msra.mxu0 0.0
  %5730 = vmatprep.subr.mxu0 0.0
  %5731 = vmatpush1.msra.mxu0 0.0
  %5732 = vmatprep.subr.mxu0 0.0
  %5733 = vmatpush1.msra.mxu0 0.0
  %5734 = vmatprep.mubr.f32.mxu0 0.0
  %5735 = vmatmul.mubr.f32.gmra.mrb[0].mxu0 %v5421
  %v5736 = vpop.f32.mrb[0].mxu0
  %v5737 = vadd.f32 %v5669, %v5736
  %v5738 = vpop.f32.mrb[0].mxu0
  %5739 = vmatprep.mubr.f32.mxu0 0.0
  %5740 = vmatmul.mubr.f32.gmra.mrb[0].mxu0 %v5424
  %v5741 = vpop.f32.mrb[0].mxu0
  %v5742 = vadd.f32 %v5669, %v5741
  %v5743 = vpop.f32.mrb[0].mxu0
  %5744 = vmatprep.mubr.f32.mxu0 0.0
  %5745 = vmatmul.mubr.f32.gmra.mrb[0].mxu0 %v5427
  %v5746 = vpop.f32.mrb[0].mxu0
  %v5747 = vadd.f32 %v5669, %v5746
  %v5748 = vpop.f32.mrb[0].mxu0
  %5749 = vmatprep.mubr.f32.mxu0 0.0
  %5750 = vmatmul.mubr.f32.gmra.mrb[0].mxu0 %v5430
  %v5751 = vpop.f32.mrb[0].mxu0
  %v5752 = vadd.f32 %v5669, %v5751
  %v5753 = vpop.f32.mrb[0].mxu0
  %5754 = vmatprep.mubr.f32.mxu0 0.0
  %5755 = vmatmul.mubr.f32.gmra.mrb[0].mxu0 %v5433
  %v5756 = vpop.f32.mrb[0].mxu0
  %v5757 = vadd.f32 %v5669, %v5756
  %v5758 = vpop.f32.mrb[0].mxu0
  %5759 = vmatprep.mubr.f32.mxu0 0.0
  %5760 = vmatmul.mubr.f32.gmra.mrb[0].mxu0 %v5436
  %v5761 = vpop.f32.mrb[0].mxu0
  %v5762 = vadd.f32 %v5669, %v5761
  %v5763 = vpop.f32.mrb[0].mxu0
  %5764 = vmatprep.mubr.f32.mxu0 0.0
  %5765 = vmatmul.mubr.f32.gmra.mrb[0].mxu0 %v5439
  %v5766 = vpop.f32.mrb[0].mxu0
  %v5767 = vadd.f32 %v5669, %v5766
  %v5768 = vpop.f32.mrb[0].mxu0
  %5769 = vmatprep.mubr.f32.mxu0 0.0
  %5770 = vmatmul.mubr.f32.gmra.mrb[0].mxu0 %v5442
  %v5771 = vpop.f32.mrb[0].mxu0
  %v5772 = vadd.f32 %v5669, %v5771
  %v5773 = vpop.f32.mrb[0].mxu0
  %5774 = vdwg.mxu0
  %v5776 = vsel %vm293, %v5549, 0
  %v5779 = vsel %vm293, %v5550, 0
  %v5782 = vsel %vm293, %v5551, 0
  %v5785 = vsel %vm293, %v5552, 0
  %v5788 = vsel %vm293, %v5553, 0
  %v5791 = vsel %vm293, %v5554, 0
  %v5794 = vsel %vm293, %v5555, 0
  %v5797 = vsel %vm293, %v5556, 0
  %v5800 = vsel %vm293, %v5628, 0
  %v5803 = vsel %vm293, %v5633, 0
  %v5806 = vsel %vm293, %v5638, 0
  %v5809 = vsel %vm293, %v5643, 0
  %v5812 = vsel %vm293, %v5648, 0
  %v5815 = vsel %vm293, %v5653, 0
  %v5818 = vsel %vm293, %v5658, 0
  %v5821 = vsel %vm293, %v5663, 0
  %5823 = vmatprep.subr.mxu0 0.0
  %5824 = vmatpush1.xpose.msra.mxu0 %v5800
  %5825 = vmatprep.subr.mxu0 0.0
  %5826 = vmatpush1.xpose.msra.mxu0 %v5803
  %5827 = vmatprep.subr.mxu0 0.0
  %5828 = vmatpush1.xpose.msra.mxu0 %v5806
  %5829 = vmatprep.subr.mxu0 0.0
  %5830 = vmatpush1.xpose.msra.mxu0 %v5809
  %5831 = vmatprep.subr.mxu0 0.0
  %5832 = vmatpush1.xpose.msra.mxu0 %v5812
  %5833 = vmatprep.subr.mxu0 0.0
  %5834 = vmatpush1.xpose.msra.mxu0 %v5815
  %5835 = vmatprep.subr.mxu0 0.0
  %5836 = vmatpush1.xpose.msra.mxu0 %v5818
  %5837 = vmatprep.subr.mxu0 0.0
  %5838 = vmatpush1.xpose.msra.mxu0 %v5821
  %5839 = vmatprep.subr.mxu0 0.0
  %5840 = vmatpush1.xpose.msra.mxu0 0.0
  %5841 = vmatprep.subr.mxu0 0.0
  %5842 = vmatpush1.xpose.msra.mxu0 0.0
  %5843 = vmatprep.subr.mxu0 0.0
  %5844 = vmatpush1.xpose.msra.mxu0 0.0
  %5845 = vmatprep.subr.mxu0 0.0
  %5846 = vmatpush1.xpose.msra.mxu0 0.0
  %5847 = vmatprep.subr.mxu0 0.0
  %5848 = vmatpush1.xpose.msra.mxu0 0.0
  %5849 = vmatprep.subr.mxu0 0.0
  %5850 = vmatpush1.xpose.msra.mxu0 0.0
  %5851 = vmatprep.subr.mxu0 0.0
  %5852 = vmatpush1.xpose.msra.mxu0 0.0
  %5853 = vmatprep.subr.mxu0 0.0
  %5854 = vmatpush1.xpose.msra.mxu0 0.0
  %5855 = vmatprep.subr.mxu0 0.0
  %5856 = vmatpush1.xpose.msra.mxu0 0.0
  %5857 = vmatprep.subr.mxu0 0.0
  %5858 = vmatpush1.xpose.msra.mxu0 0.0
  %5859 = vmatprep.subr.mxu0 0.0
  %5860 = vmatpush1.xpose.msra.mxu0 0.0
  %5861 = vmatprep.subr.mxu0 0.0
  %5862 = vmatpush1.xpose.msra.mxu0 0.0
  %5863 = vmatprep.subr.mxu0 0.0
  %5864 = vmatpush1.xpose.msra.mxu0 0.0
  %5865 = vmatprep.subr.mxu0 0.0
  %5866 = vmatpush1.xpose.msra.mxu0 0.0
  %5867 = vmatprep.subr.mxu0 0.0
  %5868 = vmatpush1.xpose.msra.mxu0 0.0
  %5869 = vmatprep.subr.mxu0 0.0
  %5870 = vmatpush1.xpose.msra.mxu0 0.0
  %5871 = vmatprep.subr.mxu0 0.0
  %5872 = vmatpush1.xpose.msra.mxu0 0.0
  %5873 = vmatprep.subr.mxu0 0.0
  %5874 = vmatpush1.xpose.msra.mxu0 0.0
  %5875 = vmatprep.subr.mxu0 0.0
  %5876 = vmatpush1.xpose.msra.mxu0 0.0
  %5877 = vmatprep.subr.mxu0 0.0
  %5878 = vmatpush1.xpose.msra.mxu0 0.0
  %5879 = vmatprep.subr.mxu0 0.0
  %5880 = vmatpush1.xpose.msra.mxu0 0.0
  %5881 = vmatprep.subr.mxu0 0.0
  %5882 = vmatpush1.xpose.msra.mxu0 0.0
  %5883 = vmatprep.subr.mxu0 0.0
  %5884 = vmatpush1.xpose.msra.mxu0 0.0
  %5885 = vmatprep.subr.mxu0 0.0
  %5886 = vmatpush1.xpose.msra.mxu0 0.0
  %5887 = vmatprep.mubr.f32.mxu0 0.0
  %5888 = vmatmul.mubr.f32.gmra.mrb[0].mxu0 %v5776
  %v5889 = vpop.f32.mrb[0].mxu0
  %v5890 = vadd.f32 %v118, %v5889
  %v5891 = vpop.f32.mrb[0].mxu0
  %5892 = vmatprep.mubr.f32.mxu0 0.0
  %5893 = vmatmul.mubr.f32.gmra.mrb[0].mxu0 %v5779
  %v5894 = vpop.f32.mrb[0].mxu0
  %v5895 = vadd.f32 %v119, %v5894
  %v5896 = vpop.f32.mrb[0].mxu0
  %5897 = vmatprep.mubr.f32.mxu0 0.0
  %5898 = vmatmul.mubr.f32.gmra.mrb[0].mxu0 %v5782
  %v5899 = vpop.f32.mrb[0].mxu0
  %v5900 = vadd.f32 %v120, %v5899
  %v5901 = vpop.f32.mrb[0].mxu0
  %5902 = vmatprep.mubr.f32.mxu0 0.0
  %5903 = vmatmul.mubr.f32.gmra.mrb[0].mxu0 %v5785
  %v5904 = vpop.f32.mrb[0].mxu0
  %v5905 = vadd.f32 %v121, %v5904
  %v5906 = vpop.f32.mrb[0].mxu0
  %5907 = vmatprep.mubr.f32.mxu0 0.0
  %5908 = vmatmul.mubr.f32.gmra.mrb[0].mxu0 %v5788
  %v5909 = vpop.f32.mrb[0].mxu0
  %v5910 = vadd.f32 %v122, %v5909
  %v5911 = vpop.f32.mrb[0].mxu0
  %5912 = vmatprep.mubr.f32.mxu0 0.0
  %5913 = vmatmul.mubr.f32.gmra.mrb[0].mxu0 %v5791
  %v5914 = vpop.f32.mrb[0].mxu0
  %v5915 = vadd.f32 %v123, %v5914
  %v5916 = vpop.f32.mrb[0].mxu0
  %5917 = vmatprep.mubr.f32.mxu0 0.0
  %5918 = vmatmul.mubr.f32.gmra.mrb[0].mxu0 %v5794
  %v5919 = vpop.f32.mrb[0].mxu0
  %v5920 = vadd.f32 %v124, %v5919
  %v5921 = vpop.f32.mrb[0].mxu0
  %5922 = vmatprep.mubr.f32.mxu0 0.0
  %5923 = vmatmul.mubr.f32.gmra.mrb[0].mxu0 %v5797
  %v5924 = vpop.f32.mrb[0].mxu0
  %v5925 = vadd.f32 %v125, %v5924
  %v5926 = vpop.f32.mrb[0].mxu0
  %5927 = vdwg.mxu0
  %v5928 = vsel %vm802, %v5890, -inf
  %5929 = vmax.xlane.f32.xlu0 %v5928
  %v5930 = vpop.xlane.xlu0 %5929
  %v5931 = vsel %vm802, %v5895, -inf
  %5932 = vmax.xlane.f32.xlu0 %v5931
  %v5933 = vpop.xlane.xlu0 %5932
  %v5934 = vsel %vm802, %v5900, -inf
  %5935 = vmax.xlane.f32.xlu0 %v5934
  %v5936 = vpop.xlane.xlu0 %5935
  %v5937 = vsel %vm802, %v5905, -inf
  %5938 = vmax.xlane.f32.xlu0 %v5937
  %v5939 = vpop.xlane.xlu0 %5938
  %v5940 = vsel %vm802, %v5910, -inf
  %5941 = vmax.xlane.f32.xlu0 %v5940
  %v5942 = vpop.xlane.xlu0 %5941
  %v5943 = vsel %vm802, %v5915, -inf
  %5944 = vmax.xlane.f32.xlu0 %v5943
  %v5945 = vpop.xlane.xlu0 %5944
  %v5946 = vsel %vm802, %v5920, -inf
  %5947 = vmax.xlane.f32.xlu0 %v5946
  %v5948 = vpop.xlane.xlu0 %5947
  %v5949 = vsel %vm802, %v5925, -inf
  %5950 = vmax.xlane.f32.xlu0 %v5949
  %v5951 = vpop.xlane.xlu0 %5950
  %v5952 = vsub.f32 %v5890, %v5930
  %v5953 = vsub.f32 %v5895, %v5933
  %v5954 = vsub.f32 %v5900, %v5936
  %v5955 = vsub.f32 %v5905, %v5939
  %v5956 = vsub.f32 %v5910, %v5942
  %v5957 = vsub.f32 %v5915, %v5945
  %v5958 = vsub.f32 %v5920, %v5948
  %v5959 = vsub.f32 %v5925, %v5951
  %v5960 = vmul.f32 %v5952, 1.442695
  %v5961 = vpow.pop %v5960
  %v5962 = vmul.f32 %v5953, 1.442695
  %v5963 = vpow.pop %v5962
  %v5964 = vmul.f32 %v5954, 1.442695
  %v5965 = vpow.pop %v5964
  %v5966 = vmul.f32 %v5955, 1.442695
  %v5967 = vpow.pop %v5966
  %v5968 = vmul.f32 %v5956, 1.442695
  %v5969 = vpow.pop %v5968
  %v5970 = vmul.f32 %v5957, 1.442695
  %v5971 = vpow.pop %v5970
  %v5972 = vmul.f32 %v5958, 1.442695
  %v5973 = vpow.pop %v5972
  %v5974 = vmul.f32 %v5959, 1.442695
  %v5975 = vpow.pop %v5974
  %v5976 = vsel %vm802, %v5961, 0.0
  %5977 = vadd.xlane.f32.xlu0 %v5976
  %v5978 = vpop.xlane.xlu0 %5977
  %v5979 = vsel %vm802, %v5963, 0.0
  %5980 = vadd.xlane.f32.xlu0 %v5979
  %v5981 = vpop.xlane.xlu0 %5980
  %v5982 = vsel %vm802, %v5965, 0.0
  %5983 = vadd.xlane.f32.xlu0 %v5982
  %v5984 = vpop.xlane.xlu0 %5983
  %v5985 = vsel %vm802, %v5967, 0.0
  %5986 = vadd.xlane.f32.xlu0 %v5985
  %v5987 = vpop.xlane.xlu0 %5986
  %v5988 = vsel %vm802, %v5969, 0.0
  %5989 = vadd.xlane.f32.xlu0 %v5988
  %v5990 = vpop.xlane.xlu0 %5989
  %v5991 = vsel %vm802, %v5971, 0.0
  %5992 = vadd.xlane.f32.xlu0 %v5991
  %v5993 = vpop.xlane.xlu0 %5992
  %v5994 = vsel %vm802, %v5973, 0.0
  %5995 = vadd.xlane.f32.xlu0 %v5994
  %v5996 = vpop.xlane.xlu0 %5995
  %v5997 = vsel %vm802, %v5975, 0.0
  %5998 = vadd.xlane.f32.xlu0 %v5997
  %v5999 = vpop.xlane.xlu0 %5998
  %v6000 = vrcp.pop %v5978
  %v6001 = vmul.f32 %v5961, %v6000
  %v6002 = vrcp.pop %v5981
  %v6003 = vmul.f32 %v5963, %v6002
  %v6004 = vrcp.pop %v5984
  %v6005 = vmul.f32 %v5965, %v6004
  %v6006 = vrcp.pop %v5987
  %v6007 = vmul.f32 %v5967, %v6006
  %v6008 = vrcp.pop %v5990
  %v6009 = vmul.f32 %v5969, %v6008
  %v6010 = vrcp.pop %v5993
  %v6011 = vmul.f32 %v5971, %v6010
  %v6012 = vrcp.pop %v5996
  %v6013 = vmul.f32 %v5973, %v6012
  %v6014 = vrcp.pop %v5999
  %v6015 = vmul.f32 %v5975, %v6014
  %v6017 = vsel %vm802, %v6001, 0
  %v6020 = vsel %vm802, %v6003, 0
  %v6023 = vsel %vm802, %v6005, 0
  %v6026 = vsel %vm802, %v6007, 0
  %v6029 = vsel %vm802, %v6009, 0
  %v6032 = vsel %vm802, %v6011, 0
  %v6035 = vsel %vm802, %v6013, 0
  %v6038 = vsel %vm802, %v6015, 0
  %6040 = vmatprep.subr.mxu0 0.0
  %6041 = vmatpush1.msra.mxu0 %v5737
  %6042 = vmatprep.subr.mxu0 0.0
  %6043 = vmatpush1.msra.mxu0 %v5742
  %6044 = vmatprep.subr.mxu0 0.0
  %6045 = vmatpush1.msra.mxu0 %v5747
  %6046 = vmatprep.subr.mxu0 0.0
  %6047 = vmatpush1.msra.mxu0 %v5752
  %6048 = vmatprep.subr.mxu0 0.0
  %6049 = vmatpush1.msra.mxu0 %v5757
  %6050 = vmatprep.subr.mxu0 0.0
  %6051 = vmatpush1.msra.mxu0 %v5762
  %6052 = vmatprep.subr.mxu0 0.0
  %6053 = vmatpush1.msra.mxu0 %v5767
  %6054 = vmatprep.subr.mxu0 0.0
  %6055 = vmatpush1.msra.mxu0 %v5772
  %6056 = vmatprep.subr.mxu0 0.0
  %6057 = vmatpush1.msra.mxu0 0.0
  %6058 = vmatprep.subr.mxu0 0.0
  %6059 = vmatpush1.msra.mxu0 0.0
  %6060 = vmatprep.subr.mxu0 0.0
  %6061 = vmatpush1.msra.mxu0 0.0
  %6062 = vmatprep.subr.mxu0 0.0
  %6063 = vmatpush1.msra.mxu0 0.0
  %6064 = vmatprep.subr.mxu0 0.0
  %6065 = vmatpush1.msra.mxu0 0.0
  %6066 = vmatprep.subr.mxu0 0.0
  %6067 = vmatpush1.msra.mxu0 0.0
  %6068 = vmatprep.subr.mxu0 0.0
  %6069 = vmatpush1.msra.mxu0 0.0
  %6070 = vmatprep.subr.mxu0 0.0
  %6071 = vmatpush1.msra.mxu0 0.0
  %6072 = vmatprep.subr.mxu0 0.0
  %6073 = vmatpush1.msra.mxu0 0.0
  %6074 = vmatprep.subr.mxu0 0.0
  %6075 = vmatpush1.msra.mxu0 0.0
  %6076 = vmatprep.subr.mxu0 0.0
  %6077 = vmatpush1.msra.mxu0 0.0
  %6078 = vmatprep.subr.mxu0 0.0
  %6079 = vmatpush1.msra.mxu0 0.0
  %6080 = vmatprep.subr.mxu0 0.0
  %6081 = vmatpush1.msra.mxu0 0.0
  %6082 = vmatprep.subr.mxu0 0.0
  %6083 = vmatpush1.msra.mxu0 0.0
  %6084 = vmatprep.subr.mxu0 0.0
  %6085 = vmatpush1.msra.mxu0 0.0
  %6086 = vmatprep.subr.mxu0 0.0
  %6087 = vmatpush1.msra.mxu0 0.0
  %6088 = vmatprep.subr.mxu0 0.0
  %6089 = vmatpush1.msra.mxu0 0.0
  %6090 = vmatprep.subr.mxu0 0.0
  %6091 = vmatpush1.msra.mxu0 0.0
  %6092 = vmatprep.subr.mxu0 0.0
  %6093 = vmatpush1.msra.mxu0 0.0
  %6094 = vmatprep.subr.mxu0 0.0
  %6095 = vmatpush1.msra.mxu0 0.0
  %6096 = vmatprep.subr.mxu0 0.0
  %6097 = vmatpush1.msra.mxu0 0.0
  %6098 = vmatprep.subr.mxu0 0.0
  %6099 = vmatpush1.msra.mxu0 0.0
  %6100 = vmatprep.subr.mxu0 0.0
  %6101 = vmatpush1.msra.mxu0 0.0
  %6102 = vmatprep.subr.mxu0 0.0
  %6103 = vmatpush1.msra.mxu0 0.0
  %6104 = vmatprep.mubr.f32.mxu0 0.0
  %6105 = vmatmul.mubr.f32.gmra.mrb[0].mxu0 %v6017
  %v6106 = vpop.f32.mrb[0].mxu0
  %v6107 = vadd.f32 0.0, %v6106
  %v6108 = vpop.f32.mrb[0].mxu0
  %6109 = vmatprep.mubr.f32.mxu0 0.0
  %6110 = vmatmul.mubr.f32.gmra.mrb[0].mxu0 %v6020
  %v6111 = vpop.f32.mrb[0].mxu0
  %v6112 = vadd.f32 0.0, %v6111
  %v6113 = vpop.f32.mrb[0].mxu0
  %6114 = vmatprep.mubr.f32.mxu0 0.0
  %6115 = vmatmul.mubr.f32.gmra.mrb[0].mxu0 %v6023
  %v6116 = vpop.f32.mrb[0].mxu0
  %v6117 = vadd.f32 0.0, %v6116
  %v6118 = vpop.f32.mrb[0].mxu0
  %6119 = vmatprep.mubr.f32.mxu0 0.0
  %6120 = vmatmul.mubr.f32.gmra.mrb[0].mxu0 %v6026
  %v6121 = vpop.f32.mrb[0].mxu0
  %v6122 = vadd.f32 0.0, %v6121
  %v6123 = vpop.f32.mrb[0].mxu0
  %6124 = vmatprep.mubr.f32.mxu0 0.0
  %6125 = vmatmul.mubr.f32.gmra.mrb[0].mxu0 %v6029
  %v6126 = vpop.f32.mrb[0].mxu0
  %v6127 = vadd.f32 0.0, %v6126
  %v6128 = vpop.f32.mrb[0].mxu0
  %6129 = vmatprep.mubr.f32.mxu0 0.0
  %6130 = vmatmul.mubr.f32.gmra.mrb[0].mxu0 %v6032
  %v6131 = vpop.f32.mrb[0].mxu0
  %v6132 = vadd.f32 0.0, %v6131
  %v6133 = vpop.f32.mrb[0].mxu0
  %6134 = vmatprep.mubr.f32.mxu0 0.0
  %6135 = vmatmul.mubr.f32.gmra.mrb[0].mxu0 %v6035
  %v6136 = vpop.f32.mrb[0].mxu0
  %v6137 = vadd.f32 0.0, %v6136
  %v6138 = vpop.f32.mrb[0].mxu0
  %6139 = vmatprep.mubr.f32.mxu0 0.0
  %6140 = vmatmul.mubr.f32.gmra.mrb[0].mxu0 %v6038
  %v6141 = vpop.f32.mrb[0].mxu0
  %v6142 = vadd.f32 0.0, %v6141
  %v6143 = vpop.f32.mrb[0].mxu0
  %6144 = vdwg.mxu0
  %v6145 = vmul.f32 %v6107, %v102
  %v6146 = vmul.f32 %v6112, %v103
  %v6147 = vmul.f32 %v6117, %v104
  %v6148 = vmul.f32 %v6122, %v105
  %v6149 = vmul.f32 %v6127, %v106
  %v6150 = vmul.f32 %v6132, %v107
  %v6151 = vmul.f32 %v6137, %v108
  %v6152 = vmul.f32 %v6142, %v109
  %6153 = vmatprep.subr.mxu0 0.0
  %6154 = vmatpush1.msra.mxu0 %v6145
  %6155 = vmatprep.subr.mxu0 0.0
  %6156 = vmatpush1.msra.mxu0 %v6146
  %6157 = vmatprep.subr.mxu0 0.0
  %6158 = vmatpush1.msra.mxu0 %v6147
  %6159 = vmatprep.subr.mxu0 0.0
  %6160 = vmatpush1.msra.mxu0 %v6148
  %6161 = vmatprep.subr.mxu0 0.0
  %6162 = vmatpush1.msra.mxu0 %v6149
  %6163 = vmatprep.subr.mxu0 0.0
  %6164 = vmatpush1.msra.mxu0 %v6150
  %6165 = vmatprep.subr.mxu0 0.0
  %6166 = vmatpush1.msra.mxu0 %v6151
  %6167 = vmatprep.subr.mxu0 0.0
  %6168 = vmatpush1.msra.mxu0 %v6152
  %6169 = vmatprep.subr.mxu0 0.0
  %6170 = vmatpush1.msra.mxu0 0.0
  %6171 = vmatprep.subr.mxu0 0.0
  %6172 = vmatpush1.msra.mxu0 0.0
  %6173 = vmatprep.subr.mxu0 0.0
  %6174 = vmatpush1.msra.mxu0 0.0
  %6175 = vmatprep.subr.mxu0 0.0
  %6176 = vmatpush1.msra.mxu0 0.0
  %6177 = vmatprep.subr.mxu0 0.0
  %6178 = vmatpush1.msra.mxu0 0.0
  %6179 = vmatprep.subr.mxu0 0.0
  %6180 = vmatpush1.msra.mxu0 0.0
  %6181 = vmatprep.subr.mxu0 0.0
  %6182 = vmatpush1.msra.mxu0 0.0
  %6183 = vmatprep.subr.mxu0 0.0
  %6184 = vmatpush1.msra.mxu0 0.0
  %6185 = vmatprep.subr.mxu0 0.0
  %6186 = vmatpush1.msra.mxu0 0.0
  %6187 = vmatprep.subr.mxu0 0.0
  %6188 = vmatpush1.msra.mxu0 0.0
  %6189 = vmatprep.subr.mxu0 0.0
  %6190 = vmatpush1.msra.mxu0 0.0
  %6191 = vmatprep.subr.mxu0 0.0
  %6192 = vmatpush1.msra.mxu0 0.0
  %6193 = vmatprep.subr.mxu0 0.0
  %6194 = vmatpush1.msra.mxu0 0.0
  %6195 = vmatprep.subr.mxu0 0.0
  %6196 = vmatpush1.msra.mxu0 0.0
  %6197 = vmatprep.subr.mxu0 0.0
  %6198 = vmatpush1.msra.mxu0 0.0
  %6199 = vmatprep.subr.mxu0 0.0
  %6200 = vmatpush1.msra.mxu0 0.0
  %6201 = vmatprep.subr.mxu0 0.0
  %6202 = vmatpush1.msra.mxu0 0.0
  %6203 = vmatprep.subr.mxu0 0.0
  %6204 = vmatpush1.msra.mxu0 0.0
  %6205 = vmatprep.subr.mxu0 0.0
  %6206 = vmatpush1.msra.mxu0 0.0
  %6207 = vmatprep.subr.mxu0 0.0
  %6208 = vmatpush1.msra.mxu0 0.0
  %6209 = vmatprep.subr.mxu0 0.0
  %6210 = vmatpush1.msra.mxu0 0.0
  %6211 = vmatprep.subr.mxu0 0.0
  %6212 = vmatpush1.msra.mxu0 0.0
  %6213 = vmatprep.subr.mxu0 0.0
  %6214 = vmatpush1.msra.mxu0 0.0
  %6215 = vmatprep.subr.mxu0 0.0
  %6216 = vmatpush1.msra.mxu0 0.0
  %6217 = vmatprep.mubr.f32.mxu0 0.0
  %6218 = vmatmul.mubr.f32.gmra.mrb[0].mxu0 %v3760
  %v6219 = vpop.f32.mrb[0].mxu0
  %v6220 = vadd.f32 0.0, %v6219
  %v6221 = vpop.f32.mrb[0].mxu0
  %6222 = vmatprep.mubr.f32.mxu0 0.0
  %6223 = vmatmul.mubr.f32.gmra.mrb[0].mxu0 %v3763
  %v6224 = vpop.f32.mrb[0].mxu0
  %v6225 = vadd.f32 0.0, %v6224
  %v6226 = vpop.f32.mrb[0].mxu0
  %6227 = vdwg.mxu0
  %v6228 = vlaneseq
  %v6229 = vshrl.u32 %v6228, 7
  %v6230 = vsub.s32 0, %v6229
  %v6231 = vrot.slane %v5415, %v6230
  %v6233 = vsel %vm293, %v6220, 0
  %v6236 = vsel %vm293, %v6225, 0
  %6238 = vmatprep.subr.mxu0 0.0
  %6239 = vmatpush1.msra.mxu0 %v5411
  %6240 = vmatprep.subr.mxu0 0.0
  %6241 = vmatpush1.msra.mxu0 %v5412
  %6242 = vmatprep.subr.mxu0 0.0
  %6243 = vmatpush1.msra.mxu0 %v5413
  %6244 = vmatprep.subr.mxu0 0.0
  %6245 = vmatpush1.msra.mxu0 %v5414
  %6246 = vmatprep.subr.mxu0 0.0
  %6247 = vmatpush1.msra.mxu0 0.0
  %6248 = vmatprep.subr.mxu0 0.0
  %6249 = vmatpush1.msra.mxu0 0.0
  %6250 = vmatprep.subr.mxu0 0.0
  %6251 = vmatpush1.msra.mxu0 0.0
  %6252 = vmatprep.subr.mxu0 0.0
  %6253 = vmatpush1.msra.mxu0 0.0
  %6254 = vmatprep.subr.mxu0 0.0
  %6255 = vmatpush1.msra.mxu0 0.0
  %6256 = vmatprep.subr.mxu0 0.0
  %6257 = vmatpush1.msra.mxu0 0.0
  %6258 = vmatprep.subr.mxu0 0.0
  %6259 = vmatpush1.msra.mxu0 0.0
  %6260 = vmatprep.subr.mxu0 0.0
  %6261 = vmatpush1.msra.mxu0 0.0
  %6262 = vmatprep.subr.mxu0 0.0
  %6263 = vmatpush1.msra.mxu0 0.0
  %6264 = vmatprep.subr.mxu0 0.0
  %6265 = vmatpush1.msra.mxu0 0.0
  %6266 = vmatprep.subr.mxu0 0.0
  %6267 = vmatpush1.msra.mxu0 0.0
  %6268 = vmatprep.subr.mxu0 0.0
  %6269 = vmatpush1.msra.mxu0 0.0
  %6270 = vmatprep.subr.mxu0 0.0
  %6271 = vmatpush1.msra.mxu0 0.0
  %6272 = vmatprep.subr.mxu0 0.0
  %6273 = vmatpush1.msra.mxu0 0.0
  %6274 = vmatprep.subr.mxu0 0.0
  %6275 = vmatpush1.msra.mxu0 0.0
  %6276 = vmatprep.subr.mxu0 0.0
  %6277 = vmatpush1.msra.mxu0 0.0
  %6278 = vmatprep.subr.mxu0 0.0
  %6279 = vmatpush1.msra.mxu0 0.0
  %6280 = vmatprep.subr.mxu0 0.0
  %6281 = vmatpush1.msra.mxu0 0.0
  %6282 = vmatprep.subr.mxu0 0.0
  %6283 = vmatpush1.msra.mxu0 0.0
  %6284 = vmatprep.subr.mxu0 0.0
  %6285 = vmatpush1.msra.mxu0 0.0
  %6286 = vmatprep.subr.mxu0 0.0
  %6287 = vmatpush1.msra.mxu0 0.0
  %6288 = vmatprep.subr.mxu0 0.0
  %6289 = vmatpush1.msra.mxu0 0.0
  %6290 = vmatprep.subr.mxu0 0.0
  %6291 = vmatpush1.msra.mxu0 0.0
  %6292 = vmatprep.subr.mxu0 0.0
  %6293 = vmatpush1.msra.mxu0 0.0
  %6294 = vmatprep.subr.mxu0 0.0
  %6295 = vmatpush1.msra.mxu0 0.0
  %6296 = vmatprep.subr.mxu0 0.0
  %6297 = vmatpush1.msra.mxu0 0.0
  %6298 = vmatprep.subr.mxu0 0.0
  %6299 = vmatpush1.msra.mxu0 0.0
  %6300 = vmatprep.subr.mxu0 0.0
  %6301 = vmatpush1.msra.mxu0 0.0
  %6302 = vmatprep.mubr.f32.mxu0 0.0
  %6303 = vmatmul.mubr.f32.gmra.mrb[0].mxu0 %v6233
  %v6304 = vpop.f32.mrb[0].mxu0
  %v6305 = vadd.f32 %v6231, %v6304
  %v6306 = vpop.f32.mrb[0].mxu0
  %6307 = vmatprep.mubr.f32.mxu0 0.0
  %6308 = vmatmul.mubr.f32.gmra.mrb[0].mxu0 %v6236
  %v6309 = vpop.f32.mrb[0].mxu0
  %v6310 = vadd.f32 %v6231, %v6309
  %v6311 = vpop.f32.mrb[0].mxu0
  %6312 = vdwg.mxu0
  %v6313 = vadd.f32 %v5285, %v6305
  %v6314 = vadd.f32 %v5286, %v6310
  %v6315 = vld [vmem:[%s19 + $0x13] sm:$0x1]
  %v6316 = vld [vmem:[%s19 + $0x14] sm:$0x1]
  %v6317 = vsel %vm293, %v6313, 0.0
  %6318 = vadd.xlane.f32.xlu0 %v6317
  %v6319 = vpop.xlane.xlu0 %6318
  %v6320 = vsel %vm293, %v6314, 0.0
  %6321 = vadd.xlane.f32.xlu0 %v6320
  %v6322 = vpop.xlane.xlu0 %6321
  %v6323 = vmul.f32 %v6319, %v1204
  %v6324 = vmul.f32 %v6322, %v1204
  %v6325 = vsub.f32 %v6313, %v6323
  %v6326 = vsub.f32 %v6314, %v6324
  %v6327 = vmul.f32 %v6325, %v6325
  %v6328 = vmul.f32 %v6326, %v6326
  %v6329 = vsel %vm293, %v6327, 0.0
  %6330 = vadd.xlane.f32.xlu0 %v6329
  %v6331 = vpop.xlane.xlu0 %6330
  %v6332 = vsel %vm293, %v6328, 0.0
  %6333 = vadd.xlane.f32.xlu0 %v6332
  %v6334 = vpop.xlane.xlu0 %6333
  %v6335 = vmul.f32 %v6331, %v1204
  %v6336 = vmul.f32 %v6334, %v1204
  %v6337 = vadd.f32 %v6335, 1e-05
  %v6338 = vadd.f32 %v6336, 1e-05
  %v6339 = vrsqrt.pop %v6337
  %v6340 = vrsqrt.pop %v6338
  %v6341 = vmul.f32 %v6325, %v6339
  %v6342 = vmul.f32 %v6326, %v6340
  %v6343 = vlaneseq
  %v6344 = vshrl.u32 %v6343, 7
  %v6345 = vsub.s32 0, %v6344
  %v6346 = vrot.slane %v6315, %v6345
  %v6347 = vmul.f32 %v6341, %v6346
  %v6348 = vmul.f32 %v6342, %v6346
  %v6349 = vlaneseq
  %v6350 = vshrl.u32 %v6349, 7
  %v6351 = vsub.s32 0, %v6350
  %v6352 = vrot.slane %v6316, %v6351
  %v6353 = vadd.f32 %v6347, %v6352
  %v6354 = vadd.f32 %v6348, %v6352
  %6355 = vmatprep.subr.mxu0 0.0
  %6356 = vmatpush1.msra.mxu0 %v6353
  %6357 = vmatprep.subr.mxu0 0.0
  %6358 = vmatpush1.msra.mxu0 %v6354
  %6359 = vmatprep.subr.mxu0 0.0
  %6360 = vmatpush1.msra.mxu0 0.0
  %6361 = vmatprep.subr.mxu0 0.0
  %6362 = vmatpush1.msra.mxu0 0.0
  %6363 = vmatprep.subr.mxu0 0.0
  %6364 = vmatpush1.msra.mxu0 0.0
  %6365 = vmatprep.subr.mxu0 0.0
  %6366 = vmatpush1.msra.mxu0 0.0
  %6367 = vmatprep.subr.mxu0 0.0
  %6368 = vmatpush1.msra.mxu0 0.0
  %6369 = vmatprep.subr.mxu0 0.0
  %6370 = vmatpush1.msra.mxu0 0.0
  %6371 = vmatprep.subr.mxu0 0.0
  %6372 = vmatpush1.msra.mxu0 0.0
  %6373 = vmatprep.subr.mxu0 0.0
  %6374 = vmatpush1.msra.mxu0 0.0
  %6375 = vmatprep.subr.mxu0 0.0
  %6376 = vmatpush1.msra.mxu0 0.0
  %6377 = vmatprep.subr.mxu0 0.0
  %6378 = vmatpush1.msra.mxu0 0.0
  %6379 = vmatprep.subr.mxu0 0.0
  %6380 = vmatpush1.msra.mxu0 0.0
  %6381 = vmatprep.subr.mxu0 0.0
  %6382 = vmatpush1.msra.mxu0 0.0
  %6383 = vmatprep.subr.mxu0 0.0
  %6384 = vmatpush1.msra.mxu0 0.0
  %6385 = vmatprep.subr.mxu0 0.0
  %6386 = vmatpush1.msra.mxu0 0.0
  %6387 = vmatprep.subr.mxu0 0.0
  %6388 = vmatpush1.msra.mxu0 0.0
  %6389 = vmatprep.subr.mxu0 0.0
  %6390 = vmatpush1.msra.mxu0 0.0
  %6391 = vmatprep.subr.mxu0 0.0
  %6392 = vmatpush1.msra.mxu0 0.0
  %6393 = vmatprep.subr.mxu0 0.0
  %6394 = vmatpush1.msra.mxu0 0.0
  %6395 = vmatprep.subr.mxu0 0.0
  %6396 = vmatpush1.msra.mxu0 0.0
  %6397 = vmatprep.subr.mxu0 0.0
  %6398 = vmatpush1.msra.mxu0 0.0
  %6399 = vmatprep.subr.mxu0 0.0
  %6400 = vmatpush1.msra.mxu0 0.0
  %6401 = vmatprep.subr.mxu0 0.0
  %6402 = vmatpush1.msra.mxu0 0.0
  %6403 = vmatprep.subr.mxu0 0.0
  %6404 = vmatpush1.msra.mxu0 0.0
  %6405 = vmatprep.subr.mxu0 0.0
  %6406 = vmatpush1.msra.mxu0 0.0
  %6407 = vmatprep.subr.mxu0 0.0
  %6408 = vmatpush1.msra.mxu0 0.0
  %6409 = vmatprep.subr.mxu0 0.0
  %6410 = vmatpush1.msra.mxu0 0.0
  %6411 = vmatprep.subr.mxu0 0.0
  %6412 = vmatpush1.msra.mxu0 0.0
  %6413 = vmatprep.subr.mxu0 0.0
  %6414 = vmatpush1.msra.mxu0 0.0
  %6415 = vmatprep.subr.mxu0 0.0
  %6416 = vmatpush1.msra.mxu0 0.0
  %6417 = vmatprep.subr.mxu0 0.0
  %6418 = vmatpush1.msra.mxu0 0.0
  %6419 = vmatprep.mubr.f32.mxu0 0.0
  %6420 = vmatmul.mubr.f32.gmra.mrb[0].mxu0 %v2871
  %v6421 = vpop.f32.mrb[0].mxu0
  %v6422 = vadd.f32 0.0, %v6421
  %v6423 = vpop.f32.mrb[0].mxu0
  %6424 = vmatprep.mubr.f32.mxu0 0.0
  %6425 = vmatmul.mubr.f32.gmra.mrb[0].mxu0 %v2874
  %v6426 = vpop.f32.mrb[0].mxu0
  %v6427 = vadd.f32 0.0, %v6426
  %v6428 = vpop.f32.mrb[0].mxu0
  %6429 = vmatprep.mubr.f32.mxu0 0.0
  %6430 = vmatmul.mubr.f32.gmra.mrb[0].mxu0 %v2877
  %v6431 = vpop.f32.mrb[0].mxu0
  %v6432 = vadd.f32 0.0, %v6431
  %v6433 = vpop.f32.mrb[0].mxu0
  %6434 = vmatprep.mubr.f32.mxu0 0.0
  %6435 = vmatmul.mubr.f32.gmra.mrb[0].mxu0 %v2880
  %v6436 = vpop.f32.mrb[0].mxu0
  %v6437 = vadd.f32 0.0, %v6436
  %v6438 = vpop.f32.mrb[0].mxu0
  %6439 = vmatprep.mubr.f32.mxu0 0.0
  %6440 = vmatmul.mubr.f32.gmra.mrb[0].mxu0 %v2883
  %v6441 = vpop.f32.mrb[0].mxu0
  %v6442 = vadd.f32 0.0, %v6441
  %v6443 = vpop.f32.mrb[0].mxu0
  %6444 = vmatprep.mubr.f32.mxu0 0.0
  %6445 = vmatmul.mubr.f32.gmra.mrb[0].mxu0 %v2886
  %v6446 = vpop.f32.mrb[0].mxu0
  %v6447 = vadd.f32 0.0, %v6446
  %v6448 = vpop.f32.mrb[0].mxu0
  %6449 = vmatprep.mubr.f32.mxu0 0.0
  %6450 = vmatmul.mubr.f32.gmra.mrb[0].mxu0 %v2889
  %v6451 = vpop.f32.mrb[0].mxu0
  %v6452 = vadd.f32 0.0, %v6451
  %v6453 = vpop.f32.mrb[0].mxu0
  %6454 = vmatprep.mubr.f32.mxu0 0.0
  %6455 = vmatmul.mubr.f32.gmra.mrb[0].mxu0 %v2892
  %v6456 = vpop.f32.mrb[0].mxu0
  %v6457 = vadd.f32 0.0, %v6456
  %v6458 = vpop.f32.mrb[0].mxu0
  %6459 = vdwg.mxu0
  %s6460 = scalar_lea.vmem %s16, 384
  %v6461 = vld [vmem:[%s6460] sm:$0xff]
  %v6462 = vld [vmem:[%s6460 + $0x8] sm:$0xff]
  %v6463 = vld [vmem:[%s6460 + $0x10] sm:$0xff]
  %v6464 = vld [vmem:[%s6460 + $0x18] sm:$0xff]
  %v6465 = vld [vmem:[%s19 + $0x15] sm:$0x1]
  %s6466 = scalar_lea.vmem %s16, 416
  %v6467 = vld [vmem:[%s6466] sm:$0xff]
  %v6468 = vld [vmem:[%s6466 + $0x8] sm:$0xff]
  %v6469 = vld [vmem:[%s6466 + $0x10] sm:$0xff]
  %v6470 = vld [vmem:[%s6466 + $0x18] sm:$0xff]
  %v6471 = vld [vmem:[%s19 + $0x16] sm:$0x1]
  %s6472 = scalar_lea.vmem %s16, 448
  %v6473 = vld [vmem:[%s6472] sm:$0xff]
  %v6474 = vld [vmem:[%s6472 + $0x8] sm:$0xff]
  %v6475 = vld [vmem:[%s6472 + $0x10] sm:$0xff]
  %v6476 = vld [vmem:[%s6472 + $0x18] sm:$0xff]
  %v6477 = vld [vmem:[%s19 + $0x17] sm:$0x1]
  %s6478 = scalar_lea.vmem %s16, 480
  %v6479 = vld [vmem:[%s6478] sm:$0xff]
  %v6480 = vld [vmem:[%s6478 + $0x8] sm:$0xff]
  %v6481 = vld [vmem:[%s6478 + $0x10] sm:$0xff]
  %v6482 = vld [vmem:[%s6478 + $0x18] sm:$0xff]
  %v6483 = vld [vmem:[%s19 + $0x18] sm:$0x1]
  %v6484 = vlaneseq
  %v6485 = vshrl.u32 %v6484, 7
  %v6486 = vsub.s32 0, %v6485
  %v6487 = vrot.slane %v6465, %v6486
  %v6489 = vsel %vm293, %v6422, 0
  %v6492 = vsel %vm293, %v6427, 0
  %v6495 = vsel %vm293, %v6432, 0
  %v6498 = vsel %vm293, %v6437, 0
  %v6501 = vsel %vm293, %v6442, 0
  %v6504 = vsel %vm293, %v6447, 0
  %v6507 = vsel %vm293, %v6452, 0
  %v6510 = vsel %vm293, %v6457, 0
  %6512 = vmatprep.subr.mxu0 0.0
  %6513 = vmatpush1.msra.mxu0 %v6461
  %6514 = vmatprep.subr.mxu0 0.0
  %6515 = vmatpush1.msra.mxu0 %v6462
  %6516 = vmatprep.subr.mxu0 0.0
  %6517 = vmatpush1.msra.mxu0 %v6463
  %6518 = vmatprep.subr.mxu0 0.0
  %6519 = vmatpush1.msra.mxu0 %v6464
  %6520 = vmatprep.subr.mxu0 0.0
  %6521 = vmatpush1.msra.mxu0 0.0
  %6522 = vmatprep.subr.mxu0 0.0
  %6523 = vmatpush1.msra.mxu0 0.0
  %6524 = vmatprep.subr.mxu0 0.0
  %6525 = vmatpush1.msra.mxu0 0.0
  %6526 = vmatprep.subr.mxu0 0.0
  %6527 = vmatpush1.msra.mxu0 0.0
  %6528 = vmatprep.subr.mxu0 0.0
  %6529 = vmatpush1.msra.mxu0 0.0
  %6530 = vmatprep.subr.mxu0 0.0
  %6531 = vmatpush1.msra.mxu0 0.0
  %6532 = vmatprep.subr.mxu0 0.0
  %6533 = vmatpush1.msra.mxu0 0.0
  %6534 = vmatprep.subr.mxu0 0.0
  %6535 = vmatpush1.msra.mxu0 0.0
  %6536 = vmatprep.subr.mxu0 0.0
  %6537 = vmatpush1.msra.mxu0 0.0
  %6538 = vmatprep.subr.mxu0 0.0
  %6539 = vmatpush1.msra.mxu0 0.0
  %6540 = vmatprep.subr.mxu0 0.0
  %6541 = vmatpush1.msra.mxu0 0.0
  %6542 = vmatprep.subr.mxu0 0.0
  %6543 = vmatpush1.msra.mxu0 0.0
  %6544 = vmatprep.subr.mxu0 0.0
  %6545 = vmatpush1.msra.mxu0 0.0
  %6546 = vmatprep.subr.mxu0 0.0
  %6547 = vmatpush1.msra.mxu0 0.0
  %6548 = vmatprep.subr.mxu0 0.0
  %6549 = vmatpush1.msra.mxu0 0.0
  %6550 = vmatprep.subr.mxu0 0.0
  %6551 = vmatpush1.msra.mxu0 0.0
  %6552 = vmatprep.subr.mxu0 0.0
  %6553 = vmatpush1.msra.mxu0 0.0
  %6554 = vmatprep.subr.mxu0 0.0
  %6555 = vmatpush1.msra.mxu0 0.0
  %6556 = vmatprep.subr.mxu0 0.0
  %6557 = vmatpush1.msra.mxu0 0.0
  %6558 = vmatprep.subr.mxu0 0.0
  %6559 = vmatpush1.msra.mxu0 0.0
  %6560 = vmatprep.subr.mxu0 0.0
  %6561 = vmatpush1.msra.mxu0 0.0
  %6562 = vmatprep.subr.mxu0 0.0
  %6563 = vmatpush1.msra.mxu0 0.0
  %6564 = vmatprep.subr.mxu0 0.0
  %6565 = vmatpush1.msra.mxu0 0.0
  %6566 = vmatprep.subr.mxu0 0.0
  %6567 = vmatpush1.msra.mxu0 0.0
  %6568 = vmatprep.subr.mxu0 0.0
  %6569 = vmatpush1.msra.mxu0 0.0
  %6570 = vmatprep.subr.mxu0 0.0
  %6571 = vmatpush1.msra.mxu0 0.0
  %6572 = vmatprep.subr.mxu0 0.0
  %6573 = vmatpush1.msra.mxu0 0.0
  %6574 = vmatprep.subr.mxu0 0.0
  %6575 = vmatpush1.msra.mxu0 0.0
  %6576 = vmatprep.mubr.f32.mxu0 0.0
  %6577 = vmatmul.mubr.f32.gmra.mrb[0].mxu0 %v6489
  %v6578 = vpop.f32.mrb[0].mxu0
  %v6579 = vadd.f32 %v6487, %v6578
  %v6580 = vpop.f32.mrb[0].mxu0
  %6581 = vmatprep.mubr.f32.mxu0 0.0
  %6582 = vmatmul.mubr.f32.gmra.mrb[0].mxu0 %v6492
  %v6583 = vpop.f32.mrb[0].mxu0
  %v6584 = vadd.f32 %v6487, %v6583
  %v6585 = vpop.f32.mrb[0].mxu0
  %6586 = vmatprep.mubr.f32.mxu0 0.0
  %6587 = vmatmul.mubr.f32.gmra.mrb[0].mxu0 %v6495
  %v6588 = vpop.f32.mrb[0].mxu0
  %v6589 = vadd.f32 %v6487, %v6588
  %v6590 = vpop.f32.mrb[0].mxu0
  %6591 = vmatprep.mubr.f32.mxu0 0.0
  %6592 = vmatmul.mubr.f32.gmra.mrb[0].mxu0 %v6498
  %v6593 = vpop.f32.mrb[0].mxu0
  %v6594 = vadd.f32 %v6487, %v6593
  %v6595 = vpop.f32.mrb[0].mxu0
  %6596 = vmatprep.mubr.f32.mxu0 0.0
  %6597 = vmatmul.mubr.f32.gmra.mrb[0].mxu0 %v6501
  %v6598 = vpop.f32.mrb[0].mxu0
  %v6599 = vadd.f32 %v6487, %v6598
  %v6600 = vpop.f32.mrb[0].mxu0
  %6601 = vmatprep.mubr.f32.mxu0 0.0
  %6602 = vmatmul.mubr.f32.gmra.mrb[0].mxu0 %v6504
  %v6603 = vpop.f32.mrb[0].mxu0
  %v6604 = vadd.f32 %v6487, %v6603
  %v6605 = vpop.f32.mrb[0].mxu0
  %6606 = vmatprep.mubr.f32.mxu0 0.0
  %6607 = vmatmul.mubr.f32.gmra.mrb[0].mxu0 %v6507
  %v6608 = vpop.f32.mrb[0].mxu0
  %v6609 = vadd.f32 %v6487, %v6608
  %v6610 = vpop.f32.mrb[0].mxu0
  %6611 = vmatprep.mubr.f32.mxu0 0.0
  %6612 = vmatmul.mubr.f32.gmra.mrb[0].mxu0 %v6510
  %v6613 = vpop.f32.mrb[0].mxu0
  %v6614 = vadd.f32 %v6487, %v6613
  %v6615 = vpop.f32.mrb[0].mxu0
  %6616 = vdwg.mxu0
  %v6617 = vmul.f32 %v6579, %v102
  %v6618 = vmul.f32 %v6584, %v103
  %v6619 = vmul.f32 %v6589, %v104
  %v6620 = vmul.f32 %v6594, %v105
  %v6621 = vmul.f32 %v6599, %v106
  %v6622 = vmul.f32 %v6604, %v107
  %v6623 = vmul.f32 %v6609, %v108
  %v6624 = vmul.f32 %v6614, %v109
  %v6625 = vlaneseq
  %v6626 = vshrl.u32 %v6625, 7
  %v6627 = vsub.s32 0, %v6626
  %v6628 = vrot.slane %v6471, %v6627
  %6629 = vmatprep.subr.mxu0 0.0
  %6630 = vmatpush1.msra.mxu0 %v6467
  %6631 = vmatprep.subr.mxu0 0.0
  %6632 = vmatpush1.msra.mxu0 %v6468
  %6633 = vmatprep.subr.mxu0 0.0
  %6634 = vmatpush1.msra.mxu0 %v6469
  %6635 = vmatprep.subr.mxu0 0.0
  %6636 = vmatpush1.msra.mxu0 %v6470
  %6637 = vmatprep.subr.mxu0 0.0
  %6638 = vmatpush1.msra.mxu0 0.0
  %6639 = vmatprep.subr.mxu0 0.0
  %6640 = vmatpush1.msra.mxu0 0.0
  %6641 = vmatprep.subr.mxu0 0.0
  %6642 = vmatpush1.msra.mxu0 0.0
  %6643 = vmatprep.subr.mxu0 0.0
  %6644 = vmatpush1.msra.mxu0 0.0
  %6645 = vmatprep.subr.mxu0 0.0
  %6646 = vmatpush1.msra.mxu0 0.0
  %6647 = vmatprep.subr.mxu0 0.0
  %6648 = vmatpush1.msra.mxu0 0.0
  %6649 = vmatprep.subr.mxu0 0.0
  %6650 = vmatpush1.msra.mxu0 0.0
  %6651 = vmatprep.subr.mxu0 0.0
  %6652 = vmatpush1.msra.mxu0 0.0
  %6653 = vmatprep.subr.mxu0 0.0
  %6654 = vmatpush1.msra.mxu0 0.0
  %6655 = vmatprep.subr.mxu0 0.0
  %6656 = vmatpush1.msra.mxu0 0.0
  %6657 = vmatprep.subr.mxu0 0.0
  %6658 = vmatpush1.msra.mxu0 0.0
  %6659 = vmatprep.subr.mxu0 0.0
  %6660 = vmatpush1.msra.mxu0 0.0
  %6661 = vmatprep.subr.mxu0 0.0
  %6662 = vmatpush1.msra.mxu0 0.0
  %6663 = vmatprep.subr.mxu0 0.0
  %6664 = vmatpush1.msra.mxu0 0.0
  %6665 = vmatprep.subr.mxu0 0.0
  %6666 = vmatpush1.msra.mxu0 0.0
  %6667 = vmatprep.subr.mxu0 0.0
  %6668 = vmatpush1.msra.mxu0 0.0
  %6669 = vmatprep.subr.mxu0 0.0
  %6670 = vmatpush1.msra.mxu0 0.0
  %6671 = vmatprep.subr.mxu0 0.0
  %6672 = vmatpush1.msra.mxu0 0.0
  %6673 = vmatprep.subr.mxu0 0.0
  %6674 = vmatpush1.msra.mxu0 0.0
  %6675 = vmatprep.subr.mxu0 0.0
  %6676 = vmatpush1.msra.mxu0 0.0
  %6677 = vmatprep.subr.mxu0 0.0
  %6678 = vmatpush1.msra.mxu0 0.0
  %6679 = vmatprep.subr.mxu0 0.0
  %6680 = vmatpush1.msra.mxu0 0.0
  %6681 = vmatprep.subr.mxu0 0.0
  %6682 = vmatpush1.msra.mxu0 0.0
  %6683 = vmatprep.subr.mxu0 0.0
  %6684 = vmatpush1.msra.mxu0 0.0
  %6685 = vmatprep.subr.mxu0 0.0
  %6686 = vmatpush1.msra.mxu0 0.0
  %6687 = vmatprep.subr.mxu0 0.0
  %6688 = vmatpush1.msra.mxu0 0.0
  %6689 = vmatprep.subr.mxu0 0.0
  %6690 = vmatpush1.msra.mxu0 0.0
  %6691 = vmatprep.subr.mxu0 0.0
  %6692 = vmatpush1.msra.mxu0 0.0
  %6693 = vmatprep.mubr.f32.mxu0 0.0
  %6694 = vmatmul.mubr.f32.gmra.mrb[0].mxu0 %v4242
  %v6695 = vpop.f32.mrb[0].mxu0
  %v6696 = vadd.f32 %v6628, %v6695
  %v6697 = vpop.f32.mrb[0].mxu0
  %6698 = vmatprep.mubr.f32.mxu0 0.0
  %6699 = vmatmul.mubr.f32.gmra.mrb[0].mxu0 %v4245
  %v6700 = vpop.f32.mrb[0].mxu0
  %v6701 = vadd.f32 %v6628, %v6700
  %v6702 = vpop.f32.mrb[0].mxu0
  %6703 = vmatprep.mubr.f32.mxu0 0.0
  %6704 = vmatmul.mubr.f32.gmra.mrb[0].mxu0 %v4248
  %v6705 = vpop.f32.mrb[0].mxu0
  %v6706 = vadd.f32 %v6628, %v6705
  %v6707 = vpop.f32.mrb[0].mxu0
  %6708 = vmatprep.mubr.f32.mxu0 0.0
  %6709 = vmatmul.mubr.f32.gmra.mrb[0].mxu0 %v4251
  %v6710 = vpop.f32.mrb[0].mxu0
  %v6711 = vadd.f32 %v6628, %v6710
  %v6712 = vpop.f32.mrb[0].mxu0
  %6713 = vmatprep.mubr.f32.mxu0 0.0
  %6714 = vmatmul.mubr.f32.gmra.mrb[0].mxu0 %v4254
  %v6715 = vpop.f32.mrb[0].mxu0
  %v6716 = vadd.f32 %v6628, %v6715
  %v6717 = vpop.f32.mrb[0].mxu0
  %6718 = vmatprep.mubr.f32.mxu0 0.0
  %6719 = vmatmul.mubr.f32.gmra.mrb[0].mxu0 %v4257
  %v6720 = vpop.f32.mrb[0].mxu0
  %v6721 = vadd.f32 %v6628, %v6720
  %v6722 = vpop.f32.mrb[0].mxu0
  %6723 = vmatprep.mubr.f32.mxu0 0.0
  %6724 = vmatmul.mubr.f32.gmra.mrb[0].mxu0 %v4260
  %v6725 = vpop.f32.mrb[0].mxu0
  %v6726 = vadd.f32 %v6628, %v6725
  %v6727 = vpop.f32.mrb[0].mxu0
  %6728 = vmatprep.mubr.f32.mxu0 0.0
  %6729 = vmatmul.mubr.f32.gmra.mrb[0].mxu0 %v4263
  %v6730 = vpop.f32.mrb[0].mxu0
  %v6731 = vadd.f32 %v6628, %v6730
  %v6732 = vpop.f32.mrb[0].mxu0
  %6733 = vdwg.mxu0
  %v6734 = vlaneseq
  %v6735 = vshrl.u32 %v6734, 7
  %v6736 = vsub.s32 0, %v6735
  %v6737 = vrot.slane %v6477, %v6736
  %6738 = vmatprep.subr.mxu0 0.0
  %6739 = vmatpush1.msra.mxu0 %v6473
  %6740 = vmatprep.subr.mxu0 0.0
  %6741 = vmatpush1.msra.mxu0 %v6474
  %6742 = vmatprep.subr.mxu0 0.0
  %6743 = vmatpush1.msra.mxu0 %v6475
  %6744 = vmatprep.subr.mxu0 0.0
  %6745 = vmatpush1.msra.mxu0 %v6476
  %6746 = vmatprep.subr.mxu0 0.0
  %6747 = vmatpush1.msra.mxu0 0.0
  %6748 = vmatprep.subr.mxu0 0.0
  %6749 = vmatpush1.msra.mxu0 0.0
  %6750 = vmatprep.subr.mxu0 0.0
  %6751 = vmatpush1.msra.mxu0 0.0
  %6752 = vmatprep.subr.mxu0 0.0
  %6753 = vmatpush1.msra.mxu0 0.0
  %6754 = vmatprep.subr.mxu0 0.0
  %6755 = vmatpush1.msra.mxu0 0.0
  %6756 = vmatprep.subr.mxu0 0.0
  %6757 = vmatpush1.msra.mxu0 0.0
  %6758 = vmatprep.subr.mxu0 0.0
  %6759 = vmatpush1.msra.mxu0 0.0
  %6760 = vmatprep.subr.mxu0 0.0
  %6761 = vmatpush1.msra.mxu0 0.0
  %6762 = vmatprep.subr.mxu0 0.0
  %6763 = vmatpush1.msra.mxu0 0.0
  %6764 = vmatprep.subr.mxu0 0.0
  %6765 = vmatpush1.msra.mxu0 0.0
  %6766 = vmatprep.subr.mxu0 0.0
  %6767 = vmatpush1.msra.mxu0 0.0
  %6768 = vmatprep.subr.mxu0 0.0
  %6769 = vmatpush1.msra.mxu0 0.0
  %6770 = vmatprep.subr.mxu0 0.0
  %6771 = vmatpush1.msra.mxu0 0.0
  %6772 = vmatprep.subr.mxu0 0.0
  %6773 = vmatpush1.msra.mxu0 0.0
  %6774 = vmatprep.subr.mxu0 0.0
  %6775 = vmatpush1.msra.mxu0 0.0
  %6776 = vmatprep.subr.mxu0 0.0
  %6777 = vmatpush1.msra.mxu0 0.0
  %6778 = vmatprep.subr.mxu0 0.0
  %6779 = vmatpush1.msra.mxu0 0.0
  %6780 = vmatprep.subr.mxu0 0.0
  %6781 = vmatpush1.msra.mxu0 0.0
  %6782 = vmatprep.subr.mxu0 0.0
  %6783 = vmatpush1.msra.mxu0 0.0
  %6784 = vmatprep.subr.mxu0 0.0
  %6785 = vmatpush1.msra.mxu0 0.0
  %6786 = vmatprep.subr.mxu0 0.0
  %6787 = vmatpush1.msra.mxu0 0.0
  %6788 = vmatprep.subr.mxu0 0.0
  %6789 = vmatpush1.msra.mxu0 0.0
  %6790 = vmatprep.subr.mxu0 0.0
  %6791 = vmatpush1.msra.mxu0 0.0
  %6792 = vmatprep.subr.mxu0 0.0
  %6793 = vmatpush1.msra.mxu0 0.0
  %6794 = vmatprep.subr.mxu0 0.0
  %6795 = vmatpush1.msra.mxu0 0.0
  %6796 = vmatprep.subr.mxu0 0.0
  %6797 = vmatpush1.msra.mxu0 0.0
  %6798 = vmatprep.subr.mxu0 0.0
  %6799 = vmatpush1.msra.mxu0 0.0
  %6800 = vmatprep.subr.mxu0 0.0
  %6801 = vmatpush1.msra.mxu0 0.0
  %6802 = vmatprep.mubr.f32.mxu0 0.0
  %6803 = vmatmul.mubr.f32.gmra.mrb[0].mxu0 %v4242
  %v6804 = vpop.f32.mrb[0].mxu0
  %v6805 = vadd.f32 %v6737, %v6804
  %v6806 = vpop.f32.mrb[0].mxu0
  %6807 = vmatprep.mubr.f32.mxu0 0.0
  %6808 = vmatmul.mubr.f32.gmra.mrb[0].mxu0 %v4245
  %v6809 = vpop.f32.mrb[0].mxu0
  %v6810 = vadd.f32 %v6737, %v6809
  %v6811 = vpop.f32.mrb[0].mxu0
  %6812 = vmatprep.mubr.f32.mxu0 0.0
  %6813 = vmatmul.mubr.f32.gmra.mrb[0].mxu0 %v4248
  %v6814 = vpop.f32.mrb[0].mxu0
  %v6815 = vadd.f32 %v6737, %v6814
  %v6816 = vpop.f32.mrb[0].mxu0
  %6817 = vmatprep.mubr.f32.mxu0 0.0
  %6818 = vmatmul.mubr.f32.gmra.mrb[0].mxu0 %v4251
  %v6819 = vpop.f32.mrb[0].mxu0
  %v6820 = vadd.f32 %v6737, %v6819
  %v6821 = vpop.f32.mrb[0].mxu0
  %6822 = vmatprep.mubr.f32.mxu0 0.0
  %6823 = vmatmul.mubr.f32.gmra.mrb[0].mxu0 %v4254
  %v6824 = vpop.f32.mrb[0].mxu0
  %v6825 = vadd.f32 %v6737, %v6824
  %v6826 = vpop.f32.mrb[0].mxu0
  %6827 = vmatprep.mubr.f32.mxu0 0.0
  %6828 = vmatmul.mubr.f32.gmra.mrb[0].mxu0 %v4257
  %v6829 = vpop.f32.mrb[0].mxu0
  %v6830 = vadd.f32 %v6737, %v6829
  %v6831 = vpop.f32.mrb[0].mxu0
  %6832 = vmatprep.mubr.f32.mxu0 0.0
  %6833 = vmatmul.mubr.f32.gmra.mrb[0].mxu0 %v4260
  %v6834 = vpop.f32.mrb[0].mxu0
  %v6835 = vadd.f32 %v6737, %v6834
  %v6836 = vpop.f32.mrb[0].mxu0
  %6837 = vmatprep.mubr.f32.mxu0 0.0
  %6838 = vmatmul.mubr.f32.gmra.mrb[0].mxu0 %v4263
  %v6839 = vpop.f32.mrb[0].mxu0
  %v6840 = vadd.f32 %v6737, %v6839
  %v6841 = vpop.f32.mrb[0].mxu0
  %6842 = vdwg.mxu0
  %v6844 = vsel %vm293, %v6617, 0
  %v6847 = vsel %vm293, %v6618, 0
  %v6850 = vsel %vm293, %v6619, 0
  %v6853 = vsel %vm293, %v6620, 0
  %v6856 = vsel %vm293, %v6621, 0
  %v6859 = vsel %vm293, %v6622, 0
  %v6862 = vsel %vm293, %v6623, 0
  %v6865 = vsel %vm293, %v6624, 0
  %v6868 = vsel %vm293, %v6696, 0
  %v6871 = vsel %vm293, %v6701, 0
  %v6874 = vsel %vm293, %v6706, 0
  %v6877 = vsel %vm293, %v6711, 0
  %v6880 = vsel %vm293, %v6716, 0
  %v6883 = vsel %vm293, %v6721, 0
  %v6886 = vsel %vm293, %v6726, 0
  %v6889 = vsel %vm293, %v6731, 0
  %6891 = vmatprep.subr.mxu0 0.0
  %6892 = vmatpush1.xpose.msra.mxu0 %v6868
  %6893 = vmatprep.subr.mxu0 0.0
  %6894 = vmatpush1.xpose.msra.mxu0 %v6871
  %6895 = vmatprep.subr.mxu0 0.0
  %6896 = vmatpush1.xpose.msra.mxu0 %v6874
  %6897 = vmatprep.subr.mxu0 0.0
  %6898 = vmatpush1.xpose.msra.mxu0 %v6877
  %6899 = vmatprep.subr.mxu0 0.0
  %6900 = vmatpush1.xpose.msra.mxu0 %v6880
  %6901 = vmatprep.subr.mxu0 0.0
  %6902 = vmatpush1.xpose.msra.mxu0 %v6883
  %6903 = vmatprep.subr.mxu0 0.0
  %6904 = vmatpush1.xpose.msra.mxu0 %v6886
  %6905 = vmatprep.subr.mxu0 0.0
  %6906 = vmatpush1.xpose.msra.mxu0 %v6889
  %6907 = vmatprep.subr.mxu0 0.0
  %6908 = vmatpush1.xpose.msra.mxu0 0.0
  %6909 = vmatprep.subr.mxu0 0.0
  %6910 = vmatpush1.xpose.msra.mxu0 0.0
  %6911 = vmatprep.subr.mxu0 0.0
  %6912 = vmatpush1.xpose.msra.mxu0 0.0
  %6913 = vmatprep.subr.mxu0 0.0
  %6914 = vmatpush1.xpose.msra.mxu0 0.0
  %6915 = vmatprep.subr.mxu0 0.0
  %6916 = vmatpush1.xpose.msra.mxu0 0.0
  %6917 = vmatprep.subr.mxu0 0.0
  %6918 = vmatpush1.xpose.msra.mxu0 0.0
  %6919 = vmatprep.subr.mxu0 0.0
  %6920 = vmatpush1.xpose.msra.mxu0 0.0
  %6921 = vmatprep.subr.mxu0 0.0
  %6922 = vmatpush1.xpose.msra.mxu0 0.0
  %6923 = vmatprep.subr.mxu0 0.0
  %6924 = vmatpush1.xpose.msra.mxu0 0.0
  %6925 = vmatprep.subr.mxu0 0.0
  %6926 = vmatpush1.xpose.msra.mxu0 0.0
  %6927 = vmatprep.subr.mxu0 0.0
  %6928 = vmatpush1.xpose.msra.mxu0 0.0
  %6929 = vmatprep.subr.mxu0 0.0
  %6930 = vmatpush1.xpose.msra.mxu0 0.0
  %6931 = vmatprep.subr.mxu0 0.0
  %6932 = vmatpush1.xpose.msra.mxu0 0.0
  %6933 = vmatprep.subr.mxu0 0.0
  %6934 = vmatpush1.xpose.msra.mxu0 0.0
  %6935 = vmatprep.subr.mxu0 0.0
  %6936 = vmatpush1.xpose.msra.mxu0 0.0
  %6937 = vmatprep.subr.mxu0 0.0
  %6938 = vmatpush1.xpose.msra.mxu0 0.0
  %6939 = vmatprep.subr.mxu0 0.0
  %6940 = vmatpush1.xpose.msra.mxu0 0.0
  %6941 = vmatprep.subr.mxu0 0.0
  %6942 = vmatpush1.xpose.msra.mxu0 0.0
  %6943 = vmatprep.subr.mxu0 0.0
  %6944 = vmatpush1.xpose.msra.mxu0 0.0
  %6945 = vmatprep.subr.mxu0 0.0
  %6946 = vmatpush1.xpose.msra.mxu0 0.0
  %6947 = vmatprep.subr.mxu0 0.0
  %6948 = vmatpush1.xpose.msra.mxu0 0.0
  %6949 = vmatprep.subr.mxu0 0.0
  %6950 = vmatpush1.xpose.msra.mxu0 0.0
  %6951 = vmatprep.subr.mxu0 0.0
  %6952 = vmatpush1.xpose.msra.mxu0 0.0
  %6953 = vmatprep.subr.mxu0 0.0
  %6954 = vmatpush1.xpose.msra.mxu0 0.0
  %6955 = vmatprep.mubr.f32.mxu0 0.0
  %6956 = vmatmul.mubr.f32.gmra.mrb[0].mxu0 %v6844
  %v6957 = vpop.f32.mrb[0].mxu0
  %v6958 = vadd.f32 %v126, %v6957
  %v6959 = vpop.f32.mrb[0].mxu0
  %6960 = vmatprep.mubr.f32.mxu0 0.0
  %6961 = vmatmul.mubr.f32.gmra.mrb[0].mxu0 %v6847
  %v6962 = vpop.f32.mrb[0].mxu0
  %v6963 = vadd.f32 %v127, %v6962
  %v6964 = vpop.f32.mrb[0].mxu0
  %6965 = vmatprep.mubr.f32.mxu0 0.0
  %6966 = vmatmul.mubr.f32.gmra.mrb[0].mxu0 %v6850
  %v6967 = vpop.f32.mrb[0].mxu0
  %v6968 = vadd.f32 %v128, %v6967
  %v6969 = vpop.f32.mrb[0].mxu0
  %6970 = vmatprep.mubr.f32.mxu0 0.0
  %6971 = vmatmul.mubr.f32.gmra.mrb[0].mxu0 %v6853
  %v6972 = vpop.f32.mrb[0].mxu0
  %v6973 = vadd.f32 %v129, %v6972
  %v6974 = vpop.f32.mrb[0].mxu0
  %6975 = vmatprep.mubr.f32.mxu0 0.0
  %6976 = vmatmul.mubr.f32.gmra.mrb[0].mxu0 %v6856
  %v6977 = vpop.f32.mrb[0].mxu0
  %v6978 = vadd.f32 %v130, %v6977
  %v6979 = vpop.f32.mrb[0].mxu0
  %6980 = vmatprep.mubr.f32.mxu0 0.0
  %6981 = vmatmul.mubr.f32.gmra.mrb[0].mxu0 %v6859
  %v6982 = vpop.f32.mrb[0].mxu0
  %v6983 = vadd.f32 %v131, %v6982
  %v6984 = vpop.f32.mrb[0].mxu0
  %6985 = vmatprep.mubr.f32.mxu0 0.0
  %6986 = vmatmul.mubr.f32.gmra.mrb[0].mxu0 %v6862
  %v6987 = vpop.f32.mrb[0].mxu0
  %v6988 = vadd.f32 %v132, %v6987
  %v6989 = vpop.f32.mrb[0].mxu0
  %6990 = vmatprep.mubr.f32.mxu0 0.0
  %6991 = vmatmul.mubr.f32.gmra.mrb[0].mxu0 %v6865
  %v6992 = vpop.f32.mrb[0].mxu0
  %v6993 = vadd.f32 %v133, %v6992
  %v6994 = vpop.f32.mrb[0].mxu0
  %6995 = vdwg.mxu0
  %v6996 = vsel %vm802, %v6958, -inf
  %6997 = vmax.xlane.f32.xlu0 %v6996
  %v6998 = vpop.xlane.xlu0 %6997
  %v6999 = vsel %vm802, %v6963, -inf
  %7000 = vmax.xlane.f32.xlu0 %v6999
  %v7001 = vpop.xlane.xlu0 %7000
  %v7002 = vsel %vm802, %v6968, -inf
  %7003 = vmax.xlane.f32.xlu0 %v7002
  %v7004 = vpop.xlane.xlu0 %7003
  %v7005 = vsel %vm802, %v6973, -inf
  %7006 = vmax.xlane.f32.xlu0 %v7005
  %v7007 = vpop.xlane.xlu0 %7006
  %v7008 = vsel %vm802, %v6978, -inf
  %7009 = vmax.xlane.f32.xlu0 %v7008
  %v7010 = vpop.xlane.xlu0 %7009
  %v7011 = vsel %vm802, %v6983, -inf
  %7012 = vmax.xlane.f32.xlu0 %v7011
  %v7013 = vpop.xlane.xlu0 %7012
  %v7014 = vsel %vm802, %v6988, -inf
  %7015 = vmax.xlane.f32.xlu0 %v7014
  %v7016 = vpop.xlane.xlu0 %7015
  %v7017 = vsel %vm802, %v6993, -inf
  %7018 = vmax.xlane.f32.xlu0 %v7017
  %v7019 = vpop.xlane.xlu0 %7018
  %v7020 = vsub.f32 %v6958, %v6998
  %v7021 = vsub.f32 %v6963, %v7001
  %v7022 = vsub.f32 %v6968, %v7004
  %v7023 = vsub.f32 %v6973, %v7007
  %v7024 = vsub.f32 %v6978, %v7010
  %v7025 = vsub.f32 %v6983, %v7013
  %v7026 = vsub.f32 %v6988, %v7016
  %v7027 = vsub.f32 %v6993, %v7019
  %v7028 = vmul.f32 %v7020, 1.442695
  %v7029 = vpow.pop %v7028
  %v7030 = vmul.f32 %v7021, 1.442695
  %v7031 = vpow.pop %v7030
  %v7032 = vmul.f32 %v7022, 1.442695
  %v7033 = vpow.pop %v7032
  %v7034 = vmul.f32 %v7023, 1.442695
  %v7035 = vpow.pop %v7034
  %v7036 = vmul.f32 %v7024, 1.442695
  %v7037 = vpow.pop %v7036
  %v7038 = vmul.f32 %v7025, 1.442695
  %v7039 = vpow.pop %v7038
  %v7040 = vmul.f32 %v7026, 1.442695
  %v7041 = vpow.pop %v7040
  %v7042 = vmul.f32 %v7027, 1.442695
  %v7043 = vpow.pop %v7042
  %v7044 = vsel %vm802, %v7029, 0.0
  %7045 = vadd.xlane.f32.xlu0 %v7044
  %v7046 = vpop.xlane.xlu0 %7045
  %v7047 = vsel %vm802, %v7031, 0.0
  %7048 = vadd.xlane.f32.xlu0 %v7047
  %v7049 = vpop.xlane.xlu0 %7048
  %v7050 = vsel %vm802, %v7033, 0.0
  %7051 = vadd.xlane.f32.xlu0 %v7050
  %v7052 = vpop.xlane.xlu0 %7051
  %v7053 = vsel %vm802, %v7035, 0.0
  %7054 = vadd.xlane.f32.xlu0 %v7053
  %v7055 = vpop.xlane.xlu0 %7054
  %v7056 = vsel %vm802, %v7037, 0.0
  %7057 = vadd.xlane.f32.xlu0 %v7056
  %v7058 = vpop.xlane.xlu0 %7057
  %v7059 = vsel %vm802, %v7039, 0.0
  %7060 = vadd.xlane.f32.xlu0 %v7059
  %v7061 = vpop.xlane.xlu0 %7060
  %v7062 = vsel %vm802, %v7041, 0.0
  %7063 = vadd.xlane.f32.xlu0 %v7062
  %v7064 = vpop.xlane.xlu0 %7063
  %v7065 = vsel %vm802, %v7043, 0.0
  %7066 = vadd.xlane.f32.xlu0 %v7065
  %v7067 = vpop.xlane.xlu0 %7066
  %v7068 = vrcp.pop %v7046
  %v7069 = vmul.f32 %v7029, %v7068
  %v7070 = vrcp.pop %v7049
  %v7071 = vmul.f32 %v7031, %v7070
  %v7072 = vrcp.pop %v7052
  %v7073 = vmul.f32 %v7033, %v7072
  %v7074 = vrcp.pop %v7055
  %v7075 = vmul.f32 %v7035, %v7074
  %v7076 = vrcp.pop %v7058
  %v7077 = vmul.f32 %v7037, %v7076
  %v7078 = vrcp.pop %v7061
  %v7079 = vmul.f32 %v7039, %v7078
  %v7080 = vrcp.pop %v7064
  %v7081 = vmul.f32 %v7041, %v7080
  %v7082 = vrcp.pop %v7067
  %v7083 = vmul.f32 %v7043, %v7082
  %v7085 = vsel %vm802, %v7069, 0
  %v7088 = vsel %vm802, %v7071, 0
  %v7091 = vsel %vm802, %v7073, 0
  %v7094 = vsel %vm802, %v7075, 0
  %v7097 = vsel %vm802, %v7077, 0
  %v7100 = vsel %vm802, %v7079, 0
  %v7103 = vsel %vm802, %v7081, 0
  %v7106 = vsel %vm802, %v7083, 0
  %7108 = vmatprep.subr.mxu0 0.0
  %7109 = vmatpush1.msra.mxu0 %v6805
  %7110 = vmatprep.subr.mxu0 0.0
  %7111 = vmatpush1.msra.mxu0 %v6810
  %7112 = vmatprep.subr.mxu0 0.0
  %7113 = vmatpush1.msra.mxu0 %v6815
  %7114 = vmatprep.subr.mxu0 0.0
  %7115 = vmatpush1.msra.mxu0 %v6820
  %7116 = vmatprep.subr.mxu0 0.0
  %7117 = vmatpush1.msra.mxu0 %v6825
  %7118 = vmatprep.subr.mxu0 0.0
  %7119 = vmatpush1.msra.mxu0 %v6830
  %7120 = vmatprep.subr.mxu0 0.0
  %7121 = vmatpush1.msra.mxu0 %v6835
  %7122 = vmatprep.subr.mxu0 0.0
  %7123 = vmatpush1.msra.mxu0 %v6840
  %7124 = vmatprep.subr.mxu0 0.0
  %7125 = vmatpush1.msra.mxu0 0.0
  %7126 = vmatprep.subr.mxu0 0.0
  %7127 = vmatpush1.msra.mxu0 0.0
  %7128 = vmatprep.subr.mxu0 0.0
  %7129 = vmatpush1.msra.mxu0 0.0
  %7130 = vmatprep.subr.mxu0 0.0
  %7131 = vmatpush1.msra.mxu0 0.0
  %7132 = vmatprep.subr.mxu0 0.0
  %7133 = vmatpush1.msra.mxu0 0.0
  %7134 = vmatprep.subr.mxu0 0.0
  %7135 = vmatpush1.msra.mxu0 0.0
  %7136 = vmatprep.subr.mxu0 0.0
  %7137 = vmatpush1.msra.mxu0 0.0
  %7138 = vmatprep.subr.mxu0 0.0
  %7139 = vmatpush1.msra.mxu0 0.0
  %7140 = vmatprep.subr.mxu0 0.0
  %7141 = vmatpush1.msra.mxu0 0.0
  %7142 = vmatprep.subr.mxu0 0.0
  %7143 = vmatpush1.msra.mxu0 0.0
  %7144 = vmatprep.subr.mxu0 0.0
  %7145 = vmatpush1.msra.mxu0 0.0
  %7146 = vmatprep.subr.mxu0 0.0
  %7147 = vmatpush1.msra.mxu0 0.0
  %7148 = vmatprep.subr.mxu0 0.0
  %7149 = vmatpush1.msra.mxu0 0.0
  %7150 = vmatprep.subr.mxu0 0.0
  %7151 = vmatpush1.msra.mxu0 0.0
  %7152 = vmatprep.subr.mxu0 0.0
  %7153 = vmatpush1.msra.mxu0 0.0
  %7154 = vmatprep.subr.mxu0 0.0
  %7155 = vmatpush1.msra.mxu0 0.0
  %7156 = vmatprep.subr.mxu0 0.0
  %7157 = vmatpush1.msra.mxu0 0.0
  %7158 = vmatprep.subr.mxu0 0.0
  %7159 = vmatpush1.msra.mxu0 0.0
  %7160 = vmatprep.subr.mxu0 0.0
  %7161 = vmatpush1.msra.mxu0 0.0
  %7162 = vmatprep.subr.mxu0 0.0
  %7163 = vmatpush1.msra.mxu0 0.0
  %7164 = vmatprep.subr.mxu0 0.0
  %7165 = vmatpush1.msra.mxu0 0.0
  %7166 = vmatprep.subr.mxu0 0.0
  %7167 = vmatpush1.msra.mxu0 0.0
  %7168 = vmatprep.subr.mxu0 0.0
  %7169 = vmatpush1.msra.mxu0 0.0
  %7170 = vmatprep.subr.mxu0 0.0
  %7171 = vmatpush1.msra.mxu0 0.0
  %7172 = vmatprep.mubr.f32.mxu0 0.0
  %7173 = vmatmul.mubr.f32.gmra.mrb[0].mxu0 %v7085
  %v7174 = vpop.f32.mrb[0].mxu0
  %v7175 = vadd.f32 0.0, %v7174
  %v7176 = vpop.f32.mrb[0].mxu0
  %7177 = vmatprep.mubr.f32.mxu0 0.0
  %7178 = vmatmul.mubr.f32.gmra.mrb[0].mxu0 %v7088
  %v7179 = vpop.f32.mrb[0].mxu0
  %v7180 = vadd.f32 0.0, %v7179
  %v7181 = vpop.f32.mrb[0].mxu0
  %7182 = vmatprep.mubr.f32.mxu0 0.0
  %7183 = vmatmul.mubr.f32.gmra.mrb[0].mxu0 %v7091
  %v7184 = vpop.f32.mrb[0].mxu0
  %v7185 = vadd.f32 0.0, %v7184
  %v7186 = vpop.f32.mrb[0].mxu0
  %7187 = vmatprep.mubr.f32.mxu0 0.0
  %7188 = vmatmul.mubr.f32.gmra.mrb[0].mxu0 %v7094
  %v7189 = vpop.f32.mrb[0].mxu0
  %v7190 = vadd.f32 0.0, %v7189
  %v7191 = vpop.f32.mrb[0].mxu0
  %7192 = vmatprep.mubr.f32.mxu0 0.0
  %7193 = vmatmul.mubr.f32.gmra.mrb[0].mxu0 %v7097
  %v7194 = vpop.f32.mrb[0].mxu0
  %v7195 = vadd.f32 0.0, %v7194
  %v7196 = vpop.f32.mrb[0].mxu0
  %7197 = vmatprep.mubr.f32.mxu0 0.0
  %7198 = vmatmul.mubr.f32.gmra.mrb[0].mxu0 %v7100
  %v7199 = vpop.f32.mrb[0].mxu0
  %v7200 = vadd.f32 0.0, %v7199
  %v7201 = vpop.f32.mrb[0].mxu0
  %7202 = vmatprep.mubr.f32.mxu0 0.0
  %7203 = vmatmul.mubr.f32.gmra.mrb[0].mxu0 %v7103
  %v7204 = vpop.f32.mrb[0].mxu0
  %v7205 = vadd.f32 0.0, %v7204
  %v7206 = vpop.f32.mrb[0].mxu0
  %7207 = vmatprep.mubr.f32.mxu0 0.0
  %7208 = vmatmul.mubr.f32.gmra.mrb[0].mxu0 %v7106
  %v7209 = vpop.f32.mrb[0].mxu0
  %v7210 = vadd.f32 0.0, %v7209
  %v7211 = vpop.f32.mrb[0].mxu0
  %7212 = vdwg.mxu0
  %v7213 = vmul.f32 %v7175, %v102
  %v7214 = vmul.f32 %v7180, %v103
  %v7215 = vmul.f32 %v7185, %v104
  %v7216 = vmul.f32 %v7190, %v105
  %v7217 = vmul.f32 %v7195, %v106
  %v7218 = vmul.f32 %v7200, %v107
  %v7219 = vmul.f32 %v7205, %v108
  %v7220 = vmul.f32 %v7210, %v109
  %7221 = vmatprep.subr.mxu0 0.0
  %7222 = vmatpush1.msra.mxu0 %v7213
  %7223 = vmatprep.subr.mxu0 0.0
  %7224 = vmatpush1.msra.mxu0 %v7214
  %7225 = vmatprep.subr.mxu0 0.0
  %7226 = vmatpush1.msra.mxu0 %v7215
  %7227 = vmatprep.subr.mxu0 0.0
  %7228 = vmatpush1.msra.mxu0 %v7216
  %7229 = vmatprep.subr.mxu0 0.0
  %7230 = vmatpush1.msra.mxu0 %v7217
  %7231 = vmatprep.subr.mxu0 0.0
  %7232 = vmatpush1.msra.mxu0 %v7218
  %7233 = vmatprep.subr.mxu0 0.0
  %7234 = vmatpush1.msra.mxu0 %v7219
  %7235 = vmatprep.subr.mxu0 0.0
  %7236 = vmatpush1.msra.mxu0 %v7220
  %7237 = vmatprep.subr.mxu0 0.0
  %7238 = vmatpush1.msra.mxu0 0.0
  %7239 = vmatprep.subr.mxu0 0.0
  %7240 = vmatpush1.msra.mxu0 0.0
  %7241 = vmatprep.subr.mxu0 0.0
  %7242 = vmatpush1.msra.mxu0 0.0
  %7243 = vmatprep.subr.mxu0 0.0
  %7244 = vmatpush1.msra.mxu0 0.0
  %7245 = vmatprep.subr.mxu0 0.0
  %7246 = vmatpush1.msra.mxu0 0.0
  %7247 = vmatprep.subr.mxu0 0.0
  %7248 = vmatpush1.msra.mxu0 0.0
  %7249 = vmatprep.subr.mxu0 0.0
  %7250 = vmatpush1.msra.mxu0 0.0
  %7251 = vmatprep.subr.mxu0 0.0
  %7252 = vmatpush1.msra.mxu0 0.0
  %7253 = vmatprep.subr.mxu0 0.0
  %7254 = vmatpush1.msra.mxu0 0.0
  %7255 = vmatprep.subr.mxu0 0.0
  %7256 = vmatpush1.msra.mxu0 0.0
  %7257 = vmatprep.subr.mxu0 0.0
  %7258 = vmatpush1.msra.mxu0 0.0
  %7259 = vmatprep.subr.mxu0 0.0
  %7260 = vmatpush1.msra.mxu0 0.0
  %7261 = vmatprep.subr.mxu0 0.0
  %7262 = vmatpush1.msra.mxu0 0.0
  %7263 = vmatprep.subr.mxu0 0.0
  %7264 = vmatpush1.msra.mxu0 0.0
  %7265 = vmatprep.subr.mxu0 0.0
  %7266 = vmatpush1.msra.mxu0 0.0
  %7267 = vmatprep.subr.mxu0 0.0
  %7268 = vmatpush1.msra.mxu0 0.0
  %7269 = vmatprep.subr.mxu0 0.0
  %7270 = vmatpush1.msra.mxu0 0.0
  %7271 = vmatprep.subr.mxu0 0.0
  %7272 = vmatpush1.msra.mxu0 0.0
  %7273 = vmatprep.subr.mxu0 0.0
  %7274 = vmatpush1.msra.mxu0 0.0
  %7275 = vmatprep.subr.mxu0 0.0
  %7276 = vmatpush1.msra.mxu0 0.0
  %7277 = vmatprep.subr.mxu0 0.0
  %7278 = vmatpush1.msra.mxu0 0.0
  %7279 = vmatprep.subr.mxu0 0.0
  %7280 = vmatpush1.msra.mxu0 0.0
  %7281 = vmatprep.subr.mxu0 0.0
  %7282 = vmatpush1.msra.mxu0 0.0
  %7283 = vmatprep.subr.mxu0 0.0
  %7284 = vmatpush1.msra.mxu0 0.0
  %7285 = vmatprep.mubr.f32.mxu0 0.0
  %7286 = vmatmul.mubr.f32.gmra.mrb[0].mxu0 %v3760
  %v7287 = vpop.f32.mrb[0].mxu0
  %v7288 = vadd.f32 0.0, %v7287
  %v7289 = vpop.f32.mrb[0].mxu0
  %7290 = vmatprep.mubr.f32.mxu0 0.0
  %7291 = vmatmul.mubr.f32.gmra.mrb[0].mxu0 %v3763
  %v7292 = vpop.f32.mrb[0].mxu0
  %v7293 = vadd.f32 0.0, %v7292
  %v7294 = vpop.f32.mrb[0].mxu0
  %7295 = vdwg.mxu0
  %v7296 = vlaneseq
  %v7297 = vshrl.u32 %v7296, 7
  %v7298 = vsub.s32 0, %v7297
  %v7299 = vrot.slane %v6483, %v7298
  %v7301 = vsel %vm293, %v7288, 0
  %v7304 = vsel %vm293, %v7293, 0
  %7306 = vmatprep.subr.mxu0 0.0
  %7307 = vmatpush1.msra.mxu0 %v6479
  %7308 = vmatprep.subr.mxu0 0.0
  %7309 = vmatpush1.msra.mxu0 %v6480
  %7310 = vmatprep.subr.mxu0 0.0
  %7311 = vmatpush1.msra.mxu0 %v6481
  %7312 = vmatprep.subr.mxu0 0.0
  %7313 = vmatpush1.msra.mxu0 %v6482
  %7314 = vmatprep.subr.mxu0 0.0
  %7315 = vmatpush1.msra.mxu0 0.0
  %7316 = vmatprep.subr.mxu0 0.0
  %7317 = vmatpush1.msra.mxu0 0.0
  %7318 = vmatprep.subr.mxu0 0.0
  %7319 = vmatpush1.msra.mxu0 0.0
  %7320 = vmatprep.subr.mxu0 0.0
  %7321 = vmatpush1.msra.mxu0 0.0
  %7322 = vmatprep.subr.mxu0 0.0
  %7323 = vmatpush1.msra.mxu0 0.0
  %7324 = vmatprep.subr.mxu0 0.0
  %7325 = vmatpush1.msra.mxu0 0.0
  %7326 = vmatprep.subr.mxu0 0.0
  %7327 = vmatpush1.msra.mxu0 0.0
  %7328 = vmatprep.subr.mxu0 0.0
  %7329 = vmatpush1.msra.mxu0 0.0
  %7330 = vmatprep.subr.mxu0 0.0
  %7331 = vmatpush1.msra.mxu0 0.0
  %7332 = vmatprep.subr.mxu0 0.0
  %7333 = vmatpush1.msra.mxu0 0.0
  %7334 = vmatprep.subr.mxu0 0.0
  %7335 = vmatpush1.msra.mxu0 0.0
  %7336 = vmatprep.subr.mxu0 0.0
  %7337 = vmatpush1.msra.mxu0 0.0
  %7338 = vmatprep.subr.mxu0 0.0
  %7339 = vmatpush1.msra.mxu0 0.0
  %7340 = vmatprep.subr.mxu0 0.0
  %7341 = vmatpush1.msra.mxu0 0.0
  %7342 = vmatprep.subr.mxu0 0.0
  %7343 = vmatpush1.msra.mxu0 0.0
  %7344 = vmatprep.subr.mxu0 0.0
  %7345 = vmatpush1.msra.mxu0 0.0
  %7346 = vmatprep.subr.mxu0 0.0
  %7347 = vmatpush1.msra.mxu0 0.0
  %7348 = vmatprep.subr.mxu0 0.0
  %7349 = vmatpush1.msra.mxu0 0.0
  %7350 = vmatprep.subr.mxu0 0.0
  %7351 = vmatpush1.msra.mxu0 0.0
  %7352 = vmatprep.subr.mxu0 0.0
  %7353 = vmatpush1.msra.mxu0 0.0
  %7354 = vmatprep.subr.mxu0 0.0
  %7355 = vmatpush1.msra.mxu0 0.0
  %7356 = vmatprep.subr.mxu0 0.0
  %7357 = vmatpush1.msra.mxu0 0.0
  %7358 = vmatprep.subr.mxu0 0.0
  %7359 = vmatpush1.msra.mxu0 0.0
  %7360 = vmatprep.subr.mxu0 0.0
  %7361 = vmatpush1.msra.mxu0 0.0
  %7362 = vmatprep.subr.mxu0 0.0
  %7363 = vmatpush1.msra.mxu0 0.0
  %7364 = vmatprep.subr.mxu0 0.0
  %7365 = vmatpush1.msra.mxu0 0.0
  %7366 = vmatprep.subr.mxu0 0.0
  %7367 = vmatpush1.msra.mxu0 0.0
  %7368 = vmatprep.subr.mxu0 0.0
  %7369 = vmatpush1.msra.mxu0 0.0
  %7370 = vmatprep.mubr.f32.mxu0 0.0
  %7371 = vmatmul.mubr.f32.gmra.mrb[0].mxu0 %v7301
  %v7372 = vpop.f32.mrb[0].mxu0
  %v7373 = vadd.f32 %v7299, %v7372
  %v7374 = vpop.f32.mrb[0].mxu0
  %7375 = vmatprep.mubr.f32.mxu0 0.0
  %7376 = vmatmul.mubr.f32.gmra.mrb[0].mxu0 %v7304
  %v7377 = vpop.f32.mrb[0].mxu0
  %v7378 = vadd.f32 %v7299, %v7377
  %v7379 = vpop.f32.mrb[0].mxu0
  %7380 = vdwg.mxu0
  %v7381 = vadd.f32 %v6353, %v7373
  %v7382 = vadd.f32 %v6354, %v7378
  %v7383 = vld [vmem:[%s19 + $0x19] sm:$0x1]
  %v7384 = vld [vmem:[%s19 + $0x1a] sm:$0x1]
  %v7385 = vsel %vm293, %v7381, 0.0
  %7386 = vadd.xlane.f32.xlu0 %v7385
  %v7387 = vpop.xlane.xlu0 %7386
  %v7388 = vsel %vm293, %v7382, 0.0
  %7389 = vadd.xlane.f32.xlu0 %v7388
  %v7390 = vpop.xlane.xlu0 %7389
  %v7391 = vmul.f32 %v7387, %v1204
  %v7392 = vmul.f32 %v7390, %v1204
  %v7393 = vsub.f32 %v7381, %v7391
  %v7394 = vsub.f32 %v7382, %v7392
  %v7395 = vmul.f32 %v7393, %v7393
  %v7396 = vmul.f32 %v7394, %v7394
  %v7397 = vsel %vm293, %v7395, 0.0
  %7398 = vadd.xlane.f32.xlu0 %v7397
  %v7399 = vpop.xlane.xlu0 %7398
  %v7400 = vsel %vm293, %v7396, 0.0
  %7401 = vadd.xlane.f32.xlu0 %v7400
  %v7402 = vpop.xlane.xlu0 %7401
  %v7403 = vmul.f32 %v7399, %v1204
  %v7404 = vmul.f32 %v7402, %v1204
  %v7405 = vadd.f32 %v7403, 1e-05
  %v7406 = vadd.f32 %v7404, 1e-05
  %v7407 = vrsqrt.pop %v7405
  %v7408 = vrsqrt.pop %v7406
  %v7409 = vmul.f32 %v7393, %v7407
  %v7410 = vmul.f32 %v7394, %v7408
  %v7411 = vlaneseq
  %v7412 = vshrl.u32 %v7411, 7
  %v7413 = vsub.s32 0, %v7412
  %v7414 = vrot.slane %v7383, %v7413
  %v7415 = vmul.f32 %v7409, %v7414
  %v7416 = vmul.f32 %v7410, %v7414
  %v7417 = vlaneseq
  %v7418 = vshrl.u32 %v7417, 7
  %v7419 = vsub.s32 0, %v7418
  %v7420 = vrot.slane %v7384, %v7419
  %v7421 = vadd.f32 %v7415, %v7420
  %v7422 = vadd.f32 %v7416, %v7420
  %s7423 = scalar_lea.vmem %s17, 32
  %v7424 = vld [vmem:[%s7423] sm:$0xff]
  %v7425 = vld [vmem:[%s7423 + $0x8] sm:$0xff]
  %v7426 = vld [vmem:[%s7423 + $0x10] sm:$0xff]
  %v7427 = vld [vmem:[%s7423 + $0x18] sm:$0xff]
  %v7428 = vld [vmem:[%s20 + $0x1] sm:$0x1]
  %v7429 = vlaneseq
  %v7430 = vshrl.u32 %v7429, 7
  %v7431 = vsub.s32 0, %v7430
  %v7432 = vrot.slane %v7428, %v7431
  %v7434 = vsel %vm293, %v7421, 0
  %v7437 = vsel %vm293, %v7422, 0
  %7439 = vmatprep.subr.mxu0 0.0
  %7440 = vmatpush1.msra.mxu0 %v7424
  %7441 = vmatprep.subr.mxu0 0.0
  %7442 = vmatpush1.msra.mxu0 %v7425
  %7443 = vmatprep.subr.mxu0 0.0
  %7444 = vmatpush1.msra.mxu0 %v7426
  %7445 = vmatprep.subr.mxu0 0.0
  %7446 = vmatpush1.msra.mxu0 %v7427
  %7447 = vmatprep.subr.mxu0 0.0
  %7448 = vmatpush1.msra.mxu0 0.0
  %7449 = vmatprep.subr.mxu0 0.0
  %7450 = vmatpush1.msra.mxu0 0.0
  %7451 = vmatprep.subr.mxu0 0.0
  %7452 = vmatpush1.msra.mxu0 0.0
  %7453 = vmatprep.subr.mxu0 0.0
  %7454 = vmatpush1.msra.mxu0 0.0
  %7455 = vmatprep.subr.mxu0 0.0
  %7456 = vmatpush1.msra.mxu0 0.0
  %7457 = vmatprep.subr.mxu0 0.0
  %7458 = vmatpush1.msra.mxu0 0.0
  %7459 = vmatprep.subr.mxu0 0.0
  %7460 = vmatpush1.msra.mxu0 0.0
  %7461 = vmatprep.subr.mxu0 0.0
  %7462 = vmatpush1.msra.mxu0 0.0
  %7463 = vmatprep.subr.mxu0 0.0
  %7464 = vmatpush1.msra.mxu0 0.0
  %7465 = vmatprep.subr.mxu0 0.0
  %7466 = vmatpush1.msra.mxu0 0.0
  %7467 = vmatprep.subr.mxu0 0.0
  %7468 = vmatpush1.msra.mxu0 0.0
  %7469 = vmatprep.subr.mxu0 0.0
  %7470 = vmatpush1.msra.mxu0 0.0
  %7471 = vmatprep.subr.mxu0 0.0
  %7472 = vmatpush1.msra.mxu0 0.0
  %7473 = vmatprep.subr.mxu0 0.0
  %7474 = vmatpush1.msra.mxu0 0.0
  %7475 = vmatprep.subr.mxu0 0.0
  %7476 = vmatpush1.msra.mxu0 0.0
  %7477 = vmatprep.subr.mxu0 0.0
  %7478 = vmatpush1.msra.mxu0 0.0
  %7479 = vmatprep.subr.mxu0 0.0
  %7480 = vmatpush1.msra.mxu0 0.0
  %7481 = vmatprep.subr.mxu0 0.0
  %7482 = vmatpush1.msra.mxu0 0.0
  %7483 = vmatprep.subr.mxu0 0.0
  %7484 = vmatpush1.msra.mxu0 0.0
  %7485 = vmatprep.subr.mxu0 0.0
  %7486 = vmatpush1.msra.mxu0 0.0
  %7487 = vmatprep.subr.mxu0 0.0
  %7488 = vmatpush1.msra.mxu0 0.0
  %7489 = vmatprep.subr.mxu0 0.0
  %7490 = vmatpush1.msra.mxu0 0.0
  %7491 = vmatprep.subr.mxu0 0.0
  %7492 = vmatpush1.msra.mxu0 0.0
  %7493 = vmatprep.subr.mxu0 0.0
  %7494 = vmatpush1.msra.mxu0 0.0
  %7495 = vmatprep.subr.mxu0 0.0
  %7496 = vmatpush1.msra.mxu0 0.0
  %7497 = vmatprep.subr.mxu0 0.0
  %7498 = vmatpush1.msra.mxu0 0.0
  %7499 = vmatprep.subr.mxu0 0.0
  %7500 = vmatpush1.msra.mxu0 0.0
  %7501 = vmatprep.subr.mxu0 0.0
  %7502 = vmatpush1.msra.mxu0 0.0
  %7503 = vmatprep.mubr.f32.mxu0 0.0
  %7504 = vmatmul.mubr.f32.gmra.mrb[0].mxu0 %v7434
  %v7505 = vpop.f32.mrb[0].mxu0
  %v7506 = vadd.f32 %v7432, %v7505
  %v7507 = vpop.f32.mrb[0].mxu0
  %7508 = vmatprep.mubr.f32.mxu0 0.0
  %7509 = vmatmul.mubr.f32.gmra.mrb[0].mxu0 %v7437
  %v7510 = vpop.f32.mrb[0].mxu0
  %v7511 = vadd.f32 %v7432, %v7510
  %v7512 = vpop.f32.mrb[0].mxu0
  %7513 = vdwg.mxu0
  %v7514 = vmax.f32 %v7506, 0.0
  %v7515 = vmax.f32 %v7511, 0.0
  %s7516 = scalar_lea.vmem %s18, 64
  %v7517 = vld [vmem:[%s7516] sm:$0xff]
  %v7518 = vld [vmem:[%s7516 + $0x8] sm:$0xff]
  %v7519 = vld [vmem:[%s7516 + $0x10] sm:$0xff]
  %v7520 = vld [vmem:[%s7516 + $0x18] sm:$0xff]
  %v7521 = vld [vmem:[%s7516 + $0x20] sm:$0xff]
  %v7522 = vld [vmem:[%s7516 + $0x28] sm:$0xff]
  %v7523 = vld [vmem:[%s7516 + $0x30] sm:$0xff]
  %v7524 = vld [vmem:[%s7516 + $0x38] sm:$0xff]
  %v7525 = vld [vmem:[%s19 + $0x1b] sm:$0x1]
  %v7526 = vlaneseq
  %v7527 = vshrl.u32 %v7526, 7
  %v7528 = vsub.s32 0, %v7527
  %v7529 = vrot.slane %v7525, %v7528
  %v7531 = vsel %vm802, %v7514, 0
  %v7534 = vsel %vm802, %v7515, 0
  %7536 = vmatprep.subr.mxu0 0.0
  %7537 = vmatpush1.msra.mxu0 %v7517
  %7538 = vmatprep.subr.mxu0 0.0
  %7539 = vmatpush1.msra.mxu0 %v7518
  %7540 = vmatprep.subr.mxu0 0.0
  %7541 = vmatpush1.msra.mxu0 %v7519
  %7542 = vmatprep.subr.mxu0 0.0
  %7543 = vmatpush1.msra.mxu0 %v7520
  %7544 = vmatprep.subr.mxu0 0.0
  %7545 = vmatpush1.msra.mxu0 %v7521
  %7546 = vmatprep.subr.mxu0 0.0
  %7547 = vmatpush1.msra.mxu0 %v7522
  %7548 = vmatprep.subr.mxu0 0.0
  %7549 = vmatpush1.msra.mxu0 %v7523
  %7550 = vmatprep.subr.mxu0 0.0
  %7551 = vmatpush1.msra.mxu0 %v7524
  %7552 = vmatprep.subr.mxu0 0.0
  %7553 = vmatpush1.msra.mxu0 0.0
  %7554 = vmatprep.subr.mxu0 0.0
  %7555 = vmatpush1.msra.mxu0 0.0
  %7556 = vmatprep.subr.mxu0 0.0
  %7557 = vmatpush1.msra.mxu0 0.0
  %7558 = vmatprep.subr.mxu0 0.0
  %7559 = vmatpush1.msra.mxu0 0.0
  %7560 = vmatprep.subr.mxu0 0.0
  %7561 = vmatpush1.msra.mxu0 0.0
  %7562 = vmatprep.subr.mxu0 0.0
  %7563 = vmatpush1.msra.mxu0 0.0
  %7564 = vmatprep.subr.mxu0 0.0
  %7565 = vmatpush1.msra.mxu0 0.0
  %7566 = vmatprep.subr.mxu0 0.0
  %7567 = vmatpush1.msra.mxu0 0.0
  %7568 = vmatprep.subr.mxu0 0.0
  %7569 = vmatpush1.msra.mxu0 0.0
  %7570 = vmatprep.subr.mxu0 0.0
  %7571 = vmatpush1.msra.mxu0 0.0
  %7572 = vmatprep.subr.mxu0 0.0
  %7573 = vmatpush1.msra.mxu0 0.0
  %7574 = vmatprep.subr.mxu0 0.0
  %7575 = vmatpush1.msra.mxu0 0.0
  %7576 = vmatprep.subr.mxu0 0.0
  %7577 = vmatpush1.msra.mxu0 0.0
  %7578 = vmatprep.subr.mxu0 0.0
  %7579 = vmatpush1.msra.mxu0 0.0
  %7580 = vmatprep.subr.mxu0 0.0
  %7581 = vmatpush1.msra.mxu0 0.0
  %7582 = vmatprep.subr.mxu0 0.0
  %7583 = vmatpush1.msra.mxu0 0.0
  %7584 = vmatprep.subr.mxu0 0.0
  %7585 = vmatpush1.msra.mxu0 0.0
  %7586 = vmatprep.subr.mxu0 0.0
  %7587 = vmatpush1.msra.mxu0 0.0
  %7588 = vmatprep.subr.mxu0 0.0
  %7589 = vmatpush1.msra.mxu0 0.0
  %7590 = vmatprep.subr.mxu0 0.0
  %7591 = vmatpush1.msra.mxu0 0.0
  %7592 = vmatprep.subr.mxu0 0.0
  %7593 = vmatpush1.msra.mxu0 0.0
  %7594 = vmatprep.subr.mxu0 0.0
  %7595 = vmatpush1.msra.mxu0 0.0
  %7596 = vmatprep.subr.mxu0 0.0
  %7597 = vmatpush1.msra.mxu0 0.0
  %7598 = vmatprep.subr.mxu0 0.0
  %7599 = vmatpush1.msra.mxu0 0.0
  %7600 = vmatprep.mubr.f32.mxu0 0.0
  %7601 = vmatmul.mubr.f32.gmra.mrb[0].mxu0 %v7531
  %v7602 = vpop.f32.mrb[0].mxu0
  %v7603 = vadd.f32 %v7529, %v7602
  %v7604 = vpop.f32.mrb[0].mxu0
  %7605 = vmatprep.mubr.f32.mxu0 0.0
  %7606 = vmatmul.mubr.f32.gmra.mrb[0].mxu0 %v7534
  %v7607 = vpop.f32.mrb[0].mxu0
  %v7608 = vadd.f32 %v7529, %v7607
  %v7609 = vpop.f32.mrb[0].mxu0
  %7610 = vdwg.mxu0
  %v7611 = vadd.f32 %v7421, %v7603
  %v7612 = vadd.f32 %v7422, %v7608
  %v7613 = vld [vmem:[%s19 + $0x1c] sm:$0x1]
  %v7614 = vld [vmem:[%s19 + $0x1d] sm:$0x1]
  %v7615 = vsel %vm293, %v7611, 0.0
  %7616 = vadd.xlane.f32.xlu0 %v7615
  %v7617 = vpop.xlane.xlu0 %7616
  %v7618 = vsel %vm293, %v7612, 0.0
  %7619 = vadd.xlane.f32.xlu0 %v7618
  %v7620 = vpop.xlane.xlu0 %7619
  %v7621 = vmul.f32 %v7617, %v1204
  %v7622 = vmul.f32 %v7620, %v1204
  %v7623 = vsub.f32 %v7611, %v7621
  %v7624 = vsub.f32 %v7612, %v7622
  %v7625 = vmul.f32 %v7623, %v7623
  %v7626 = vmul.f32 %v7624, %v7624
  %v7627 = vsel %vm293, %v7625, 0.0
  %7628 = vadd.xlane.f32.xlu0 %v7627
  %v7629 = vpop.xlane.xlu0 %7628
  %v7630 = vsel %vm293, %v7626, 0.0
  %7631 = vadd.xlane.f32.xlu0 %v7630
  %v7632 = vpop.xlane.xlu0 %7631
  %v7633 = vmul.f32 %v7629, %v1204
  %v7634 = vmul.f32 %v7632, %v1204
  %v7635 = vadd.f32 %v7633, 1e-05
  %v7636 = vadd.f32 %v7634, 1e-05
  %v7637 = vrsqrt.pop %v7635
  %v7638 = vrsqrt.pop %v7636
  %v7639 = vmul.f32 %v7623, %v7637
  %v7640 = vmul.f32 %v7624, %v7638
  %v7641 = vlaneseq
  %v7642 = vshrl.u32 %v7641, 7
  %v7643 = vsub.s32 0, %v7642
  %v7644 = vrot.slane %v7613, %v7643
  %v7645 = vmul.f32 %v7639, %v7644
  %v7646 = vmul.f32 %v7640, %v7644
  %v7647 = vlaneseq
  %v7648 = vshrl.u32 %v7647, 7
  %v7649 = vsub.s32 0, %v7648
  %v7650 = vrot.slane %v7614, %v7649
  %v7651 = vadd.f32 %v7645, %v7650
  %v7652 = vadd.f32 %v7646, %v7650
  %v7653 = vld [vmem:[%s21] sm:$0xff]
  %v7654 = vld [vmem:[%s21 + $0x8] sm:$0xff]
  %v7655 = vld [vmem:[%s21 + $0x10] sm:$0xff]
  %v7656 = vld [vmem:[%s21 + $0x18] sm:$0xff]
  %v7657 = vld [vmem:[%s22] sm:$0x1]
  %v7659 = vlaneseq
  %v7660 = vshrl.u32 %v7659, 7
  %v7661 = vsub.s32 0, %v7660
  %v7662 = vrot.slane %v7657, %v7661
  %v7665 = vsel %vm293, %v7651, 0
  %v7668 = vsel %vm293, %v7652, 0
  %7670 = vmatprep.subr.mxu0 0.0
  %7671 = vmatpush1.msra.mxu0 %v7653
  %7672 = vmatprep.subr.mxu0 0.0
  %7673 = vmatpush1.msra.mxu0 %v7654
  %7674 = vmatprep.subr.mxu0 0.0
  %7675 = vmatpush1.msra.mxu0 %v7655
  %7676 = vmatprep.subr.mxu0 0.0
  %7677 = vmatpush1.msra.mxu0 %v7656
  %7678 = vmatprep.subr.mxu0 0.0
  %7679 = vmatpush1.msra.mxu0 0.0
  %7680 = vmatprep.subr.mxu0 0.0
  %7681 = vmatpush1.msra.mxu0 0.0
  %7682 = vmatprep.subr.mxu0 0.0
  %7683 = vmatpush1.msra.mxu0 0.0
  %7684 = vmatprep.subr.mxu0 0.0
  %7685 = vmatpush1.msra.mxu0 0.0
  %7686 = vmatprep.subr.mxu0 0.0
  %7687 = vmatpush1.msra.mxu0 0.0
  %7688 = vmatprep.subr.mxu0 0.0
  %7689 = vmatpush1.msra.mxu0 0.0
  %7690 = vmatprep.subr.mxu0 0.0
  %7691 = vmatpush1.msra.mxu0 0.0
  %7692 = vmatprep.subr.mxu0 0.0
  %7693 = vmatpush1.msra.mxu0 0.0
  %7694 = vmatprep.subr.mxu0 0.0
  %7695 = vmatpush1.msra.mxu0 0.0
  %7696 = vmatprep.subr.mxu0 0.0
  %7697 = vmatpush1.msra.mxu0 0.0
  %7698 = vmatprep.subr.mxu0 0.0
  %7699 = vmatpush1.msra.mxu0 0.0
  %7700 = vmatprep.subr.mxu0 0.0
  %7701 = vmatpush1.msra.mxu0 0.0
  %7702 = vmatprep.subr.mxu0 0.0
  %7703 = vmatpush1.msra.mxu0 0.0
  %7704 = vmatprep.subr.mxu0 0.0
  %7705 = vmatpush1.msra.mxu0 0.0
  %7706 = vmatprep.subr.mxu0 0.0
  %7707 = vmatpush1.msra.mxu0 0.0
  %7708 = vmatprep.subr.mxu0 0.0
  %7709 = vmatpush1.msra.mxu0 0.0
  %7710 = vmatprep.subr.mxu0 0.0
  %7711 = vmatpush1.msra.mxu0 0.0
  %7712 = vmatprep.subr.mxu0 0.0
  %7713 = vmatpush1.msra.mxu0 0.0
  %7714 = vmatprep.subr.mxu0 0.0
  %7715 = vmatpush1.msra.mxu0 0.0
  %7716 = vmatprep.subr.mxu0 0.0
  %7717 = vmatpush1.msra.mxu0 0.0
  %7718 = vmatprep.subr.mxu0 0.0
  %7719 = vmatpush1.msra.mxu0 0.0
  %7720 = vmatprep.subr.mxu0 0.0
  %7721 = vmatpush1.msra.mxu0 0.0
  %7722 = vmatprep.subr.mxu0 0.0
  %7723 = vmatpush1.msra.mxu0 0.0
  %7724 = vmatprep.subr.mxu0 0.0
  %7725 = vmatpush1.msra.mxu0 0.0
  %7726 = vmatprep.subr.mxu0 0.0
  %7727 = vmatpush1.msra.mxu0 0.0
  %7728 = vmatprep.subr.mxu0 0.0
  %7729 = vmatpush1.msra.mxu0 0.0
  %7730 = vmatprep.subr.mxu0 0.0
  %7731 = vmatpush1.msra.mxu0 0.0
  %7732 = vmatprep.subr.mxu0 0.0
  %7733 = vmatpush1.msra.mxu0 0.0
  %7734 = vmatprep.mubr.f32.mxu0 0.0
  %7735 = vmatmul.mubr.f32.gmra.mrb[0].mxu0 %v7665
  %v7736 = vpop.f32.mrb[0].mxu0
  %v7737 = vadd.f32 %v7662, %v7736
  %v7738 = vpop.f32.mrb[0].mxu0
  %7739 = vmatprep.mubr.f32.mxu0 0.0
  %7740 = vmatmul.mubr.f32.gmra.mrb[0].mxu0 %v7668
  %v7741 = vpop.f32.mrb[0].mxu0
  %v7742 = vadd.f32 %v7662, %v7741
  %v7743 = vpop.f32.mrb[0].mxu0
  %7744 = vdwg.mxu0
  %7745 = vst [vmem:[%s23] sm:$0xff] %v7737
  %7746 = vst [vmem:[%s23 + $0x8] sm:$0xff] %v7742
  // Predicated region
  $region94: #{transformer_forward.1} parent=0 // pred_check
    _
  $region95: #{transformer_forward.1} parent=0 // pred_check_branch
    %7748 = sbr.rel (0) target = $region97
  $region96: #{transformer_forward.1} parent=0 // pred_region
    _
  $region97: #{transformer_forward.1} parent=0 // pred_fallthru
    _
  // Predicated region
  $region98: #{transformer_forward.1} parent=0 // pred_check
    _
  $region99: #{transformer_forward.1} parent=0 // pred_check_branch
    %7750 = sbr.rel (0) target = $region101
  $region100: #{transformer_forward.1} parent=0 // pred_region
    _
  $region101: #{transformer_forward.1} parent=0 // pred_fallthru
    _

</llo_original>
